<compile_context>
chip_gen: v5e
topology: v5e:2x2
jax: 0.10.0
libtpu: 0.0.40
codegen_flags: <defaults>
</compile_context>

<pallas_src>
import functools
import math

import jax
import jax.numpy as jnp
from jax.experimental import pallas as pl
from jax.experimental.pallas import tpu as pltpu

# ----------------------------- small config ---------------------------------
BS = 2            # batch
IMG_RES = 32      # image_res (small)
PATCH = 16        # patch_size (as in module)
IN_CH = 3
V_DIM = 32        # vision_width (== text hidden, as in real ALBEF)
V_DEPTH = 2       # ViT depth (shrunk from 12)
V_HEADS = 4
MLP_RATIO = 4
T_DIM = 32        # BERT hidden_size
T_LAYERS = 4      # num_hidden_layers (shrunk)
FUSION_LAYER = 2  # fusion_layer
T_HEADS = 4
T_INTER = 4 * T_DIM
VOCAB = 64
MAX_POS = 16
SEQ = 8
EMBED_DIM = 16    # embed_dim (projection dim)
TEMP = 0.07

NEG_MASK = -10000.0
_VMEM_LIMIT = 32 * 1024 * 1024

_PAR = pltpu.CompilerParams(dimension_semantics=("parallel",),
                            vmem_limit_bytes=_VMEM_LIMIT)


# ----------------------------- BlockSpec helpers -----------------------------
def _rep_spec(a):
    """Whole array as one block, identical at every grid step (weights/tables)."""
    nd = a.ndim
    return pl.BlockSpec(a.shape, lambda b, _nd=nd: (0,) * _nd)


def _row_spec(tail):
    """One batch row per grid step; full extent on the remaining dims."""
    nz = len(tail)
    return pl.BlockSpec((1,) + tuple(tail), lambda b, _nz=nz: (b,) + (0,) * _nz)


# ----------------------------- in-kernel math --------------------------------
def _layernorm(x, g, b, eps):
    mu = jnp.mean(x, axis=-1, keepdims=True)
    var = jnp.mean(jnp.square(x - mu), axis=-1, keepdims=True)
    return (x - mu) * jax.lax.rsqrt(var + eps) * g + b


def _dot_bf16(a, b):
    """MXU matmul with bf16 operands, f32 accumulation."""
    return jnp.dot(a.astype(jnp.bfloat16), b.astype(jnp.bfloat16),
                   preferred_element_type=jnp.float32)


def _bcast_heads(x, n_heads):
    """(S, D) f32 -> (H, S, D) bf16, cast hoisted once per use site."""
    return jnp.broadcast_to(x.astype(jnp.bfloat16)[None], (n_heads,) + x.shape)


def _heads_dot(x_bh, w_h, b_h):
    """Batched-over-heads projection: (H,S,Din)@(H,Din,Dout) + (H,1,Dout)."""
    y = jax.lax.dot_general(x_bh, w_h,
                            (((2,), (1,)), ((0,), (0,))),
                            preferred_element_type=jnp.float32)
    return y + b_h


def _attn_core(q_h, k_h, v_h, mask_add, scale):
    """Batched per-head attention.  q_h:(H,Sq,dh), k_h/v_h:(H,Sk,dh)."""
    s = jax.lax.dot_general(q_h.astype(jnp.bfloat16), k_h.astype(jnp.bfloat16),
                            (((2,), (2,)), ((0,), (0,))),
                            preferred_element_type=jnp.float32) * scale
    if mask_add is not None:
        s = s + mask_add                       # (1,1,Sk) broadcast over (H,Sq,Sk)
    s = s - jnp.max(s, axis=-1, keepdims=True)
    p = jnp.exp(s)
    p = p * pl.reciprocal(jnp.sum(p, axis=-1, keepdims=True), approx=True)
    return jax.lax.dot_general(p.astype(jnp.bfloat16), v_h.astype(jnp.bfloat16),
                               (((2,), (1,)), ((0,), (0,))),
                               preferred_element_type=jnp.float32)   # (H,Sq,dh)


def _merge_heads(ctx_h, wo_h, bo):
    """One batched (H,Sq,dh)@(H,dh,D) + sum over heads == concat-then-project."""
    out = jax.lax.dot_general(ctx_h.astype(jnp.bfloat16), wo_h,
                              (((2,), (1,)), ((0,), (0,))),
                              preferred_element_type=jnp.float32)    # (H,Sq,D)
    return jnp.sum(out, axis=0) + bo                                 # (Sq,D)


# ----------------------------- Pallas kernels --------------------------------
def _vit_stack_kernel(patches_ref, pw_ref, pb_ref, cls_ref, pos_ref,
                      ln1g_ref, ln1b_ref, wqkv_ref, bqkv_ref, wo_ref, bo_ref,
                      ln2g_ref, ln2b_ref, wfc1_ref, bfc1_ref, wfc2_ref, bfc2_ref,
                      lnfg_ref, lnfb_ref, o_ref, *, n_heads, depth):
    # Patch embed + cls token + pos embed, built in-register (single final store).
    pe = _dot_bf16(patches_ref[0], pw_ref[...]) + pb_ref[...]        # (N, D)
    x = jnp.concatenate([cls_ref[0], pe], axis=0) + pos_ref[0]       # (N+1, D)
    d = x.shape[-1]
    dh = d // n_heads
    scale = 1.0 / math.sqrt(dh)
    for l in range(depth):                                           # unrolled
        h = _layernorm(x, ln1g_ref[l], ln1b_ref[l], 1e-6)
        hb = _bcast_heads(h, n_heads)
        qkv = _heads_dot(hb, wqkv_ref[l], bqkv_ref[l]).astype(jnp.bfloat16)
        ctx = _attn_core(qkv[:, :, :dh], qkv[:, :, dh:2 * dh], qkv[:, :, 2 * dh:],
                         None, scale)
        x = x + _merge_heads(ctx, wo_ref[l], bo_ref[l])
        h = _layernorm(x, ln2g_ref[l], ln2b_ref[l], 1e-6)
        # TODO(synk): PyTorch nn.GELU / BERT "gelu" are erf-exact; tanh approx used.
        h = jax.nn.gelu(_dot_bf16(h, wfc1_ref[l]) + bfc1_ref[l], approximate=True)
        x = x + _dot_bf16(h, wfc2_ref[l]) + bfc2_ref[l]
    o_ref[0] = _layernorm(x, lnfg_ref[...], lnfb_ref[...], 1e-6)


def _bert_text_stack_kernel(emb_ref, mask_ref, elng_ref, elnb_ref,
                            wqkv_ref, bqkv_ref, wo_ref, bo_ref, alng_ref, alnb_ref,
                            wi_ref, bi_ref, wo2_ref, bo2_ref, olng_ref, olnb_ref,
                            o_ref, *, n_heads, depth):
    x = _layernorm(emb_ref[0], elng_ref[...], elnb_ref[...], 1e-12)  # embeddings LN
    mask_add = (1.0 - mask_ref[...]) * NEG_MASK                      # (1,1,S), hoisted
    d = x.shape[-1]
    dh = d // n_heads
    scale = 1.0 / math.sqrt(dh)
    for l in range(depth):
        xb = _bcast_heads(x, n_heads)
        qkv = _heads_dot(xb, wqkv_ref[l], bqkv_ref[l]).astype(jnp.bfloat16)
        ctx = _attn_core(qkv[:, :, :dh], qkv[:, :, dh:2 * dh], qkv[:, :, 2 * dh:],
                         mask_add, scale)
        attn = _merge_heads(ctx, wo_ref[l], bo_ref[l])
        x = _layernorm(attn + x, alng_ref[l], alnb_ref[l], 1e-12)
        h = jax.nn.gelu(_dot_bf16(x, wi_ref[l]) + bi_ref[l], approximate=True)
        h = _dot_bf16(h, wo2_ref[l]) + bo2_ref[l]
        x = _layernorm(h + x, olng_ref[l], olnb_ref[l], 1e-12)
    o_ref[0] = x


def _fusion_stack_itm_kernel(txt_ref, mask_ref, enc_ref,
                             wqkv_ref, bqkv_ref, wo_ref, bo_ref, alng_ref, alnb_ref,
                             wxq_ref, bxq_ref, wxkv_ref, bxkv_ref, wxo_ref, bxo_ref,
                             xlng_ref, xlnb_ref,
                             wi_ref, bi_ref, wo2_ref, bo2_ref, olng_ref, olnb_ref,
                             itmw_ref, itmb_ref,
                             logit_ref, nll_ref, *, n_heads, depth, bs):
    x = txt_ref[0]                                                   # (S, D)
    mask_add = (1.0 - mask_ref[...]) * NEG_MASK                      # (1,1,S)
    enc_b = _bcast_heads(enc_ref[0], n_heads)                        # hoisted, constant
    d = x.shape[-1]
    dh = d // n_heads
    scale = 1.0 / math.sqrt(dh)
    for l in range(depth):
        # self-attention
        xb = _bcast_heads(x, n_heads)
        qkv = _heads_dot(xb, wqkv_ref[l], bqkv_ref[l]).astype(jnp.bfloat16)
        ctx = _attn_core(qkv[:, :, :dh], qkv[:, :, dh:2 * dh], qkv[:, :, 2 * dh:],
                         mask_add, scale)
        x = _layernorm(_merge_heads(ctx, wo_ref[l], bo_ref[l]) + x,
                       alng_ref[l], alnb_ref[l], 1e-12)
        # cross-attention (image attention mask is all ones -> additive mask == 0)
        q_h = _heads_dot(_bcast_heads(x, n_heads), wxq_ref[l], bxq_ref[l])
        kv = _heads_dot(enc_b, wxkv_ref[l], bxkv_ref[l]).astype(jnp.bfloat16)
        ctx = _attn_core(q_h, kv[:, :, :dh], kv[:, :, dh:], None, scale)
        x = _layernorm(_merge_heads(ctx, wxo_ref[l], bxo_ref[l]) + x,
                       xlng_ref[l], xlnb_ref[l], 1e-12)
        # feed-forward
        h = jax.nn.gelu(_dot_bf16(x, wi_ref[l]) + bi_ref[l], approximate=True)
        h = _dot_bf16(h, wo2_ref[l]) + bo2_ref[l]
        x = _layernorm(h + x, olng_ref[l], olnb_ref[l], 1e-12)
    # --- fused ITM head + per-row cross-entropy epilogue ---
    cls = x[0:1, :]                                                  # (1, D)
    logits = jnp.dot(cls, itmw_ref[...],
                     preferred_element_type=jnp.float32) + itmb_ref[...]   # (1, 2)
    mx = jnp.max(logits, axis=-1, keepdims=True)
    lse = jnp.log(jnp.sum(jnp.exp(logits - mx), axis=-1, keepdims=True)) + mx
    logp = logits - lse
    label = (pl.program_id(0) < bs).astype(jnp.int32)                # [1]*bs + [0]*2bs
    col = jax.lax.broadcasted_iota(jnp.int32, (1, 2), 1)
    onehot = (col == label).astype(jnp.float32)
    nll = -jnp.sum(logp * onehot, axis=-1, keepdims=True)            # (1, 1)
    logit_ref[0] = logits
    nll_ref[0] = nll


def _ita_kernel(img_ref, txt_ref, wv_ref, bv_ref, wt_ref, bt_ref, invt_ref,
                sim_ref, loss_ref, *, bs):
    inv_t = invt_ref[0, 0]                                           # SMEM scalar

    def proj_norm(x, w, b):
        y = jnp.dot(x, w, preferred_element_type=jnp.float32) + b
        nrm = jnp.sqrt(jnp.sum(y * y, axis=-1, keepdims=True))
        return y * pl.reciprocal(jnp.maximum(nrm, 1e-12))

    vi = proj_norm(img_ref[...], wv_ref[...], bv_ref[...])           # (B, E)
    ti = proj_norm(txt_ref[...], wt_ref[...], bt_ref[...])           # (B, E)
    sim_i2t = jax.lax.dot_general(vi, ti, (((1,), (1,)), ((), ())),
                                  preferred_element_type=jnp.float32) * inv_t
    sim_t2i = jax.lax.dot_general(ti, vi, (((1,), (1,)), ((), ())),
                                  preferred_element_type=jnp.float32) * inv_t
    eye = (jax.lax.broadcasted_iota(jnp.int32, (bs, bs), 0)
           == jax.lax.broadcasted_iota(jnp.int32, (bs, bs), 1)).astype(jnp.float32)

    def nll_rows(m):
        mx = jnp.max(m, axis=-1, keepdims=True)
        lse = jnp.log(jnp.sum(jnp.exp(m - mx), axis=-1, keepdims=True)) + mx
        return lse - jnp.sum(m * eye, axis=-1, keepdims=True)        # (B, 1)

    loss = jnp.sum(nll_rows(sim_i2t) + nll_rows(sim_t2i),
                   axis=0, keepdims=True) * (0.5 / bs)               # (1, 1)
    sim_ref[...] = sim_i2t
    loss_ref[...] = loss


# ----------------------------- pallas_call wrappers ---------------------------
def vit_encode(vp, patches):
    B, N, CPP = patches.shape
    args = (patches, vp['patch_w'], vp['patch_b'], vp['cls'], vp['pos'],
            vp['ln1_g'], vp['ln1_b'], vp['wqkv'], vp['bqkv'], vp['wo'], vp['bo'],
            vp['ln2_g'], vp['ln2_b'], vp['wfc1'], vp['bfc1'], vp['wfc2'], vp['bfc2'],
            vp['lnf_g'], vp['lnf_b'])
    return pl.pallas_call(
        functools.partial(_vit_stack_kernel, n_heads=V_HEADS, depth=V_DEPTH),
        grid=(B,),
        in_specs=[_row_spec((N, CPP))] + [_rep_spec(a) for a in args[1:]],
        out_specs=_row_spec((N + 1, V_DIM)),
        out_shape=jax.ShapeDtypeStruct((B, N + 1, V_DIM), jnp.float32),
        compiler_params=_PAR,
    )(*args)


def bert_text_encode(bp, emb, mask3):
    B, S, D = emb.shape
    st = bp['self_stack']
    args = (emb, mask3, bp['emb_ln_g'], bp['emb_ln_b'],
            st['wqkv'], st['bqkv'], st['wo'], st['bo'],
            st['attn_ln_g'], st['attn_ln_b'],
            st['wi'], st['bi'], st['wo2'], st['bo2'],
            st['out_ln_g'], st['out_ln_b'])
    return pl.pallas_call(
        functools.partial(_bert_text_stack_kernel, n_heads=T_HEADS,
                          depth=FUSION_LAYER),
        grid=(B,),
        in_specs=[_row_spec((S, D)), _row_spec((1, S))]
                 + [_rep_spec(a) for a in args[2:]],
        out_specs=_row_spec((S, D)),
        out_shape=jax.ShapeDtypeStruct((B, S, D), jnp.float32),
        compiler_params=_PAR,
    )(*args)


def fusion_encode_itm(bp, itm, text_all, mask_all3, enc_all, bs):
    M, S, D = text_all.shape
    Sv, Dv = enc_all.shape[1], enc_all.shape[2]
    fs = bp['fusion_stack']
    args = (text_all, mask_all3, enc_all,
            fs['wqkv'], fs['bqkv'], fs['wo'], fs['bo'],
            fs['attn_ln_g'], fs['attn_ln_b'],
            fs['wxq'], fs['bxq'], fs['wxkv'], fs['bxkv'], fs['wxo'], fs['bxo'],
            fs['x_ln_g'], fs['x_ln_b'],
            fs['wi'], fs['bi'], fs['wo2'], fs['bo2'],
            fs['out_ln_g'], fs['out_ln_b'],
            itm['w'], itm['b'])
    logits, nll = pl.pallas_call(
        functools.partial(_fusion_stack_itm_kernel, n_heads=T_HEADS,
                          depth=T_LAYERS - FUSION_LAYER, bs=bs),
        grid=(M,),
        in_specs=[_row_spec((S, D)), _row_spec((1, S)), _row_spec((Sv, Dv))]
                 + [_rep_spec(a) for a in args[3:]],
        out_specs=(_row_spec((1, 2)), _row_spec((1, 1))),
        out_shape=(jax.ShapeDtypeStruct((M, 1, 2), jnp.float32),
                   jax.ShapeDtypeStruct((M, 1, 1), jnp.float32)),
        compiler_params=_PAR,
    )(*args)
    return logits.reshape(M, 2), nll.reshape(M)


def ita_head(img_cls, txt_cls, vproj, tproj, inv_temp):
    B = img_cls.shape[0]
    args = (img_cls, txt_cls, vproj['w'], vproj['b'], tproj['w'], tproj['b'], inv_temp)
    sim, loss = pl.pallas_call(
        functools.partial(_ita_kernel, bs=B),
        grid=(1,),
        in_specs=[_rep_spec(a) for a in args[:-1]]
                 + [pl.BlockSpec(memory_space=pltpu.MemorySpace.SMEM)],
        out_specs=(pl.BlockSpec((B, B), lambda i: (0, 0)),
                   pl.BlockSpec((1, 1), lambda i: (0, 0))),
        out_shape=(jax.ShapeDtypeStruct((B, B), jnp.float32),
                   jax.ShapeDtypeStruct((1, 1), jnp.float32)),
        compiler_params=pltpu.CompilerParams(
            dimension_semantics=("arbitrary",), vmem_limit_bytes=_VMEM_LIMIT),
    )(*args)
    return sim, loss[0, 0]


# ----------------------------- parameter init --------------------------------
def _nrm(key, shape, dtype=jnp.float32, std=0.02):
    return (jax.random.normal(key, shape, jnp.float32) * std).astype(dtype)


def init_vit(key):
    n_patches = (IMG_RES // PATCH) ** 2
    dh = V_DIM // V_HEADS
    L = V_DEPTH
    ks = jax.random.split(key, 7)
    return {
        'patch_w': _nrm(ks[0], (IN_CH * PATCH * PATCH, V_DIM), jnp.bfloat16),
        'patch_b': jnp.zeros((1, V_DIM), jnp.float32),
        'cls': _nrm(ks[1], (1, 1, V_DIM)),
        'pos': _nrm(ks[2], (1, n_patches + 1, V_DIM)),
        'ln1_g': jnp.ones((L, 1, V_DIM), jnp.float32),
        'ln1_b': jnp.zeros((L, 1, V_DIM), jnp.float32),
        'wqkv': _nrm(ks[3], (L, V_HEADS, V_DIM, 3 * dh), jnp.bfloat16),
        'bqkv': jnp.zeros((L, V_HEADS, 1, 3 * dh), jnp.float32),
        'wo': _nrm(ks[4], (L, V_HEADS, dh, V_DIM), jnp.bfloat16),
        'bo': jnp.zeros((L, 1, V_DIM), jnp.float32),
        'ln2_g': jnp.ones((L, 1, V_DIM), jnp.float32),
        'ln2_b': jnp.zeros((L, 1, V_DIM), jnp.float32),
        'wfc1': _nrm(ks[5], (L, V_DIM, MLP_RATIO * V_DIM), jnp.bfloat16),
        'bfc1': jnp.zeros((L, 1, MLP_RATIO * V_DIM), jnp.float32),
        'wfc2': _nrm(ks[6], (L, MLP_RATIO * V_DIM, V_DIM), jnp.bfloat16),
        'bfc2': jnp.zeros((L, 1, V_DIM), jnp.float32),
        'lnf_g': jnp.ones((1, V_DIM), jnp.float32),
        'lnf_b': jnp.zeros((1, V_DIM), jnp.float32),
    }


def _init_self_stack(key, n_layers, d, n_heads, inter):
    dh = d // n_heads
    ks = jax.random.split(key, 4)
    return {
        'wqkv': _nrm(ks[0], (n_layers, n_heads, d, 3 * dh), jnp.bfloat16),
        'bqkv': jnp.zeros((n_layers, n_heads, 1, 3 * dh), jnp.float32),
        'wo': _nrm(ks[1], (n_layers, n_heads, dh, d), jnp.bfloat16),
        'bo': jnp.zeros((n_layers, 1, d), jnp.float32),
        'attn_ln_g': jnp.ones((n_layers, 1, d), jnp.float32),
        'attn_ln_b': jnp.zeros((n_layers, 1, d), jnp.float32),
        'wi': _nrm(ks[2], (n_layers, d, inter), jnp.bfloat16),
        'bi': jnp.zeros((n_layers, 1, inter), jnp.float32),
        'wo2': _nrm(ks[3], (n_layers, inter, d), jnp.bfloat16),
        'bo2': jnp.zeros((n_layers, 1, d), jnp.float32),
        'out_ln_g': jnp.ones((n_layers, 1, d), jnp.float32),
        'out_ln_b': jnp.zeros((n_layers, 1, d), jnp.float32),
    }


def _init_fusion_stack(key, n_layers, d, dv, n_heads, inter):
    dh = d // n_heads
    ks = jax.random.split(key, 4)
    st = _init_self_stack(ks[0], n_layers, d, n_heads, inter)
    st.update({
        'wxq': _nrm(ks[1], (n_layers, n_heads, d, dh), jnp.bfloat16),
        'bxq': jnp.zeros((n_layers, n_heads, 1, dh), jnp.float32),
        'wxkv': _nrm(ks[2], (n_layers, n_heads, dv, 2 * dh), jnp.bfloat16),
        'bxkv': jnp.zeros((n_layers, n_heads, 1, 2 * dh), jnp.float32),
        'wxo': _nrm(ks[3], (n_layers, n_heads, dh, d), jnp.bfloat16),
        'bxo': jnp.zeros((n_layers, 1, d), jnp.float32),
        'x_ln_g': jnp.ones((n_layers, 1, d), jnp.float32),
        'x_ln_b': jnp.zeros((n_layers, 1, d), jnp.float32),
    })
    return st


def init_bert(key):
    ks = jax.random.split(key, 5)
    return {
        'word_emb': _nrm(ks[0], (VOCAB, T_DIM)),
        'pos_emb': _nrm(ks[1], (MAX_POS, T_DIM)),
        'type_emb': _nrm(ks[2], (2, T_DIM)),
        'emb_ln_g': jnp.ones((1, T_DIM), jnp.float32),
        'emb_ln_b': jnp.zeros((1, T_DIM), jnp.float32),
        'self_stack': _init_self_stack(ks[3], FUSION_LAYER, T_DIM, T_HEADS, T_INTER),
        'fusion_stack': _init_fusion_stack(ks[4], T_LAYERS - FUSION_LAYER,
                                           T_DIM, V_DIM, T_HEADS, T_INTER),
    }


def init_albef(key):
    ks = jax.random.split(key, 5)
    return {
        'vit': init_vit(ks[0]),
        'bert': init_bert(ks[1]),
        'vision_proj': {'w': _nrm(ks[2], (V_DIM, EMBED_DIM)),
                        'b': jnp.zeros((1, EMBED_DIM), jnp.float32)},
        'text_proj': {'w': _nrm(ks[3], (T_DIM, EMBED_DIM)),
                      'b': jnp.zeros((1, EMBED_DIM), jnp.float32)},
        'itm_head': {'w': _nrm(ks[4], (T_DIM, 2)),
                     'b': jnp.zeros((1, 2), jnp.float32)},
        'temp': jnp.asarray(TEMP, jnp.float32),
    }


# ----------------------------- model forward ---------------------------------
def albef_forward_train(params, image, text_input_ids, text_attention_mask, rng):
    bs = image.shape[0]
    seq = text_input_ids.shape[1]
    text_mask = text_attention_mask.astype(jnp.float32)
    mask3 = text_mask[:, None, :]

    # --- visual encoder (fused: patch-embed + blocks + final LN) ---
    # TODO(synk): Conv2d(k=s=PATCH) is done as a one-time plain-JAX patch flatten;
    # at production scale this should be strided in-kernel reads over NHWC.
    B, C, H, W = image.shape
    hp, wp = H // PATCH, W // PATCH
    patches = image.reshape(B, C, hp, PATCH, wp, PATCH).transpose(0, 2, 4, 1, 3, 5)
    patches = patches.reshape(B, hp * wp, C * PATCH * PATCH)
    image_embeds = vit_encode(params['vit'], patches)                  # (B, Sv, D)

    # --- text encoder (fused: embeddings LN + all self layers) ---
    # TODO(synk): embedding/attention dropout omitted (eval semantics).
    bp = params['bert']
    emb = (bp['word_emb'][text_input_ids]
           + bp['pos_emb'][jnp.arange(seq)][None, :, :]
           + bp['type_emb'][0][None, None, :])
    text_embeds = bert_text_encode(bp, emb, mask3)                     # (B, S, D)

    # --- fused projection heads + L2-norm + similarity + ITA loss ---
    inv_temp = jnp.reshape(1.0 / params['temp'], (1, 1)).astype(jnp.float32)
    sim_i2t, loss_ita = ita_head(image_embeds[:, 0, :], text_embeds[:, 0, :],
                                 params['vision_proj'], params['text_proj'], inv_temp)
    sim_t2i = sim_i2t.T

    # --- hard-negative mining (no-grad in torch) ---
    # TODO(synk): torch.multinomial on zero-diagonal softmax weights reproduced as
    # jax.random.categorical with the diagonal masked to -inf (same distribution).
    diag_mask = jnp.eye(bs, dtype=jnp.float32) * -1e9
    k1, k2 = jax.random.split(rng)
    hard_img_index = jax.random.categorical(k1, sim_t2i[:, :bs] + diag_mask, axis=-1)
    hard_text_index = jax.random.categorical(k2, sim_i2t[:, :bs] + diag_mask, axis=-1)

    image_embeds_neg = image_embeds[hard_img_index]
    text_embeds_neg = text_embeds[hard_text_index]
    text_mask_neg = text_mask[hard_text_index]

    # --- merged positive + negative fusion pass (grid = 3B) + fused ITM head ---
    # Row order: [pos (B) | (text, img_neg) (B) | (text_neg, img) (B)] which matches
    # torch.cat([output_pos CLS, output_neg CLS]) ordering exactly.
    text_all = jnp.concatenate([text_embeds, text_embeds, text_embeds_neg], axis=0)
    mask_all3 = jnp.concatenate([text_mask, text_mask, text_mask_neg],
                                axis=0)[:, None, :]
    enc_all = jnp.concatenate([image_embeds, image_embeds_neg, image_embeds], axis=0)

    vl_output, nll_rows = fusion_encode_itm(bp, params['itm_head'],
                                            text_all, mask_all3, enc_all, bs)
    loss_itm = jnp.mean(nll_rows)
    itm_labels = jnp.concatenate([jnp.ones((bs,), jnp.int32),
                                  jnp.zeros((2 * bs,), jnp.int32)], axis=0)
    loss = loss_ita + loss_itm
    return loss, vl_output, loss_ita, loss_itm, itm_labels


# ----------------------------- main -------------------------------------------
if __name__ == "__main__":
    params = init_albef(jax.random.PRNGKey(42))
    key = jax.random.PRNGKey(0)
    k_img, k_txt, k_rng = jax.random.split(key, 3)
    image = jax.random.normal(k_img, (BS, IN_CH, IMG_RES, IMG_RES), jnp.float32)
    text_input_ids = jax.random.randint(k_txt, (BS, SEQ), 0, VOCAB, dtype=jnp.int32)
    text_attention_mask = jnp.array([[1] * SEQ,
                                     [1] * (SEQ - 2) + [0, 0]], dtype=jnp.int32)

    fwd = jax.jit(albef_forward_train)
    outs = fwd(params, image, text_input_ids, text_attention_mask, k_rng)
    jax.block_until_ready(outs)
    print("KERNEL_OK")
</pallas_src>

<mosaic_0001>
module attributes {stable_mosaic.version = 11 : i64} {
  func.func @_vit_stack_kernel(%arg0: i32, %arg1: memref<1x4x768xf32, #tpu.memory_space<vmem>>, %arg2: memref<768x32xbf16, #tpu.memory_space<vmem>>, %arg3: memref<1x32xf32, #tpu.memory_space<vmem>>, %arg4: memref<1x1x32xf32, #tpu.memory_space<vmem>>, %arg5: memref<1x5x32xf32, #tpu.memory_space<vmem>>, %arg6: memref<2x1x32xf32, #tpu.memory_space<vmem>>, %arg7: memref<2x1x32xf32, #tpu.memory_space<vmem>>, %arg8: memref<2x4x32x24xbf16, #tpu.memory_space<vmem>>, %arg9: memref<2x4x1x24xf32, #tpu.memory_space<vmem>>, %arg10: memref<2x4x8x32xbf16, #tpu.memory_space<vmem>>, %arg11: memref<2x1x32xf32, #tpu.memory_space<vmem>>, %arg12: memref<2x1x32xf32, #tpu.memory_space<vmem>>, %arg13: memref<2x1x32xf32, #tpu.memory_space<vmem>>, %arg14: memref<2x32x128xbf16, #tpu.memory_space<vmem>>, %arg15: memref<2x1x128xf32, #tpu.memory_space<vmem>>, %arg16: memref<2x128x32xbf16, #tpu.memory_space<vmem>>, %arg17: memref<2x1x32xf32, #tpu.memory_space<vmem>>, %arg18: memref<1x32xf32, #tpu.memory_space<vmem>>, %arg19: memref<1x32xf32, #tpu.memory_space<vmem>>, %arg20: memref<1x5x32xf32, #tpu.memory_space<vmem>>) attributes {dimension_semantics = [#tpu.dimension_semantics<parallel>], iteration_bounds = array<i64: 2>, scalar_prefetch = 0 : i64, scratch_operands = 0 : i64, tpu.core_type = #tpu.core_type<tc>, window_params = [{transform_indices = @transform_0, window_bounds = array<i64: 1, 4, 768>}, {pipeline_mode = #tpu.pipeline_mode<synchronous>, transform_indices = @transform_1, window_bounds = array<i64: 768, 32>}, {pipeline_mode = #tpu.pipeline_mode<synchronous>, transform_indices = @transform_2, window_bounds = array<i64: 1, 32>}, {pipeline_mode = #tpu.pipeline_mode<synchronous>, transform_indices = @transform_3, window_bounds = array<i64: 1, 1, 32>}, {pipeline_mode = #tpu.pipeline_mode<synchronous>, transform_indices = @transform_4, window_bounds = array<i64: 1, 5, 32>}, {pipeline_mode = #tpu.pipeline_mode<synchronous>, transform_indices = @transform_5, window_bounds = array<i64: 2, 1, 32>}, {pipeline_mode = #tpu.pipeline_mode<synchronous>, transform_indices = @transform_6, window_bounds = array<i64: 2, 1, 32>}, {pipeline_mode = #tpu.pipeline_mode<synchronous>, transform_indices = @transform_7, window_bounds = array<i64: 2, 4, 32, 24>}, {pipeline_mode = #tpu.pipeline_mode<synchronous>, transform_indices = @transform_8, window_bounds = array<i64: 2, 4, 1, 24>}, {pipeline_mode = #tpu.pipeline_mode<synchronous>, transform_indices = @transform_9, window_bounds = array<i64: 2, 4, 8, 32>}, {pipeline_mode = #tpu.pipeline_mode<synchronous>, transform_indices = @transform_10, window_bounds = array<i64: 2, 1, 32>}, {pipeline_mode = #tpu.pipeline_mode<synchronous>, transform_indices = @transform_11, window_bounds = array<i64: 2, 1, 32>}, {pipeline_mode = #tpu.pipeline_mode<synchronous>, transform_indices = @transform_12, window_bounds = array<i64: 2, 1, 32>}, {pipeline_mode = #tpu.pipeline_mode<synchronous>, transform_indices = @transform_13, window_bounds = array<i64: 2, 32, 128>}, {pipeline_mode = #tpu.pipeline_mode<synchronous>, transform_indices = @transform_14, window_bounds = array<i64: 2, 1, 128>}, {pipeline_mode = #tpu.pipeline_mode<synchronous>, transform_indices = @transform_15, window_bounds = array<i64: 2, 128, 32>}, {pipeline_mode = #tpu.pipeline_mode<synchronous>, transform_indices = @transform_16, window_bounds = array<i64: 2, 1, 32>}, {pipeline_mode = #tpu.pipeline_mode<synchronous>, transform_indices = @transform_17, window_bounds = array<i64: 1, 32>}, {pipeline_mode = #tpu.pipeline_mode<synchronous>, transform_indices = @transform_18, window_bounds = array<i64: 1, 32>}, {transform_indices = @transform_19, window_bounds = array<i64: 1, 5, 32>}]} {
    %c0 = arith.constant 0 : index
    %c0_0 = arith.constant 0 : index
    %c0_1 = arith.constant 0 : index
    %0 = vector.load %arg1[%c0, %c0_0, %c0_1] : memref<1x4x768xf32, #tpu.memory_space<vmem>>, vector<1x4x768xf32>
    %1 = vector.shape_cast %0 : vector<1x4x768xf32> to vector<4x768xf32>
    %c0_2 = arith.constant 0 : index
    %c0_3 = arith.constant 0 : index
    %2 = vector.load %arg2[%c0_2, %c0_3] : memref<768x32xbf16, #tpu.memory_space<vmem>>, vector<768x32xbf16>
    %3 = arith.truncf %1 : vector<4x768xf32> to vector<4x768xbf16>
    %cst = arith.constant dense<0.000000e+00> : vector<4x32xf32>
    %4 = tpu.matmul %3, %2, %cst {dimension_numbers = #tpu.dot_dimension_numbers<[1], [0], [0], [1], [0, 0, 1, 1], [], []>} : vector<4x768xbf16>, vector<768x32xbf16>, vector<4x32xf32> -> vector<4x32xf32>
    %c0_4 = arith.constant 0 : index
    %c0_5 = arith.constant 0 : index
    %5 = vector.load %arg3[%c0_4, %c0_5] : memref<1x32xf32, #tpu.memory_space<vmem>>, vector<1x32xf32>
    %6 = vector.broadcast %5 : vector<1x32xf32> to vector<4x32xf32>
    %7 = arith.addf %4, %6 : vector<4x32xf32>
    %c0_6 = arith.constant 0 : index
    %c0_7 = arith.constant 0 : index
    %c0_8 = arith.constant 0 : index
    %8 = vector.load %arg4[%c0_6, %c0_7, %c0_8] : memref<1x1x32xf32, #tpu.memory_space<vmem>>, vector<1x1x32xf32>
    %9 = vector.shape_cast %8 : vector<1x1x32xf32> to vector<1x32xf32>
    %10 = tpu.concatenate %9, %7 in 0 : vector<1x32xf32>, vector<4x32xf32> -> vector<5x32xf32>
    %c0_9 = arith.constant 0 : index
    %c0_10 = arith.constant 0 : index
    %c0_11 = arith.constant 0 : index
    %11 = vector.load %arg5[%c0_9, %c0_10, %c0_11] : memref<1x5x32xf32, #tpu.memory_space<vmem>>, vector<1x5x32xf32>
    %12 = vector.shape_cast %11 : vector<1x5x32xf32> to vector<5x32xf32>
    %13 = arith.addf %10, %12 : vector<5x32xf32>
    %c0_12 = arith.constant 0 : index
    %c0_13 = arith.constant 0 : index
    %c0_14 = arith.constant 0 : index
    %14 = vector.load %arg6[%c0_12, %c0_13, %c0_14] : memref<2x1x32xf32, #tpu.memory_space<vmem>>, vector<1x1x32xf32>
    %15 = vector.shape_cast %14 : vector<1x1x32xf32> to vector<1x32xf32>
    %c0_15 = arith.constant 0 : index
    %c0_16 = arith.constant 0 : index
    %c0_17 = arith.constant 0 : index
    %16 = vector.load %arg7[%c0_15, %c0_16, %c0_17] : memref<2x1x32xf32, #tpu.memory_space<vmem>>, vector<1x1x32xf32>
    %17 = vector.shape_cast %16 : vector<1x1x32xf32> to vector<1x32xf32>
    %cst_18 = arith.constant dense<0.000000e+00> : vector<5xf32>
    %18 = vector.multi_reduction <add>, %13, %cst_18 [1] : vector<5x32xf32> to vector<5xf32>
    %19 = vector.shape_cast %18 : vector<5xf32> to vector<5x1xf32>
    %cst_19 = arith.constant 3.200000e+01 : f32
    %20 = vector.broadcast %cst_19 : f32 to vector<5x1xf32>
    %21 = arith.divf %19, %20 : vector<5x1xf32>
    %22 = vector.broadcast %21 : vector<5x1xf32> to vector<5x32xf32>
    %23 = arith.subf %13, %22 : vector<5x32xf32>
    %24 = arith.mulf %23, %23 : vector<5x32xf32>
    %cst_20 = arith.constant dense<0.000000e+00> : vector<5xf32>
    %25 = vector.multi_reduction <add>, %24, %cst_20 [1] : vector<5x32xf32> to vector<5xf32>
    %26 = vector.shape_cast %25 : vector<5xf32> to vector<5x1xf32>
    %cst_21 = arith.constant 3.200000e+01 : f32
    %27 = vector.broadcast %cst_21 : f32 to vector<5x1xf32>
    %28 = arith.divf %26, %27 : vector<5x1xf32>
    %29 = vector.broadcast %21 : vector<5x1xf32> to vector<5x32xf32>
    %30 = arith.subf %13, %29 : vector<5x32xf32>
    %cst_22 = arith.constant 9.99999997E-7 : f32
    %31 = vector.broadcast %cst_22 : f32 to vector<5x1xf32>
    %32 = arith.addf %28, %31 : vector<5x1xf32>
    %33 = math.rsqrt %32 : vector<5x1xf32>
    %34 = vector.broadcast %33 : vector<5x1xf32> to vector<5x32xf32>
    %35 = arith.mulf %30, %34 : vector<5x32xf32>
    %36 = vector.broadcast %15 : vector<1x32xf32> to vector<5x32xf32>
    %37 = arith.mulf %35, %36 : vector<5x32xf32>
    %38 = vector.broadcast %17 : vector<1x32xf32> to vector<5x32xf32>
    %39 = arith.addf %37, %38 : vector<5x32xf32>
    %40 = arith.truncf %39 : vector<5x32xf32> to vector<5x32xbf16>
    %41 = vector.shape_cast %40 : vector<5x32xbf16> to vector<1x5x32xbf16>
    %42 = vector.shape_cast %41 : vector<1x5x32xbf16> to vector<1x5x32xbf16>
    %43 = vector.broadcast %42 : vector<1x5x32xbf16> to vector<4x5x32xbf16>
    %c0_23 = arith.constant 0 : index
    %c0_24 = arith.constant 0 : index
    %c0_25 = arith.constant 0 : index
    %c0_26 = arith.constant 0 : index
    %44 = vector.load %arg8[%c0_23, %c0_24, %c0_25, %c0_26] : memref<2x4x32x24xbf16, #tpu.memory_space<vmem>>, vector<1x4x32x24xbf16>
    %45 = vector.shape_cast %44 : vector<1x4x32x24xbf16> to vector<4x32x24xbf16>
    %c0_27 = arith.constant 0 : index
    %c0_28 = arith.constant 0 : index
    %c0_29 = arith.constant 0 : index
    %c0_30 = arith.constant 0 : index
    %46 = vector.load %arg9[%c0_27, %c0_28, %c0_29, %c0_30] : memref<2x4x1x24xf32, #tpu.memory_space<vmem>>, vector<1x4x1x24xf32>
    %47 = vector.shape_cast %46 : vector<1x4x1x24xf32> to vector<4x1x24xf32>
    %cst_31 = arith.constant dense<0.000000e+00> : vector<4x5x24xf32>
    %48 = tpu.matmul %43, %45, %cst_31 {dimension_numbers = #tpu.dot_dimension_numbers<[2], [1], [1], [2], [0, 0, 0, 1, 1, 2], [0], [0]>} : vector<4x5x32xbf16>, vector<4x32x24xbf16>, vector<4x5x24xf32> -> vector<4x5x24xf32>
    %49 = vector.broadcast %47 : vector<4x1x24xf32> to vector<4x5x24xf32>
    %50 = arith.addf %48, %49 : vector<4x5x24xf32>
    %51 = arith.truncf %50 : vector<4x5x24xf32> to vector<4x5x24xbf16>
    %52 = vector.extract_strided_slice %51 {offsets = [0, 0, 0], sizes = [4, 5, 8], strides = [1, 1, 1]} : vector<4x5x24xbf16> to vector<4x5x8xbf16>
    %53 = vector.extract_strided_slice %51 {offsets = [0, 0, 8], sizes = [4, 5, 8], strides = [1, 1, 1]} : vector<4x5x24xbf16> to vector<4x5x8xbf16>
    %54 = vector.extract_strided_slice %51 {offsets = [0, 0, 16], sizes = [4, 5, 8], strides = [1, 1, 1]} : vector<4x5x24xbf16> to vector<4x5x8xbf16>
    %cst_32 = arith.constant dense<0.000000e+00> : vector<4x5x5xf32>
    %55 = tpu.matmul %52, %53, %cst_32 {dimension_numbers = #tpu.dot_dimension_numbers<[2], [2], [1], [1], [0, 0, 0, 1, 1, 1], [0], [0]>} : vector<4x5x8xbf16>, vector<4x5x8xbf16>, vector<4x5x5xf32> -> vector<4x5x5xf32>
    %cst_33 = arith.constant 0.353553385 : f32
    %56 = vector.broadcast %cst_33 : f32 to vector<4x5x5xf32>
    %57 = arith.mulf %55, %56 : vector<4x5x5xf32>
    %cst_34 = arith.constant dense<0xFF800000> : vector<4x5xf32>
    %58 = vector.multi_reduction <maximumf>, %57, %cst_34 [2] : vector<4x5x5xf32> to vector<4x5xf32>
    %59 = vector.shape_cast %58 : vector<4x5xf32> to vector<4x5x1xf32>
    %60 = vector.broadcast %59 : vector<4x5x1xf32> to vector<4x5x5xf32>
    %61 = arith.subf %57, %60 : vector<4x5x5xf32>
    %62 = math.exp %61 : vector<4x5x5xf32>
    %cst_35 = arith.constant dense<0.000000e+00> : vector<4x5xf32>
    %63 = vector.multi_reduction <add>, %62, %cst_35 [2] : vector<4x5x5xf32> to vector<4x5xf32>
    %64 = vector.shape_cast %63 : vector<4x5xf32> to vector<4x5x1xf32>
    %65 = tpu.reciprocal %64 {approx = true} : vector<4x5x1xf32> -> vector<4x5x1xf32>
    %66 = vector.broadcast %65 : vector<4x5x1xf32> to vector<4x5x5xf32>
    %67 = arith.mulf %62, %66 : vector<4x5x5xf32>
    %68 = arith.truncf %67 : vector<4x5x5xf32> to vector<4x5x5xbf16>
    %cst_36 = arith.constant dense<0.000000e+00> : vector<4x5x8xf32>
    %69 = tpu.matmul %68, %54, %cst_36 {dimension_numbers = #tpu.dot_dimension_numbers<[2], [1], [1], [2], [0, 0, 0, 1, 1, 2], [0], [0]>} : vector<4x5x5xbf16>, vector<4x5x8xbf16>, vector<4x5x8xf32> -> vector<4x5x8xf32>
    %c0_37 = arith.constant 0 : index
    %c0_38 = arith.constant 0 : index
    %c0_39 = arith.constant 0 : index
    %c0_40 = arith.constant 0 : index
    %70 = vector.load %arg10[%c0_37, %c0_38, %c0_39, %c0_40] : memref<2x4x8x32xbf16, #tpu.memory_space<vmem>>, vector<1x4x8x32xbf16>
    %71 = vector.shape_cast %70 : vector<1x4x8x32xbf16> to vector<4x8x32xbf16>
    %c0_41 = arith.constant 0 : index
    %c0_42 = arith.constant 0 : index
    %c0_43 = arith.constant 0 : index
    %72 = vector.load %arg11[%c0_41, %c0_42, %c0_43] : memref<2x1x32xf32, #tpu.memory_space<vmem>>, vector<1x1x32xf32>
    %73 = vector.shape_cast %72 : vector<1x1x32xf32> to vector<1x32xf32>
    %74 = arith.truncf %69 : vector<4x5x8xf32> to vector<4x5x8xbf16>
    %cst_44 = arith.constant dense<0.000000e+00> : vector<4x5x32xf32>
    %75 = tpu.matmul %74, %71, %cst_44 {dimension_numbers = #tpu.dot_dimension_numbers<[2], [1], [1], [2], [0, 0, 0, 1, 1, 2], [0], [0]>} : vector<4x5x8xbf16>, vector<4x8x32xbf16>, vector<4x5x32xf32> -> vector<4x5x32xf32>
    %cst_45 = arith.constant dense<0.000000e+00> : vector<5x32xf32>
    %76 = vector.multi_reduction <add>, %75, %cst_45 [0] : vector<4x5x32xf32> to vector<5x32xf32>
    %77 = vector.broadcast %73 : vector<1x32xf32> to vector<5x32xf32>
    %78 = arith.addf %76, %77 : vector<5x32xf32>
    %79 = arith.addf %13, %78 : vector<5x32xf32>
    %c0_46 = arith.constant 0 : index
    %c0_47 = arith.constant 0 : index
    %c0_48 = arith.constant 0 : index
    %80 = vector.load %arg12[%c0_46, %c0_47, %c0_48] : memref<2x1x32xf32, #tpu.memory_space<vmem>>, vector<1x1x32xf32>
    %81 = vector.shape_cast %80 : vector<1x1x32xf32> to vector<1x32xf32>
    %c0_49 = arith.constant 0 : index
    %c0_50 = arith.constant 0 : index
    %c0_51 = arith.constant 0 : index
    %82 = vector.load %arg13[%c0_49, %c0_50, %c0_51] : memref<2x1x32xf32, #tpu.memory_space<vmem>>, vector<1x1x32xf32>
    %83 = vector.shape_cast %82 : vector<1x1x32xf32> to vector<1x32xf32>
    %cst_52 = arith.constant dense<0.000000e+00> : vector<5xf32>
    %84 = vector.multi_reduction <add>, %79, %cst_52 [1] : vector<5x32xf32> to vector<5xf32>
    %85 = vector.shape_cast %84 : vector<5xf32> to vector<5x1xf32>
    %cst_53 = arith.constant 3.200000e+01 : f32
    %86 = vector.broadcast %cst_53 : f32 to vector<5x1xf32>
    %87 = arith.divf %85, %86 : vector<5x1xf32>
    %88 = vector.broadcast %87 : vector<5x1xf32> to vector<5x32xf32>
    %89 = arith.subf %79, %88 : vector<5x32xf32>
    %90 = arith.mulf %89, %89 : vector<5x32xf32>
    %cst_54 = arith.constant dense<0.000000e+00> : vector<5xf32>
    %91 = vector.multi_reduction <add>, %90, %cst_54 [1] : vector<5x32xf32> to vector<5xf32>
    %92 = vector.shape_cast %91 : vector<5xf32> to vector<5x1xf32>
    %cst_55 = arith.constant 3.200000e+01 : f32
    %93 = vector.broadcast %cst_55 : f32 to vector<5x1xf32>
    %94 = arith.divf %92, %93 : vector<5x1xf32>
    %95 = vector.broadcast %87 : vector<5x1xf32> to vector<5x32xf32>
    %96 = arith.subf %79, %95 : vector<5x32xf32>
    %cst_56 = arith.constant 9.99999997E-7 : f32
    %97 = vector.broadcast %cst_56 : f32 to vector<5x1xf32>
    %98 = arith.addf %94, %97 : vector<5x1xf32>
    %99 = math.rsqrt %98 : vector<5x1xf32>
    %100 = vector.broadcast %99 : vector<5x1xf32> to vector<5x32xf32>
    %101 = arith.mulf %96, %100 : vector<5x32xf32>
    %102 = vector.broadcast %81 : vector<1x32xf32> to vector<5x32xf32>
    %103 = arith.mulf %101, %102 : vector<5x32xf32>
    %104 = vector.broadcast %83 : vector<1x32xf32> to vector<5x32xf32>
    %105 = arith.addf %103, %104 : vector<5x32xf32>
    %c0_57 = arith.constant 0 : index
    %c0_58 = arith.constant 0 : index
    %c0_59 = arith.constant 0 : index
    %106 = vector.load %arg14[%c0_57, %c0_58, %c0_59] : memref<2x32x128xbf16, #tpu.memory_space<vmem>>, vector<1x32x128xbf16>
    %107 = vector.shape_cast %106 : vector<1x32x128xbf16> to vector<32x128xbf16>
    %108 = arith.truncf %105 : vector<5x32xf32> to vector<5x32xbf16>
    %cst_60 = arith.constant dense<0.000000e+00> : vector<5x128xf32>
    %109 = tpu.matmul %108, %107, %cst_60 {dimension_numbers = #tpu.dot_dimension_numbers<[1], [0], [0], [1], [0, 0, 1, 1], [], []>} : vector<5x32xbf16>, vector<32x128xbf16>, vector<5x128xf32> -> vector<5x128xf32>
    %c0_61 = arith.constant 0 : index
    %c0_62 = arith.constant 0 : index
    %c0_63 = arith.constant 0 : index
    %110 = vector.load %arg15[%c0_61, %c0_62, %c0_63] : memref<2x1x128xf32, #tpu.memory_space<vmem>>, vector<1x1x128xf32>
    %111 = vector.shape_cast %110 : vector<1x1x128xf32> to vector<1x128xf32>
    %112 = vector.broadcast %111 : vector<1x128xf32> to vector<5x128xf32>
    %113 = arith.addf %109, %112 : vector<5x128xf32>
    %114 = arith.mulf %113, %113 : vector<5x128xf32>
    %115 = arith.mulf %113, %114 : vector<5x128xf32>
    %cst_64 = arith.constant 4.471500e-02 : f32
    %116 = vector.broadcast %cst_64 : f32 to vector<5x128xf32>
    %117 = arith.mulf %116, %115 : vector<5x128xf32>
    %118 = arith.addf %113, %117 : vector<5x128xf32>
    %cst_65 = arith.constant 0.797884583 : f32
    %119 = vector.broadcast %cst_65 : f32 to vector<5x128xf32>
    %120 = arith.mulf %119, %118 : vector<5x128xf32>
    %121 = math.tanh %120 : vector<5x128xf32>
    %cst_66 = arith.constant 1.000000e+00 : f32
    %122 = vector.broadcast %cst_66 : f32 to vector<5x128xf32>
    %123 = arith.addf %122, %121 : vector<5x128xf32>
    %cst_67 = arith.constant 5.000000e-01 : f32
    %124 = vector.broadcast %cst_67 : f32 to vector<5x128xf32>
    %125 = arith.mulf %124, %123 : vector<5x128xf32>
    %126 = arith.mulf %113, %125 : vector<5x128xf32>
    %c0_68 = arith.constant 0 : index
    %c0_69 = arith.constant 0 : index
    %c0_70 = arith.constant 0 : index
    %127 = vector.load %arg16[%c0_68, %c0_69, %c0_70] : memref<2x128x32xbf16, #tpu.memory_space<vmem>>, vector<1x128x32xbf16>
    %128 = vector.shape_cast %127 : vector<1x128x32xbf16> to vector<128x32xbf16>
    %129 = arith.truncf %126 : vector<5x128xf32> to vector<5x128xbf16>
    %cst_71 = arith.constant dense<0.000000e+00> : vector<5x32xf32>
    %130 = tpu.matmul %129, %128, %cst_71 {dimension_numbers = #tpu.dot_dimension_numbers<[1], [0], [0], [1], [0, 0, 1, 1], [], []>} : vector<5x128xbf16>, vector<128x32xbf16>, vector<5x32xf32> -> vector<5x32xf32>
    %131 = arith.addf %79, %130 : vector<5x32xf32>
    %c0_72 = arith.constant 0 : index
    %c0_73 = arith.constant 0 : index
    %c0_74 = arith.constant 0 : index
    %132 = vector.load %arg17[%c0_72, %c0_73, %c0_74] : memref<2x1x32xf32, #tpu.memory_space<vmem>>, vector<1x1x32xf32>
    %133 = vector.shape_cast %132 : vector<1x1x32xf32> to vector<1x32xf32>
    %134 = vector.broadcast %133 : vector<1x32xf32> to vector<5x32xf32>
    %135 = arith.addf %131, %134 : vector<5x32xf32>
    %c1 = arith.constant 1 : index
    %c0_75 = arith.constant 0 : index
    %c0_76 = arith.constant 0 : index
    %136 = vector.load %arg6[%c1, %c0_75, %c0_76] : memref<2x1x32xf32, #tpu.memory_space<vmem>>, vector<1x1x32xf32>
    %137 = vector.shape_cast %136 : vector<1x1x32xf32> to vector<1x32xf32>
    %c1_77 = arith.constant 1 : index
    %c0_78 = arith.constant 0 : index
    %c0_79 = arith.constant 0 : index
    %138 = vector.load %arg7[%c1_77, %c0_78, %c0_79] : memref<2x1x32xf32, #tpu.memory_space<vmem>>, vector<1x1x32xf32>
    %139 = vector.shape_cast %138 : vector<1x1x32xf32> to vector<1x32xf32>
    %cst_80 = arith.constant dense<0.000000e+00> : vector<5xf32>
    %140 = vector.multi_reduction <add>, %135, %cst_80 [1] : vector<5x32xf32> to vector<5xf32>
    %141 = vector.shape_cast %140 : vector<5xf32> to vector<5x1xf32>
    %cst_81 = arith.constant 3.200000e+01 : f32
    %142 = vector.broadcast %cst_81 : f32 to vector<5x1xf32>
    %143 = arith.divf %141, %142 : vector<5x1xf32>
    %144 = vector.broadcast %143 : vector<5x1xf32> to vector<5x32xf32>
    %145 = arith.subf %135, %144 : vector<5x32xf32>
    %146 = arith.mulf %145, %145 : vector<5x32xf32>
    %cst_82 = arith.constant dense<0.000000e+00> : vector<5xf32>
    %147 = vector.multi_reduction <add>, %146, %cst_82 [1] : vector<5x32xf32> to vector<5xf32>
    %148 = vector.shape_cast %147 : vector<5xf32> to vector<5x1xf32>
    %cst_83 = arith.constant 3.200000e+01 : f32
    %149 = vector.broadcast %cst_83 : f32 to vector<5x1xf32>
    %150 = arith.divf %148, %149 : vector<5x1xf32>
    %151 = vector.broadcast %143 : vector<5x1xf32> to vector<5x32xf32>
    %152 = arith.subf %135, %151 : vector<5x32xf32>
    %cst_84 = arith.constant 9.99999997E-7 : f32
    %153 = vector.broadcast %cst_84 : f32 to vector<5x1xf32>
    %154 = arith.addf %150, %153 : vector<5x1xf32>
    %155 = math.rsqrt %154 : vector<5x1xf32>
    %156 = vector.broadcast %155 : vector<5x1xf32> to vector<5x32xf32>
    %157 = arith.mulf %152, %156 : vector<5x32xf32>
    %158 = vector.broadcast %137 : vector<1x32xf32> to vector<5x32xf32>
    %159 = arith.mulf %157, %158 : vector<5x32xf32>
    %160 = vector.broadcast %139 : vector<1x32xf32> to vector<5x32xf32>
    %161 = arith.addf %159, %160 : vector<5x32xf32>
    %162 = arith.truncf %161 : vector<5x32xf32> to vector<5x32xbf16>
    %163 = vector.shape_cast %162 : vector<5x32xbf16> to vector<1x5x32xbf16>
    %164 = vector.shape_cast %163 : vector<1x5x32xbf16> to vector<1x5x32xbf16>
    %165 = vector.broadcast %164 : vector<1x5x32xbf16> to vector<4x5x32xbf16>
    %c1_85 = arith.constant 1 : index
    %c0_86 = arith.constant 0 : index
    %c0_87 = arith.constant 0 : index
    %c0_88 = arith.constant 0 : index
    %166 = vector.load %arg8[%c1_85, %c0_86, %c0_87, %c0_88] : memref<2x4x32x24xbf16, #tpu.memory_space<vmem>>, vector<1x4x32x24xbf16>
    %167 = vector.shape_cast %166 : vector<1x4x32x24xbf16> to vector<4x32x24xbf16>
    %c1_89 = arith.constant 1 : index
    %c0_90 = arith.constant 0 : index
    %c0_91 = arith.constant 0 : index
    %c0_92 = arith.constant 0 : index
    %168 = vector.load %arg9[%c1_89, %c0_90, %c0_91, %c0_92] : memref<2x4x1x24xf32, #tpu.memory_space<vmem>>, vector<1x4x1x24xf32>
    %169 = vector.shape_cast %168 : vector<1x4x1x24xf32> to vector<4x1x24xf32>
    %cst_93 = arith.constant dense<0.000000e+00> : vector<4x5x24xf32>
    %170 = tpu.matmul %165, %167, %cst_93 {dimension_numbers = #tpu.dot_dimension_numbers<[2], [1], [1], [2], [0, 0, 0, 1, 1, 2], [0], [0]>} : vector<4x5x32xbf16>, vector<4x32x24xbf16>, vector<4x5x24xf32> -> vector<4x5x24xf32>
    %171 = vector.broadcast %169 : vector<4x1x24xf32> to vector<4x5x24xf32>
    %172 = arith.addf %170, %171 : vector<4x5x24xf32>
    %173 = arith.truncf %172 : vector<4x5x24xf32> to vector<4x5x24xbf16>
    %174 = vector.extract_strided_slice %173 {offsets = [0, 0, 0], sizes = [4, 5, 8], strides = [1, 1, 1]} : vector<4x5x24xbf16> to vector<4x5x8xbf16>
    %175 = vector.extract_strided_slice %173 {offsets = [0, 0, 8], sizes = [4, 5, 8], strides = [1, 1, 1]} : vector<4x5x24xbf16> to vector<4x5x8xbf16>
    %176 = vector.extract_strided_slice %173 {offsets = [0, 0, 16], sizes = [4, 5, 8], strides = [1, 1, 1]} : vector<4x5x24xbf16> to vector<4x5x8xbf16>
    %cst_94 = arith.constant dense<0.000000e+00> : vector<4x5x5xf32>
    %177 = tpu.matmul %174, %175, %cst_94 {dimension_numbers = #tpu.dot_dimension_numbers<[2], [2], [1], [1], [0, 0, 0, 1, 1, 1], [0], [0]>} : vector<4x5x8xbf16>, vector<4x5x8xbf16>, vector<4x5x5xf32> -> vector<4x5x5xf32>
    %cst_95 = arith.constant 0.353553385 : f32
    %178 = vector.broadcast %cst_95 : f32 to vector<4x5x5xf32>
    %179 = arith.mulf %177, %178 : vector<4x5x5xf32>
    %cst_96 = arith.constant dense<0xFF800000> : vector<4x5xf32>
    %180 = vector.multi_reduction <maximumf>, %179, %cst_96 [2] : vector<4x5x5xf32> to vector<4x5xf32>
    %181 = vector.shape_cast %180 : vector<4x5xf32> to vector<4x5x1xf32>
    %182 = vector.broadcast %181 : vector<4x5x1xf32> to vector<4x5x5xf32>
    %183 = arith.subf %179, %182 : vector<4x5x5xf32>
    %184 = math.exp %183 : vector<4x5x5xf32>
    %cst_97 = arith.constant dense<0.000000e+00> : vector<4x5xf32>
    %185 = vector.multi_reduction <add>, %184, %cst_97 [2] : vector<4x5x5xf32> to vector<4x5xf32>
    %186 = vector.shape_cast %185 : vector<4x5xf32> to vector<4x5x1xf32>
    %187 = tpu.reciprocal %186 {approx = true} : vector<4x5x1xf32> -> vector<4x5x1xf32>
    %188 = vector.broadcast %187 : vector<4x5x1xf32> to vector<4x5x5xf32>
    %189 = arith.mulf %184, %188 : vector<4x5x5xf32>
    %190 = arith.truncf %189 : vector<4x5x5xf32> to vector<4x5x5xbf16>
    %cst_98 = arith.constant dense<0.000000e+00> : vector<4x5x8xf32>
    %191 = tpu.matmul %190, %176, %cst_98 {dimension_numbers = #tpu.dot_dimension_numbers<[2], [1], [1], [2], [0, 0, 0, 1, 1, 2], [0], [0]>} : vector<4x5x5xbf16>, vector<4x5x8xbf16>, vector<4x5x8xf32> -> vector<4x5x8xf32>
    %c1_99 = arith.constant 1 : index
    %c0_100 = arith.constant 0 : index
    %c0_101 = arith.constant 0 : index
    %c0_102 = arith.constant 0 : index
    %192 = vector.load %arg10[%c1_99, %c0_100, %c0_101, %c0_102] : memref<2x4x8x32xbf16, #tpu.memory_space<vmem>>, vector<1x4x8x32xbf16>
    %193 = vector.shape_cast %192 : vector<1x4x8x32xbf16> to vector<4x8x32xbf16>
    %c1_103 = arith.constant 1 : index
    %c0_104 = arith.constant 0 : index
    %c0_105 = arith.constant 0 : index
    %194 = vector.load %arg11[%c1_103, %c0_104, %c0_105] : memref<2x1x32xf32, #tpu.memory_space<vmem>>, vector<1x1x32xf32>
    %195 = vector.shape_cast %194 : vector<1x1x32xf32> to vector<1x32xf32>
    %196 = arith.truncf %191 : vector<4x5x8xf32> to vector<4x5x8xbf16>
    %cst_106 = arith.constant dense<0.000000e+00> : vector<4x5x32xf32>
    %197 = tpu.matmul %196, %193, %cst_106 {dimension_numbers = #tpu.dot_dimension_numbers<[2], [1], [1], [2], [0, 0, 0, 1, 1, 2], [0], [0]>} : vector<4x5x8xbf16>, vector<4x8x32xbf16>, vector<4x5x32xf32> -> vector<4x5x32xf32>
    %cst_107 = arith.constant dense<0.000000e+00> : vector<5x32xf32>
    %198 = vector.multi_reduction <add>, %197, %cst_107 [0] : vector<4x5x32xf32> to vector<5x32xf32>
    %199 = vector.broadcast %195 : vector<1x32xf32> to vector<5x32xf32>
    %200 = arith.addf %198, %199 : vector<5x32xf32>
    %201 = arith.addf %135, %200 : vector<5x32xf32>
    %c1_108 = arith.constant 1 : index
    %c0_109 = arith.constant 0 : index
    %c0_110 = arith.constant 0 : index
    %202 = vector.load %arg12[%c1_108, %c0_109, %c0_110] : memref<2x1x32xf32, #tpu.memory_space<vmem>>, vector<1x1x32xf32>
    %203 = vector.shape_cast %202 : vector<1x1x32xf32> to vector<1x32xf32>
    %c1_111 = arith.constant 1 : index
    %c0_112 = arith.constant 0 : index
    %c0_113 = arith.constant 0 : index
    %204 = vector.load %arg13[%c1_111, %c0_112, %c0_113] : memref<2x1x32xf32, #tpu.memory_space<vmem>>, vector<1x1x32xf32>
    %205 = vector.shape_cast %204 : vector<1x1x32xf32> to vector<1x32xf32>
    %cst_114 = arith.constant dense<0.000000e+00> : vector<5xf32>
    %206 = vector.multi_reduction <add>, %201, %cst_114 [1] : vector<5x32xf32> to vector<5xf32>
    %207 = vector.shape_cast %206 : vector<5xf32> to vector<5x1xf32>
    %cst_115 = arith.constant 3.200000e+01 : f32
    %208 = vector.broadcast %cst_115 : f32 to vector<5x1xf32>
    %209 = arith.divf %207, %208 : vector<5x1xf32>
    %210 = vector.broadcast %209 : vector<5x1xf32> to vector<5x32xf32>
    %211 = arith.subf %201, %210 : vector<5x32xf32>
    %212 = arith.mulf %211, %211 : vector<5x32xf32>
    %cst_116 = arith.constant dense<0.000000e+00> : vector<5xf32>
    %213 = vector.multi_reduction <add>, %212, %cst_116 [1] : vector<5x32xf32> to vector<5xf32>
    %214 = vector.shape_cast %213 : vector<5xf32> to vector<5x1xf32>
    %cst_117 = arith.constant 3.200000e+01 : f32
    %215 = vector.broadcast %cst_117 : f32 to vector<5x1xf32>
    %216 = arith.divf %214, %215 : vector<5x1xf32>
    %217 = vector.broadcast %209 : vector<5x1xf32> to vector<5x32xf32>
    %218 = arith.subf %201, %217 : vector<5x32xf32>
    %cst_118 = arith.constant 9.99999997E-7 : f32
    %219 = vector.broadcast %cst_118 : f32 to vector<5x1xf32>
    %220 = arith.addf %216, %219 : vector<5x1xf32>
    %221 = math.rsqrt %220 : vector<5x1xf32>
    %222 = vector.broadcast %221 : vector<5x1xf32> to vector<5x32xf32>
    %223 = arith.mulf %218, %222 : vector<5x32xf32>
    %224 = vector.broadcast %203 : vector<1x32xf32> to vector<5x32xf32>
    %225 = arith.mulf %223, %224 : vector<5x32xf32>
    %226 = vector.broadcast %205 : vector<1x32xf32> to vector<5x32xf32>
    %227 = arith.addf %225, %226 : vector<5x32xf32>
    %c1_119 = arith.constant 1 : index
    %c0_120 = arith.constant 0 : index
    %c0_121 = arith.constant 0 : index
    %228 = vector.load %arg14[%c1_119, %c0_120, %c0_121] : memref<2x32x128xbf16, #tpu.memory_space<vmem>>, vector<1x32x128xbf16>
    %229 = vector.shape_cast %228 : vector<1x32x128xbf16> to vector<32x128xbf16>
    %230 = arith.truncf %227 : vector<5x32xf32> to vector<5x32xbf16>
    %cst_122 = arith.constant dense<0.000000e+00> : vector<5x128xf32>
    %231 = tpu.matmul %230, %229, %cst_122 {dimension_numbers = #tpu.dot_dimension_numbers<[1], [0], [0], [1], [0, 0, 1, 1], [], []>} : vector<5x32xbf16>, vector<32x128xbf16>, vector<5x128xf32> -> vector<5x128xf32>
    %c1_123 = arith.constant 1 : index
    %c0_124 = arith.constant 0 : index
    %c0_125 = arith.constant 0 : index
    %232 = vector.load %arg15[%c1_123, %c0_124, %c0_125] : memref<2x1x128xf32, #tpu.memory_space<vmem>>, vector<1x1x128xf32>
    %233 = vector.shape_cast %232 : vector<1x1x128xf32> to vector<1x128xf32>
    %234 = vector.broadcast %233 : vector<1x128xf32> to vector<5x128xf32>
    %235 = arith.addf %231, %234 : vector<5x128xf32>
    %236 = arith.mulf %235, %235 : vector<5x128xf32>
    %237 = arith.mulf %235, %236 : vector<5x128xf32>
    %cst_126 = arith.constant 4.471500e-02 : f32
    %238 = vector.broadcast %cst_126 : f32 to vector<5x128xf32>
    %239 = arith.mulf %238, %237 : vector<5x128xf32>
    %240 = arith.addf %235, %239 : vector<5x128xf32>
    %cst_127 = arith.constant 0.797884583 : f32
    %241 = vector.broadcast %cst_127 : f32 to vector<5x128xf32>
    %242 = arith.mulf %241, %240 : vector<5x128xf32>
    %243 = math.tanh %242 : vector<5x128xf32>
    %cst_128 = arith.constant 1.000000e+00 : f32
    %244 = vector.broadcast %cst_128 : f32 to vector<5x128xf32>
    %245 = arith.addf %244, %243 : vector<5x128xf32>
    %cst_129 = arith.constant 5.000000e-01 : f32
    %246 = vector.broadcast %cst_129 : f32 to vector<5x128xf32>
    %247 = arith.mulf %246, %245 : vector<5x128xf32>
    %248 = arith.mulf %235, %247 : vector<5x128xf32>
    %c1_130 = arith.constant 1 : index
    %c0_131 = arith.constant 0 : index
    %c0_132 = arith.constant 0 : index
    %249 = vector.load %arg16[%c1_130, %c0_131, %c0_132] : memref<2x128x32xbf16, #tpu.memory_space<vmem>>, vector<1x128x32xbf16>
    %250 = vector.shape_cast %249 : vector<1x128x32xbf16> to vector<128x32xbf16>
    %251 = arith.truncf %248 : vector<5x128xf32> to vector<5x128xbf16>
    %cst_133 = arith.constant dense<0.000000e+00> : vector<5x32xf32>
    %252 = tpu.matmul %251, %250, %cst_133 {dimension_numbers = #tpu.dot_dimension_numbers<[1], [0], [0], [1], [0, 0, 1, 1], [], []>} : vector<5x128xbf16>, vector<128x32xbf16>, vector<5x32xf32> -> vector<5x32xf32>
    %253 = arith.addf %201, %252 : vector<5x32xf32>
    %c1_134 = arith.constant 1 : index
    %c0_135 = arith.constant 0 : index
    %c0_136 = arith.constant 0 : index
    %254 = vector.load %arg17[%c1_134, %c0_135, %c0_136] : memref<2x1x32xf32, #tpu.memory_space<vmem>>, vector<1x1x32xf32>
    %255 = vector.shape_cast %254 : vector<1x1x32xf32> to vector<1x32xf32>
    %256 = vector.broadcast %255 : vector<1x32xf32> to vector<5x32xf32>
    %257 = arith.addf %253, %256 : vector<5x32xf32>
    %c0_137 = arith.constant 0 : index
    %c0_138 = arith.constant 0 : index
    %258 = vector.load %arg18[%c0_137, %c0_138] : memref<1x32xf32, #tpu.memory_space<vmem>>, vector<1x32xf32>
    %c0_139 = arith.constant 0 : index
    %c0_140 = arith.constant 0 : index
    %259 = vector.load %arg19[%c0_139, %c0_140] : memref<1x32xf32, #tpu.memory_space<vmem>>, vector<1x32xf32>
    %cst_141 = arith.constant dense<0.000000e+00> : vector<5xf32>
    %260 = vector.multi_reduction <add>, %257, %cst_141 [1] : vector<5x32xf32> to vector<5xf32>
    %261 = vector.shape_cast %260 : vector<5xf32> to vector<5x1xf32>
    %cst_142 = arith.constant 3.200000e+01 : f32
    %262 = vector.broadcast %cst_142 : f32 to vector<5x1xf32>
    %263 = arith.divf %261, %262 : vector<5x1xf32>
    %264 = vector.broadcast %263 : vector<5x1xf32> to vector<5x32xf32>
    %265 = arith.subf %257, %264 : vector<5x32xf32>
    %266 = arith.mulf %265, %265 : vector<5x32xf32>
    %cst_143 = arith.constant dense<0.000000e+00> : vector<5xf32>
    %267 = vector.multi_reduction <add>, %266, %cst_143 [1] : vector<5x32xf32> to vector<5xf32>
    %268 = vector.shape_cast %267 : vector<5xf32> to vector<5x1xf32>
    %cst_144 = arith.constant 3.200000e+01 : f32
    %269 = vector.broadcast %cst_144 : f32 to vector<5x1xf32>
    %270 = arith.divf %268, %269 : vector<5x1xf32>
    %271 = vector.broadcast %263 : vector<5x1xf32> to vector<5x32xf32>
    %272 = arith.subf %257, %271 : vector<5x32xf32>
    %cst_145 = arith.constant 9.99999997E-7 : f32
    %273 = vector.broadcast %cst_145 : f32 to vector<5x1xf32>
    %274 = arith.addf %270, %273 : vector<5x1xf32>
    %275 = math.rsqrt %274 : vector<5x1xf32>
    %276 = vector.broadcast %275 : vector<5x1xf32> to vector<5x32xf32>
    %277 = arith.mulf %272, %276 : vector<5x32xf32>
    %278 = vector.broadcast %258 : vector<1x32xf32> to vector<5x32xf32>
    %279 = arith.mulf %277, %278 : vector<5x32xf32>
    %280 = vector.broadcast %259 : vector<1x32xf32> to vector<5x32xf32>
    %281 = arith.addf %279, %280 : vector<5x32xf32>
    %c0_146 = arith.constant 0 : index
    %c0_147 = arith.constant 0 : index
    %c0_148 = arith.constant 0 : index
    %282 = vector.load %arg20[%c0_146, %c0_147, %c0_148] : memref<1x5x32xf32, #tpu.memory_space<vmem>>, vector<1x5x32xf32>
    %283 = vector.shape_cast %282 : vector<1x5x32xf32> to vector<5x32xf32>
    %284 = vector.shape_cast %281 : vector<5x32xf32> to vector<1x5x32xf32>
    tpu.vector_store %arg20[%c0_146, %c0_147, %c0_148], %284 {strides = array<i32>} : memref<1x5x32xf32, #tpu.memory_space<vmem>>, vector<1x5x32xf32>,
    return
  }
  func.func @transform_0(%arg0: i32) -> (i32, i32, i32) {
    %c0_i32 = arith.constant 0 : i32
    %c0_i32_0 = arith.constant 0 : i32
    %c0_i32_1 = arith.constant 0 : i32
    return %arg0, %c0_i32, %c0_i32_0 : i32, i32, i32
  }
  func.func @transform_1(%arg0: i32) -> (i32, i32) {
    %c0_i32 = arith.constant 0 : i32
    %c0_i32_0 = arith.constant 0 : i32
    %c0_i32_1 = arith.constant 0 : i32
    return %c0_i32, %c0_i32_0 : i32, i32
  }
  func.func @transform_2(%arg0: i32) -> (i32, i32) {
    %c0_i32 = arith.constant 0 : i32
    %c0_i32_0 = arith.constant 0 : i32
    %c0_i32_1 = arith.constant 0 : i32
    return %c0_i32, %c0_i32_0 : i32, i32
  }
  func.func @transform_3(%arg0: i32) -> (i32, i32, i32) {
    %c0_i32 = arith.constant 0 : i32
    %c0_i32_0 = arith.constant 0 : i32
    %c0_i32_1 = arith.constant 0 : i32
    %c0_i32_2 = arith.constant 0 : i32
    return %c0_i32, %c0_i32_0, %c0_i32_1 : i32, i32, i32
  }
  func.func @transform_4(%arg0: i32) -> (i32, i32, i32) {
    %c0_i32 = arith.constant 0 : i32
    %c0_i32_0 = arith.constant 0 : i32
    %c0_i32_1 = arith.constant 0 : i32
    %c0_i32_2 = arith.constant 0 : i32
    return %c0_i32, %c0_i32_0, %c0_i32_1 : i32, i32, i32
  }
  func.func @transform_5(%arg0: i32) -> (i32, i32, i32) {
    %c0_i32 = arith.constant 0 : i32
    %c0_i32_0 = arith.constant 0 : i32
    %c0_i32_1 = arith.constant 0 : i32
    %c0_i32_2 = arith.constant 0 : i32
    return %c0_i32, %c0_i32_0, %c0_i32_1 : i32, i32, i32
  }
  func.func @transform_6(%arg0: i32) -> (i32, i32, i32) {
    %c0_i32 = arith.constant 0 : i32
    %c0_i32_0 = arith.constant 0 : i32
    %c0_i32_1 = arith.constant 0 : i32
    %c0_i32_2 = arith.constant 0 : i32
    return %c0_i32, %c0_i32_0, %c0_i32_1 : i32, i32, i32
  }
  func.func @transform_7(%arg0: i32) -> (i32, i32, i32, i32) {
    %c0_i32 = arith.constant 0 : i32
    %c0_i32_0 = arith.constant 0 : i32
    %c0_i32_1 = arith.constant 0 : i32
    %c0_i32_2 = arith.constant 0 : i32
    %c0_i32_3 = arith.constant 0 : i32
    return %c0_i32, %c0_i32_0, %c0_i32_1, %c0_i32_2 : i32, i32, i32, i32
  }
  func.func @transform_8(%arg0: i32) -> (i32, i32, i32, i32) {
    %c0_i32 = arith.constant 0 : i32
    %c0_i32_0 = arith.constant 0 : i32
    %c0_i32_1 = arith.constant 0 : i32
    %c0_i32_2 = arith.constant 0 : i32
    %c0_i32_3 = arith.constant 0 : i32
    return %c0_i32, %c0_i32_0, %c0_i32_1, %c0_i32_2 : i32, i32, i32, i32
  }
  func.func @transform_9(%arg0: i32) -> (i32, i32, i32, i32) {
    %c0_i32 = arith.constant 0 : i32
    %c0_i32_0 = arith.constant 0 : i32
    %c0_i32_1 = arith.constant 0 : i32
    %c0_i32_2 = arith.constant 0 : i32
    %c0_i32_3 = arith.constant 0 : i32
    return %c0_i32, %c0_i32_0, %c0_i32_1, %c0_i32_2 : i32, i32, i32, i32
  }
  func.func @transform_10(%arg0: i32) -> (i32, i32, i32) {
    %c0_i32 = arith.constant 0 : i32
    %c0_i32_0 = arith.constant 0 : i32
    %c0_i32_1 = arith.constant 0 : i32
    %c0_i32_2 = arith.constant 0 : i32
    return %c0_i32, %c0_i32_0, %c0_i32_1 : i32, i32, i32
  }
  func.func @transform_11(%arg0: i32) -> (i32, i32, i32) {
    %c0_i32 = arith.constant 0 : i32
    %c0_i32_0 = arith.constant 0 : i32
    %c0_i32_1 = arith.constant 0 : i32
    %c0_i32_2 = arith.constant 0 : i32
    return %c0_i32, %c0_i32_0, %c0_i32_1 : i32, i32, i32
  }
  func.func @transform_12(%arg0: i32) -> (i32, i32, i32) {
    %c0_i32 = arith.constant 0 : i32
    %c0_i32_0 = arith.constant 0 : i32
    %c0_i32_1 = arith.constant 0 : i32
    %c0_i32_2 = arith.constant 0 : i32
    return %c0_i32, %c0_i32_0, %c0_i32_1 : i32, i32, i32
  }
  func.func @transform_13(%arg0: i32) -> (i32, i32, i32) {
    %c0_i32 = arith.constant 0 : i32
    %c0_i32_0 = arith.constant 0 : i32
    %c0_i32_1 = arith.constant 0 : i32
    %c0_i32_2 = arith.constant 0 : i32
    return %c0_i32, %c0_i32_0, %c0_i32_1 : i32, i32, i32
  }
  func.func @transform_14(%arg0: i32) -> (i32, i32, i32) {
    %c0_i32 = arith.constant 0 : i32
    %c0_i32_0 = arith.constant 0 : i32
    %c0_i32_1 = arith.constant 0 : i32
    %c0_i32_2 = arith.constant 0 : i32
    return %c0_i32, %c0_i32_0, %c0_i32_1 : i32, i32, i32
  }
  func.func @transform_15(%arg0: i32) -> (i32, i32, i32) {
    %c0_i32 = arith.constant 0 : i32
    %c0_i32_0 = arith.constant 0 : i32
    %c0_i32_1 = arith.constant 0 : i32
    %c0_i32_2 = arith.constant 0 : i32
    return %c0_i32, %c0_i32_0, %c0_i32_1 : i32, i32, i32
  }
  func.func @transform_16(%arg0: i32) -> (i32, i32, i32) {
    %c0_i32 = arith.constant 0 : i32
    %c0_i32_0 = arith.constant 0 : i32
    %c0_i32_1 = arith.constant 0 : i32
    %c0_i32_2 = arith.constant 0 : i32
    return %c0_i32, %c0_i32_0, %c0_i32_1 : i32, i32, i32
  }
  func.func @transform_17(%arg0: i32) -> (i32, i32) {
    %c0_i32 = arith.constant 0 : i32
    %c0_i32_0 = arith.constant 0 : i32
    %c0_i32_1 = arith.constant 0 : i32
    return %c0_i32, %c0_i32_0 : i32, i32
  }
  func.func @transform_18(%arg0: i32) -> (i32, i32) {
    %c0_i32 = arith.constant 0 : i32
    %c0_i32_0 = arith.constant 0 : i32
    %c0_i32_1 = arith.constant 0 : i32
    return %c0_i32, %c0_i32_0 : i32, i32
  }
  func.func @transform_19(%arg0: i32) -> (i32, i32, i32) {
    %c0_i32 = arith.constant 0 : i32
    %c0_i32_0 = arith.constant 0 : i32
    %c0_i32_1 = arith.constant 0 : i32
    return %arg0, %c0_i32, %c0_i32_0 : i32, i32, i32
  }
}

module attributes {stable_mosaic.version = 11 : i64} {
  func.func @_bert_text_stack_kernel(%arg0: i32, %arg1: memref<1x8x32xf32, #tpu.memory_space<vmem>>, %arg2: memref<1x1x8xf32, #tpu.memory_space<vmem>>, %arg3: memref<1x32xf32, #tpu.memory_space<vmem>>, %arg4: memref<1x32xf32, #tpu.memory_space<vmem>>, %arg5: memref<2x4x32x24xbf16, #tpu.memory_space<vmem>>, %arg6: memref<2x4x1x24xf32, #tpu.memory_space<vmem>>, %arg7: memref<2x4x8x32xbf16, #tpu.memory_space<vmem>>, %arg8: memref<2x1x32xf32, #tpu.memory_space<vmem>>, %arg9: memref<2x1x32xf32, #tpu.memory_space<vmem>>, %arg10: memref<2x1x32xf32, #tpu.memory_space<vmem>>, %arg11: memref<2x32x128xbf16, #tpu.memory_space<vmem>>, %arg12: memref<2x1x128xf32, #tpu.memory_space<vmem>>, %arg13: memref<2x128x32xbf16, #tpu.memory_space<vmem>>, %arg14: memref<2x1x32xf32, #tpu.memory_space<vmem>>, %arg15: memref<2x1x32xf32, #tpu.memory_space<vmem>>, %arg16: memref<2x1x32xf32, #tpu.memory_space<vmem>>, %arg17: memref<1x8x32xf32, #tpu.memory_space<vmem>>) attributes {dimension_semantics = [#tpu.dimension_semantics<parallel>], iteration_bounds = array<i64: 2>, scalar_prefetch = 0 : i64, scratch_operands = 0 : i64, tpu.core_type = #tpu.core_type<tc>, window_params = [{transform_indices = @transform_0, window_bounds = array<i64: 1, 8, 32>}, {transform_indices = @transform_1, window_bounds = array<i64: 1, 1, 8>}, {pipeline_mode = #tpu.pipeline_mode<synchronous>, transform_indices = @transform_2, window_bounds = array<i64: 1, 32>}, {pipeline_mode = #tpu.pipeline_mode<synchronous>, transform_indices = @transform_3, window_bounds = array<i64: 1, 32>}, {pipeline_mode = #tpu.pipeline_mode<synchronous>, transform_indices = @transform_4, window_bounds = array<i64: 2, 4, 32, 24>}, {pipeline_mode = #tpu.pipeline_mode<synchronous>, transform_indices = @transform_5, window_bounds = array<i64: 2, 4, 1, 24>}, {pipeline_mode = #tpu.pipeline_mode<synchronous>, transform_indices = @transform_6, window_bounds = array<i64: 2, 4, 8, 32>}, {pipeline_mode = #tpu.pipeline_mode<synchronous>, transform_indices = @transform_7, window_bounds = array<i64: 2, 1, 32>}, {pipeline_mode = #tpu.pipeline_mode<synchronous>, transform_indices = @transform_8, window_bounds = array<i64: 2, 1, 32>}, {pipeline_mode = #tpu.pipeline_mode<synchronous>, transform_indices = @transform_9, window_bounds = array<i64: 2, 1, 32>}, {pipeline_mode = #tpu.pipeline_mode<synchronous>, transform_indices = @transform_10, window_bounds = array<i64: 2, 32, 128>}, {pipeline_mode = #tpu.pipeline_mode<synchronous>, transform_indices = @transform_11, window_bounds = array<i64: 2, 1, 128>}, {pipeline_mode = #tpu.pipeline_mode<synchronous>, transform_indices = @transform_12, window_bounds = array<i64: 2, 128, 32>}, {pipeline_mode = #tpu.pipeline_mode<synchronous>, transform_indices = @transform_13, window_bounds = array<i64: 2, 1, 32>}, {pipeline_mode = #tpu.pipeline_mode<synchronous>, transform_indices = @transform_14, window_bounds = array<i64: 2, 1, 32>}, {pipeline_mode = #tpu.pipeline_mode<synchronous>, transform_indices = @transform_15, window_bounds = array<i64: 2, 1, 32>}, {transform_indices = @transform_16, window_bounds = array<i64: 1, 8, 32>}]} {
    %c0 = arith.constant 0 : index
    %c0_0 = arith.constant 0 : index
    %c0_1 = arith.constant 0 : index
    %0 = vector.load %arg1[%c0, %c0_0, %c0_1] : memref<1x8x32xf32, #tpu.memory_space<vmem>>, vector<1x8x32xf32>
    %1 = vector.shape_cast %0 : vector<1x8x32xf32> to vector<8x32xf32>
    %c0_2 = arith.constant 0 : index
    %c0_3 = arith.constant 0 : index
    %2 = vector.load %arg3[%c0_2, %c0_3] : memref<1x32xf32, #tpu.memory_space<vmem>>, vector<1x32xf32>
    %c0_4 = arith.constant 0 : index
    %c0_5 = arith.constant 0 : index
    %3 = vector.load %arg4[%c0_4, %c0_5] : memref<1x32xf32, #tpu.memory_space<vmem>>, vector<1x32xf32>
    %cst = arith.constant dense<0.000000e+00> : vector<8xf32>
    %4 = vector.multi_reduction <add>, %1, %cst [1] : vector<8x32xf32> to vector<8xf32>
    %5 = vector.shape_cast %4 : vector<8xf32> to vector<8x1xf32>
    %cst_6 = arith.constant 3.200000e+01 : f32
    %6 = vector.broadcast %cst_6 : f32 to vector<8x1xf32>
    %7 = arith.divf %5, %6 : vector<8x1xf32>
    %8 = vector.broadcast %7 : vector<8x1xf32> to vector<8x32xf32>
    %9 = arith.subf %1, %8 : vector<8x32xf32>
    %10 = arith.mulf %9, %9 : vector<8x32xf32>
    %cst_7 = arith.constant dense<0.000000e+00> : vector<8xf32>
    %11 = vector.multi_reduction <add>, %10, %cst_7 [1] : vector<8x32xf32> to vector<8xf32>
    %12 = vector.shape_cast %11 : vector<8xf32> to vector<8x1xf32>
    %cst_8 = arith.constant 3.200000e+01 : f32
    %13 = vector.broadcast %cst_8 : f32 to vector<8x1xf32>
    %14 = arith.divf %12, %13 : vector<8x1xf32>
    %15 = vector.broadcast %7 : vector<8x1xf32> to vector<8x32xf32>
    %16 = arith.subf %1, %15 : vector<8x32xf32>
    %cst_9 = arith.constant 9.99999996E-13 : f32
    %17 = vector.broadcast %cst_9 : f32 to vector<8x1xf32>
    %18 = arith.addf %14, %17 : vector<8x1xf32>
    %19 = math.rsqrt %18 : vector<8x1xf32>
    %20 = vector.broadcast %19 : vector<8x1xf32> to vector<8x32xf32>
    %21 = arith.mulf %16, %20 : vector<8x32xf32>
    %22 = vector.broadcast %2 : vector<1x32xf32> to vector<8x32xf32>
    %23 = arith.mulf %21, %22 : vector<8x32xf32>
    %24 = vector.broadcast %3 : vector<1x32xf32> to vector<8x32xf32>
    %25 = arith.addf %23, %24 : vector<8x32xf32>
    %c0_10 = arith.constant 0 : index
    %c0_11 = arith.constant 0 : index
    %c0_12 = arith.constant 0 : index
    %26 = vector.load %arg2[%c0_10, %c0_11, %c0_12] : memref<1x1x8xf32, #tpu.memory_space<vmem>>, vector<1x1x8xf32>
    %cst_13 = arith.constant 1.000000e+00 : f32
    %27 = vector.broadcast %cst_13 : f32 to vector<1x1x8xf32>
    %28 = arith.subf %27, %26 : vector<1x1x8xf32>
    %cst_14 = arith.constant -1.000000e+04 : f32
    %29 = vector.broadcast %cst_14 : f32 to vector<1x1x8xf32>
    %30 = arith.mulf %28, %29 : vector<1x1x8xf32>
    %31 = arith.truncf %25 : vector<8x32xf32> to vector<8x32xbf16>
    %32 = vector.shape_cast %31 : vector<8x32xbf16> to vector<1x8x32xbf16>
    %33 = vector.shape_cast %32 : vector<1x8x32xbf16> to vector<1x8x32xbf16>
    %34 = vector.broadcast %33 : vector<1x8x32xbf16> to vector<4x8x32xbf16>
    %c0_15 = arith.constant 0 : index
    %c0_16 = arith.constant 0 : index
    %c0_17 = arith.constant 0 : index
    %c0_18 = arith.constant 0 : index
    %35 = vector.load %arg5[%c0_15, %c0_16, %c0_17, %c0_18] : memref<2x4x32x24xbf16, #tpu.memory_space<vmem>>, vector<1x4x32x24xbf16>
    %36 = vector.shape_cast %35 : vector<1x4x32x24xbf16> to vector<4x32x24xbf16>
    %c0_19 = arith.constant 0 : index
    %c0_20 = arith.constant 0 : index
    %c0_21 = arith.constant 0 : index
    %c0_22 = arith.constant 0 : index
    %37 = vector.load %arg6[%c0_19, %c0_20, %c0_21, %c0_22] : memref<2x4x1x24xf32, #tpu.memory_space<vmem>>, vector<1x4x1x24xf32>
    %38 = vector.shape_cast %37 : vector<1x4x1x24xf32> to vector<4x1x24xf32>
    %cst_23 = arith.constant dense<0.000000e+00> : vector<4x8x24xf32>
    %39 = tpu.matmul %34, %36, %cst_23 {dimension_numbers = #tpu.dot_dimension_numbers<[2], [1], [1], [2], [0, 0, 0, 1, 1, 2], [0], [0]>} : vector<4x8x32xbf16>, vector<4x32x24xbf16>, vector<4x8x24xf32> -> vector<4x8x24xf32>
    %40 = vector.broadcast %38 : vector<4x1x24xf32> to vector<4x8x24xf32>
    %41 = arith.addf %39, %40 : vector<4x8x24xf32>
    %42 = arith.truncf %41 : vector<4x8x24xf32> to vector<4x8x24xbf16>
    %43 = vector.extract_strided_slice %42 {offsets = [0, 0, 0], sizes = [4, 8, 8], strides = [1, 1, 1]} : vector<4x8x24xbf16> to vector<4x8x8xbf16>
    %44 = vector.extract_strided_slice %42 {offsets = [0, 0, 8], sizes = [4, 8, 8], strides = [1, 1, 1]} : vector<4x8x24xbf16> to vector<4x8x8xbf16>
    %45 = vector.extract_strided_slice %42 {offsets = [0, 0, 16], sizes = [4, 8, 8], strides = [1, 1, 1]} : vector<4x8x24xbf16> to vector<4x8x8xbf16>
    %cst_24 = arith.constant dense<0.000000e+00> : vector<4x8x8xf32>
    %46 = tpu.matmul %43, %44, %cst_24 {dimension_numbers = #tpu.dot_dimension_numbers<[2], [2], [1], [1], [0, 0, 0, 1, 1, 1], [0], [0]>} : vector<4x8x8xbf16>, vector<4x8x8xbf16>, vector<4x8x8xf32> -> vector<4x8x8xf32>
    %cst_25 = arith.constant 0.353553385 : f32
    %47 = vector.broadcast %cst_25 : f32 to vector<4x8x8xf32>
    %48 = arith.mulf %46, %47 : vector<4x8x8xf32>
    %49 = vector.broadcast %30 : vector<1x1x8xf32> to vector<4x8x8xf32>
    %50 = arith.addf %48, %49 : vector<4x8x8xf32>
    %cst_26 = arith.constant dense<0xFF800000> : vector<4x8xf32>
    %51 = vector.multi_reduction <maximumf>, %50, %cst_26 [2] : vector<4x8x8xf32> to vector<4x8xf32>
    %52 = vector.shape_cast %51 : vector<4x8xf32> to vector<4x8x1xf32>
    %53 = vector.broadcast %52 : vector<4x8x1xf32> to vector<4x8x8xf32>
    %54 = arith.subf %50, %53 : vector<4x8x8xf32>
    %55 = math.exp %54 : vector<4x8x8xf32>
    %cst_27 = arith.constant dense<0.000000e+00> : vector<4x8xf32>
    %56 = vector.multi_reduction <add>, %55, %cst_27 [2] : vector<4x8x8xf32> to vector<4x8xf32>
    %57 = vector.shape_cast %56 : vector<4x8xf32> to vector<4x8x1xf32>
    %58 = tpu.reciprocal %57 {approx = true} : vector<4x8x1xf32> -> vector<4x8x1xf32>
    %59 = vector.broadcast %58 : vector<4x8x1xf32> to vector<4x8x8xf32>
    %60 = arith.mulf %55, %59 : vector<4x8x8xf32>
    %61 = arith.truncf %60 : vector<4x8x8xf32> to vector<4x8x8xbf16>
    %cst_28 = arith.constant dense<0.000000e+00> : vector<4x8x8xf32>
    %62 = tpu.matmul %61, %45, %cst_28 {dimension_numbers = #tpu.dot_dimension_numbers<[2], [1], [1], [2], [0, 0, 0, 1, 1, 2], [0], [0]>} : vector<4x8x8xbf16>, vector<4x8x8xbf16>, vector<4x8x8xf32> -> vector<4x8x8xf32>
    %c0_29 = arith.constant 0 : index
    %c0_30 = arith.constant 0 : index
    %c0_31 = arith.constant 0 : index
    %c0_32 = arith.constant 0 : index
    %63 = vector.load %arg7[%c0_29, %c0_30, %c0_31, %c0_32] : memref<2x4x8x32xbf16, #tpu.memory_space<vmem>>, vector<1x4x8x32xbf16>
    %64 = vector.shape_cast %63 : vector<1x4x8x32xbf16> to vector<4x8x32xbf16>
    %c0_33 = arith.constant 0 : index
    %c0_34 = arith.constant 0 : index
    %c0_35 = arith.constant 0 : index
    %65 = vector.load %arg8[%c0_33, %c0_34, %c0_35] : memref<2x1x32xf32, #tpu.memory_space<vmem>>, vector<1x1x32xf32>
    %66 = vector.shape_cast %65 : vector<1x1x32xf32> to vector<1x32xf32>
    %67 = arith.truncf %62 : vector<4x8x8xf32> to vector<4x8x8xbf16>
    %cst_36 = arith.constant dense<0.000000e+00> : vector<4x8x32xf32>
    %68 = tpu.matmul %67, %64, %cst_36 {dimension_numbers = #tpu.dot_dimension_numbers<[2], [1], [1], [2], [0, 0, 0, 1, 1, 2], [0], [0]>} : vector<4x8x8xbf16>, vector<4x8x32xbf16>, vector<4x8x32xf32> -> vector<4x8x32xf32>
    %cst_37 = arith.constant dense<0.000000e+00> : vector<8x32xf32>
    %69 = vector.multi_reduction <add>, %68, %cst_37 [0] : vector<4x8x32xf32> to vector<8x32xf32>
    %70 = vector.broadcast %66 : vector<1x32xf32> to vector<8x32xf32>
    %71 = arith.addf %69, %70 : vector<8x32xf32>
    %72 = arith.addf %71, %25 : vector<8x32xf32>
    %c0_38 = arith.constant 0 : index
    %c0_39 = arith.constant 0 : index
    %c0_40 = arith.constant 0 : index
    %73 = vector.load %arg9[%c0_38, %c0_39, %c0_40] : memref<2x1x32xf32, #tpu.memory_space<vmem>>, vector<1x1x32xf32>
    %74 = vector.shape_cast %73 : vector<1x1x32xf32> to vector<1x32xf32>
    %c0_41 = arith.constant 0 : index
    %c0_42 = arith.constant 0 : index
    %c0_43 = arith.constant 0 : index
    %75 = vector.load %arg10[%c0_41, %c0_42, %c0_43] : memref<2x1x32xf32, #tpu.memory_space<vmem>>, vector<1x1x32xf32>
    %76 = vector.shape_cast %75 : vector<1x1x32xf32> to vector<1x32xf32>
    %cst_44 = arith.constant dense<0.000000e+00> : vector<8xf32>
    %77 = vector.multi_reduction <add>, %72, %cst_44 [1] : vector<8x32xf32> to vector<8xf32>
    %78 = vector.shape_cast %77 : vector<8xf32> to vector<8x1xf32>
    %cst_45 = arith.constant 3.200000e+01 : f32
    %79 = vector.broadcast %cst_45 : f32 to vector<8x1xf32>
    %80 = arith.divf %78, %79 : vector<8x1xf32>
    %81 = vector.broadcast %80 : vector<8x1xf32> to vector<8x32xf32>
    %82 = arith.subf %72, %81 : vector<8x32xf32>
    %83 = arith.mulf %82, %82 : vector<8x32xf32>
    %cst_46 = arith.constant dense<0.000000e+00> : vector<8xf32>
    %84 = vector.multi_reduction <add>, %83, %cst_46 [1] : vector<8x32xf32> to vector<8xf32>
    %85 = vector.shape_cast %84 : vector<8xf32> to vector<8x1xf32>
    %cst_47 = arith.constant 3.200000e+01 : f32
    %86 = vector.broadcast %cst_47 : f32 to vector<8x1xf32>
    %87 = arith.divf %85, %86 : vector<8x1xf32>
    %88 = vector.broadcast %80 : vector<8x1xf32> to vector<8x32xf32>
    %89 = arith.subf %72, %88 : vector<8x32xf32>
    %cst_48 = arith.constant 9.99999996E-13 : f32
    %90 = vector.broadcast %cst_48 : f32 to vector<8x1xf32>
    %91 = arith.addf %87, %90 : vector<8x1xf32>
    %92 = math.rsqrt %91 : vector<8x1xf32>
    %93 = vector.broadcast %92 : vector<8x1xf32> to vector<8x32xf32>
    %94 = arith.mulf %89, %93 : vector<8x32xf32>
    %95 = vector.broadcast %74 : vector<1x32xf32> to vector<8x32xf32>
    %96 = arith.mulf %94, %95 : vector<8x32xf32>
    %97 = vector.broadcast %76 : vector<1x32xf32> to vector<8x32xf32>
    %98 = arith.addf %96, %97 : vector<8x32xf32>
    %c0_49 = arith.constant 0 : index
    %c0_50 = arith.constant 0 : index
    %c0_51 = arith.constant 0 : index
    %99 = vector.load %arg11[%c0_49, %c0_50, %c0_51] : memref<2x32x128xbf16, #tpu.memory_space<vmem>>, vector<1x32x128xbf16>
    %100 = vector.shape_cast %99 : vector<1x32x128xbf16> to vector<32x128xbf16>
    %101 = arith.truncf %98 : vector<8x32xf32> to vector<8x32xbf16>
    %cst_52 = arith.constant dense<0.000000e+00> : vector<8x128xf32>
    %102 = tpu.matmul %101, %100, %cst_52 {dimension_numbers = #tpu.dot_dimension_numbers<[1], [0], [0], [1], [0, 0, 1, 1], [], []>} : vector<8x32xbf16>, vector<32x128xbf16>, vector<8x128xf32> -> vector<8x128xf32>
    %c0_53 = arith.constant 0 : index
    %c0_54 = arith.constant 0 : index
    %c0_55 = arith.constant 0 : index
    %103 = vector.load %arg12[%c0_53, %c0_54, %c0_55] : memref<2x1x128xf32, #tpu.memory_space<vmem>>, vector<1x1x128xf32>
    %104 = vector.shape_cast %103 : vector<1x1x128xf32> to vector<1x128xf32>
    %105 = vector.broadcast %104 : vector<1x128xf32> to vector<8x128xf32>
    %106 = arith.addf %102, %105 : vector<8x128xf32>
    %107 = arith.mulf %106, %106 : vector<8x128xf32>
    %108 = arith.mulf %106, %107 : vector<8x128xf32>
    %cst_56 = arith.constant 4.471500e-02 : f32
    %109 = vector.broadcast %cst_56 : f32 to vector<8x128xf32>
    %110 = arith.mulf %109, %108 : vector<8x128xf32>
    %111 = arith.addf %106, %110 : vector<8x128xf32>
    %cst_57 = arith.constant 0.797884583 : f32
    %112 = vector.broadcast %cst_57 : f32 to vector<8x128xf32>
    %113 = arith.mulf %112, %111 : vector<8x128xf32>
    %114 = math.tanh %113 : vector<8x128xf32>
    %cst_58 = arith.constant 1.000000e+00 : f32
    %115 = vector.broadcast %cst_58 : f32 to vector<8x128xf32>
    %116 = arith.addf %115, %114 : vector<8x128xf32>
    %cst_59 = arith.constant 5.000000e-01 : f32
    %117 = vector.broadcast %cst_59 : f32 to vector<8x128xf32>
    %118 = arith.mulf %117, %116 : vector<8x128xf32>
    %119 = arith.mulf %106, %118 : vector<8x128xf32>
    %c0_60 = arith.constant 0 : index
    %c0_61 = arith.constant 0 : index
    %c0_62 = arith.constant 0 : index
    %120 = vector.load %arg13[%c0_60, %c0_61, %c0_62] : memref<2x128x32xbf16, #tpu.memory_space<vmem>>, vector<1x128x32xbf16>
    %121 = vector.shape_cast %120 : vector<1x128x32xbf16> to vector<128x32xbf16>
    %122 = arith.truncf %119 : vector<8x128xf32> to vector<8x128xbf16>
    %cst_63 = arith.constant dense<0.000000e+00> : vector<8x32xf32>
    %123 = tpu.matmul %122, %121, %cst_63 {dimension_numbers = #tpu.dot_dimension_numbers<[1], [0], [0], [1], [0, 0, 1, 1], [], []>} : vector<8x128xbf16>, vector<128x32xbf16>, vector<8x32xf32> -> vector<8x32xf32>
    %c0_64 = arith.constant 0 : index
    %c0_65 = arith.constant 0 : index
    %c0_66 = arith.constant 0 : index
    %124 = vector.load %arg14[%c0_64, %c0_65, %c0_66] : memref<2x1x32xf32, #tpu.memory_space<vmem>>, vector<1x1x32xf32>
    %125 = vector.shape_cast %124 : vector<1x1x32xf32> to vector<1x32xf32>
    %126 = vector.broadcast %125 : vector<1x32xf32> to vector<8x32xf32>
    %127 = arith.addf %123, %126 : vector<8x32xf32>
    %128 = arith.addf %127, %98 : vector<8x32xf32>
    %c0_67 = arith.constant 0 : index
    %c0_68 = arith.constant 0 : index
    %c0_69 = arith.constant 0 : index
    %129 = vector.load %arg15[%c0_67, %c0_68, %c0_69] : memref<2x1x32xf32, #tpu.memory_space<vmem>>, vector<1x1x32xf32>
    %130 = vector.shape_cast %129 : vector<1x1x32xf32> to vector<1x32xf32>
    %c0_70 = arith.constant 0 : index
    %c0_71 = arith.constant 0 : index
    %c0_72 = arith.constant 0 : index
    %131 = vector.load %arg16[%c0_70, %c0_71, %c0_72] : memref<2x1x32xf32, #tpu.memory_space<vmem>>, vector<1x1x32xf32>
    %132 = vector.shape_cast %131 : vector<1x1x32xf32> to vector<1x32xf32>
    %cst_73 = arith.constant dense<0.000000e+00> : vector<8xf32>
    %133 = vector.multi_reduction <add>, %128, %cst_73 [1] : vector<8x32xf32> to vector<8xf32>
    %134 = vector.shape_cast %133 : vector<8xf32> to vector<8x1xf32>
    %cst_74 = arith.constant 3.200000e+01 : f32
    %135 = vector.broadcast %cst_74 : f32 to vector<8x1xf32>
    %136 = arith.divf %134, %135 : vector<8x1xf32>
    %137 = vector.broadcast %136 : vector<8x1xf32> to vector<8x32xf32>
    %138 = arith.subf %128, %137 : vector<8x32xf32>
    %139 = arith.mulf %138, %138 : vector<8x32xf32>
    %cst_75 = arith.constant dense<0.000000e+00> : vector<8xf32>
    %140 = vector.multi_reduction <add>, %139, %cst_75 [1] : vector<8x32xf32> to vector<8xf32>
    %141 = vector.shape_cast %140 : vector<8xf32> to vector<8x1xf32>
    %cst_76 = arith.constant 3.200000e+01 : f32
    %142 = vector.broadcast %cst_76 : f32 to vector<8x1xf32>
    %143 = arith.divf %141, %142 : vector<8x1xf32>
    %144 = vector.broadcast %136 : vector<8x1xf32> to vector<8x32xf32>
    %145 = arith.subf %128, %144 : vector<8x32xf32>
    %cst_77 = arith.constant 9.99999996E-13 : f32
    %146 = vector.broadcast %cst_77 : f32 to vector<8x1xf32>
    %147 = arith.addf %143, %146 : vector<8x1xf32>
    %148 = math.rsqrt %147 : vector<8x1xf32>
    %149 = vector.broadcast %148 : vector<8x1xf32> to vector<8x32xf32>
    %150 = arith.mulf %145, %149 : vector<8x32xf32>
    %151 = vector.broadcast %130 : vector<1x32xf32> to vector<8x32xf32>
    %152 = arith.mulf %150, %151 : vector<8x32xf32>
    %153 = vector.broadcast %132 : vector<1x32xf32> to vector<8x32xf32>
    %154 = arith.addf %152, %153 : vector<8x32xf32>
    %155 = arith.truncf %154 : vector<8x32xf32> to vector<8x32xbf16>
    %156 = vector.shape_cast %155 : vector<8x32xbf16> to vector<1x8x32xbf16>
    %157 = vector.shape_cast %156 : vector<1x8x32xbf16> to vector<1x8x32xbf16>
    %158 = vector.broadcast %157 : vector<1x8x32xbf16> to vector<4x8x32xbf16>
    %c1 = arith.constant 1 : index
    %c0_78 = arith.constant 0 : index
    %c0_79 = arith.constant 0 : index
    %c0_80 = arith.constant 0 : index
    %159 = vector.load %arg5[%c1, %c0_78, %c0_79, %c0_80] : memref<2x4x32x24xbf16, #tpu.memory_space<vmem>>, vector<1x4x32x24xbf16>
    %160 = vector.shape_cast %159 : vector<1x4x32x24xbf16> to vector<4x32x24xbf16>
    %c1_81 = arith.constant 1 : index
    %c0_82 = arith.constant 0 : index
    %c0_83 = arith.constant 0 : index
    %c0_84 = arith.constant 0 : index
    %161 = vector.load %arg6[%c1_81, %c0_82, %c0_83, %c0_84] : memref<2x4x1x24xf32, #tpu.memory_space<vmem>>, vector<1x4x1x24xf32>
    %162 = vector.shape_cast %161 : vector<1x4x1x24xf32> to vector<4x1x24xf32>
    %cst_85 = arith.constant dense<0.000000e+00> : vector<4x8x24xf32>
    %163 = tpu.matmul %158, %160, %cst_85 {dimension_numbers = #tpu.dot_dimension_numbers<[2], [1], [1], [2], [0, 0, 0, 1, 1, 2], [0], [0]>} : vector<4x8x32xbf16>, vector<4x32x24xbf16>, vector<4x8x24xf32> -> vector<4x8x24xf32>
    %164 = vector.broadcast %162 : vector<4x1x24xf32> to vector<4x8x24xf32>
    %165 = arith.addf %163, %164 : vector<4x8x24xf32>
    %166 = arith.truncf %165 : vector<4x8x24xf32> to vector<4x8x24xbf16>
    %167 = vector.extract_strided_slice %166 {offsets = [0, 0, 0], sizes = [4, 8, 8], strides = [1, 1, 1]} : vector<4x8x24xbf16> to vector<4x8x8xbf16>
    %168 = vector.extract_strided_slice %166 {offsets = [0, 0, 8], sizes = [4, 8, 8], strides = [1, 1, 1]} : vector<4x8x24xbf16> to vector<4x8x8xbf16>
    %169 = vector.extract_strided_slice %166 {offsets = [0, 0, 16], sizes = [4, 8, 8], strides = [1, 1, 1]} : vector<4x8x24xbf16> to vector<4x8x8xbf16>
    %cst_86 = arith.constant dense<0.000000e+00> : vector<4x8x8xf32>
    %170 = tpu.matmul %167, %168, %cst_86 {dimension_numbers = #tpu.dot_dimension_numbers<[2], [2], [1], [1], [0, 0, 0, 1, 1, 1], [0], [0]>} : vector<4x8x8xbf16>, vector<4x8x8xbf16>, vector<4x8x8xf32> -> vector<4x8x8xf32>
    %cst_87 = arith.constant 0.353553385 : f32
    %171 = vector.broadcast %cst_87 : f32 to vector<4x8x8xf32>
    %172 = arith.mulf %170, %171 : vector<4x8x8xf32>
    %173 = vector.broadcast %30 : vector<1x1x8xf32> to vector<4x8x8xf32>
    %174 = arith.addf %172, %173 : vector<4x8x8xf32>
    %cst_88 = arith.constant dense<0xFF800000> : vector<4x8xf32>
    %175 = vector.multi_reduction <maximumf>, %174, %cst_88 [2] : vector<4x8x8xf32> to vector<4x8xf32>
    %176 = vector.shape_cast %175 : vector<4x8xf32> to vector<4x8x1xf32>
    %177 = vector.broadcast %176 : vector<4x8x1xf32> to vector<4x8x8xf32>
    %178 = arith.subf %174, %177 : vector<4x8x8xf32>
    %179 = math.exp %178 : vector<4x8x8xf32>
    %cst_89 = arith.constant dense<0.000000e+00> : vector<4x8xf32>
    %180 = vector.multi_reduction <add>, %179, %cst_89 [2] : vector<4x8x8xf32> to vector<4x8xf32>
    %181 = vector.shape_cast %180 : vector<4x8xf32> to vector<4x8x1xf32>
    %182 = tpu.reciprocal %181 {approx = true} : vector<4x8x1xf32> -> vector<4x8x1xf32>
    %183 = vector.broadcast %182 : vector<4x8x1xf32> to vector<4x8x8xf32>
    %184 = arith.mulf %179, %183 : vector<4x8x8xf32>
    %185 = arith.truncf %184 : vector<4x8x8xf32> to vector<4x8x8xbf16>
    %cst_90 = arith.constant dense<0.000000e+00> : vector<4x8x8xf32>
    %186 = tpu.matmul %185, %169, %cst_90 {dimension_numbers = #tpu.dot_dimension_numbers<[2], [1], [1], [2], [0, 0, 0, 1, 1, 2], [0], [0]>} : vector<4x8x8xbf16>, vector<4x8x8xbf16>, vector<4x8x8xf32> -> vector<4x8x8xf32>
    %c1_91 = arith.constant 1 : index
    %c0_92 = arith.constant 0 : index
    %c0_93 = arith.constant 0 : index
    %c0_94 = arith.constant 0 : index
    %187 = vector.load %arg7[%c1_91, %c0_92, %c0_93, %c0_94] : memref<2x4x8x32xbf16, #tpu.memory_space<vmem>>, vector<1x4x8x32xbf16>
    %188 = vector.shape_cast %187 : vector<1x4x8x32xbf16> to vector<4x8x32xbf16>
    %c1_95 = arith.constant 1 : index
    %c0_96 = arith.constant 0 : index
    %c0_97 = arith.constant 0 : index
    %189 = vector.load %arg8[%c1_95, %c0_96, %c0_97] : memref<2x1x32xf32, #tpu.memory_space<vmem>>, vector<1x1x32xf32>
    %190 = vector.shape_cast %189 : vector<1x1x32xf32> to vector<1x32xf32>
    %191 = arith.truncf %186 : vector<4x8x8xf32> to vector<4x8x8xbf16>
    %cst_98 = arith.constant dense<0.000000e+00> : vector<4x8x32xf32>
    %192 = tpu.matmul %191, %188, %cst_98 {dimension_numbers = #tpu.dot_dimension_numbers<[2], [1], [1], [2], [0, 0, 0, 1, 1, 2], [0], [0]>} : vector<4x8x8xbf16>, vector<4x8x32xbf16>, vector<4x8x32xf32> -> vector<4x8x32xf32>
    %cst_99 = arith.constant dense<0.000000e+00> : vector<8x32xf32>
    %193 = vector.multi_reduction <add>, %192, %cst_99 [0] : vector<4x8x32xf32> to vector<8x32xf32>
    %194 = vector.broadcast %190 : vector<1x32xf32> to vector<8x32xf32>
    %195 = arith.addf %193, %194 : vector<8x32xf32>
    %196 = arith.addf %195, %154 : vector<8x32xf32>
    %c1_100 = arith.constant 1 : index
    %c0_101 = arith.constant 0 : index
    %c0_102 = arith.constant 0 : index
    %197 = vector.load %arg9[%c1_100, %c0_101, %c0_102] : memref<2x1x32xf32, #tpu.memory_space<vmem>>, vector<1x1x32xf32>
    %198 = vector.shape_cast %197 : vector<1x1x32xf32> to vector<1x32xf32>
    %c1_103 = arith.constant 1 : index
    %c0_104 = arith.constant 0 : index
    %c0_105 = arith.constant 0 : index
    %199 = vector.load %arg10[%c1_103, %c0_104, %c0_105] : memref<2x1x32xf32, #tpu.memory_space<vmem>>, vector<1x1x32xf32>
    %200 = vector.shape_cast %199 : vector<1x1x32xf32> to vector<1x32xf32>
    %cst_106 = arith.constant dense<0.000000e+00> : vector<8xf32>
    %201 = vector.multi_reduction <add>, %196, %cst_106 [1] : vector<8x32xf32> to vector<8xf32>
    %202 = vector.shape_cast %201 : vector<8xf32> to vector<8x1xf32>
    %cst_107 = arith.constant 3.200000e+01 : f32
    %203 = vector.broadcast %cst_107 : f32 to vector<8x1xf32>
    %204 = arith.divf %202, %203 : vector<8x1xf32>
    %205 = vector.broadcast %204 : vector<8x1xf32> to vector<8x32xf32>
    %206 = arith.subf %196, %205 : vector<8x32xf32>
    %207 = arith.mulf %206, %206 : vector<8x32xf32>
    %cst_108 = arith.constant dense<0.000000e+00> : vector<8xf32>
    %208 = vector.multi_reduction <add>, %207, %cst_108 [1] : vector<8x32xf32> to vector<8xf32>
    %209 = vector.shape_cast %208 : vector<8xf32> to vector<8x1xf32>
    %cst_109 = arith.constant 3.200000e+01 : f32
    %210 = vector.broadcast %cst_109 : f32 to vector<8x1xf32>
    %211 = arith.divf %209, %210 : vector<8x1xf32>
    %212 = vector.broadcast %204 : vector<8x1xf32> to vector<8x32xf32>
    %213 = arith.subf %196, %212 : vector<8x32xf32>
    %cst_110 = arith.constant 9.99999996E-13 : f32
    %214 = vector.broadcast %cst_110 : f32 to vector<8x1xf32>
    %215 = arith.addf %211, %214 : vector<8x1xf32>
    %216 = math.rsqrt %215 : vector<8x1xf32>
    %217 = vector.broadcast %216 : vector<8x1xf32> to vector<8x32xf32>
    %218 = arith.mulf %213, %217 : vector<8x32xf32>
    %219 = vector.broadcast %198 : vector<1x32xf32> to vector<8x32xf32>
    %220 = arith.mulf %218, %219 : vector<8x32xf32>
    %221 = vector.broadcast %200 : vector<1x32xf32> to vector<8x32xf32>
    %222 = arith.addf %220, %221 : vector<8x32xf32>
    %c1_111 = arith.constant 1 : index
    %c0_112 = arith.constant 0 : index
    %c0_113 = arith.constant 0 : index
    %223 = vector.load %arg11[%c1_111, %c0_112, %c0_113] : memref<2x32x128xbf16, #tpu.memory_space<vmem>>, vector<1x32x128xbf16>
    %224 = vector.shape_cast %223 : vector<1x32x128xbf16> to vector<32x128xbf16>
    %225 = arith.truncf %222 : vector<8x32xf32> to vector<8x32xbf16>
    %cst_114 = arith.constant dense<0.000000e+00> : vector<8x128xf32>
    %226 = tpu.matmul %225, %224, %cst_114 {dimension_numbers = #tpu.dot_dimension_numbers<[1], [0], [0], [1], [0, 0, 1, 1], [], []>} : vector<8x32xbf16>, vector<32x128xbf16>, vector<8x128xf32> -> vector<8x128xf32>
    %c1_115 = arith.constant 1 : index
    %c0_116 = arith.constant 0 : index
    %c0_117 = arith.constant 0 : index
    %227 = vector.load %arg12[%c1_115, %c0_116, %c0_117] : memref<2x1x128xf32, #tpu.memory_space<vmem>>, vector<1x1x128xf32>
    %228 = vector.shape_cast %227 : vector<1x1x128xf32> to vector<1x128xf32>
    %229 = vector.broadcast %228 : vector<1x128xf32> to vector<8x128xf32>
    %230 = arith.addf %226, %229 : vector<8x128xf32>
    %231 = arith.mulf %230, %230 : vector<8x128xf32>
    %232 = arith.mulf %230, %231 : vector<8x128xf32>
    %cst_118 = arith.constant 4.471500e-02 : f32
    %233 = vector.broadcast %cst_118 : f32 to vector<8x128xf32>
    %234 = arith.mulf %233, %232 : vector<8x128xf32>
    %235 = arith.addf %230, %234 : vector<8x128xf32>
    %cst_119 = arith.constant 0.797884583 : f32
    %236 = vector.broadcast %cst_119 : f32 to vector<8x128xf32>
    %237 = arith.mulf %236, %235 : vector<8x128xf32>
    %238 = math.tanh %237 : vector<8x128xf32>
    %cst_120 = arith.constant 1.000000e+00 : f32
    %239 = vector.broadcast %cst_120 : f32 to vector<8x128xf32>
    %240 = arith.addf %239, %238 : vector<8x128xf32>
    %cst_121 = arith.constant 5.000000e-01 : f32
    %241 = vector.broadcast %cst_121 : f32 to vector<8x128xf32>
    %242 = arith.mulf %241, %240 : vector<8x128xf32>
    %243 = arith.mulf %230, %242 : vector<8x128xf32>
    %c1_122 = arith.constant 1 : index
    %c0_123 = arith.constant 0 : index
    %c0_124 = arith.constant 0 : index
    %244 = vector.load %arg13[%c1_122, %c0_123, %c0_124] : memref<2x128x32xbf16, #tpu.memory_space<vmem>>, vector<1x128x32xbf16>
    %245 = vector.shape_cast %244 : vector<1x128x32xbf16> to vector<128x32xbf16>
    %246 = arith.truncf %243 : vector<8x128xf32> to vector<8x128xbf16>
    %cst_125 = arith.constant dense<0.000000e+00> : vector<8x32xf32>
    %247 = tpu.matmul %246, %245, %cst_125 {dimension_numbers = #tpu.dot_dimension_numbers<[1], [0], [0], [1], [0, 0, 1, 1], [], []>} : vector<8x128xbf16>, vector<128x32xbf16>, vector<8x32xf32> -> vector<8x32xf32>
    %c1_126 = arith.constant 1 : index
    %c0_127 = arith.constant 0 : index
    %c0_128 = arith.constant 0 : index
    %248 = vector.load %arg14[%c1_126, %c0_127, %c0_128] : memref<2x1x32xf32, #tpu.memory_space<vmem>>, vector<1x1x32xf32>
    %249 = vector.shape_cast %248 : vector<1x1x32xf32> to vector<1x32xf32>
    %250 = vector.broadcast %249 : vector<1x32xf32> to vector<8x32xf32>
    %251 = arith.addf %247, %250 : vector<8x32xf32>
    %252 = arith.addf %251, %222 : vector<8x32xf32>
    %c1_129 = arith.constant 1 : index
    %c0_130 = arith.constant 0 : index
    %c0_131 = arith.constant 0 : index
    %253 = vector.load %arg15[%c1_129, %c0_130, %c0_131] : memref<2x1x32xf32, #tpu.memory_space<vmem>>, vector<1x1x32xf32>
    %254 = vector.shape_cast %253 : vector<1x1x32xf32> to vector<1x32xf32>
    %c1_132 = arith.constant 1 : index
    %c0_133 = arith.constant 0 : index
    %c0_134 = arith.constant 0 : index
    %255 = vector.load %arg16[%c1_132, %c0_133, %c0_134] : memref<2x1x32xf32, #tpu.memory_space<vmem>>, vector<1x1x32xf32>
    %256 = vector.shape_cast %255 : vector<1x1x32xf32> to vector<1x32xf32>
    %cst_135 = arith.constant dense<0.000000e+00> : vector<8xf32>
    %257 = vector.multi_reduction <add>, %252, %cst_135 [1] : vector<8x32xf32> to vector<8xf32>
    %258 = vector.shape_cast %257 : vector<8xf32> to vector<8x1xf32>
    %cst_136 = arith.constant 3.200000e+01 : f32
    %259 = vector.broadcast %cst_136 : f32 to vector<8x1xf32>
    %260 = arith.divf %258, %259 : vector<8x1xf32>
    %261 = vector.broadcast %260 : vector<8x1xf32> to vector<8x32xf32>
    %262 = arith.subf %252, %261 : vector<8x32xf32>
    %263 = arith.mulf %262, %262 : vector<8x32xf32>
    %cst_137 = arith.constant dense<0.000000e+00> : vector<8xf32>
    %264 = vector.multi_reduction <add>, %263, %cst_137 [1] : vector<8x32xf32> to vector<8xf32>
    %265 = vector.shape_cast %264 : vector<8xf32> to vector<8x1xf32>
    %cst_138 = arith.constant 3.200000e+01 : f32
    %266 = vector.broadcast %cst_138 : f32 to vector<8x1xf32>
    %267 = arith.divf %265, %266 : vector<8x1xf32>
    %268 = vector.broadcast %260 : vector<8x1xf32> to vector<8x32xf32>
    %269 = arith.subf %252, %268 : vector<8x32xf32>
    %cst_139 = arith.constant 9.99999996E-13 : f32
    %270 = vector.broadcast %cst_139 : f32 to vector<8x1xf32>
    %271 = arith.addf %267, %270 : vector<8x1xf32>
    %272 = math.rsqrt %271 : vector<8x1xf32>
    %273 = vector.broadcast %272 : vector<8x1xf32> to vector<8x32xf32>
    %274 = arith.mulf %269, %273 : vector<8x32xf32>
    %275 = vector.broadcast %254 : vector<1x32xf32> to vector<8x32xf32>
    %276 = arith.mulf %274, %275 : vector<8x32xf32>
    %277 = vector.broadcast %256 : vector<1x32xf32> to vector<8x32xf32>
    %278 = arith.addf %276, %277 : vector<8x32xf32>
    %c0_140 = arith.constant 0 : index
    %c0_141 = arith.constant 0 : index
    %c0_142 = arith.constant 0 : index
    %279 = vector.load %arg17[%c0_140, %c0_141, %c0_142] : memref<1x8x32xf32, #tpu.memory_space<vmem>>, vector<1x8x32xf32>
    %280 = vector.shape_cast %279 : vector<1x8x32xf32> to vector<8x32xf32>
    %281 = vector.shape_cast %278 : vector<8x32xf32> to vector<1x8x32xf32>
    tpu.vector_store %arg17[%c0_140, %c0_141, %c0_142], %281 {strides = array<i32>} : memref<1x8x32xf32, #tpu.memory_space<vmem>>, vector<1x8x32xf32>,
    return
  }
  func.func @transform_0(%arg0: i32) -> (i32, i32, i32) {
    %c0_i32 = arith.constant 0 : i32
    %c0_i32_0 = arith.constant 0 : i32
    %c0_i32_1 = arith.constant 0 : i32
    return %arg0, %c0_i32, %c0_i32_0 : i32, i32, i32
  }
  func.func @transform_1(%arg0: i32) -> (i32, i32, i32) {
    %c0_i32 = arith.constant 0 : i32
    %c0_i32_0 = arith.constant 0 : i32
    %c0_i32_1 = arith.constant 0 : i32
    return %arg0, %c0_i32, %c0_i32_0 : i32, i32, i32
  }
  func.func @transform_2(%arg0: i32) -> (i32, i32) {
    %c0_i32 = arith.constant 0 : i32
    %c0_i32_0 = arith.constant 0 : i32
    %c0_i32_1 = arith.constant 0 : i32
    return %c0_i32, %c0_i32_0 : i32, i32
  }
  func.func @transform_3(%arg0: i32) -> (i32, i32) {
    %c0_i32 = arith.constant 0 : i32
    %c0_i32_0 = arith.constant 0 : i32
    %c0_i32_1 = arith.constant 0 : i32
    return %c0_i32, %c0_i32_0 : i32, i32
  }
  func.func @transform_4(%arg0: i32) -> (i32, i32, i32, i32) {
    %c0_i32 = arith.constant 0 : i32
    %c0_i32_0 = arith.constant 0 : i32
    %c0_i32_1 = arith.constant 0 : i32
    %c0_i32_2 = arith.constant 0 : i32
    %c0_i32_3 = arith.constant 0 : i32
    return %c0_i32, %c0_i32_0, %c0_i32_1, %c0_i32_2 : i32, i32, i32, i32
  }
  func.func @transform_5(%arg0: i32) -> (i32, i32, i32, i32) {
    %c0_i32 = arith.constant 0 : i32
    %c0_i32_0 = arith.constant 0 : i32
    %c0_i32_1 = arith.constant 0 : i32
    %c0_i32_2 = arith.constant 0 : i32
    %c0_i32_3 = arith.constant 0 : i32
    return %c0_i32, %c0_i32_0, %c0_i32_1, %c0_i32_2 : i32, i32, i32, i32
  }
  func.func @transform_6(%arg0: i32) -> (i32, i32, i32, i32) {
    %c0_i32 = arith.constant 0 : i32
    %c0_i32_0 = arith.constant 0 : i32
    %c0_i32_1 = arith.constant 0 : i32
    %c0_i32_2 = arith.constant 0 : i32
    %c0_i32_3 = arith.constant 0 : i32
    return %c0_i32, %c0_i32_0, %c0_i32_1, %c0_i32_2 : i32, i32, i32, i32
  }
  func.func @transform_7(%arg0: i32) -> (i32, i32, i32) {
    %c0_i32 = arith.constant 0 : i32
    %c0_i32_0 = arith.constant 0 : i32
    %c0_i32_1 = arith.constant 0 : i32
    %c0_i32_2 = arith.constant 0 : i32
    return %c0_i32, %c0_i32_0, %c0_i32_1 : i32, i32, i32
  }
  func.func @transform_8(%arg0: i32) -> (i32, i32, i32) {
    %c0_i32 = arith.constant 0 : i32
    %c0_i32_0 = arith.constant 0 : i32
    %c0_i32_1 = arith.constant 0 : i32
    %c0_i32_2 = arith.constant 0 : i32
    return %c0_i32, %c0_i32_0, %c0_i32_1 : i32, i32, i32
  }
  func.func @transform_9(%arg0: i32) -> (i32, i32, i32) {
    %c0_i32 = arith.constant 0 : i32
    %c0_i32_0 = arith.constant 0 : i32
    %c0_i32_1 = arith.constant 0 : i32
    %c0_i32_2 = arith.constant 0 : i32
    return %c0_i32, %c0_i32_0, %c0_i32_1 : i32, i32, i32
  }
  func.func @transform_10(%arg0: i32) -> (i32, i32, i32) {
    %c0_i32 = arith.constant 0 : i32
    %c0_i32_0 = arith.constant 0 : i32
    %c0_i32_1 = arith.constant 0 : i32
    %c0_i32_2 = arith.constant 0 : i32
    return %c0_i32, %c0_i32_0, %c0_i32_1 : i32, i32, i32
  }
  func.func @transform_11(%arg0: i32) -> (i32, i32, i32) {
    %c0_i32 = arith.constant 0 : i32
    %c0_i32_0 = arith.constant 0 : i32
    %c0_i32_1 = arith.constant 0 : i32
    %c0_i32_2 = arith.constant 0 : i32
    return %c0_i32, %c0_i32_0, %c0_i32_1 : i32, i32, i32
  }
  func.func @transform_12(%arg0: i32) -> (i32, i32, i32) {
    %c0_i32 = arith.constant 0 : i32
    %c0_i32_0 = arith.constant 0 : i32
    %c0_i32_1 = arith.constant 0 : i32
    %c0_i32_2 = arith.constant 0 : i32
    return %c0_i32, %c0_i32_0, %c0_i32_1 : i32, i32, i32
  }
  func.func @transform_13(%arg0: i32) -> (i32, i32, i32) {
    %c0_i32 = arith.constant 0 : i32
    %c0_i32_0 = arith.constant 0 : i32
    %c0_i32_1 = arith.constant 0 : i32
    %c0_i32_2 = arith.constant 0 : i32
    return %c0_i32, %c0_i32_0, %c0_i32_1 : i32, i32, i32
  }
  func.func @transform_14(%arg0: i32) -> (i32, i32, i32) {
    %c0_i32 = arith.constant 0 : i32
    %c0_i32_0 = arith.constant 0 : i32
    %c0_i32_1 = arith.constant 0 : i32
    %c0_i32_2 = arith.constant 0 : i32
    return %c0_i32, %c0_i32_0, %c0_i32_1 : i32, i32, i32
  }
  func.func @transform_15(%arg0: i32) -> (i32, i32, i32) {
    %c0_i32 = arith.constant 0 : i32
    %c0_i32_0 = arith.constant 0 : i32
    %c0_i32_1 = arith.constant 0 : i32
    %c0_i32_2 = arith.constant 0 : i32
    return %c0_i32, %c0_i32_0, %c0_i32_1 : i32, i32, i32
  }
  func.func @transform_16(%arg0: i32) -> (i32, i32, i32) {
    %c0_i32 = arith.constant 0 : i32
    %c0_i32_0 = arith.constant 0 : i32
    %c0_i32_1 = arith.constant 0 : i32
    return %arg0, %c0_i32, %c0_i32_0 : i32, i32, i32
  }
}

module attributes {stable_mosaic.version = 11 : i64} {
  func.func @_ita_kernel(%arg0: i32, %arg1: memref<2x32xf32, #tpu.memory_space<vmem>>, %arg2: memref<2x32xf32, #tpu.memory_space<vmem>>, %arg3: memref<32x16xf32, #tpu.memory_space<vmem>>, %arg4: memref<1x16xf32, #tpu.memory_space<vmem>>, %arg5: memref<32x16xf32, #tpu.memory_space<vmem>>, %arg6: memref<1x16xf32, #tpu.memory_space<vmem>>, %arg7: memref<1x1xf32, #tpu.memory_space<smem>>, %arg8: memref<2x2xf32, #tpu.memory_space<vmem>>, %arg9: memref<1x1xf32, #tpu.memory_space<vmem>>) attributes {dimension_semantics = [#tpu.dimension_semantics<arbitrary>], iteration_bounds = array<i64: 1>, scalar_prefetch = 0 : i64, scratch_operands = 0 : i64, tpu.core_type = #tpu.core_type<tc>, window_params = [{pipeline_mode = #tpu.pipeline_mode<synchronous>, transform_indices = @transform_0, window_bounds = array<i64: 2, 32>}, {pipeline_mode = #tpu.pipeline_mode<synchronous>, transform_indices = @transform_1, window_bounds = array<i64: 2, 32>}, {pipeline_mode = #tpu.pipeline_mode<synchronous>, transform_indices = @transform_2, window_bounds = array<i64: 32, 16>}, {pipeline_mode = #tpu.pipeline_mode<synchronous>, transform_indices = @transform_3, window_bounds = array<i64: 1, 16>}, {pipeline_mode = #tpu.pipeline_mode<synchronous>, transform_indices = @transform_4, window_bounds = array<i64: 32, 16>}, {pipeline_mode = #tpu.pipeline_mode<synchronous>, transform_indices = @transform_5, window_bounds = array<i64: 1, 16>}, {transform_indices = @transform_6, window_bounds = array<i64: 1, 1>}, {pipeline_mode = #tpu.pipeline_mode<synchronous>, transform_indices = @transform_7, window_bounds = array<i64: 2, 2>}, {pipeline_mode = #tpu.pipeline_mode<synchronous>, transform_indices = @transform_8, window_bounds = array<i64: 1, 1>}]} {
    %c0 = arith.constant 0 : index
    %c0_0 = arith.constant 0 : index
    %0 = memref.load %arg7[%c0, %c0_0] : memref<1x1xf32, #tpu.memory_space<smem>>
    %c0_1 = arith.constant 0 : index
    %c0_2 = arith.constant 0 : index
    %1 = vector.load %arg1[%c0_1, %c0_2] : memref<2x32xf32, #tpu.memory_space<vmem>>, vector<2x32xf32>
    %c0_3 = arith.constant 0 : index
    %c0_4 = arith.constant 0 : index
    %2 = vector.load %arg3[%c0_3, %c0_4] : memref<32x16xf32, #tpu.memory_space<vmem>>, vector<32x16xf32>
    %c0_5 = arith.constant 0 : index
    %c0_6 = arith.constant 0 : index
    %3 = vector.load %arg4[%c0_5, %c0_6] : memref<1x16xf32, #tpu.memory_space<vmem>>, vector<1x16xf32>
    %cst = arith.constant dense<0.000000e+00> : vector<2x16xf32>
    %4 = tpu.matmul %1, %2, %cst {dimension_numbers = #tpu.dot_dimension_numbers<[1], [0], [0], [1], [0, 0, 1, 1], [], []>} : vector<2x32xf32>, vector<32x16xf32>, vector<2x16xf32> -> vector<2x16xf32>
    %5 = vector.broadcast %3 : vector<1x16xf32> to vector<2x16xf32>
    %6 = arith.addf %4, %5 : vector<2x16xf32>
    %7 = arith.mulf %6, %6 : vector<2x16xf32>
    %cst_7 = arith.constant dense<0.000000e+00> : vector<2xf32>
    %8 = vector.multi_reduction <add>, %7, %cst_7 [1] : vector<2x16xf32> to vector<2xf32>
    %9 = vector.shape_cast %8 : vector<2xf32> to vector<2x1xf32>
    %10 = math.sqrt %9 : vector<2x1xf32>
    %cst_8 = arith.constant 9.99999996E-13 : f32
    %11 = vector.broadcast %cst_8 : f32 to vector<2x1xf32>
    %12 = arith.maximumf %10, %11 : vector<2x1xf32>
    %13 = tpu.reciprocal %12 : vector<2x1xf32> -> vector<2x1xf32>
    %14 = vector.broadcast %13 : vector<2x1xf32> to vector<2x16xf32>
    %15 = arith.mulf %6, %14 : vector<2x16xf32>
    %c0_9 = arith.constant 0 : index
    %c0_10 = arith.constant 0 : index
    %16 = vector.load %arg2[%c0_9, %c0_10] : memref<2x32xf32, #tpu.memory_space<vmem>>, vector<2x32xf32>
    %c0_11 = arith.constant 0 : index
    %c0_12 = arith.constant 0 : index
    %17 = vector.load %arg5[%c0_11, %c0_12] : memref<32x16xf32, #tpu.memory_space<vmem>>, vector<32x16xf32>
    %c0_13 = arith.constant 0 : index
    %c0_14 = arith.constant 0 : index
    %18 = vector.load %arg6[%c0_13, %c0_14] : memref<1x16xf32, #tpu.memory_space<vmem>>, vector<1x16xf32>
    %cst_15 = arith.constant dense<0.000000e+00> : vector<2x16xf32>
    %19 = tpu.matmul %16, %17, %cst_15 {dimension_numbers = #tpu.dot_dimension_numbers<[1], [0], [0], [1], [0, 0, 1, 1], [], []>} : vector<2x32xf32>, vector<32x16xf32>, vector<2x16xf32> -> vector<2x16xf32>
    %20 = vector.broadcast %18 : vector<1x16xf32> to vector<2x16xf32>
    %21 = arith.addf %19, %20 : vector<2x16xf32>
    %22 = arith.mulf %21, %21 : vector<2x16xf32>
    %cst_16 = arith.constant dense<0.000000e+00> : vector<2xf32>
    %23 = vector.multi_reduction <add>, %22, %cst_16 [1] : vector<2x16xf32> to vector<2xf32>
    %24 = vector.shape_cast %23 : vector<2xf32> to vector<2x1xf32>
    %25 = math.sqrt %24 : vector<2x1xf32>
    %cst_17 = arith.constant 9.99999996E-13 : f32
    %26 = vector.broadcast %cst_17 : f32 to vector<2x1xf32>
    %27 = arith.maximumf %25, %26 : vector<2x1xf32>
    %28 = tpu.reciprocal %27 : vector<2x1xf32> -> vector<2x1xf32>
    %29 = vector.broadcast %28 : vector<2x1xf32> to vector<2x16xf32>
    %30 = arith.mulf %21, %29 : vector<2x16xf32>
    %cst_18 = arith.constant dense<0.000000e+00> : vector<2x2xf32>
    %31 = tpu.matmul %15, %30, %cst_18 {dimension_numbers = #tpu.dot_dimension_numbers<[1], [1], [0], [0], [0, 0, 1, 0], [], []>} : vector<2x16xf32>, vector<2x16xf32>, vector<2x2xf32> -> vector<2x2xf32>
    %32 = vector.broadcast %0 : f32 to vector<2x2xf32>
    %33 = arith.mulf %31, %32 : vector<2x2xf32>
    %cst_19 = arith.constant dense<0.000000e+00> : vector<2x2xf32>
    %34 = tpu.matmul %30, %15, %cst_19 {dimension_numbers = #tpu.dot_dimension_numbers<[1], [1], [0], [0], [0, 0, 1, 0], [], []>} : vector<2x16xf32>, vector<2x16xf32>, vector<2x2xf32> -> vector<2x2xf32>
    %35 = vector.broadcast %0 : f32 to vector<2x2xf32>
    %36 = arith.mulf %34, %35 : vector<2x2xf32>
    %37 = tpu.iota {dimensions = array<i32: 0>} : vector<2x2xi32>
    %38 = tpu.iota {dimensions = array<i32: 1>} : vector<2x2xi32>
    %39 = arith.cmpi eq, %37, %38 : vector<2x2xi32>
    %40 = arith.extui %39 : vector<2x2xi1> to vector<2x2xi32>
    %41 = arith.sitofp %40 : vector<2x2xi32> to vector<2x2xf32>
    %cst_20 = arith.constant dense<0xFF800000> : vector<2xf32>
    %42 = vector.multi_reduction <maximumf>, %33, %cst_20 [1] : vector<2x2xf32> to vector<2xf32>
    %43 = vector.shape_cast %42 : vector<2xf32> to vector<2x1xf32>
    %44 = vector.broadcast %43 : vector<2x1xf32> to vector<2x2xf32>
    %45 = arith.subf %33, %44 : vector<2x2xf32>
    %46 = math.exp %45 : vector<2x2xf32>
    %cst_21 = arith.constant dense<0.000000e+00> : vector<2xf32>
    %47 = vector.multi_reduction <add>, %46, %cst_21 [1] : vector<2x2xf32> to vector<2xf32>
    %48 = vector.shape_cast %47 : vector<2xf32> to vector<2x1xf32>
    %49 = math.log %48 : vector<2x1xf32>
    %50 = arith.addf %49, %43 : vector<2x1xf32>
    %51 = arith.mulf %33, %41 : vector<2x2xf32>
    %cst_22 = arith.constant dense<0.000000e+00> : vector<2xf32>
    %52 = vector.multi_reduction <add>, %51, %cst_22 [1] : vector<2x2xf32> to vector<2xf32>
    %53 = vector.shape_cast %52 : vector<2xf32> to vector<2x1xf32>
    %54 = arith.subf %50, %53 : vector<2x1xf32>
    %cst_23 = arith.constant dense<0xFF800000> : vector<2xf32>
    %55 = vector.multi_reduction <maximumf>, %36, %cst_23 [1] : vector<2x2xf32> to vector<2xf32>
    %56 = vector.shape_cast %55 : vector<2xf32> to vector<2x1xf32>
    %57 = vector.broadcast %56 : vector<2x1xf32> to vector<2x2xf32>
    %58 = arith.subf %36, %57 : vector<2x2xf32>
    %59 = math.exp %58 : vector<2x2xf32>
    %cst_24 = arith.constant dense<0.000000e+00> : vector<2xf32>
    %60 = vector.multi_reduction <add>, %59, %cst_24 [1] : vector<2x2xf32> to vector<2xf32>
    %61 = vector.shape_cast %60 : vector<2xf32> to vector<2x1xf32>
    %62 = math.log %61 : vector<2x1xf32>
    %63 = arith.addf %62, %56 : vector<2x1xf32>
    %64 = arith.mulf %36, %41 : vector<2x2xf32>
    %cst_25 = arith.constant dense<0.000000e+00> : vector<2xf32>
    %65 = vector.multi_reduction <add>, %64, %cst_25 [1] : vector<2x2xf32> to vector<2xf32>
    %66 = vector.shape_cast %65 : vector<2xf32> to vector<2x1xf32>
    %67 = arith.subf %63, %66 : vector<2x1xf32>
    %68 = arith.addf %54, %67 : vector<2x1xf32>
    %cst_26 = arith.constant dense<0.000000e+00> : vector<1xf32>
    %69 = vector.multi_reduction <add>, %68, %cst_26 [0] : vector<2x1xf32> to vector<1xf32>
    %70 = vector.shape_cast %69 : vector<1xf32> to vector<1x1xf32>
    %cst_27 = arith.constant 2.500000e-01 : f32
    %71 = vector.broadcast %cst_27 : f32 to vector<1x1xf32>
    %72 = arith.mulf %70, %71 : vector<1x1xf32>
    %c0_28 = arith.constant 0 : index
    %c0_29 = arith.constant 0 : index
    %73 = vector.load %arg8[%c0_28, %c0_29] : memref<2x2xf32, #tpu.memory_space<vmem>>, vector<2x2xf32>
    tpu.vector_store %arg8[%c0_28, %c0_29], %33 {strides = array<i32>} : memref<2x2xf32, #tpu.memory_space<vmem>>, vector<2x2xf32>,
    %c0_30 = arith.constant 0 : index
    %c0_31 = arith.constant 0 : index
    %74 = vector.load %arg9[%c0_30, %c0_31] : memref<1x1xf32, #tpu.memory_space<vmem>>, vector<1x1xf32>
    tpu.vector_store %arg9[%c0_30, %c0_31], %72 {strides = array<i32>} : memref<1x1xf32, #tpu.memory_space<vmem>>, vector<1x1xf32>,
    return
  }
  func.func @transform_0(%arg0: i32) -> (i32, i32) {
    %c0_i32 = arith.constant 0 : i32
    %c0_i32_0 = arith.constant 0 : i32
    %c0_i32_1 = arith.constant 0 : i32
    return %c0_i32, %c0_i32_0 : i32, i32
  }
  func.func @transform_1(%arg0: i32) -> (i32, i32) {
    %c0_i32 = arith.constant 0 : i32
    %c0_i32_0 = arith.constant 0 : i32
    %c0_i32_1 = arith.constant 0 : i32
    return %c0_i32, %c0_i32_0 : i32, i32
  }
  func.func @transform_2(%arg0: i32) -> (i32, i32) {
    %c0_i32 = arith.constant 0 : i32
    %c0_i32_0 = arith.constant 0 : i32
    %c0_i32_1 = arith.constant 0 : i32
    return %c0_i32, %c0_i32_0 : i32, i32
  }
  func.func @transform_3(%arg0: i32) -> (i32, i32) {
    %c0_i32 = arith.constant 0 : i32
    %c0_i32_0 = arith.constant 0 : i32
    %c0_i32_1 = arith.constant 0 : i32
    return %c0_i32, %c0_i32_0 : i32, i32
  }
  func.func @transform_4(%arg0: i32) -> (i32, i32) {
    %c0_i32 = arith.constant 0 : i32
    %c0_i32_0 = arith.constant 0 : i32
    %c0_i32_1 = arith.constant 0 : i32
    return %c0_i32, %c0_i32_0 : i32, i32
  }
  func.func @transform_5(%arg0: i32) -> (i32, i32) {
    %c0_i32 = arith.constant 0 : i32
    %c0_i32_0 = arith.constant 0 : i32
    %c0_i32_1 = arith.constant 0 : i32
    return %c0_i32, %c0_i32_0 : i32, i32
  }
  func.func @transform_6(%arg0: i32) -> (i32, i32) {
    %c0_i32 = arith.constant 0 : i32
    %c0_i32_0 = arith.constant 0 : i32
    %c0_i32_1 = arith.constant 0 : i32
    return %c0_i32, %c0_i32_0 : i32, i32
  }
  func.func @transform_7(%arg0: i32) -> (i32, i32) {
    %c0_i32 = arith.constant 0 : i32
    %c0_i32_0 = arith.constant 0 : i32
    %c0_i32_1 = arith.constant 0 : i32
    return %c0_i32, %c0_i32_0 : i32, i32
  }
  func.func @transform_8(%arg0: i32) -> (i32, i32) {
    %c0_i32 = arith.constant 0 : i32
    %c0_i32_0 = arith.constant 0 : i32
    %c0_i32_1 = arith.constant 0 : i32
    return %c0_i32, %c0_i32_0 : i32, i32
  }
}

module attributes {stable_mosaic.version = 11 : i64} {
  func.func @_fusion_stack_itm_kernel(%arg0: i32, %arg1: memref<1x8x32xf32, #tpu.memory_space<vmem>>, %arg2: memref<1x1x8xf32, #tpu.memory_space<vmem>>, %arg3: memref<1x5x32xf32, #tpu.memory_space<vmem>>, %arg4: memref<2x4x32x24xbf16, #tpu.memory_space<vmem>>, %arg5: memref<2x4x1x24xf32, #tpu.memory_space<vmem>>, %arg6: memref<2x4x8x32xbf16, #tpu.memory_space<vmem>>, %arg7: memref<2x1x32xf32, #tpu.memory_space<vmem>>, %arg8: memref<2x1x32xf32, #tpu.memory_space<vmem>>, %arg9: memref<2x1x32xf32, #tpu.memory_space<vmem>>, %arg10: memref<2x4x32x8xbf16, #tpu.memory_space<vmem>>, %arg11: memref<2x4x1x8xf32, #tpu.memory_space<vmem>>, %arg12: memref<2x4x32x16xbf16, #tpu.memory_space<vmem>>, %arg13: memref<2x4x1x16xf32, #tpu.memory_space<vmem>>, %arg14: memref<2x4x8x32xbf16, #tpu.memory_space<vmem>>, %arg15: memref<2x1x32xf32, #tpu.memory_space<vmem>>, %arg16: memref<2x1x32xf32, #tpu.memory_space<vmem>>, %arg17: memref<2x1x32xf32, #tpu.memory_space<vmem>>, %arg18: memref<2x32x128xbf16, #tpu.memory_space<vmem>>, %arg19: memref<2x1x128xf32, #tpu.memory_space<vmem>>, %arg20: memref<2x128x32xbf16, #tpu.memory_space<vmem>>, %arg21: memref<2x1x32xf32, #tpu.memory_space<vmem>>, %arg22: memref<2x1x32xf32, #tpu.memory_space<vmem>>, %arg23: memref<2x1x32xf32, #tpu.memory_space<vmem>>, %arg24: memref<32x2xf32, #tpu.memory_space<vmem>>, %arg25: memref<1x2xf32, #tpu.memory_space<vmem>>, %arg26: memref<1x1x2xf32, #tpu.memory_space<vmem>>, %arg27: memref<1x1x1xf32, #tpu.memory_space<vmem>>) attributes {dimension_semantics = [#tpu.dimension_semantics<parallel>], iteration_bounds = array<i64: 6>, scalar_prefetch = 0 : i64, scratch_operands = 0 : i64, tpu.core_type = #tpu.core_type<tc>, window_params = [{transform_indices = @transform_0, window_bounds = array<i64: 1, 8, 32>}, {transform_indices = @transform_1, window_bounds = array<i64: 1, 1, 8>}, {transform_indices = @transform_2, window_bounds = array<i64: 1, 5, 32>}, {pipeline_mode = #tpu.pipeline_mode<synchronous>, transform_indices = @transform_3, window_bounds = array<i64: 2, 4, 32, 24>}, {pipeline_mode = #tpu.pipeline_mode<synchronous>, transform_indices = @transform_4, window_bounds = array<i64: 2, 4, 1, 24>}, {pipeline_mode = #tpu.pipeline_mode<synchronous>, transform_indices = @transform_5, window_bounds = array<i64: 2, 4, 8, 32>}, {pipeline_mode = #tpu.pipeline_mode<synchronous>, transform_indices = @transform_6, window_bounds = array<i64: 2, 1, 32>}, {pipeline_mode = #tpu.pipeline_mode<synchronous>, transform_indices = @transform_7, window_bounds = array<i64: 2, 1, 32>}, {pipeline_mode = #tpu.pipeline_mode<synchronous>, transform_indices = @transform_8, window_bounds = array<i64: 2, 1, 32>}, {pipeline_mode = #tpu.pipeline_mode<synchronous>, transform_indices = @transform_9, window_bounds = array<i64: 2, 4, 32, 8>}, {pipeline_mode = #tpu.pipeline_mode<synchronous>, transform_indices = @transform_10, window_bounds = array<i64: 2, 4, 1, 8>}, {pipeline_mode = #tpu.pipeline_mode<synchronous>, transform_indices = @transform_11, window_bounds = array<i64: 2, 4, 32, 16>}, {pipeline_mode = #tpu.pipeline_mode<synchronous>, transform_indices = @transform_12, window_bounds = array<i64: 2, 4, 1, 16>}, {pipeline_mode = #tpu.pipeline_mode<synchronous>, transform_indices = @transform_13, window_bounds = array<i64: 2, 4, 8, 32>}, {pipeline_mode = #tpu.pipeline_mode<synchronous>, transform_indices = @transform_14, window_bounds = array<i64: 2, 1, 32>}, {pipeline_mode = #tpu.pipeline_mode<synchronous>, transform_indices = @transform_15, window_bounds = array<i64: 2, 1, 32>}, {pipeline_mode = #tpu.pipeline_mode<synchronous>, transform_indices = @transform_16, window_bounds = array<i64: 2, 1, 32>}, {pipeline_mode = #tpu.pipeline_mode<synchronous>, transform_indices = @transform_17, window_bounds = array<i64: 2, 32, 128>}, {pipeline_mode = #tpu.pipeline_mode<synchronous>, transform_indices = @transform_18, window_bounds = array<i64: 2, 1, 128>}, {pipeline_mode = #tpu.pipeline_mode<synchronous>, transform_indices = @transform_19, window_bounds = array<i64: 2, 128, 32>}, {pipeline_mode = #tpu.pipeline_mode<synchronous>, transform_indices = @transform_20, window_bounds = array<i64: 2, 1, 32>}, {pipeline_mode = #tpu.pipeline_mode<synchronous>, transform_indices = @transform_21, window_bounds = array<i64: 2, 1, 32>}, {pipeline_mode = #tpu.pipeline_mode<synchronous>, transform_indices = @transform_22, window_bounds = array<i64: 2, 1, 32>}, {pipeline_mode = #tpu.pipeline_mode<synchronous>, transform_indices = @transform_23, window_bounds = array<i64: 32, 2>}, {pipeline_mode = #tpu.pipeline_mode<synchronous>, transform_indices = @transform_24, window_bounds = array<i64: 1, 2>}, {transform_indices = @transform_25, window_bounds = array<i64: 1, 1, 2>}, {transform_indices = @transform_26, window_bounds = array<i64: 1, 1, 1>}]} {
    %c0 = arith.constant 0 : index
    %c0_0 = arith.constant 0 : index
    %c0_1 = arith.constant 0 : index
    %0 = vector.load %arg1[%c0, %c0_0, %c0_1] : memref<1x8x32xf32, #tpu.memory_space<vmem>>, vector<1x8x32xf32>
    %1 = vector.shape_cast %0 : vector<1x8x32xf32> to vector<8x32xf32>
    %c0_2 = arith.constant 0 : index
    %c0_3 = arith.constant 0 : index
    %c0_4 = arith.constant 0 : index
    %2 = vector.load %arg2[%c0_2, %c0_3, %c0_4] : memref<1x1x8xf32, #tpu.memory_space<vmem>>, vector<1x1x8xf32>
    %cst = arith.constant 1.000000e+00 : f32
    %3 = vector.broadcast %cst : f32 to vector<1x1x8xf32>
    %4 = arith.subf %3, %2 : vector<1x1x8xf32>
    %cst_5 = arith.constant -1.000000e+04 : f32
    %5 = vector.broadcast %cst_5 : f32 to vector<1x1x8xf32>
    %6 = arith.mulf %4, %5 : vector<1x1x8xf32>
    %c0_6 = arith.constant 0 : index
    %c0_7 = arith.constant 0 : index
    %c0_8 = arith.constant 0 : index
    %7 = vector.load %arg3[%c0_6, %c0_7, %c0_8] : memref<1x5x32xf32, #tpu.memory_space<vmem>>, vector<1x5x32xf32>
    %8 = vector.shape_cast %7 : vector<1x5x32xf32> to vector<5x32xf32>
    %9 = arith.truncf %8 : vector<5x32xf32> to vector<5x32xbf16>
    %10 = vector.shape_cast %9 : vector<5x32xbf16> to vector<1x5x32xbf16>
    %11 = vector.shape_cast %10 : vector<1x5x32xbf16> to vector<1x5x32xbf16>
    %12 = vector.broadcast %11 : vector<1x5x32xbf16> to vector<4x5x32xbf16>
    %13 = arith.truncf %1 : vector<8x32xf32> to vector<8x32xbf16>
    %14 = vector.shape_cast %13 : vector<8x32xbf16> to vector<1x8x32xbf16>
    %15 = vector.shape_cast %14 : vector<1x8x32xbf16> to vector<1x8x32xbf16>
    %16 = vector.broadcast %15 : vector<1x8x32xbf16> to vector<4x8x32xbf16>
    %c0_9 = arith.constant 0 : index
    %c0_10 = arith.constant 0 : index
    %c0_11 = arith.constant 0 : index
    %c0_12 = arith.constant 0 : index
    %17 = vector.load %arg4[%c0_9, %c0_10, %c0_11, %c0_12] : memref<2x4x32x24xbf16, #tpu.memory_space<vmem>>, vector<1x4x32x24xbf16>
    %18 = vector.shape_cast %17 : vector<1x4x32x24xbf16> to vector<4x32x24xbf16>
    %c0_13 = arith.constant 0 : index
    %c0_14 = arith.constant 0 : index
    %c0_15 = arith.constant 0 : index
    %c0_16 = arith.constant 0 : index
    %19 = vector.load %arg5[%c0_13, %c0_14, %c0_15, %c0_16] : memref<2x4x1x24xf32, #tpu.memory_space<vmem>>, vector<1x4x1x24xf32>
    %20 = vector.shape_cast %19 : vector<1x4x1x24xf32> to vector<4x1x24xf32>
    %cst_17 = arith.constant dense<0.000000e+00> : vector<4x8x24xf32>
    %21 = tpu.matmul %16, %18, %cst_17 {dimension_numbers = #tpu.dot_dimension_numbers<[2], [1], [1], [2], [0, 0, 0, 1, 1, 2], [0], [0]>} : vector<4x8x32xbf16>, vector<4x32x24xbf16>, vector<4x8x24xf32> -> vector<4x8x24xf32>
    %22 = vector.broadcast %20 : vector<4x1x24xf32> to vector<4x8x24xf32>
    %23 = arith.addf %21, %22 : vector<4x8x24xf32>
    %24 = arith.truncf %23 : vector<4x8x24xf32> to vector<4x8x24xbf16>
    %25 = vector.extract_strided_slice %24 {offsets = [0, 0, 0], sizes = [4, 8, 8], strides = [1, 1, 1]} : vector<4x8x24xbf16> to vector<4x8x8xbf16>
    %26 = vector.extract_strided_slice %24 {offsets = [0, 0, 8], sizes = [4, 8, 8], strides = [1, 1, 1]} : vector<4x8x24xbf16> to vector<4x8x8xbf16>
    %27 = vector.extract_strided_slice %24 {offsets = [0, 0, 16], sizes = [4, 8, 8], strides = [1, 1, 1]} : vector<4x8x24xbf16> to vector<4x8x8xbf16>
    %cst_18 = arith.constant dense<0.000000e+00> : vector<4x8x8xf32>
    %28 = tpu.matmul %25, %26, %cst_18 {dimension_numbers = #tpu.dot_dimension_numbers<[2], [2], [1], [1], [0, 0, 0, 1, 1, 1], [0], [0]>} : vector<4x8x8xbf16>, vector<4x8x8xbf16>, vector<4x8x8xf32> -> vector<4x8x8xf32>
    %cst_19 = arith.constant 0.353553385 : f32
    %29 = vector.broadcast %cst_19 : f32 to vector<4x8x8xf32>
    %30 = arith.mulf %28, %29 : vector<4x8x8xf32>
    %31 = vector.broadcast %6 : vector<1x1x8xf32> to vector<4x8x8xf32>
    %32 = arith.addf %30, %31 : vector<4x8x8xf32>
    %cst_20 = arith.constant dense<0xFF800000> : vector<4x8xf32>
    %33 = vector.multi_reduction <maximumf>, %32, %cst_20 [2] : vector<4x8x8xf32> to vector<4x8xf32>
    %34 = vector.shape_cast %33 : vector<4x8xf32> to vector<4x8x1xf32>
    %35 = vector.broadcast %34 : vector<4x8x1xf32> to vector<4x8x8xf32>
    %36 = arith.subf %32, %35 : vector<4x8x8xf32>
    %37 = math.exp %36 : vector<4x8x8xf32>
    %cst_21 = arith.constant dense<0.000000e+00> : vector<4x8xf32>
    %38 = vector.multi_reduction <add>, %37, %cst_21 [2] : vector<4x8x8xf32> to vector<4x8xf32>
    %39 = vector.shape_cast %38 : vector<4x8xf32> to vector<4x8x1xf32>
    %40 = tpu.reciprocal %39 {approx = true} : vector<4x8x1xf32> -> vector<4x8x1xf32>
    %41 = vector.broadcast %40 : vector<4x8x1xf32> to vector<4x8x8xf32>
    %42 = arith.mulf %37, %41 : vector<4x8x8xf32>
    %43 = arith.truncf %42 : vector<4x8x8xf32> to vector<4x8x8xbf16>
    %cst_22 = arith.constant dense<0.000000e+00> : vector<4x8x8xf32>
    %44 = tpu.matmul %43, %27, %cst_22 {dimension_numbers = #tpu.dot_dimension_numbers<[2], [1], [1], [2], [0, 0, 0, 1, 1, 2], [0], [0]>} : vector<4x8x8xbf16>, vector<4x8x8xbf16>, vector<4x8x8xf32> -> vector<4x8x8xf32>
    %c0_23 = arith.constant 0 : index
    %c0_24 = arith.constant 0 : index
    %c0_25 = arith.constant 0 : index
    %c0_26 = arith.constant 0 : index
    %45 = vector.load %arg6[%c0_23, %c0_24, %c0_25, %c0_26] : memref<2x4x8x32xbf16, #tpu.memory_space<vmem>>, vector<1x4x8x32xbf16>
    %46 = vector.shape_cast %45 : vector<1x4x8x32xbf16> to vector<4x8x32xbf16>
    %c0_27 = arith.constant 0 : index
    %c0_28 = arith.constant 0 : index
    %c0_29 = arith.constant 0 : index
    %47 = vector.load %arg7[%c0_27, %c0_28, %c0_29] : memref<2x1x32xf32, #tpu.memory_space<vmem>>, vector<1x1x32xf32>
    %48 = vector.shape_cast %47 : vector<1x1x32xf32> to vector<1x32xf32>
    %49 = arith.truncf %44 : vector<4x8x8xf32> to vector<4x8x8xbf16>
    %cst_30 = arith.constant dense<0.000000e+00> : vector<4x8x32xf32>
    %50 = tpu.matmul %49, %46, %cst_30 {dimension_numbers = #tpu.dot_dimension_numbers<[2], [1], [1], [2], [0, 0, 0, 1, 1, 2], [0], [0]>} : vector<4x8x8xbf16>, vector<4x8x32xbf16>, vector<4x8x32xf32> -> vector<4x8x32xf32>
    %cst_31 = arith.constant dense<0.000000e+00> : vector<8x32xf32>
    %51 = vector.multi_reduction <add>, %50, %cst_31 [0] : vector<4x8x32xf32> to vector<8x32xf32>
    %52 = vector.broadcast %48 : vector<1x32xf32> to vector<8x32xf32>
    %53 = arith.addf %51, %52 : vector<8x32xf32>
    %54 = arith.addf %53, %1 : vector<8x32xf32>
    %c0_32 = arith.constant 0 : index
    %c0_33 = arith.constant 0 : index
    %c0_34 = arith.constant 0 : index
    %55 = vector.load %arg8[%c0_32, %c0_33, %c0_34] : memref<2x1x32xf32, #tpu.memory_space<vmem>>, vector<1x1x32xf32>
    %56 = vector.shape_cast %55 : vector<1x1x32xf32> to vector<1x32xf32>
    %c0_35 = arith.constant 0 : index
    %c0_36 = arith.constant 0 : index
    %c0_37 = arith.constant 0 : index
    %57 = vector.load %arg9[%c0_35, %c0_36, %c0_37] : memref<2x1x32xf32, #tpu.memory_space<vmem>>, vector<1x1x32xf32>
    %58 = vector.shape_cast %57 : vector<1x1x32xf32> to vector<1x32xf32>
    %cst_38 = arith.constant dense<0.000000e+00> : vector<8xf32>
    %59 = vector.multi_reduction <add>, %54, %cst_38 [1] : vector<8x32xf32> to vector<8xf32>
    %60 = vector.shape_cast %59 : vector<8xf32> to vector<8x1xf32>
    %cst_39 = arith.constant 3.200000e+01 : f32
    %61 = vector.broadcast %cst_39 : f32 to vector<8x1xf32>
    %62 = arith.divf %60, %61 : vector<8x1xf32>
    %63 = vector.broadcast %62 : vector<8x1xf32> to vector<8x32xf32>
    %64 = arith.subf %54, %63 : vector<8x32xf32>
    %65 = arith.mulf %64, %64 : vector<8x32xf32>
    %cst_40 = arith.constant dense<0.000000e+00> : vector<8xf32>
    %66 = vector.multi_reduction <add>, %65, %cst_40 [1] : vector<8x32xf32> to vector<8xf32>
    %67 = vector.shape_cast %66 : vector<8xf32> to vector<8x1xf32>
    %cst_41 = arith.constant 3.200000e+01 : f32
    %68 = vector.broadcast %cst_41 : f32 to vector<8x1xf32>
    %69 = arith.divf %67, %68 : vector<8x1xf32>
    %70 = vector.broadcast %62 : vector<8x1xf32> to vector<8x32xf32>
    %71 = arith.subf %54, %70 : vector<8x32xf32>
    %cst_42 = arith.constant 9.99999996E-13 : f32
    %72 = vector.broadcast %cst_42 : f32 to vector<8x1xf32>
    %73 = arith.addf %69, %72 : vector<8x1xf32>
    %74 = math.rsqrt %73 : vector<8x1xf32>
    %75 = vector.broadcast %74 : vector<8x1xf32> to vector<8x32xf32>
    %76 = arith.mulf %71, %75 : vector<8x32xf32>
    %77 = vector.broadcast %56 : vector<1x32xf32> to vector<8x32xf32>
    %78 = arith.mulf %76, %77 : vector<8x32xf32>
    %79 = vector.broadcast %58 : vector<1x32xf32> to vector<8x32xf32>
    %80 = arith.addf %78, %79 : vector<8x32xf32>
    %81 = arith.truncf %80 : vector<8x32xf32> to vector<8x32xbf16>
    %82 = vector.shape_cast %81 : vector<8x32xbf16> to vector<1x8x32xbf16>
    %83 = vector.shape_cast %82 : vector<1x8x32xbf16> to vector<1x8x32xbf16>
    %84 = vector.broadcast %83 : vector<1x8x32xbf16> to vector<4x8x32xbf16>
    %c0_43 = arith.constant 0 : index
    %c0_44 = arith.constant 0 : index
    %c0_45 = arith.constant 0 : index
    %c0_46 = arith.constant 0 : index
    %85 = vector.load %arg10[%c0_43, %c0_44, %c0_45, %c0_46] : memref<2x4x32x8xbf16, #tpu.memory_space<vmem>>, vector<1x4x32x8xbf16>
    %86 = vector.shape_cast %85 : vector<1x4x32x8xbf16> to vector<4x32x8xbf16>
    %c0_47 = arith.constant 0 : index
    %c0_48 = arith.constant 0 : index
    %c0_49 = arith.constant 0 : index
    %c0_50 = arith.constant 0 : index
    %87 = vector.load %arg11[%c0_47, %c0_48, %c0_49, %c0_50] : memref<2x4x1x8xf32, #tpu.memory_space<vmem>>, vector<1x4x1x8xf32>
    %88 = vector.shape_cast %87 : vector<1x4x1x8xf32> to vector<4x1x8xf32>
    %cst_51 = arith.constant dense<0.000000e+00> : vector<4x8x8xf32>
    %89 = tpu.matmul %84, %86, %cst_51 {dimension_numbers = #tpu.dot_dimension_numbers<[2], [1], [1], [2], [0, 0, 0, 1, 1, 2], [0], [0]>} : vector<4x8x32xbf16>, vector<4x32x8xbf16>, vector<4x8x8xf32> -> vector<4x8x8xf32>
    %90 = vector.broadcast %88 : vector<4x1x8xf32> to vector<4x8x8xf32>
    %91 = arith.addf %89, %90 : vector<4x8x8xf32>
    %c0_52 = arith.constant 0 : index
    %c0_53 = arith.constant 0 : index
    %c0_54 = arith.constant 0 : index
    %c0_55 = arith.constant 0 : index
    %92 = vector.load %arg12[%c0_52, %c0_53, %c0_54, %c0_55] : memref<2x4x32x16xbf16, #tpu.memory_space<vmem>>, vector<1x4x32x16xbf16>
    %93 = vector.shape_cast %92 : vector<1x4x32x16xbf16> to vector<4x32x16xbf16>
    %c0_56 = arith.constant 0 : index
    %c0_57 = arith.constant 0 : index
    %c0_58 = arith.constant 0 : index
    %c0_59 = arith.constant 0 : index
    %94 = vector.load %arg13[%c0_56, %c0_57, %c0_58, %c0_59] : memref<2x4x1x16xf32, #tpu.memory_space<vmem>>, vector<1x4x1x16xf32>
    %95 = vector.shape_cast %94 : vector<1x4x1x16xf32> to vector<4x1x16xf32>
    %cst_60 = arith.constant dense<0.000000e+00> : vector<4x5x16xf32>
    %96 = tpu.matmul %12, %93, %cst_60 {dimension_numbers = #tpu.dot_dimension_numbers<[2], [1], [1], [2], [0, 0, 0, 1, 1, 2], [0], [0]>} : vector<4x5x32xbf16>, vector<4x32x16xbf16>, vector<4x5x16xf32> -> vector<4x5x16xf32>
    %97 = vector.broadcast %95 : vector<4x1x16xf32> to vector<4x5x16xf32>
    %98 = arith.addf %96, %97 : vector<4x5x16xf32>
    %99 = arith.truncf %98 : vector<4x5x16xf32> to vector<4x5x16xbf16>
    %100 = vector.extract_strided_slice %99 {offsets = [0, 0, 0], sizes = [4, 5, 8], strides = [1, 1, 1]} : vector<4x5x16xbf16> to vector<4x5x8xbf16>
    %101 = vector.extract_strided_slice %99 {offsets = [0, 0, 8], sizes = [4, 5, 8], strides = [1, 1, 1]} : vector<4x5x16xbf16> to vector<4x5x8xbf16>
    %102 = arith.truncf %91 : vector<4x8x8xf32> to vector<4x8x8xbf16>
    %cst_61 = arith.constant dense<0.000000e+00> : vector<4x8x5xf32>
    %103 = tpu.matmul %102, %100, %cst_61 {dimension_numbers = #tpu.dot_dimension_numbers<[2], [2], [1], [1], [0, 0, 0, 1, 1, 1], [0], [0]>} : vector<4x8x8xbf16>, vector<4x5x8xbf16>, vector<4x8x5xf32> -> vector<4x8x5xf32>
    %cst_62 = arith.constant 0.353553385 : f32
    %104 = vector.broadcast %cst_62 : f32 to vector<4x8x5xf32>
    %105 = arith.mulf %103, %104 : vector<4x8x5xf32>
    %cst_63 = arith.constant dense<0xFF800000> : vector<4x8xf32>
    %106 = vector.multi_reduction <maximumf>, %105, %cst_63 [2] : vector<4x8x5xf32> to vector<4x8xf32>
    %107 = vector.shape_cast %106 : vector<4x8xf32> to vector<4x8x1xf32>
    %108 = vector.broadcast %107 : vector<4x8x1xf32> to vector<4x8x5xf32>
    %109 = arith.subf %105, %108 : vector<4x8x5xf32>
    %110 = math.exp %109 : vector<4x8x5xf32>
    %cst_64 = arith.constant dense<0.000000e+00> : vector<4x8xf32>
    %111 = vector.multi_reduction <add>, %110, %cst_64 [2] : vector<4x8x5xf32> to vector<4x8xf32>
    %112 = vector.shape_cast %111 : vector<4x8xf32> to vector<4x8x1xf32>
    %113 = tpu.reciprocal %112 {approx = true} : vector<4x8x1xf32> -> vector<4x8x1xf32>
    %114 = vector.broadcast %113 : vector<4x8x1xf32> to vector<4x8x5xf32>
    %115 = arith.mulf %110, %114 : vector<4x8x5xf32>
    %116 = arith.truncf %115 : vector<4x8x5xf32> to vector<4x8x5xbf16>
    %cst_65 = arith.constant dense<0.000000e+00> : vector<4x8x8xf32>
    %117 = tpu.matmul %116, %101, %cst_65 {dimension_numbers = #tpu.dot_dimension_numbers<[2], [1], [1], [2], [0, 0, 0, 1, 1, 2], [0], [0]>} : vector<4x8x5xbf16>, vector<4x5x8xbf16>, vector<4x8x8xf32> -> vector<4x8x8xf32>
    %c0_66 = arith.constant 0 : index
    %c0_67 = arith.constant 0 : index
    %c0_68 = arith.constant 0 : index
    %c0_69 = arith.constant 0 : index
    %118 = vector.load %arg14[%c0_66, %c0_67, %c0_68, %c0_69] : memref<2x4x8x32xbf16, #tpu.memory_space<vmem>>, vector<1x4x8x32xbf16>
    %119 = vector.shape_cast %118 : vector<1x4x8x32xbf16> to vector<4x8x32xbf16>
    %c0_70 = arith.constant 0 : index
    %c0_71 = arith.constant 0 : index
    %c0_72 = arith.constant 0 : index
    %120 = vector.load %arg15[%c0_70, %c0_71, %c0_72] : memref<2x1x32xf32, #tpu.memory_space<vmem>>, vector<1x1x32xf32>
    %121 = vector.shape_cast %120 : vector<1x1x32xf32> to vector<1x32xf32>
    %122 = arith.truncf %117 : vector<4x8x8xf32> to vector<4x8x8xbf16>
    %cst_73 = arith.constant dense<0.000000e+00> : vector<4x8x32xf32>
    %123 = tpu.matmul %122, %119, %cst_73 {dimension_numbers = #tpu.dot_dimension_numbers<[2], [1], [1], [2], [0, 0, 0, 1, 1, 2], [0], [0]>} : vector<4x8x8xbf16>, vector<4x8x32xbf16>, vector<4x8x32xf32> -> vector<4x8x32xf32>
    %cst_74 = arith.constant dense<0.000000e+00> : vector<8x32xf32>
    %124 = vector.multi_reduction <add>, %123, %cst_74 [0] : vector<4x8x32xf32> to vector<8x32xf32>
    %125 = vector.broadcast %121 : vector<1x32xf32> to vector<8x32xf32>
    %126 = arith.addf %124, %125 : vector<8x32xf32>
    %127 = arith.addf %126, %80 : vector<8x32xf32>
    %c0_75 = arith.constant 0 : index
    %c0_76 = arith.constant 0 : index
    %c0_77 = arith.constant 0 : index
    %128 = vector.load %arg16[%c0_75, %c0_76, %c0_77] : memref<2x1x32xf32, #tpu.memory_space<vmem>>, vector<1x1x32xf32>
    %129 = vector.shape_cast %128 : vector<1x1x32xf32> to vector<1x32xf32>
    %c0_78 = arith.constant 0 : index
    %c0_79 = arith.constant 0 : index
    %c0_80 = arith.constant 0 : index
    %130 = vector.load %arg17[%c0_78, %c0_79, %c0_80] : memref<2x1x32xf32, #tpu.memory_space<vmem>>, vector<1x1x32xf32>
    %131 = vector.shape_cast %130 : vector<1x1x32xf32> to vector<1x32xf32>
    %cst_81 = arith.constant dense<0.000000e+00> : vector<8xf32>
    %132 = vector.multi_reduction <add>, %127, %cst_81 [1] : vector<8x32xf32> to vector<8xf32>
    %133 = vector.shape_cast %132 : vector<8xf32> to vector<8x1xf32>
    %cst_82 = arith.constant 3.200000e+01 : f32
    %134 = vector.broadcast %cst_82 : f32 to vector<8x1xf32>
    %135 = arith.divf %133, %134 : vector<8x1xf32>
    %136 = vector.broadcast %135 : vector<8x1xf32> to vector<8x32xf32>
    %137 = arith.subf %127, %136 : vector<8x32xf32>
    %138 = arith.mulf %137, %137 : vector<8x32xf32>
    %cst_83 = arith.constant dense<0.000000e+00> : vector<8xf32>
    %139 = vector.multi_reduction <add>, %138, %cst_83 [1] : vector<8x32xf32> to vector<8xf32>
    %140 = vector.shape_cast %139 : vector<8xf32> to vector<8x1xf32>
    %cst_84 = arith.constant 3.200000e+01 : f32
    %141 = vector.broadcast %cst_84 : f32 to vector<8x1xf32>
    %142 = arith.divf %140, %141 : vector<8x1xf32>
    %143 = vector.broadcast %135 : vector<8x1xf32> to vector<8x32xf32>
    %144 = arith.subf %127, %143 : vector<8x32xf32>
    %cst_85 = arith.constant 9.99999996E-13 : f32
    %145 = vector.broadcast %cst_85 : f32 to vector<8x1xf32>
    %146 = arith.addf %142, %145 : vector<8x1xf32>
    %147 = math.rsqrt %146 : vector<8x1xf32>
    %148 = vector.broadcast %147 : vector<8x1xf32> to vector<8x32xf32>
    %149 = arith.mulf %144, %148 : vector<8x32xf32>
    %150 = vector.broadcast %129 : vector<1x32xf32> to vector<8x32xf32>
    %151 = arith.mulf %149, %150 : vector<8x32xf32>
    %152 = vector.broadcast %131 : vector<1x32xf32> to vector<8x32xf32>
    %153 = arith.addf %151, %152 : vector<8x32xf32>
    %c0_86 = arith.constant 0 : index
    %c0_87 = arith.constant 0 : index
    %c0_88 = arith.constant 0 : index
    %154 = vector.load %arg18[%c0_86, %c0_87, %c0_88] : memref<2x32x128xbf16, #tpu.memory_space<vmem>>, vector<1x32x128xbf16>
    %155 = vector.shape_cast %154 : vector<1x32x128xbf16> to vector<32x128xbf16>
    %156 = arith.truncf %153 : vector<8x32xf32> to vector<8x32xbf16>
    %cst_89 = arith.constant dense<0.000000e+00> : vector<8x128xf32>
    %157 = tpu.matmul %156, %155, %cst_89 {dimension_numbers = #tpu.dot_dimension_numbers<[1], [0], [0], [1], [0, 0, 1, 1], [], []>} : vector<8x32xbf16>, vector<32x128xbf16>, vector<8x128xf32> -> vector<8x128xf32>
    %c0_90 = arith.constant 0 : index
    %c0_91 = arith.constant 0 : index
    %c0_92 = arith.constant 0 : index
    %158 = vector.load %arg19[%c0_90, %c0_91, %c0_92] : memref<2x1x128xf32, #tpu.memory_space<vmem>>, vector<1x1x128xf32>
    %159 = vector.shape_cast %158 : vector<1x1x128xf32> to vector<1x128xf32>
    %160 = vector.broadcast %159 : vector<1x128xf32> to vector<8x128xf32>
    %161 = arith.addf %157, %160 : vector<8x128xf32>
    %162 = arith.mulf %161, %161 : vector<8x128xf32>
    %163 = arith.mulf %161, %162 : vector<8x128xf32>
    %cst_93 = arith.constant 4.471500e-02 : f32
    %164 = vector.broadcast %cst_93 : f32 to vector<8x128xf32>
    %165 = arith.mulf %164, %163 : vector<8x128xf32>
    %166 = arith.addf %161, %165 : vector<8x128xf32>
    %cst_94 = arith.constant 0.797884583 : f32
    %167 = vector.broadcast %cst_94 : f32 to vector<8x128xf32>
    %168 = arith.mulf %167, %166 : vector<8x128xf32>
    %169 = math.tanh %168 : vector<8x128xf32>
    %cst_95 = arith.constant 1.000000e+00 : f32
    %170 = vector.broadcast %cst_95 : f32 to vector<8x128xf32>
    %171 = arith.addf %170, %169 : vector<8x128xf32>
    %cst_96 = arith.constant 5.000000e-01 : f32
    %172 = vector.broadcast %cst_96 : f32 to vector<8x128xf32>
    %173 = arith.mulf %172, %171 : vector<8x128xf32>
    %174 = arith.mulf %161, %173 : vector<8x128xf32>
    %c0_97 = arith.constant 0 : index
    %c0_98 = arith.constant 0 : index
    %c0_99 = arith.constant 0 : index
    %175 = vector.load %arg20[%c0_97, %c0_98, %c0_99] : memref<2x128x32xbf16, #tpu.memory_space<vmem>>, vector<1x128x32xbf16>
    %176 = vector.shape_cast %175 : vector<1x128x32xbf16> to vector<128x32xbf16>
    %177 = arith.truncf %174 : vector<8x128xf32> to vector<8x128xbf16>
    %cst_100 = arith.constant dense<0.000000e+00> : vector<8x32xf32>
    %178 = tpu.matmul %177, %176, %cst_100 {dimension_numbers = #tpu.dot_dimension_numbers<[1], [0], [0], [1], [0, 0, 1, 1], [], []>} : vector<8x128xbf16>, vector<128x32xbf16>, vector<8x32xf32> -> vector<8x32xf32>
    %c0_101 = arith.constant 0 : index
    %c0_102 = arith.constant 0 : index
    %c0_103 = arith.constant 0 : index
    %179 = vector.load %arg21[%c0_101, %c0_102, %c0_103] : memref<2x1x32xf32, #tpu.memory_space<vmem>>, vector<1x1x32xf32>
    %180 = vector.shape_cast %179 : vector<1x1x32xf32> to vector<1x32xf32>
    %181 = vector.broadcast %180 : vector<1x32xf32> to vector<8x32xf32>
    %182 = arith.addf %178, %181 : vector<8x32xf32>
    %183 = arith.addf %182, %153 : vector<8x32xf32>
    %c0_104 = arith.constant 0 : index
    %c0_105 = arith.constant 0 : index
    %c0_106 = arith.constant 0 : index
    %184 = vector.load %arg22[%c0_104, %c0_105, %c0_106] : memref<2x1x32xf32, #tpu.memory_space<vmem>>, vector<1x1x32xf32>
    %185 = vector.shape_cast %184 : vector<1x1x32xf32> to vector<1x32xf32>
    %c0_107 = arith.constant 0 : index
    %c0_108 = arith.constant 0 : index
    %c0_109 = arith.constant 0 : index
    %186 = vector.load %arg23[%c0_107, %c0_108, %c0_109] : memref<2x1x32xf32, #tpu.memory_space<vmem>>, vector<1x1x32xf32>
    %187 = vector.shape_cast %186 : vector<1x1x32xf32> to vector<1x32xf32>
    %cst_110 = arith.constant dense<0.000000e+00> : vector<8xf32>
    %188 = vector.multi_reduction <add>, %183, %cst_110 [1] : vector<8x32xf32> to vector<8xf32>
    %189 = vector.shape_cast %188 : vector<8xf32> to vector<8x1xf32>
    %cst_111 = arith.constant 3.200000e+01 : f32
    %190 = vector.broadcast %cst_111 : f32 to vector<8x1xf32>
    %191 = arith.divf %189, %190 : vector<8x1xf32>
    %192 = vector.broadcast %191 : vector<8x1xf32> to vector<8x32xf32>
    %193 = arith.subf %183, %192 : vector<8x32xf32>
    %194 = arith.mulf %193, %193 : vector<8x32xf32>
    %cst_112 = arith.constant dense<0.000000e+00> : vector<8xf32>
    %195 = vector.multi_reduction <add>, %194, %cst_112 [1] : vector<8x32xf32> to vector<8xf32>
    %196 = vector.shape_cast %195 : vector<8xf32> to vector<8x1xf32>
    %cst_113 = arith.constant 3.200000e+01 : f32
    %197 = vector.broadcast %cst_113 : f32 to vector<8x1xf32>
    %198 = arith.divf %196, %197 : vector<8x1xf32>
    %199 = vector.broadcast %191 : vector<8x1xf32> to vector<8x32xf32>
    %200 = arith.subf %183, %199 : vector<8x32xf32>
    %cst_114 = arith.constant 9.99999996E-13 : f32
    %201 = vector.broadcast %cst_114 : f32 to vector<8x1xf32>
    %202 = arith.addf %198, %201 : vector<8x1xf32>
    %203 = math.rsqrt %202 : vector<8x1xf32>
    %204 = vector.broadcast %203 : vector<8x1xf32> to vector<8x32xf32>
    %205 = arith.mulf %200, %204 : vector<8x32xf32>
    %206 = vector.broadcast %185 : vector<1x32xf32> to vector<8x32xf32>
    %207 = arith.mulf %205, %206 : vector<8x32xf32>
    %208 = vector.broadcast %187 : vector<1x32xf32> to vector<8x32xf32>
    %209 = arith.addf %207, %208 : vector<8x32xf32>
    %210 = arith.truncf %209 : vector<8x32xf32> to vector<8x32xbf16>
    %211 = vector.shape_cast %210 : vector<8x32xbf16> to vector<1x8x32xbf16>
    %212 = vector.shape_cast %211 : vector<1x8x32xbf16> to vector<1x8x32xbf16>
    %213 = vector.broadcast %212 : vector<1x8x32xbf16> to vector<4x8x32xbf16>
    %c1 = arith.constant 1 : index
    %c0_115 = arith.constant 0 : index
    %c0_116 = arith.constant 0 : index
    %c0_117 = arith.constant 0 : index
    %214 = vector.load %arg4[%c1, %c0_115, %c0_116, %c0_117] : memref<2x4x32x24xbf16, #tpu.memory_space<vmem>>, vector<1x4x32x24xbf16>
    %215 = vector.shape_cast %214 : vector<1x4x32x24xbf16> to vector<4x32x24xbf16>
    %c1_118 = arith.constant 1 : index
    %c0_119 = arith.constant 0 : index
    %c0_120 = arith.constant 0 : index
    %c0_121 = arith.constant 0 : index
    %216 = vector.load %arg5[%c1_118, %c0_119, %c0_120, %c0_121] : memref<2x4x1x24xf32, #tpu.memory_space<vmem>>, vector<1x4x1x24xf32>
    %217 = vector.shape_cast %216 : vector<1x4x1x24xf32> to vector<4x1x24xf32>
    %cst_122 = arith.constant dense<0.000000e+00> : vector<4x8x24xf32>
    %218 = tpu.matmul %213, %215, %cst_122 {dimension_numbers = #tpu.dot_dimension_numbers<[2], [1], [1], [2], [0, 0, 0, 1, 1, 2], [0], [0]>} : vector<4x8x32xbf16>, vector<4x32x24xbf16>, vector<4x8x24xf32> -> vector<4x8x24xf32>
    %219 = vector.broadcast %217 : vector<4x1x24xf32> to vector<4x8x24xf32>
    %220 = arith.addf %218, %219 : vector<4x8x24xf32>
    %221 = arith.truncf %220 : vector<4x8x24xf32> to vector<4x8x24xbf16>
    %222 = vector.extract_strided_slice %221 {offsets = [0, 0, 0], sizes = [4, 8, 8], strides = [1, 1, 1]} : vector<4x8x24xbf16> to vector<4x8x8xbf16>
    %223 = vector.extract_strided_slice %221 {offsets = [0, 0, 8], sizes = [4, 8, 8], strides = [1, 1, 1]} : vector<4x8x24xbf16> to vector<4x8x8xbf16>
    %224 = vector.extract_strided_slice %221 {offsets = [0, 0, 16], sizes = [4, 8, 8], strides = [1, 1, 1]} : vector<4x8x24xbf16> to vector<4x8x8xbf16>
    %cst_123 = arith.constant dense<0.000000e+00> : vector<4x8x8xf32>
    %225 = tpu.matmul %222, %223, %cst_123 {dimension_numbers = #tpu.dot_dimension_numbers<[2], [2], [1], [1], [0, 0, 0, 1, 1, 1], [0], [0]>} : vector<4x8x8xbf16>, vector<4x8x8xbf16>, vector<4x8x8xf32> -> vector<4x8x8xf32>
    %cst_124 = arith.constant 0.353553385 : f32
    %226 = vector.broadcast %cst_124 : f32 to vector<4x8x8xf32>
    %227 = arith.mulf %225, %226 : vector<4x8x8xf32>
    %228 = vector.broadcast %6 : vector<1x1x8xf32> to vector<4x8x8xf32>
    %229 = arith.addf %227, %228 : vector<4x8x8xf32>
    %cst_125 = arith.constant dense<0xFF800000> : vector<4x8xf32>
    %230 = vector.multi_reduction <maximumf>, %229, %cst_125 [2] : vector<4x8x8xf32> to vector<4x8xf32>
    %231 = vector.shape_cast %230 : vector<4x8xf32> to vector<4x8x1xf32>
    %232 = vector.broadcast %231 : vector<4x8x1xf32> to vector<4x8x8xf32>
    %233 = arith.subf %229, %232 : vector<4x8x8xf32>
    %234 = math.exp %233 : vector<4x8x8xf32>
    %cst_126 = arith.constant dense<0.000000e+00> : vector<4x8xf32>
    %235 = vector.multi_reduction <add>, %234, %cst_126 [2] : vector<4x8x8xf32> to vector<4x8xf32>
    %236 = vector.shape_cast %235 : vector<4x8xf32> to vector<4x8x1xf32>
    %237 = tpu.reciprocal %236 {approx = true} : vector<4x8x1xf32> -> vector<4x8x1xf32>
    %238 = vector.broadcast %237 : vector<4x8x1xf32> to vector<4x8x8xf32>
    %239 = arith.mulf %234, %238 : vector<4x8x8xf32>
    %240 = arith.truncf %239 : vector<4x8x8xf32> to vector<4x8x8xbf16>
    %cst_127 = arith.constant dense<0.000000e+00> : vector<4x8x8xf32>
    %241 = tpu.matmul %240, %224, %cst_127 {dimension_numbers = #tpu.dot_dimension_numbers<[2], [1], [1], [2], [0, 0, 0, 1, 1, 2], [0], [0]>} : vector<4x8x8xbf16>, vector<4x8x8xbf16>, vector<4x8x8xf32> -> vector<4x8x8xf32>
    %c1_128 = arith.constant 1 : index
    %c0_129 = arith.constant 0 : index
    %c0_130 = arith.constant 0 : index
    %c0_131 = arith.constant 0 : index
    %242 = vector.load %arg6[%c1_128, %c0_129, %c0_130, %c0_131] : memref<2x4x8x32xbf16, #tpu.memory_space<vmem>>, vector<1x4x8x32xbf16>
    %243 = vector.shape_cast %242 : vector<1x4x8x32xbf16> to vector<4x8x32xbf16>
    %c1_132 = arith.constant 1 : index
    %c0_133 = arith.constant 0 : index
    %c0_134 = arith.constant 0 : index
    %244 = vector.load %arg7[%c1_132, %c0_133, %c0_134] : memref<2x1x32xf32, #tpu.memory_space<vmem>>, vector<1x1x32xf32>
    %245 = vector.shape_cast %244 : vector<1x1x32xf32> to vector<1x32xf32>
    %246 = arith.truncf %241 : vector<4x8x8xf32> to vector<4x8x8xbf16>
    %cst_135 = arith.constant dense<0.000000e+00> : vector<4x8x32xf32>
    %247 = tpu.matmul %246, %243, %cst_135 {dimension_numbers = #tpu.dot_dimension_numbers<[2], [1], [1], [2], [0, 0, 0, 1, 1, 2], [0], [0]>} : vector<4x8x8xbf16>, vector<4x8x32xbf16>, vector<4x8x32xf32> -> vector<4x8x32xf32>
    %cst_136 = arith.constant dense<0.000000e+00> : vector<8x32xf32>
    %248 = vector.multi_reduction <add>, %247, %cst_136 [0] : vector<4x8x32xf32> to vector<8x32xf32>
    %249 = vector.broadcast %245 : vector<1x32xf32> to vector<8x32xf32>
    %250 = arith.addf %248, %249 : vector<8x32xf32>
    %251 = arith.addf %250, %209 : vector<8x32xf32>
    %c1_137 = arith.constant 1 : index
    %c0_138 = arith.constant 0 : index
    %c0_139 = arith.constant 0 : index
    %252 = vector.load %arg8[%c1_137, %c0_138, %c0_139] : memref<2x1x32xf32, #tpu.memory_space<vmem>>, vector<1x1x32xf32>
    %253 = vector.shape_cast %252 : vector<1x1x32xf32> to vector<1x32xf32>
    %c1_140 = arith.constant 1 : index
    %c0_141 = arith.constant 0 : index
    %c0_142 = arith.constant 0 : index
    %254 = vector.load %arg9[%c1_140, %c0_141, %c0_142] : memref<2x1x32xf32, #tpu.memory_space<vmem>>, vector<1x1x32xf32>
    %255 = vector.shape_cast %254 : vector<1x1x32xf32> to vector<1x32xf32>
    %cst_143 = arith.constant dense<0.000000e+00> : vector<8xf32>
    %256 = vector.multi_reduction <add>, %251, %cst_143 [1] : vector<8x32xf32> to vector<8xf32>
    %257 = vector.shape_cast %256 : vector<8xf32> to vector<8x1xf32>
    %cst_144 = arith.constant 3.200000e+01 : f32
    %258 = vector.broadcast %cst_144 : f32 to vector<8x1xf32>
    %259 = arith.divf %257, %258 : vector<8x1xf32>
    %260 = vector.broadcast %259 : vector<8x1xf32> to vector<8x32xf32>
    %261 = arith.subf %251, %260 : vector<8x32xf32>
    %262 = arith.mulf %261, %261 : vector<8x32xf32>
    %cst_145 = arith.constant dense<0.000000e+00> : vector<8xf32>
    %263 = vector.multi_reduction <add>, %262, %cst_145 [1] : vector<8x32xf32> to vector<8xf32>
    %264 = vector.shape_cast %263 : vector<8xf32> to vector<8x1xf32>
    %cst_146 = arith.constant 3.200000e+01 : f32
    %265 = vector.broadcast %cst_146 : f32 to vector<8x1xf32>
    %266 = arith.divf %264, %265 : vector<8x1xf32>
    %267 = vector.broadcast %259 : vector<8x1xf32> to vector<8x32xf32>
    %268 = arith.subf %251, %267 : vector<8x32xf32>
    %cst_147 = arith.constant 9.99999996E-13 : f32
    %269 = vector.broadcast %cst_147 : f32 to vector<8x1xf32>
    %270 = arith.addf %266, %269 : vector<8x1xf32>
    %271 = math.rsqrt %270 : vector<8x1xf32>
    %272 = vector.broadcast %271 : vector<8x1xf32> to vector<8x32xf32>
    %273 = arith.mulf %268, %272 : vector<8x32xf32>
    %274 = vector.broadcast %253 : vector<1x32xf32> to vector<8x32xf32>
    %275 = arith.mulf %273, %274 : vector<8x32xf32>
    %276 = vector.broadcast %255 : vector<1x32xf32> to vector<8x32xf32>
    %277 = arith.addf %275, %276 : vector<8x32xf32>
    %278 = arith.truncf %277 : vector<8x32xf32> to vector<8x32xbf16>
    %279 = vector.shape_cast %278 : vector<8x32xbf16> to vector<1x8x32xbf16>
    %280 = vector.shape_cast %279 : vector<1x8x32xbf16> to vector<1x8x32xbf16>
    %281 = vector.broadcast %280 : vector<1x8x32xbf16> to vector<4x8x32xbf16>
    %c1_148 = arith.constant 1 : index
    %c0_149 = arith.constant 0 : index
    %c0_150 = arith.constant 0 : index
    %c0_151 = arith.constant 0 : index
    %282 = vector.load %arg10[%c1_148, %c0_149, %c0_150, %c0_151] : memref<2x4x32x8xbf16, #tpu.memory_space<vmem>>, vector<1x4x32x8xbf16>
    %283 = vector.shape_cast %282 : vector<1x4x32x8xbf16> to vector<4x32x8xbf16>
    %c1_152 = arith.constant 1 : index
    %c0_153 = arith.constant 0 : index
    %c0_154 = arith.constant 0 : index
    %c0_155 = arith.constant 0 : index
    %284 = vector.load %arg11[%c1_152, %c0_153, %c0_154, %c0_155] : memref<2x4x1x8xf32, #tpu.memory_space<vmem>>, vector<1x4x1x8xf32>
    %285 = vector.shape_cast %284 : vector<1x4x1x8xf32> to vector<4x1x8xf32>
    %cst_156 = arith.constant dense<0.000000e+00> : vector<4x8x8xf32>
    %286 = tpu.matmul %281, %283, %cst_156 {dimension_numbers = #tpu.dot_dimension_numbers<[2], [1], [1], [2], [0, 0, 0, 1, 1, 2], [0], [0]>} : vector<4x8x32xbf16>, vector<4x32x8xbf16>, vector<4x8x8xf32> -> vector<4x8x8xf32>
    %287 = vector.broadcast %285 : vector<4x1x8xf32> to vector<4x8x8xf32>
    %288 = arith.addf %286, %287 : vector<4x8x8xf32>
    %c1_157 = arith.constant 1 : index
    %c0_158 = arith.constant 0 : index
    %c0_159 = arith.constant 0 : index
    %c0_160 = arith.constant 0 : index
    %289 = vector.load %arg12[%c1_157, %c0_158, %c0_159, %c0_160] : memref<2x4x32x16xbf16, #tpu.memory_space<vmem>>, vector<1x4x32x16xbf16>
    %290 = vector.shape_cast %289 : vector<1x4x32x16xbf16> to vector<4x32x16xbf16>
    %c1_161 = arith.constant 1 : index
    %c0_162 = arith.constant 0 : index
    %c0_163 = arith.constant 0 : index
    %c0_164 = arith.constant 0 : index
    %291 = vector.load %arg13[%c1_161, %c0_162, %c0_163, %c0_164] : memref<2x4x1x16xf32, #tpu.memory_space<vmem>>, vector<1x4x1x16xf32>
    %292 = vector.shape_cast %291 : vector<1x4x1x16xf32> to vector<4x1x16xf32>
    %cst_165 = arith.constant dense<0.000000e+00> : vector<4x5x16xf32>
    %293 = tpu.matmul %12, %290, %cst_165 {dimension_numbers = #tpu.dot_dimension_numbers<[2], [1], [1], [2], [0, 0, 0, 1, 1, 2], [0], [0]>} : vector<4x5x32xbf16>, vector<4x32x16xbf16>, vector<4x5x16xf32> -> vector<4x5x16xf32>
    %294 = vector.broadcast %292 : vector<4x1x16xf32> to vector<4x5x16xf32>
    %295 = arith.addf %293, %294 : vector<4x5x16xf32>
    %296 = arith.truncf %295 : vector<4x5x16xf32> to vector<4x5x16xbf16>
    %297 = vector.extract_strided_slice %296 {offsets = [0, 0, 0], sizes = [4, 5, 8], strides = [1, 1, 1]} : vector<4x5x16xbf16> to vector<4x5x8xbf16>
    %298 = vector.extract_strided_slice %296 {offsets = [0, 0, 8], sizes = [4, 5, 8], strides = [1, 1, 1]} : vector<4x5x16xbf16> to vector<4x5x8xbf16>
    %299 = arith.truncf %288 : vector<4x8x8xf32> to vector<4x8x8xbf16>
    %cst_166 = arith.constant dense<0.000000e+00> : vector<4x8x5xf32>
    %300 = tpu.matmul %299, %297, %cst_166 {dimension_numbers = #tpu.dot_dimension_numbers<[2], [2], [1], [1], [0, 0, 0, 1, 1, 1], [0], [0]>} : vector<4x8x8xbf16>, vector<4x5x8xbf16>, vector<4x8x5xf32> -> vector<4x8x5xf32>
    %cst_167 = arith.constant 0.353553385 : f32
    %301 = vector.broadcast %cst_167 : f32 to vector<4x8x5xf32>
    %302 = arith.mulf %300, %301 : vector<4x8x5xf32>
    %cst_168 = arith.constant dense<0xFF800000> : vector<4x8xf32>
    %303 = vector.multi_reduction <maximumf>, %302, %cst_168 [2] : vector<4x8x5xf32> to vector<4x8xf32>
    %304 = vector.shape_cast %303 : vector<4x8xf32> to vector<4x8x1xf32>
    %305 = vector.broadcast %304 : vector<4x8x1xf32> to vector<4x8x5xf32>
    %306 = arith.subf %302, %305 : vector<4x8x5xf32>
    %307 = math.exp %306 : vector<4x8x5xf32>
    %cst_169 = arith.constant dense<0.000000e+00> : vector<4x8xf32>
    %308 = vector.multi_reduction <add>, %307, %cst_169 [2] : vector<4x8x5xf32> to vector<4x8xf32>
    %309 = vector.shape_cast %308 : vector<4x8xf32> to vector<4x8x1xf32>
    %310 = tpu.reciprocal %309 {approx = true} : vector<4x8x1xf32> -> vector<4x8x1xf32>
    %311 = vector.broadcast %310 : vector<4x8x1xf32> to vector<4x8x5xf32>
    %312 = arith.mulf %307, %311 : vector<4x8x5xf32>
    %313 = arith.truncf %312 : vector<4x8x5xf32> to vector<4x8x5xbf16>
    %cst_170 = arith.constant dense<0.000000e+00> : vector<4x8x8xf32>
    %314 = tpu.matmul %313, %298, %cst_170 {dimension_numbers = #tpu.dot_dimension_numbers<[2], [1], [1], [2], [0, 0, 0, 1, 1, 2], [0], [0]>} : vector<4x8x5xbf16>, vector<4x5x8xbf16>, vector<4x8x8xf32> -> vector<4x8x8xf32>
    %c1_171 = arith.constant 1 : index
    %c0_172 = arith.constant 0 : index
    %c0_173 = arith.constant 0 : index
    %c0_174 = arith.constant 0 : index
    %315 = vector.load %arg14[%c1_171, %c0_172, %c0_173, %c0_174] : memref<2x4x8x32xbf16, #tpu.memory_space<vmem>>, vector<1x4x8x32xbf16>
    %316 = vector.shape_cast %315 : vector<1x4x8x32xbf16> to vector<4x8x32xbf16>
    %c1_175 = arith.constant 1 : index
    %c0_176 = arith.constant 0 : index
    %c0_177 = arith.constant 0 : index
    %317 = vector.load %arg15[%c1_175, %c0_176, %c0_177] : memref<2x1x32xf32, #tpu.memory_space<vmem>>, vector<1x1x32xf32>
    %318 = vector.shape_cast %317 : vector<1x1x32xf32> to vector<1x32xf32>
    %319 = arith.truncf %314 : vector<4x8x8xf32> to vector<4x8x8xbf16>
    %cst_178 = arith.constant dense<0.000000e+00> : vector<4x8x32xf32>
    %320 = tpu.matmul %319, %316, %cst_178 {dimension_numbers = #tpu.dot_dimension_numbers<[2], [1], [1], [2], [0, 0, 0, 1, 1, 2], [0], [0]>} : vector<4x8x8xbf16>, vector<4x8x32xbf16>, vector<4x8x32xf32> -> vector<4x8x32xf32>
    %cst_179 = arith.constant dense<0.000000e+00> : vector<8x32xf32>
    %321 = vector.multi_reduction <add>, %320, %cst_179 [0] : vector<4x8x32xf32> to vector<8x32xf32>
    %322 = vector.broadcast %318 : vector<1x32xf32> to vector<8x32xf32>
    %323 = arith.addf %321, %322 : vector<8x32xf32>
    %324 = arith.addf %323, %277 : vector<8x32xf32>
    %c1_180 = arith.constant 1 : index
    %c0_181 = arith.constant 0 : index
    %c0_182 = arith.constant 0 : index
    %325 = vector.load %arg16[%c1_180, %c0_181, %c0_182] : memref<2x1x32xf32, #tpu.memory_space<vmem>>, vector<1x1x32xf32>
    %326 = vector.shape_cast %325 : vector<1x1x32xf32> to vector<1x32xf32>
    %c1_183 = arith.constant 1 : index
    %c0_184 = arith.constant 0 : index
    %c0_185 = arith.constant 0 : index
    %327 = vector.load %arg17[%c1_183, %c0_184, %c0_185] : memref<2x1x32xf32, #tpu.memory_space<vmem>>, vector<1x1x32xf32>
    %328 = vector.shape_cast %327 : vector<1x1x32xf32> to vector<1x32xf32>
    %cst_186 = arith.constant dense<0.000000e+00> : vector<8xf32>
    %329 = vector.multi_reduction <add>, %324, %cst_186 [1] : vector<8x32xf32> to vector<8xf32>
    %330 = vector.shape_cast %329 : vector<8xf32> to vector<8x1xf32>
    %cst_187 = arith.constant 3.200000e+01 : f32
    %331 = vector.broadcast %cst_187 : f32 to vector<8x1xf32>
    %332 = arith.divf %330, %331 : vector<8x1xf32>
    %333 = vector.broadcast %332 : vector<8x1xf32> to vector<8x32xf32>
    %334 = arith.subf %324, %333 : vector<8x32xf32>
    %335 = arith.mulf %334, %334 : vector<8x32xf32>
    %cst_188 = arith.constant dense<0.000000e+00> : vector<8xf32>
    %336 = vector.multi_reduction <add>, %335, %cst_188 [1] : vector<8x32xf32> to vector<8xf32>
    %337 = vector.shape_cast %336 : vector<8xf32> to vector<8x1xf32>
    %cst_189 = arith.constant 3.200000e+01 : f32
    %338 = vector.broadcast %cst_189 : f32 to vector<8x1xf32>
    %339 = arith.divf %337, %338 : vector<8x1xf32>
    %340 = vector.broadcast %332 : vector<8x1xf32> to vector<8x32xf32>
    %341 = arith.subf %324, %340 : vector<8x32xf32>
    %cst_190 = arith.constant 9.99999996E-13 : f32
    %342 = vector.broadcast %cst_190 : f32 to vector<8x1xf32>
    %343 = arith.addf %339, %342 : vector<8x1xf32>
    %344 = math.rsqrt %343 : vector<8x1xf32>
    %345 = vector.broadcast %344 : vector<8x1xf32> to vector<8x32xf32>
    %346 = arith.mulf %341, %345 : vector<8x32xf32>
    %347 = vector.broadcast %326 : vector<1x32xf32> to vector<8x32xf32>
    %348 = arith.mulf %346, %347 : vector<8x32xf32>
    %349 = vector.broadcast %328 : vector<1x32xf32> to vector<8x32xf32>
    %350 = arith.addf %348, %349 : vector<8x32xf32>
    %c1_191 = arith.constant 1 : index
    %c0_192 = arith.constant 0 : index
    %c0_193 = arith.constant 0 : index
    %351 = vector.load %arg18[%c1_191, %c0_192, %c0_193] : memref<2x32x128xbf16, #tpu.memory_space<vmem>>, vector<1x32x128xbf16>
    %352 = vector.shape_cast %351 : vector<1x32x128xbf16> to vector<32x128xbf16>
    %353 = arith.truncf %350 : vector<8x32xf32> to vector<8x32xbf16>
    %cst_194 = arith.constant dense<0.000000e+00> : vector<8x128xf32>
    %354 = tpu.matmul %353, %352, %cst_194 {dimension_numbers = #tpu.dot_dimension_numbers<[1], [0], [0], [1], [0, 0, 1, 1], [], []>} : vector<8x32xbf16>, vector<32x128xbf16>, vector<8x128xf32> -> vector<8x128xf32>
    %c1_195 = arith.constant 1 : index
    %c0_196 = arith.constant 0 : index
    %c0_197 = arith.constant 0 : index
    %355 = vector.load %arg19[%c1_195, %c0_196, %c0_197] : memref<2x1x128xf32, #tpu.memory_space<vmem>>, vector<1x1x128xf32>
    %356 = vector.shape_cast %355 : vector<1x1x128xf32> to vector<1x128xf32>
    %357 = vector.broadcast %356 : vector<1x128xf32> to vector<8x128xf32>
    %358 = arith.addf %354, %357 : vector<8x128xf32>
    %359 = arith.mulf %358, %358 : vector<8x128xf32>
    %360 = arith.mulf %358, %359 : vector<8x128xf32>
    %cst_198 = arith.constant 4.471500e-02 : f32
    %361 = vector.broadcast %cst_198 : f32 to vector<8x128xf32>
    %362 = arith.mulf %361, %360 : vector<8x128xf32>
    %363 = arith.addf %358, %362 : vector<8x128xf32>
    %cst_199 = arith.constant 0.797884583 : f32
    %364 = vector.broadcast %cst_199 : f32 to vector<8x128xf32>
    %365 = arith.mulf %364, %363 : vector<8x128xf32>
    %366 = math.tanh %365 : vector<8x128xf32>
    %cst_200 = arith.constant 1.000000e+00 : f32
    %367 = vector.broadcast %cst_200 : f32 to vector<8x128xf32>
    %368 = arith.addf %367, %366 : vector<8x128xf32>
    %cst_201 = arith.constant 5.000000e-01 : f32
    %369 = vector.broadcast %cst_201 : f32 to vector<8x128xf32>
    %370 = arith.mulf %369, %368 : vector<8x128xf32>
    %371 = arith.mulf %358, %370 : vector<8x128xf32>
    %c1_202 = arith.constant 1 : index
    %c0_203 = arith.constant 0 : index
    %c0_204 = arith.constant 0 : index
    %372 = vector.load %arg20[%c1_202, %c0_203, %c0_204] : memref<2x128x32xbf16, #tpu.memory_space<vmem>>, vector<1x128x32xbf16>
    %373 = vector.shape_cast %372 : vector<1x128x32xbf16> to vector<128x32xbf16>
    %374 = arith.truncf %371 : vector<8x128xf32> to vector<8x128xbf16>
    %cst_205 = arith.constant dense<0.000000e+00> : vector<8x32xf32>
    %375 = tpu.matmul %374, %373, %cst_205 {dimension_numbers = #tpu.dot_dimension_numbers<[1], [0], [0], [1], [0, 0, 1, 1], [], []>} : vector<8x128xbf16>, vector<128x32xbf16>, vector<8x32xf32> -> vector<8x32xf32>
    %c1_206 = arith.constant 1 : index
    %c0_207 = arith.constant 0 : index
    %c0_208 = arith.constant 0 : index
    %376 = vector.load %arg21[%c1_206, %c0_207, %c0_208] : memref<2x1x32xf32, #tpu.memory_space<vmem>>, vector<1x1x32xf32>
    %377 = vector.shape_cast %376 : vector<1x1x32xf32> to vector<1x32xf32>
    %378 = vector.broadcast %377 : vector<1x32xf32> to vector<8x32xf32>
    %379 = arith.addf %375, %378 : vector<8x32xf32>
    %380 = arith.addf %379, %350 : vector<8x32xf32>
    %c1_209 = arith.constant 1 : index
    %c0_210 = arith.constant 0 : index
    %c0_211 = arith.constant 0 : index
    %381 = vector.load %arg22[%c1_209, %c0_210, %c0_211] : memref<2x1x32xf32, #tpu.memory_space<vmem>>, vector<1x1x32xf32>
    %382 = vector.shape_cast %381 : vector<1x1x32xf32> to vector<1x32xf32>
    %c1_212 = arith.constant 1 : index
    %c0_213 = arith.constant 0 : index
    %c0_214 = arith.constant 0 : index
    %383 = vector.load %arg23[%c1_212, %c0_213, %c0_214] : memref<2x1x32xf32, #tpu.memory_space<vmem>>, vector<1x1x32xf32>
    %384 = vector.shape_cast %383 : vector<1x1x32xf32> to vector<1x32xf32>
    %cst_215 = arith.constant dense<0.000000e+00> : vector<8xf32>
    %385 = vector.multi_reduction <add>, %380, %cst_215 [1] : vector<8x32xf32> to vector<8xf32>
    %386 = vector.shape_cast %385 : vector<8xf32> to vector<8x1xf32>
    %cst_216 = arith.constant 3.200000e+01 : f32
    %387 = vector.broadcast %cst_216 : f32 to vector<8x1xf32>
    %388 = arith.divf %386, %387 : vector<8x1xf32>
    %389 = vector.broadcast %388 : vector<8x1xf32> to vector<8x32xf32>
    %390 = arith.subf %380, %389 : vector<8x32xf32>
    %391 = arith.mulf %390, %390 : vector<8x32xf32>
    %cst_217 = arith.constant dense<0.000000e+00> : vector<8xf32>
    %392 = vector.multi_reduction <add>, %391, %cst_217 [1] : vector<8x32xf32> to vector<8xf32>
    %393 = vector.shape_cast %392 : vector<8xf32> to vector<8x1xf32>
    %cst_218 = arith.constant 3.200000e+01 : f32
    %394 = vector.broadcast %cst_218 : f32 to vector<8x1xf32>
    %395 = arith.divf %393, %394 : vector<8x1xf32>
    %396 = vector.broadcast %388 : vector<8x1xf32> to vector<8x32xf32>
    %397 = arith.subf %380, %396 : vector<8x32xf32>
    %cst_219 = arith.constant 9.99999996E-13 : f32
    %398 = vector.broadcast %cst_219 : f32 to vector<8x1xf32>
    %399 = arith.addf %395, %398 : vector<8x1xf32>
    %400 = math.rsqrt %399 : vector<8x1xf32>
    %401 = vector.broadcast %400 : vector<8x1xf32> to vector<8x32xf32>
    %402 = arith.mulf %397, %401 : vector<8x32xf32>
    %403 = vector.broadcast %382 : vector<1x32xf32> to vector<8x32xf32>
    %404 = arith.mulf %402, %403 : vector<8x32xf32>
    %405 = vector.broadcast %384 : vector<1x32xf32> to vector<8x32xf32>
    %406 = arith.addf %404, %405 : vector<8x32xf32>
    %407 = vector.extract_strided_slice %406 {offsets = [0, 0], sizes = [1, 32], strides = [1, 1]} : vector<8x32xf32> to vector<1x32xf32>
    %c0_220 = arith.constant 0 : index
    %c0_221 = arith.constant 0 : index
    %408 = vector.load %arg24[%c0_220, %c0_221] : memref<32x2xf32, #tpu.memory_space<vmem>>, vector<32x2xf32>
    %cst_222 = arith.constant dense<0.000000e+00> : vector<1x2xf32>
    %409 = tpu.matmul %407, %408, %cst_222 {dimension_numbers = #tpu.dot_dimension_numbers<[1], [0], [0], [1], [0, 0, 1, 1], [], []>} : vector<1x32xf32>, vector<32x2xf32>, vector<1x2xf32> -> vector<1x2xf32>
    %c0_223 = arith.constant 0 : index
    %c0_224 = arith.constant 0 : index
    %410 = vector.load %arg25[%c0_223, %c0_224] : memref<1x2xf32, #tpu.memory_space<vmem>>, vector<1x2xf32>
    %411 = arith.addf %409, %410 : vector<1x2xf32>
    %cst_225 = arith.constant dense<0xFF800000> : vector<1xf32>
    %412 = vector.multi_reduction <maximumf>, %411, %cst_225 [1] : vector<1x2xf32> to vector<1xf32>
    %413 = vector.shape_cast %412 : vector<1xf32> to vector<1x1xf32>
    %414 = vector.broadcast %413 : vector<1x1xf32> to vector<1x2xf32>
    %415 = arith.subf %411, %414 : vector<1x2xf32>
    %416 = math.exp %415 : vector<1x2xf32>
    %cst_226 = arith.constant dense<0.000000e+00> : vector<1xf32>
    %417 = vector.multi_reduction <add>, %416, %cst_226 [1] : vector<1x2xf32> to vector<1xf32>
    %418 = vector.shape_cast %417 : vector<1xf32> to vector<1x1xf32>
    %419 = math.log %418 : vector<1x1xf32>
    %420 = arith.addf %419, %413 : vector<1x1xf32>
    %421 = vector.broadcast %420 : vector<1x1xf32> to vector<1x2xf32>
    %422 = arith.subf %411, %421 : vector<1x2xf32>
    %c2_i32 = arith.constant 2 : i32
    %423 = arith.cmpi slt, %arg0, %c2_i32 : i32
    %424 = arith.extui %423 : i1 to i32
    %425 = tpu.iota {dimensions = array<i32: 1>} : vector<1x2xi32>
    %426 = vector.broadcast %424 : i32 to vector<1x2xi32>
    %427 = arith.cmpi eq, %425, %426 : vector<1x2xi32>
    %428 = arith.extui %427 : vector<1x2xi1> to vector<1x2xi32>
    %429 = arith.sitofp %428 : vector<1x2xi32> to vector<1x2xf32>
    %430 = arith.mulf %422, %429 : vector<1x2xf32>
    %cst_227 = arith.constant dense<0.000000e+00> : vector<1xf32>
    %431 = vector.multi_reduction <add>, %430, %cst_227 [1] : vector<1x2xf32> to vector<1xf32>
    %432 = vector.shape_cast %431 : vector<1xf32> to vector<1x1xf32>
    %cst_228 = arith.constant 0.000000e+00 : f32
    %433 = vector.broadcast %cst_228 : f32 to vector<1x1xf32>
    %434 = arith.subf %433, %432 : vector<1x1xf32>
    %c0_229 = arith.constant 0 : index
    %c0_230 = arith.constant 0 : index
    %c0_231 = arith.constant 0 : index
    %435 = vector.load %arg26[%c0_229, %c0_230, %c0_231] : memref<1x1x2xf32, #tpu.memory_space<vmem>>, vector<1x1x2xf32>
    %436 = vector.shape_cast %435 : vector<1x1x2xf32> to vector<1x2xf32>
    %437 = vector.shape_cast %411 : vector<1x2xf32> to vector<1x1x2xf32>
    tpu.vector_store %arg26[%c0_229, %c0_230, %c0_231], %437 {strides = array<i32>} : memref<1x1x2xf32, #tpu.memory_space<vmem>>, vector<1x1x2xf32>,
    %c0_232 = arith.constant 0 : index
    %c0_233 = arith.constant 0 : index
    %c0_234 = arith.constant 0 : index
    %438 = vector.load %arg27[%c0_232, %c0_233, %c0_234] : memref<1x1x1xf32, #tpu.memory_space<vmem>>, vector<1x1x1xf32>
    %439 = vector.shape_cast %438 : vector<1x1x1xf32> to vector<1x1xf32>
    %440 = vector.shape_cast %434 : vector<1x1xf32> to vector<1x1x1xf32>
    tpu.vector_store %arg27[%c0_232, %c0_233, %c0_234], %440 {strides = array<i32>} : memref<1x1x1xf32, #tpu.memory_space<vmem>>, vector<1x1x1xf32>,
    return
  }
  func.func @transform_0(%arg0: i32) -> (i32, i32, i32) {
    %c0_i32 = arith.constant 0 : i32
    %c0_i32_0 = arith.constant 0 : i32
    %c0_i32_1 = arith.constant 0 : i32
    return %arg0, %c0_i32, %c0_i32_0 : i32, i32, i32
  }
  func.func @transform_1(%arg0: i32) -> (i32, i32, i32) {
    %c0_i32 = arith.constant 0 : i32
    %c0_i32_0 = arith.constant 0 : i32
    %c0_i32_1 = arith.constant 0 : i32
    return %arg0, %c0_i32, %c0_i32_0 : i32, i32, i32
  }
  func.func @transform_2(%arg0: i32) -> (i32, i32, i32) {
    %c0_i32 = arith.constant 0 : i32
    %c0_i32_0 = arith.constant 0 : i32
    %c0_i32_1 = arith.constant 0 : i32
    return %arg0, %c0_i32, %c0_i32_0 : i32, i32, i32
  }
  func.func @transform_3(%arg0: i32) -> (i32, i32, i32, i32) {
    %c0_i32 = arith.constant 0 : i32
    %c0_i32_0 = arith.constant 0 : i32
    %c0_i32_1 = arith.constant 0 : i32
    %c0_i32_2 = arith.constant 0 : i32
    %c0_i32_3 = arith.constant 0 : i32
    return %c0_i32, %c0_i32_0, %c0_i32_1, %c0_i32_2 : i32, i32, i32, i32
  }
  func.func @transform_4(%arg0: i32) -> (i32, i32, i32, i32) {
    %c0_i32 = arith.constant 0 : i32
    %c0_i32_0 = arith.constant 0 : i32
    %c0_i32_1 = arith.constant 0 : i32
    %c0_i32_2 = arith.constant 0 : i32
    %c0_i32_3 = arith.constant 0 : i32
    return %c0_i32, %c0_i32_0, %c0_i32_1, %c0_i32_2 : i32, i32, i32, i32
  }
  func.func @transform_5(%arg0: i32) -> (i32, i32, i32, i32) {
    %c0_i32 = arith.constant 0 : i32
    %c0_i32_0 = arith.constant 0 : i32
    %c0_i32_1 = arith.constant 0 : i32
    %c0_i32_2 = arith.constant 0 : i32
    %c0_i32_3 = arith.constant 0 : i32
    return %c0_i32, %c0_i32_0, %c0_i32_1, %c0_i32_2 : i32, i32, i32, i32
  }
  func.func @transform_6(%arg0: i32) -> (i32, i32, i32) {
    %c0_i32 = arith.constant 0 : i32
    %c0_i32_0 = arith.constant 0 : i32
    %c0_i32_1 = arith.constant 0 : i32
    %c0_i32_2 = arith.constant 0 : i32
    return %c0_i32, %c0_i32_0, %c0_i32_1 : i32, i32, i32
  }
  func.func @transform_7(%arg0: i32) -> (i32, i32, i32) {
    %c0_i32 = arith.constant 0 : i32
    %c0_i32_0 = arith.constant 0 : i32
    %c0_i32_1 = arith.constant 0 : i32
    %c0_i32_2 = arith.constant 0 : i32
    return %c0_i32, %c0_i32_0, %c0_i32_1 : i32, i32, i32
  }
  func.func @transform_8(%arg0: i32) -> (i32, i32, i32) {
    %c0_i32 = arith.constant 0 : i32
    %c0_i32_0 = arith.constant 0 : i32
    %c0_i32_1 = arith.constant 0 : i32
    %c0_i32_2 = arith.constant 0 : i32
    return %c0_i32, %c0_i32_0, %c0_i32_1 : i32, i32, i32
  }
  func.func @transform_9(%arg0: i32) -> (i32, i32, i32, i32) {
    %c0_i32 = arith.constant 0 : i32
    %c0_i32_0 = arith.constant 0 : i32
    %c0_i32_1 = arith.constant 0 : i32
    %c0_i32_2 = arith.constant 0 : i32
    %c0_i32_3 = arith.constant 0 : i32
    return %c0_i32, %c0_i32_0, %c0_i32_1, %c0_i32_2 : i32, i32, i32, i32
  }
  func.func @transform_10(%arg0: i32) -> (i32, i32, i32, i32) {
    %c0_i32 = arith.constant 0 : i32
    %c0_i32_0 = arith.constant 0 : i32
    %c0_i32_1 = arith.constant 0 : i32
    %c0_i32_2 = arith.constant 0 : i32
    %c0_i32_3 = arith.constant 0 : i32
    return %c0_i32, %c0_i32_0, %c0_i32_1, %c0_i32_2 : i32, i32, i32, i32
  }
  func.func @transform_11(%arg0: i32) -> (i32, i32, i32, i32) {
    %c0_i32 = arith.constant 0 : i32
    %c0_i32_0 = arith.constant 0 : i32
    %c0_i32_1 = arith.constant 0 : i32
    %c0_i32_2 = arith.constant 0 : i32
    %c0_i32_3 = arith.constant 0 : i32
    return %c0_i32, %c0_i32_0, %c0_i32_1, %c0_i32_2 : i32, i32, i32, i32
  }
  func.func @transform_12(%arg0: i32) -> (i32, i32, i32, i32) {
    %c0_i32 = arith.constant 0 : i32
    %c0_i32_0 = arith.constant 0 : i32
    %c0_i32_1 = arith.constant 0 : i32
    %c0_i32_2 = arith.constant 0 : i32
    %c0_i32_3 = arith.constant 0 : i32
    return %c0_i32, %c0_i32_0, %c0_i32_1, %c0_i32_2 : i32, i32, i32, i32
  }
  func.func @transform_13(%arg0: i32) -> (i32, i32, i32, i32) {
    %c0_i32 = arith.constant 0 : i32
    %c0_i32_0 = arith.constant 0 : i32
    %c0_i32_1 = arith.constant 0 : i32
    %c0_i32_2 = arith.constant 0 : i32
    %c0_i32_3 = arith.constant 0 : i32
    return %c0_i32, %c0_i32_0, %c0_i32_1, %c0_i32_2 : i32, i32, i32, i32
  }
  func.func @transform_14(%arg0: i32) -> (i32, i32, i32) {
    %c0_i32 = arith.constant 0 : i32
    %c0_i32_0 = arith.constant 0 : i32
    %c0_i32_1 = arith.constant 0 : i32
    %c0_i32_2 = arith.constant 0 : i32
    return %c0_i32, %c0_i32_0, %c0_i32_1 : i32, i32, i32
  }
  func.func @transform_15(%arg0: i32) -> (i32, i32, i32) {
    %c0_i32 = arith.constant 0 : i32
    %c0_i32_0 = arith.constant 0 : i32
    %c0_i32_1 = arith.constant 0 : i32
    %c0_i32_2 = arith.constant 0 : i32
    return %c0_i32, %c0_i32_0, %c0_i32_1 : i32, i32, i32
  }
  func.func @transform_16(%arg0: i32) -> (i32, i32, i32) {
    %c0_i32 = arith.constant 0 : i32
    %c0_i32_0 = arith.constant 0 : i32
    %c0_i32_1 = arith.constant 0 : i32
    %c0_i32_2 = arith.constant 0 : i32
    return %c0_i32, %c0_i32_0, %c0_i32_1 : i32, i32, i32
  }
  func.func @transform_17(%arg0: i32) -> (i32, i32, i32) {
    %c0_i32 = arith.constant 0 : i32
    %c0_i32_0 = arith.constant 0 : i32
    %c0_i32_1 = arith.constant 0 : i32
    %c0_i32_2 = arith.constant 0 : i32
    return %c0_i32, %c0_i32_0, %c0_i32_1 : i32, i32, i32
  }
  func.func @transform_18(%arg0: i32) -> (i32, i32, i32) {
    %c0_i32 = arith.constant 0 : i32
    %c0_i32_0 = arith.constant 0 : i32
    %c0_i32_1 = arith.constant 0 : i32
    %c0_i32_2 = arith.constant 0 : i32
    return %c0_i32, %c0_i32_0, %c0_i32_1 : i32, i32, i32
  }
  func.func @transform_19(%arg0: i32) -> (i32, i32, i32) {
    %c0_i32 = arith.constant 0 : i32
    %c0_i32_0 = arith.constant 0 : i32
    %c0_i32_1 = arith.constant 0 : i32
    %c0_i32_2 = arith.constant 0 : i32
    return %c0_i32, %c0_i32_0, %c0_i32_1 : i32, i32, i32
  }
  func.func @transform_20(%arg0: i32) -> (i32, i32, i32) {
    %c0_i32 = arith.constant 0 : i32
    %c0_i32_0 = arith.constant 0 : i32
    %c0_i32_1 = arith.constant 0 : i32
    %c0_i32_2 = arith.constant 0 : i32
    return %c0_i32, %c0_i32_0, %c0_i32_1 : i32, i32, i32
  }
  func.func @transform_21(%arg0: i32) -> (i32, i32, i32) {
    %c0_i32 = arith.constant 0 : i32
    %c0_i32_0 = arith.constant 0 : i32
    %c0_i32_1 = arith.constant 0 : i32
    %c0_i32_2 = arith.constant 0 : i32
    return %c0_i32, %c0_i32_0, %c0_i32_1 : i32, i32, i32
  }
  func.func @transform_22(%arg0: i32) -> (i32, i32, i32) {
    %c0_i32 = arith.constant 0 : i32
    %c0_i32_0 = arith.constant 0 : i32
    %c0_i32_1 = arith.constant 0 : i32
    %c0_i32_2 = arith.constant 0 : i32
    return %c0_i32, %c0_i32_0, %c0_i32_1 : i32, i32, i32
  }
  func.func @transform_23(%arg0: i32) -> (i32, i32) {
    %c0_i32 = arith.constant 0 : i32
    %c0_i32_0 = arith.constant 0 : i32
    %c0_i32_1 = arith.constant 0 : i32
    return %c0_i32, %c0_i32_0 : i32, i32
  }
  func.func @transform_24(%arg0: i32) -> (i32, i32) {
    %c0_i32 = arith.constant 0 : i32
    %c0_i32_0 = arith.constant 0 : i32
    %c0_i32_1 = arith.constant 0 : i32
    return %c0_i32, %c0_i32_0 : i32, i32
  }
  func.func @transform_25(%arg0: i32) -> (i32, i32, i32) {
    %c0_i32 = arith.constant 0 : i32
    %c0_i32_0 = arith.constant 0 : i32
    %c0_i32_1 = arith.constant 0 : i32
    return %arg0, %c0_i32, %c0_i32_0 : i32, i32, i32
  }
  func.func @transform_26(%arg0: i32) -> (i32, i32, i32) {
    %c0_i32 = arith.constant 0 : i32
    %c0_i32_0 = arith.constant 0 : i32
    %c0_i32_1 = arith.constant 0 : i32
    return %arg0, %c0_i32, %c0_i32_0 : i32, i32, i32
  }
}

</mosaic_0001>

<llo_original>
// kernel: albef_forward_train.6
$region0: #{albef_forward_train.6}
  #allocation0 [shape = 'u32[]', space=smem, size = 0x4, offset = 0x4, fixed_abs, tag = 'smem constant byte address 0x4 - core index']
  #allocation1 [shape = 'u32[72,128]{1,0:T(1,128)}', space=vmem, size = 0x9000, scoped, tag = 'internal scratch']
  #allocation2 [shape = 'f32[1,1]{1,0:T(1,128)S(6)}', space=smem, size = 0x200, scoped, tag = 'scoped memory for albef_forward_train.6']
  %s0 = inlined_call_operand.vmem [shape: f32[2,32], index: 0, kind: input, shape index: {}]
  %s1 = inlined_call_operand.vmem [shape: f32[2,32], index: 1, kind: input, shape index: {}]
  %s2 = inlined_call_operand.vmem [shape: f32[32,16], index: 2, kind: input, shape index: {}]
  %s3 = inlined_call_operand.vmem [shape: f32[1,16], index: 3, kind: input, shape index: {}]
  %s4 = inlined_call_operand.vmem [shape: f32[32,16], index: 4, kind: input, shape index: {}]
  %s5 = inlined_call_operand.vmem [shape: f32[1,16], index: 5, kind: input, shape index: {}]
  %s6 = inlined_call_operand.<no memory space> [shape: f32[1,1], index: 6, kind: input, shape index: {}]
  %s7 = inlined_call_operand.vmem [shape: f32[2,2], index: 7, kind: output, shape index: {0}]
  %s8 = inlined_call_operand.hbm [shape: f32[1,1], index: 8, kind: output, shape index: {1}]
  %9 = xla_tuple %s7, %s8
  %s10 = sld [smem:[#allocation0]]
  $region46: #{albef_forward_train.6} parent=0
    _
  %s12 = ssub.s32 1, %s10
  %s13 = scalar_select 0, %s12, %s10
  %14 = sst [smem:[#allocation2]] %s6
  $region1: #{albef_forward_train.6} parent=0
    #allocation3 [shape = 'u8[512]{0}', space=vmem, size = 0x400, scoped, tag = 'output window, operand 1, single buffered']
    #allocation4 [shape = 's32[1]{0}', space=sflag, size = 0x4, scoped, tag = 'scoped memory for albef_forward_train.6']
    %15 = vsyncpa [#allocation4], 0
    // Predicated region
    $region2: #{albef_forward_train.6} parent=1 // pred_check
      _
    $region3: #{albef_forward_train.6} parent=1 // pred_check_branch
      %17 = sbr.rel (0) target = $region5
    $region4: #{albef_forward_train.6} parent=1 // pred_region
      _
    $region5: #{albef_forward_train.6} parent=1 // pred_fallthru
      _
    // Predicated region
    $region6: #{albef_forward_train.6} parent=1 // pred_check
      _
    $region7: #{albef_forward_train.6} parent=1 // pred_check_branch
      %19 = sbr.rel (0) target = $region9
    $region8: #{albef_forward_train.6} parent=1 // pred_region
      _
    $region9: #{albef_forward_train.6} parent=1 // pred_fallthru
      _
    // Predicated region
    $region10: #{albef_forward_train.6} parent=1 // pred_check
      _
    $region11: #{albef_forward_train.6} parent=1 // pred_check_branch
      %21 = sbr.rel (0) target = $region13
    $region12: #{albef_forward_train.6} parent=1 // pred_region
      _
    $region13: #{albef_forward_train.6} parent=1 // pred_fallthru
      _
    // Predicated region
    $region14: #{albef_forward_train.6} parent=1 // pred_check
      _
    $region15: #{albef_forward_train.6} parent=1 // pred_check_branch
      %23 = sbr.rel (0) target = $region17
    $region16: #{albef_forward_train.6} parent=1 // pred_region
      _
    $region17: #{albef_forward_train.6} parent=1 // pred_fallthru
      _
    // Predicated region
    $region18: #{albef_forward_train.6} parent=1 // pred_check
      _
    $region19: #{albef_forward_train.6} parent=1 // pred_check_branch
      %25 = sbr.rel (0) target = $region21
    $region20: #{albef_forward_train.6} parent=1 // pred_region
      _
    $region21: #{albef_forward_train.6} parent=1 // pred_fallthru
      _
    // Predicated region
    $region22: #{albef_forward_train.6} parent=1 // pred_check
      _
    $region23: #{albef_forward_train.6} parent=1 // pred_check_branch
      %27 = sbr.rel (0) target = $region25
    $region24: #{albef_forward_train.6} parent=1 // pred_region
      _
    $region25: #{albef_forward_train.6} parent=1 // pred_fallthru
      _
    // Predicated region
    $region26: #{albef_forward_train.6} parent=1 // pred_check
      _
    $region27: #{albef_forward_train.6} parent=1 // pred_check_branch
      %29 = sbr.rel (0) target = $region29
    $region28: #{albef_forward_train.6} parent=1 // pred_region
      _
    $region29: #{albef_forward_train.6} parent=1 // pred_fallthru
      _
    %s30 = sld [smem:[#allocation2]]
    %v31 = vld [vmem:[%s0] sm:$0x3]
    %v32 = vld [vmem:[%s2] sm:$0xff]
    %v33 = vld [vmem:[%s2 + $0x8] sm:$0xff]
    %v34 = vld [vmem:[%s2 + $0x10] sm:$0xff]
    %v35 = vld [vmem:[%s2 + $0x18] sm:$0xff]
    %v36 = vld [vmem:[%s3] sm:$0x1]
    %v38 = vperm.slane %v36, 0
    %vm40 = vcmask 261120
    %v42 = vsel %vm40, %v31, 0
    %44 = vmatpush.msra.mxu0 0.0
    %45 = vmatpush.msra.mxu0 0.0
    %46 = vmatpush.msra.mxu0 0.0
    %47 = vmatpush.msra.mxu0 0.0
    %48 = vmatpush.msra.mxu0 0.0
    %49 = vmatpush.msra.mxu0 0.0
    %50 = vmatpush.msra.mxu0 0.0
    %51 = vmatpush.msra.mxu0 0.0
    %52 = vmatpush.msra.mxu0 0.0
    %53 = vmatpush.msra.mxu0 0.0
    %54 = vmatpush.msra.mxu0 0.0
    %55 = vmatpush.msra.mxu0 0.0
    %56 = vmatpush.msra.mxu0 %v35
    %57 = vmatpush.msra.mxu0 %v34
    %58 = vmatpush.msra.mxu0 %v33
    %59 = vmatpush.msra.mxu0 %v32
    %60 = vmatmul.f32.gmra.mxu0 %v42
    %v61 = vpop.f32.mrf.mxu0
    %v62 = vadd.f32 %v38, %v61
    %63 = vdwg.mxu0
    %v64 = vmul.f32 %v62, %v62
    %vm65 = vcmask 123904
    %v66 = vsel %vm65, %v64, 0.0
    %67 = vadd.xlane.f32.xlu0 %v66
    %v68 = vpop.xlane.xlu0 %67
    %v69 = vrsqrt.pop %v68
    %v70 = vmul.f32 %v69, %v68
    %v71 = vmul.f32 %v70, %v69
    %v72 = vmul.f32 0.5, %v71
    %v73 = vsub.f32 1.5, %v72
    %v74 = vmul.f32 %v69, %v73
    %v75 = vmul.f32 %v68, %v74
    %vm76 = vcmp.eq.f32.partialorder %v68, inf
    %v77 = vsel %vm76, %v68, %v75
    %vm78 = vcmp.eq.f32.partialorder %v68, 0.0
    %v79 = vand.u32 %v68, 2147483648
    %v80 = vsel %vm78, %v79, %v77
    %v81 = vmax.f32 %v80, 1e-12
    %v82 = vrcp.pop %v81
    %v83 = vmul.f32 %v81, %v82
    %v84 = vsub.f32 1.0, %v83
    %v85 = vmul.f32 %v82, %v84
    %v86 = vadd.f32 %v82, %v85
    %vm87 = vweird.f32 %v81
    %vm88 = vweird.f32 %v82
    %vm89 = vmor %vm87, %vm88
    %v90 = vsel %vm89, %v82, %v86
    %v91 = vand.u32 2147483647, %v81
    %vm92 = vcmp.eq.f32.partialorder %v91, 8.507059e+37
    %v93 = vand.u32 %v81, 2147483648
    %v94 = vor.u32 1.1754944e-38, %v93
    %v95 = vsel %vm92, %v94, %v90
    %v96 = vmul.f32 %v62, %v95
    %v97 = vld [vmem:[%s1] sm:$0x3]
    %v98 = vld [vmem:[%s4] sm:$0xff]
    %v99 = vld [vmem:[%s4 + $0x8] sm:$0xff]
    %v100 = vld [vmem:[%s4 + $0x10] sm:$0xff]
    %v101 = vld [vmem:[%s4 + $0x18] sm:$0xff]
    %v102 = vld [vmem:[%s5] sm:$0x1]
    %v104 = vperm.slane %v102, 0
    %v107 = vsel %vm40, %v97, 0
    %109 = vmatpush.msra.mxu0 0.0
    %110 = vmatpush.msra.mxu0 0.0
    %111 = vmatpush.msra.mxu0 0.0
    %112 = vmatpush.msra.mxu0 0.0
    %113 = vmatpush.msra.mxu0 0.0
    %114 = vmatpush.msra.mxu0 0.0
    %115 = vmatpush.msra.mxu0 0.0
    %116 = vmatpush.msra.mxu0 0.0
    %117 = vmatpush.msra.mxu0 0.0
    %118 = vmatpush.msra.mxu0 0.0
    %119 = vmatpush.msra.mxu0 0.0
    %120 = vmatpush.msra.mxu0 0.0
    %121 = vmatpush.msra.mxu0 %v101
    %122 = vmatpush.msra.mxu0 %v100
    %123 = vmatpush.msra.mxu0 %v99
    %124 = vmatpush.msra.mxu0 %v98
    %125 = vmatmul.f32.gmra.mxu0 %v107
    %v126 = vpop.f32.mrf.mxu0
    %v127 = vadd.f32 %v104, %v126
    %128 = vdwg.mxu0
    %v129 = vmul.f32 %v127, %v127
    %v130 = vsel %vm65, %v129, 0.0
    %131 = vadd.xlane.f32.xlu0 %v130
    %v132 = vpop.xlane.xlu0 %131
    %v133 = vrsqrt.pop %v132
    %v134 = vmul.f32 %v133, %v132
    %v135 = vmul.f32 %v134, %v133
    %v136 = vmul.f32 0.5, %v135
    %v137 = vsub.f32 1.5, %v136
    %v138 = vmul.f32 %v133, %v137
    %v139 = vmul.f32 %v132, %v138
    %vm140 = vcmp.eq.f32.partialorder %v132, inf
    %v141 = vsel %vm140, %v132, %v139
    %vm142 = vcmp.eq.f32.partialorder %v132, 0.0
    %v143 = vand.u32 %v132, 2147483648
    %v144 = vsel %vm142, %v143, %v141
    %v145 = vmax.f32 %v144, 1e-12
    %v146 = vrcp.pop %v145
    %v147 = vmul.f32 %v145, %v146
    %v148 = vsub.f32 1.0, %v147
    %v149 = vmul.f32 %v146, %v148
    %v150 = vadd.f32 %v146, %v149
    %vm151 = vweird.f32 %v145
    %vm152 = vweird.f32 %v146
    %vm153 = vmor %vm151, %vm152
    %v154 = vsel %vm153, %v146, %v150
    %v155 = vand.u32 2147483647, %v145
    %vm156 = vcmp.eq.f32.partialorder %v155, 8.507059e+37
    %v157 = vand.u32 %v145, 2147483648
    %v158 = vor.u32 1.1754944e-38, %v157
    %v159 = vsel %vm156, %v158, %v154
    %v160 = vmul.f32 %v127, %v159
    %vm161 = vcmask 130048
    %v163 = vsel %vm161, %v96, 0
    %v166 = vsel %vm161, %v160, 0
    %168 = vmatpush.xpose.msra.mxu0 0.0
    %169 = vmatpush.xpose.msra.mxu0 0.0
    %170 = vmatpush.xpose.msra.mxu0 0.0
    %171 = vmatpush.xpose.msra.mxu0 0.0
    %172 = vmatpush.xpose.msra.mxu0 0.0
    %173 = vmatpush.xpose.msra.mxu0 0.0
    %174 = vmatpush.xpose.msra.mxu0 0.0
    %175 = vmatpush.xpose.msra.mxu0 0.0
    %176 = vmatpush.xpose.msra.mxu0 0.0
    %177 = vmatpush.xpose.msra.mxu0 0.0
    %178 = vmatpush.xpose.msra.mxu0 0.0
    %179 = vmatpush.xpose.msra.mxu0 0.0
    %180 = vmatpush.xpose.msra.mxu0 0.0
    %181 = vmatpush.xpose.msra.mxu0 0.0
    %182 = vmatpush.xpose.msra.mxu0 0.0
    %183 = vmatpush.xpose.msra.mxu0 %v166
    %184 = vmatmul.f32.gmra.mxu0 %v163
    %v185 = vpop.f32.mrf.mxu0
    %v186 = vadd.f32 0.0, %v185
    %187 = vdwg.mxu0
    %v188 = vstv %s30
    %v189 = vmul.f32 %v186, %v188
    %190 = vmatpush.xpose.msra.mxu0 0.0
    %191 = vmatpush.xpose.msra.mxu0 0.0
    %192 = vmatpush.xpose.msra.mxu0 0.0
    %193 = vmatpush.xpose.msra.mxu0 0.0
    %194 = vmatpush.xpose.msra.mxu0 0.0
    %195 = vmatpush.xpose.msra.mxu0 0.0
    %196 = vmatpush.xpose.msra.mxu0 0.0
    %197 = vmatpush.xpose.msra.mxu0 0.0
    %198 = vmatpush.xpose.msra.mxu0 0.0
    %199 = vmatpush.xpose.msra.mxu0 0.0
    %200 = vmatpush.xpose.msra.mxu0 0.0
    %201 = vmatpush.xpose.msra.mxu0 0.0
    %202 = vmatpush.xpose.msra.mxu0 0.0
    %203 = vmatpush.xpose.msra.mxu0 0.0
    %204 = vmatpush.xpose.msra.mxu0 0.0
    %205 = vmatpush.xpose.msra.mxu0 %v163
    %206 = vmatmul.f32.gmra.mxu0 %v166
    %v207 = vpop.f32.mrf.mxu0
    %v208 = vadd.f32 0.0, %v207
    %209 = vdwg.mxu0
    %v210 = vmul.f32 %v208, %v188
    %v211 = vlaneseq
    %v212 = vshrl.u32 %v211, 7
    %v213 = vlaneseq
    %v214 = vand.u32 %v213, 127
    %vm215 = vcmp.eq.s32.totalorder %v212, %v214
    %v216 = vsel %vm215, 1, 0
    %v217 = vcvt.s32.f32 %v216
    %vm218 = vcmask 9216
    %v219 = vsel %vm218, %v189, -inf
    %220 = vmax.xlane.f32.xlu0 %v219
    %v221 = vpop.xlane.xlu0 %220
    %v222 = vsub.f32 %v189, %v221
    %v223 = vmul.f32 %v222, 1.442695
    %v224 = vpow.pop %v223
    %v225 = vsel %vm218, %v224, 0.0
    %226 = vadd.xlane.f32.xlu0 %v225
    %v227 = vpop.xlane.xlu0 %226
    %v228 = vlog2.pop %v227
    %v229 = vmul.f32 %v228, 0.6931472
    %v230 = vadd.f32 %v229, %v221
    %v231 = vmul.f32 %v189, %v217
    %v232 = vsel %vm218, %v231, 0.0
    %233 = vadd.xlane.f32.xlu0 %v232
    %v234 = vpop.xlane.xlu0 %233
    %v235 = vsub.f32 %v230, %v234
    %v236 = vsel %vm218, %v210, -inf
    %237 = vmax.xlane.f32.xlu0 %v236
    %v238 = vpop.xlane.xlu0 %237
    %v239 = vsub.f32 %v210, %v238
    %v240 = vmul.f32 %v239, 1.442695
    %v241 = vpow.pop %v240
    %v242 = vsel %vm218, %v241, 0.0
    %243 = vadd.xlane.f32.xlu0 %v242
    %v244 = vpop.xlane.xlu0 %243
    %v245 = vlog2.pop %v244
    %v246 = vmul.f32 %v245, 0.6931472
    %v247 = vadd.f32 %v246, %v238
    %v248 = vmul.f32 %v210, %v217
    %v249 = vsel %vm218, %v248, 0.0
    %250 = vadd.xlane.f32.xlu0 %v249
    %v251 = vpop.xlane.xlu0 %250
    %v252 = vsub.f32 %v247, %v251
    %v253 = vadd.f32 %v235, %v252
    %vm254 = vcmask 1041408
    %v255 = vsel %vm254, %v253, 0.0
    %v256 = vrot.slane %v255, 4
    %v257 = vadd.f32 %v255, %v256
    %v258 = vrot.slane %v257, 2
    %v259 = vadd.f32 %v257, %v258
    %v260 = vrot.slane %v259, 1
    %v261 = vadd.f32 %v259, %v260
    %v262 = vmul.f32 %v261, 0.25
    %263 = vst.msk [vmem:[%s7] sm:$0x3] %vm218, %v189
    %vm264 = vcmask 0
    %265 = vst.msk [vmem:[#allocation3] sm:$0x1] %vm264, %v262
    // Predicated region
    $region30: #{albef_forward_train.6} parent=1 // pred_check
      _
    $region31: #{albef_forward_train.6} parent=1 // pred_check_branch
      %267 = sbr.rel (0) target = $region33
    $region32: #{albef_forward_train.6} parent=1 // pred_region
      _
    $region33: #{albef_forward_train.6} parent=1 // pred_fallthru
      _
    // Predicated region
    $region34: #{albef_forward_train.6} parent=1 // pred_check
      _
    $region35: #{albef_forward_train.6} parent=1 // pred_check_branch
      %269 = sbr.rel (0) target = $region37
    $region36: #{albef_forward_train.6} parent=1 // pred_region
      %271 = vsyncadd [#allocation4], 0
      %s273 = sshll.u32 [#allocation3], 4
      %s274 = int_to_ptr.vmem [resolvable:$true] %s273
      %s275 = sshll.u32 %s8, 4
      %s276 = int_to_ptr.hbm [resolvable:$true] %s275
      %278 = dma.vmem_to_hbm [thread:$0]  %s274, 16, %s276, [#allocation4]
    $region37: #{albef_forward_train.6} parent=1 // pred_fallthru
      _
    // Predicated region
    $region38: #{albef_forward_train.6} parent=1 // pred_check
      _
    $region39: #{albef_forward_train.6} parent=1 // pred_check_branch
      %280 = sbr.rel (0) target = $region41
    $region40: #{albef_forward_train.6} parent=1 // pred_region
      _
    $region41: #{albef_forward_train.6} parent=1 // pred_fallthru
      _
    // Predicated region
    $region42: #{albef_forward_train.6} parent=1 // pred_check
      _
    $region43: #{albef_forward_train.6} parent=1 // pred_check_branch
      %282 = sbr.rel (0) target = $region45
    $region44: #{albef_forward_train.6} parent=1 // pred_region
      %284 = dma.done [#allocation4], 16
    $region45: #{albef_forward_train.6} parent=1 // pred_fallthru
      _
    %285 = vsyncpa [#allocation4], 1

// kernel: albef_forward_train.5
$region0: #{albef_forward_train.5}
  #allocation0 [shape = 'u32[]', space=smem, size = 0x4, offset = 0x4, fixed_abs, tag = 'smem constant byte address 0x4 - core index']
  #allocation1 [shape = 'u32[72,128]{1,0:T(1,128)}', space=vmem, size = 0x9000, scoped, tag = 'internal scratch']
  %s0 = inlined_call_operand.vmem [shape: f32[2,8,32], index: 0, kind: input, shape index: {}]
  %s1 = inlined_call_operand.vmem [shape: f32[2,1,8], index: 1, kind: input, shape index: {}]
  %s2 = inlined_call_operand.vmem [shape: f32[1,32], index: 2, kind: input, shape index: {}]
  %s3 = inlined_call_operand.vmem [shape: f32[1,32], index: 3, kind: input, shape index: {}]
  %s4 = inlined_call_operand.vmem [shape: bf16[2,4,32,24], index: 4, kind: input, shape index: {}]
  %s5 = inlined_call_operand.vmem [shape: f32[2,4,1,24], index: 5, kind: input, shape index: {}]
  %s6 = inlined_call_operand.vmem [shape: bf16[2,4,8,32], index: 6, kind: input, shape index: {}]
  %s7 = inlined_call_operand.vmem [shape: f32[2,1,32], index: 7, kind: input, shape index: {}]
  %s8 = inlined_call_operand.vmem [shape: f32[2,1,32], index: 8, kind: input, shape index: {}]
  %s9 = inlined_call_operand.vmem [shape: f32[2,1,32], index: 9, kind: input, shape index: {}]
  %s10 = inlined_call_operand.vmem [shape: bf16[2,32,128], index: 10, kind: input, shape index: {}]
  %s11 = inlined_call_operand.vmem [shape: f32[2,1,128], index: 11, kind: input, shape index: {}]
  %s12 = inlined_call_operand.vmem [shape: bf16[2,128,32], index: 12, kind: input, shape index: {}]
  %s13 = inlined_call_operand.vmem [shape: f32[2,1,32], index: 13, kind: input, shape index: {}]
  %s14 = inlined_call_operand.vmem [shape: f32[2,1,32], index: 14, kind: input, shape index: {}]
  %s15 = inlined_call_operand.vmem [shape: f32[2,1,32], index: 15, kind: input, shape index: {}]
  %s16 = inlined_call_operand.vmem [shape: f32[2,8,32], index: 16, kind: output, shape index: {}]
  %s17 = sld [smem:[#allocation0]]
  $region97: #{albef_forward_train.5} parent=0
    _
  %s19 = ssub.s32 1, %s17
  %s20 = scalar_select 0, %s19, %s17
  loop: start=0, step=1, limit=4
  $region2: #{albef_forward_train.5} parent=0 // loop_pre_header
    _
  $region3: #{albef_forward_train.5} parent=0 // loop_header
    %s22 = sphi 0, %s26
    %p23 = scmp.ge.s32.totalorder %s22, 4
    %s32 = sphi 0, %s34
    %s35 = sphi 0, %s32
    %s36 = sphi 0, %s35
    %s52 = sphi 0, %s36
    %s58 = sphi 0, %s60
    %s61 = sphi 0, %s58
    %s62 = sphi 0, %s61
    %s78 = sphi 0, %s62
    %s82 = sphi 0, %s82
    %s84 = sphi 0, %s82
    %s85 = sphi 0, %s84
    %s99 = sphi 0, %s85
    %s103 = sphi 0, %s103
    %s105 = sphi 0, %s103
    %s106 = sphi 0, %s105
    %s120 = sphi 0, %s106
    %s124 = sphi 0, %s124
    %s126 = sphi 0, %s124
    %s127 = sphi 0, %s126
    %s141 = sphi 0, %s127
    %s145 = sphi 0, %s145
    %s147 = sphi 0, %s145
    %s148 = sphi 0, %s147
    %s162 = sphi 0, %s148
    %s166 = sphi 0, %s166
    %s168 = sphi 0, %s166
    %s169 = sphi 0, %s168
    %s183 = sphi 0, %s169
    %s187 = sphi 0, %s187
    %s189 = sphi 0, %s187
    %s190 = sphi 0, %s189
    %s204 = sphi 0, %s190
    %s208 = sphi 0, %s208
    %s210 = sphi 0, %s208
    %s211 = sphi 0, %s210
    %s225 = sphi 0, %s211
    %s229 = sphi 0, %s229
    %s231 = sphi 0, %s229
    %s232 = sphi 0, %s231
    %s246 = sphi 0, %s232
    %s250 = sphi 0, %s250
    %s252 = sphi 0, %s250
    %s253 = sphi 0, %s252
    %s267 = sphi 0, %s253
    %s271 = sphi 0, %s271
    %s273 = sphi 0, %s271
    %s274 = sphi 0, %s273
    %s288 = sphi 0, %s274
    %s292 = sphi 0, %s292
    %s294 = sphi 0, %s292
    %s295 = sphi 0, %s294
    %s309 = sphi 0, %s295
    %s313 = sphi 0, %s313
    %s315 = sphi 0, %s313
    %s316 = sphi 0, %s315
    %s330 = sphi 0, %s316
    %s334 = sphi 0, %s334
    %s336 = sphi 0, %s334
    %s337 = sphi 0, %s336
    %s351 = sphi 0, %s337
    %s355 = sphi 0, %s355
    %s357 = sphi 0, %s355
    %s358 = sphi 0, %s357
    %s372 = sphi 0, %s358
    %s378 = sphi 0, %s380
    %s381 = sphi 0, %s378
    %s382 = sphi 0, %s381
    %s398 = sphi 0, %s382
  $region4: #{albef_forward_train.5} parent=0 // loop_header_branch
    %25 = sbr.rel (%p23) target = $region8
  $region5: #{albef_forward_train.5} parent=0 // loop_body
    %s27 = ssub.s32 %s22, 1
    %s28 = ssub.s32 %s22, 2
    %s29 = sadd.s32 %s22, 1
    %s30 = ssub.s32 %s22, %s29
    %p31 = scmp.eq.s32.totalorder %s30, 0
    %s33 = sadd.s32 %s32, 1
    %s34 = scalar_select %p31, %s32, %s33
    %p37 = pneg %p31
    %p38 = scmp.eq.s32.totalorder %s22, 1
    %p39 = por %p37, %p38
    %p40 = scmp.ne.s32.totalorder %s32, %s35
    %p41 = scmp.eq.s32.totalorder %s22, 0
    %p42 = por %p40, %p41
    %p43 = scmp.ne.s32.totalorder %s32, %s35
    %p44 = scmp.eq.s32.totalorder %s27, 1
    %p45 = por %p43, %p44
    %p46 = scmp.ne.s32.totalorder %s35, %s36
    %p47 = scmp.eq.s32.totalorder %s27, 0
    %p48 = por %p46, %p47
    %p49 = scmp.ne.s32.totalorder %s35, %s36
    %p50 = scmp.eq.s32.totalorder %s28, 1
    %p51 = por %p49, %p50
    %p53 = scmp.ne.s32.totalorder %s36, %s52
    %p54 = scmp.eq.s32.totalorder %s28, 0
    %p55 = por %p53, %p54
    %s56 = ssub.s32 %s22, %s29
    %p57 = scmp.eq.s32.totalorder %s56, 0
    %s59 = sadd.s32 %s58, 1
    %s60 = scalar_select %p57, %s58, %s59
    %p63 = pneg %p57
    %p64 = scmp.eq.s32.totalorder %s22, 1
    %p65 = por %p63, %p64
    %p66 = scmp.ne.s32.totalorder %s58, %s61
    %p67 = scmp.eq.s32.totalorder %s22, 0
    %p68 = por %p66, %p67
    %p69 = scmp.ne.s32.totalorder %s58, %s61
    %p70 = scmp.eq.s32.totalorder %s27, 1
    %p71 = por %p69, %p70
    %p72 = scmp.ne.s32.totalorder %s61, %s62
    %p73 = scmp.eq.s32.totalorder %s27, 0
    %p74 = por %p72, %p73
    %p75 = scmp.ne.s32.totalorder %s61, %s62
    %p76 = scmp.eq.s32.totalorder %s28, 1
    %p77 = por %p75, %p76
    %p79 = scmp.ne.s32.totalorder %s62, %s78
    %p80 = scmp.eq.s32.totalorder %s28, 0
    %p81 = por %p79, %p80
    %s83 = sadd.s32 %s82, 1
    %p86 = scmp.eq.s32.totalorder %s22, 1
    %p87 = scmp.ne.s32.totalorder %s82, %s84
    %p88 = scmp.eq.s32.totalorder %s22, 0
    %p89 = por %p87, %p88
    %p90 = scmp.ne.s32.totalorder %s82, %s84
    %p91 = scmp.eq.s32.totalorder %s27, 1
    %p92 = por %p90, %p91
    %p93 = scmp.ne.s32.totalorder %s84, %s85
    %p94 = scmp.eq.s32.totalorder %s27, 0
    %p95 = por %p93, %p94
    %p96 = scmp.ne.s32.totalorder %s84, %s85
    %p97 = scmp.eq.s32.totalorder %s28, 1
    %p98 = por %p96, %p97
    %p100 = scmp.ne.s32.totalorder %s85, %s99
    %p101 = scmp.eq.s32.totalorder %s28, 0
    %p102 = por %p100, %p101
    %s104 = sadd.s32 %s103, 1
    %p107 = scmp.eq.s32.totalorder %s22, 1
    %p108 = scmp.ne.s32.totalorder %s103, %s105
    %p109 = scmp.eq.s32.totalorder %s22, 0
    %p110 = por %p108, %p109
    %p111 = scmp.ne.s32.totalorder %s103, %s105
    %p112 = scmp.eq.s32.totalorder %s27, 1
    %p113 = por %p111, %p112
    %p114 = scmp.ne.s32.totalorder %s105, %s106
    %p115 = scmp.eq.s32.totalorder %s27, 0
    %p116 = por %p114, %p115
    %p117 = scmp.ne.s32.totalorder %s105, %s106
    %p118 = scmp.eq.s32.totalorder %s28, 1
    %p119 = por %p117, %p118
    %p121 = scmp.ne.s32.totalorder %s106, %s120
    %p122 = scmp.eq.s32.totalorder %s28, 0
    %p123 = por %p121, %p122
    %s125 = sadd.s32 %s124, 1
    %p128 = scmp.eq.s32.totalorder %s22, 1
    %p129 = scmp.ne.s32.totalorder %s124, %s126
    %p130 = scmp.eq.s32.totalorder %s22, 0
    %p131 = por %p129, %p130
    %p132 = scmp.ne.s32.totalorder %s124, %s126
    %p133 = scmp.eq.s32.totalorder %s27, 1
    %p134 = por %p132, %p133
    %p135 = scmp.ne.s32.totalorder %s126, %s127
    %p136 = scmp.eq.s32.totalorder %s27, 0
    %p137 = por %p135, %p136
    %p138 = scmp.ne.s32.totalorder %s126, %s127
    %p139 = scmp.eq.s32.totalorder %s28, 1
    %p140 = por %p138, %p139
    %p142 = scmp.ne.s32.totalorder %s127, %s141
    %p143 = scmp.eq.s32.totalorder %s28, 0
    %p144 = por %p142, %p143
    %s146 = sadd.s32 %s145, 1
    %p149 = scmp.eq.s32.totalorder %s22, 1
    %p150 = scmp.ne.s32.totalorder %s145, %s147
    %p151 = scmp.eq.s32.totalorder %s22, 0
    %p152 = por %p150, %p151
    %p153 = scmp.ne.s32.totalorder %s145, %s147
    %p154 = scmp.eq.s32.totalorder %s27, 1
    %p155 = por %p153, %p154
    %p156 = scmp.ne.s32.totalorder %s147, %s148
    %p157 = scmp.eq.s32.totalorder %s27, 0
    %p158 = por %p156, %p157
    %p159 = scmp.ne.s32.totalorder %s147, %s148
    %p160 = scmp.eq.s32.totalorder %s28, 1
    %p161 = por %p159, %p160
    %p163 = scmp.ne.s32.totalorder %s148, %s162
    %p164 = scmp.eq.s32.totalorder %s28, 0
    %p165 = por %p163, %p164
    %s167 = sadd.s32 %s166, 1
    %p170 = scmp.eq.s32.totalorder %s22, 1
    %p171 = scmp.ne.s32.totalorder %s166, %s168
    %p172 = scmp.eq.s32.totalorder %s22, 0
    %p173 = por %p171, %p172
    %p174 = scmp.ne.s32.totalorder %s166, %s168
    %p175 = scmp.eq.s32.totalorder %s27, 1
    %p176 = por %p174, %p175
    %p177 = scmp.ne.s32.totalorder %s168, %s169
    %p178 = scmp.eq.s32.totalorder %s27, 0
    %p179 = por %p177, %p178
    %p180 = scmp.ne.s32.totalorder %s168, %s169
    %p181 = scmp.eq.s32.totalorder %s28, 1
    %p182 = por %p180, %p181
    %p184 = scmp.ne.s32.totalorder %s169, %s183
    %p185 = scmp.eq.s32.totalorder %s28, 0
    %p186 = por %p184, %p185
    %s188 = sadd.s32 %s187, 1
    %p191 = scmp.eq.s32.totalorder %s22, 1
    %p192 = scmp.ne.s32.totalorder %s187, %s189
    %p193 = scmp.eq.s32.totalorder %s22, 0
    %p194 = por %p192, %p193
    %p195 = scmp.ne.s32.totalorder %s187, %s189
    %p196 = scmp.eq.s32.totalorder %s27, 1
    %p197 = por %p195, %p196
    %p198 = scmp.ne.s32.totalorder %s189, %s190
    %p199 = scmp.eq.s32.totalorder %s27, 0
    %p200 = por %p198, %p199
    %p201 = scmp.ne.s32.totalorder %s189, %s190
    %p202 = scmp.eq.s32.totalorder %s28, 1
    %p203 = por %p201, %p202
    %p205 = scmp.ne.s32.totalorder %s190, %s204
    %p206 = scmp.eq.s32.totalorder %s28, 0
    %p207 = por %p205, %p206
    %s209 = sadd.s32 %s208, 1
    %p212 = scmp.eq.s32.totalorder %s22, 1
    %p213 = scmp.ne.s32.totalorder %s208, %s210
    %p214 = scmp.eq.s32.totalorder %s22, 0
    %p215 = por %p213, %p214
    %p216 = scmp.ne.s32.totalorder %s208, %s210
    %p217 = scmp.eq.s32.totalorder %s27, 1
    %p218 = por %p216, %p217
    %p219 = scmp.ne.s32.totalorder %s210, %s211
    %p220 = scmp.eq.s32.totalorder %s27, 0
    %p221 = por %p219, %p220
    %p222 = scmp.ne.s32.totalorder %s210, %s211
    %p223 = scmp.eq.s32.totalorder %s28, 1
    %p224 = por %p222, %p223
    %p226 = scmp.ne.s32.totalorder %s211, %s225
    %p227 = scmp.eq.s32.totalorder %s28, 0
    %p228 = por %p226, %p227
    %s230 = sadd.s32 %s229, 1
    %p233 = scmp.eq.s32.totalorder %s22, 1
    %p234 = scmp.ne.s32.totalorder %s229, %s231
    %p235 = scmp.eq.s32.totalorder %s22, 0
    %p236 = por %p234, %p235
    %p237 = scmp.ne.s32.totalorder %s229, %s231
    %p238 = scmp.eq.s32.totalorder %s27, 1
    %p239 = por %p237, %p238
    %p240 = scmp.ne.s32.totalorder %s231, %s232
    %p241 = scmp.eq.s32.totalorder %s27, 0
    %p242 = por %p240, %p241
    %p243 = scmp.ne.s32.totalorder %s231, %s232
    %p244 = scmp.eq.s32.totalorder %s28, 1
    %p245 = por %p243, %p244
    %p247 = scmp.ne.s32.totalorder %s232, %s246
    %p248 = scmp.eq.s32.totalorder %s28, 0
    %p249 = por %p247, %p248
    %s251 = sadd.s32 %s250, 1
    %p254 = scmp.eq.s32.totalorder %s22, 1
    %p255 = scmp.ne.s32.totalorder %s250, %s252
    %p256 = scmp.eq.s32.totalorder %s22, 0
    %p257 = por %p255, %p256
    %p258 = scmp.ne.s32.totalorder %s250, %s252
    %p259 = scmp.eq.s32.totalorder %s27, 1
    %p260 = por %p258, %p259
    %p261 = scmp.ne.s32.totalorder %s252, %s253
    %p262 = scmp.eq.s32.totalorder %s27, 0
    %p263 = por %p261, %p262
    %p264 = scmp.ne.s32.totalorder %s252, %s253
    %p265 = scmp.eq.s32.totalorder %s28, 1
    %p266 = por %p264, %p265
    %p268 = scmp.ne.s32.totalorder %s253, %s267
    %p269 = scmp.eq.s32.totalorder %s28, 0
    %p270 = por %p268, %p269
    %s272 = sadd.s32 %s271, 1
    %p275 = scmp.eq.s32.totalorder %s22, 1
    %p276 = scmp.ne.s32.totalorder %s271, %s273
    %p277 = scmp.eq.s32.totalorder %s22, 0
    %p278 = por %p276, %p277
    %p279 = scmp.ne.s32.totalorder %s271, %s273
    %p280 = scmp.eq.s32.totalorder %s27, 1
    %p281 = por %p279, %p280
    %p282 = scmp.ne.s32.totalorder %s273, %s274
    %p283 = scmp.eq.s32.totalorder %s27, 0
    %p284 = por %p282, %p283
    %p285 = scmp.ne.s32.totalorder %s273, %s274
    %p286 = scmp.eq.s32.totalorder %s28, 1
    %p287 = por %p285, %p286
    %p289 = scmp.ne.s32.totalorder %s274, %s288
    %p290 = scmp.eq.s32.totalorder %s28, 0
    %p291 = por %p289, %p290
    %s293 = sadd.s32 %s292, 1
    %p296 = scmp.eq.s32.totalorder %s22, 1
    %p297 = scmp.ne.s32.totalorder %s292, %s294
    %p298 = scmp.eq.s32.totalorder %s22, 0
    %p299 = por %p297, %p298
    %p300 = scmp.ne.s32.totalorder %s292, %s294
    %p301 = scmp.eq.s32.totalorder %s27, 1
    %p302 = por %p300, %p301
    %p303 = scmp.ne.s32.totalorder %s294, %s295
    %p304 = scmp.eq.s32.totalorder %s27, 0
    %p305 = por %p303, %p304
    %p306 = scmp.ne.s32.totalorder %s294, %s295
    %p307 = scmp.eq.s32.totalorder %s28, 1
    %p308 = por %p306, %p307
    %p310 = scmp.ne.s32.totalorder %s295, %s309
    %p311 = scmp.eq.s32.totalorder %s28, 0
    %p312 = por %p310, %p311
    %s314 = sadd.s32 %s313, 1
    %p317 = scmp.eq.s32.totalorder %s22, 1
    %p318 = scmp.ne.s32.totalorder %s313, %s315
    %p319 = scmp.eq.s32.totalorder %s22, 0
    %p320 = por %p318, %p319
    %p321 = scmp.ne.s32.totalorder %s313, %s315
    %p322 = scmp.eq.s32.totalorder %s27, 1
    %p323 = por %p321, %p322
    %p324 = scmp.ne.s32.totalorder %s315, %s316
    %p325 = scmp.eq.s32.totalorder %s27, 0
    %p326 = por %p324, %p325
    %p327 = scmp.ne.s32.totalorder %s315, %s316
    %p328 = scmp.eq.s32.totalorder %s28, 1
    %p329 = por %p327, %p328
    %p331 = scmp.ne.s32.totalorder %s316, %s330
    %p332 = scmp.eq.s32.totalorder %s28, 0
    %p333 = por %p331, %p332
    %s335 = sadd.s32 %s334, 1
    %p338 = scmp.eq.s32.totalorder %s22, 1
    %p339 = scmp.ne.s32.totalorder %s334, %s336
    %p340 = scmp.eq.s32.totalorder %s22, 0
    %p341 = por %p339, %p340
    %p342 = scmp.ne.s32.totalorder %s334, %s336
    %p343 = scmp.eq.s32.totalorder %s27, 1
    %p344 = por %p342, %p343
    %p345 = scmp.ne.s32.totalorder %s336, %s337
    %p346 = scmp.eq.s32.totalorder %s27, 0
    %p347 = por %p345, %p346
    %p348 = scmp.ne.s32.totalorder %s336, %s337
    %p349 = scmp.eq.s32.totalorder %s28, 1
    %p350 = por %p348, %p349
    %p352 = scmp.ne.s32.totalorder %s337, %s351
    %p353 = scmp.eq.s32.totalorder %s28, 0
    %p354 = por %p352, %p353
    %s356 = sadd.s32 %s355, 1
    %p359 = scmp.eq.s32.totalorder %s22, 1
    %p360 = scmp.ne.s32.totalorder %s355, %s357
    %p361 = scmp.eq.s32.totalorder %s22, 0
    %p362 = por %p360, %p361
    %p363 = scmp.ne.s32.totalorder %s355, %s357
    %p364 = scmp.eq.s32.totalorder %s27, 1
    %p365 = por %p363, %p364
    %p366 = scmp.ne.s32.totalorder %s357, %s358
    %p367 = scmp.eq.s32.totalorder %s27, 0
    %p368 = por %p366, %p367
    %p369 = scmp.ne.s32.totalorder %s357, %s358
    %p370 = scmp.eq.s32.totalorder %s28, 1
    %p371 = por %p369, %p370
    %p373 = scmp.ne.s32.totalorder %s358, %s372
    %p374 = scmp.eq.s32.totalorder %s28, 0
    %p375 = por %p373, %p374
    %s376 = ssub.s32 %s22, %s29
    %p377 = scmp.eq.s32.totalorder %s376, 0
    %s379 = sadd.s32 %s378, 1
    %s380 = scalar_select %p377, %s378, %s379
    %p383 = pneg %p377
    %p384 = scmp.eq.s32.totalorder %s22, 1
    %p385 = por %p383, %p384
    %p386 = scmp.ne.s32.totalorder %s378, %s381
    %p387 = scmp.eq.s32.totalorder %s22, 0
    %p388 = por %p386, %p387
    %p389 = scmp.ne.s32.totalorder %s378, %s381
    %p390 = scmp.eq.s32.totalorder %s27, 1
    %p391 = por %p389, %p390
    %p392 = scmp.ne.s32.totalorder %s381, %s382
    %p393 = scmp.eq.s32.totalorder %s27, 0
    %p394 = por %p392, %p393
    %p395 = scmp.ne.s32.totalorder %s381, %s382
    %p396 = scmp.eq.s32.totalorder %s28, 1
    %p397 = por %p395, %p396
    %p399 = scmp.ne.s32.totalorder %s382, %s398
    %p400 = scmp.eq.s32.totalorder %s28, 0
    %p401 = por %p399, %p400
    %p402 = scmp.le.s32.totalorder 1, %s22
    %p403 = scmp.lt.s32.totalorder %s22, 3
    %p404 = pnand %p402, %p403
    %p405 = pneg %p404
    // Predicated region
    $region9: #{albef_forward_train.5} parent=5 // pred_check
      _
    $region10: #{albef_forward_train.5} parent=5 // pred_check_branch
      %407 = sbr.rel (%p404) target = $region12
    $region11: #{albef_forward_train.5} parent=5 // pred_region
      %s408 = ssub.s32 %s22, 1
      // Predicated region
      $region13: #{albef_forward_train.5} parent=11 // pred_check
        %p409 = pneg %p95
      $region14: #{albef_forward_train.5} parent=11 // pred_check_branch
        %411 = sbr.rel (%p409) target = $region16
      $region15: #{albef_forward_train.5} parent=11 // pred_region
        _
      $region16: #{albef_forward_train.5} parent=11 // pred_fallthru
        _
      // Predicated region
      $region17: #{albef_forward_train.5} parent=11 // pred_check
        %p412 = pneg %p116
      $region18: #{albef_forward_train.5} parent=11 // pred_check_branch
        %414 = sbr.rel (%p412) target = $region20
      $region19: #{albef_forward_train.5} parent=11 // pred_region
        _
      $region20: #{albef_forward_train.5} parent=11 // pred_fallthru
        _
      // Predicated region
      $region21: #{albef_forward_train.5} parent=11 // pred_check
        %p415 = pneg %p137
      $region22: #{albef_forward_train.5} parent=11 // pred_check_branch
        %417 = sbr.rel (%p415) target = $region24
      $region23: #{albef_forward_train.5} parent=11 // pred_region
        _
      $region24: #{albef_forward_train.5} parent=11 // pred_fallthru
        _
      // Predicated region
      $region25: #{albef_forward_train.5} parent=11 // pred_check
        %p418 = pneg %p158
      $region26: #{albef_forward_train.5} parent=11 // pred_check_branch
        %420 = sbr.rel (%p418) target = $region28
      $region27: #{albef_forward_train.5} parent=11 // pred_region
        _
      $region28: #{albef_forward_train.5} parent=11 // pred_fallthru
        _
      // Predicated region
      $region29: #{albef_forward_train.5} parent=11 // pred_check
        %p421 = pneg %p179
      $region30: #{albef_forward_train.5} parent=11 // pred_check_branch
        %423 = sbr.rel (%p421) target = $region32
      $region31: #{albef_forward_train.5} parent=11 // pred_region
        _
      $region32: #{albef_forward_train.5} parent=11 // pred_fallthru
        _
      // Predicated region
      $region33: #{albef_forward_train.5} parent=11 // pred_check
        %p424 = pneg %p200
      $region34: #{albef_forward_train.5} parent=11 // pred_check_branch
        %426 = sbr.rel (%p424) target = $region36
      $region35: #{albef_forward_train.5} parent=11 // pred_region
        _
      $region36: #{albef_forward_train.5} parent=11 // pred_fallthru
        _
      // Predicated region
      $region37: #{albef_forward_train.5} parent=11 // pred_check
        %p427 = pneg %p221
      $region38: #{albef_forward_train.5} parent=11 // pred_check_branch
        %429 = sbr.rel (%p427) target = $region40
      $region39: #{albef_forward_train.5} parent=11 // pred_region
        _
      $region40: #{albef_forward_train.5} parent=11 // pred_fallthru
        _
      // Predicated region
      $region41: #{albef_forward_train.5} parent=11 // pred_check
        %p430 = pneg %p242
      $region42: #{albef_forward_train.5} parent=11 // pred_check_branch
        %432 = sbr.rel (%p430) target = $region44
      $region43: #{albef_forward_train.5} parent=11 // pred_region
        _
      $region44: #{albef_forward_train.5} parent=11 // pred_fallthru
        _
      // Predicated region
      $region45: #{albef_forward_train.5} parent=11 // pred_check
        %p433 = pneg %p263
      $region46: #{albef_forward_train.5} parent=11 // pred_check_branch
        %435 = sbr.rel (%p433) target = $region48
      $region47: #{albef_forward_train.5} parent=11 // pred_region
        _
      $region48: #{albef_forward_train.5} parent=11 // pred_fallthru
        _
      // Predicated region
      $region49: #{albef_forward_train.5} parent=11 // pred_check
        %p436 = pneg %p284
      $region50: #{albef_forward_train.5} parent=11 // pred_check_branch
        %438 = sbr.rel (%p436) target = $region52
      $region51: #{albef_forward_train.5} parent=11 // pred_region
        _
      $region52: #{albef_forward_train.5} parent=11 // pred_fallthru
        _
      // Predicated region
      $region53: #{albef_forward_train.5} parent=11 // pred_check
        %p439 = pneg %p305
      $region54: #{albef_forward_train.5} parent=11 // pred_check_branch
        %441 = sbr.rel (%p439) target = $region56
      $region55: #{albef_forward_train.5} parent=11 // pred_region
        _
      $region56: #{albef_forward_train.5} parent=11 // pred_fallthru
        _
      // Predicated region
      $region57: #{albef_forward_train.5} parent=11 // pred_check
        %p442 = pneg %p326
      $region58: #{albef_forward_train.5} parent=11 // pred_check_branch
        %444 = sbr.rel (%p442) target = $region60
      $region59: #{albef_forward_train.5} parent=11 // pred_region
        _
      $region60: #{albef_forward_train.5} parent=11 // pred_fallthru
        _
      // Predicated region
      $region61: #{albef_forward_train.5} parent=11 // pred_check
        %p445 = pneg %p347
      $region62: #{albef_forward_train.5} parent=11 // pred_check_branch
        %447 = sbr.rel (%p445) target = $region64
      $region63: #{albef_forward_train.5} parent=11 // pred_region
        _
      $region64: #{albef_forward_train.5} parent=11 // pred_fallthru
        _
      // Predicated region
      $region65: #{albef_forward_train.5} parent=11 // pred_check
        %p448 = pneg %p368
      $region66: #{albef_forward_train.5} parent=11 // pred_check_branch
        %450 = sbr.rel (%p448) target = $region68
      $region67: #{albef_forward_train.5} parent=11 // pred_region
        _
      $region68: #{albef_forward_train.5} parent=11 // pred_fallthru
        _
    $region12: #{albef_forward_train.5} parent=5 // pred_fallthru
      _
    %p451 = scmp.lt.s32.totalorder %s22, 2
    // Predicated region
    $region69: #{albef_forward_train.5} parent=5 // pred_check
      %p452 = pneg %p451
    $region70: #{albef_forward_train.5} parent=5 // pred_check_branch
      %454 = sbr.rel (%p452) target = $region72
    $region71: #{albef_forward_train.5} parent=5 // pred_region
      // Predicated region
      $region73: #{albef_forward_train.5} parent=71 // pred_check
        %p455 = pneg %p42
      $region74: #{albef_forward_train.5} parent=71 // pred_check_branch
        %457 = sbr.rel (%p455) target = $region76
      $region75: #{albef_forward_train.5} parent=71 // pred_region
        %p458 = scmp.lt.s32.totalorder %s22, 1
        %s459 = scalar_select %p458, %s22, 1
        %s460 = smul.addr %s459, 8
        %s461 = scalar_lea.vmem %s0, %s460
      $region76: #{albef_forward_train.5} parent=71 // pred_fallthru
        _
      // Predicated region
      $region77: #{albef_forward_train.5} parent=71 // pred_check
        %p462 = pneg %p68
      $region78: #{albef_forward_train.5} parent=71 // pred_check_branch
        %464 = sbr.rel (%p462) target = $region80
      $region79: #{albef_forward_train.5} parent=71 // pred_region
        %p465 = scmp.lt.s32.totalorder %s22, 1
        %s466 = scalar_select %p465, %s22, 1
        %s467 = scalar_lea.vmem %s1, %s466
      $region80: #{albef_forward_train.5} parent=71 // pred_fallthru
        _
    $region72: #{albef_forward_train.5} parent=5 // pred_fallthru
      _
    %p468 = scmp.le.s32.totalorder 1, %s22
    %p469 = scmp.lt.s32.totalorder %s22, 3
    %p470 = pnand %p468, %p469
    %p471 = pneg %p470
    // Predicated region
    $region81: #{albef_forward_train.5} parent=5 // pred_check
      _
    $region82: #{albef_forward_train.5} parent=5 // pred_check_branch
      %473 = sbr.rel (%p470) target = $region84
    $region83: #{albef_forward_train.5} parent=5 // pred_region
      %s474 = ssub.s32 %s22, 1
      %p475 = scmp.lt.s32.totalorder %s27, 1
      %s476 = scalar_select %p475, %s27, 1
      %s477 = smul.addr %s476, 8
      %s478 = scalar_lea.vmem %s0, %s477
      %p479 = pneg %p48
      %p480 = pneg %p45
      %p481 = scmp.lt.s32.totalorder %s27, 1
      %s482 = scalar_select %p481, %s27, 1
      %s483 = scalar_lea.vmem %s1, %s482
      %p484 = pneg %p74
      %p485 = pneg %p71
      %p486 = pneg %p95
      %p487 = pneg %p92
      %p488 = pneg %p116
      %p489 = pneg %p113
      %p490 = pneg %p137
      %p491 = pneg %p134
      %p492 = pneg %p158
      %p493 = pneg %p155
      %p494 = pneg %p179
      %p495 = pneg %p176
      %p496 = pneg %p200
      %p497 = pneg %p197
      %p498 = pneg %p221
      %p499 = pneg %p218
      %p500 = pneg %p242
      %p501 = pneg %p239
      %p502 = pneg %p263
      %p503 = pneg %p260
      %p504 = pneg %p284
      %p505 = pneg %p281
      %p506 = pneg %p305
      %p507 = pneg %p302
      %p508 = pneg %p326
      %p509 = pneg %p323
      %p510 = pneg %p347
      %p511 = pneg %p344
      %p512 = pneg %p368
      %p513 = pneg %p365
      %p514 = pneg %p394
      %p515 = pneg %p391
      %p516 = scmp.lt.s32.totalorder %s27, 1
      %s517 = scalar_select %p516, %s27, 1
      %s518 = smul.addr %s517, 8
      %s519 = scalar_lea.vmem %s16, %s518
      %p520 = scmp.lt.s32.totalorder %s27, 1
      %s521 = scalar_select %p520, %s27, 1
      %s522 = smul.addr %s521, 8
      %s523 = scalar_lea.vmem %s0, %s522
      %p524 = scmp.lt.s32.totalorder %s27, 1
      %s525 = scalar_select %p524, %s27, 1
      %s526 = scalar_lea.vmem %s1, %s525
      %p527 = scmp.lt.s32.totalorder %s27, 1
      %s528 = scalar_select %p527, %s27, 1
      %s529 = smul.addr %s528, 8
      %s530 = scalar_lea.vmem %s16, %s529
      %v532 = vld [vmem:[%s523] sm:$0xff]
      %v533 = vld [vmem:[%s2] sm:$0x1]
      %v534 = vld [vmem:[%s3] sm:$0x1]
      %vm535 = vcmask 261120
      %v536 = vsel %vm535, %v532, 0.0
      %537 = vadd.xlane.f32.xlu0 %v536
      %v538 = vpop.xlane.xlu0 %537
      %v539 = vrcp.pop 32.0
      %v540 = vmul.f32 32.0, %v539
      %v541 = vsub.f32 1.0, %v540
      %v542 = vmul.f32 %v539, %v541
      %v543 = vadd.f32 %v539, %v542
      %vm544 = vweird.f32 %v539
      %v545 = vsel %vm544, %v539, %v543
      %v546 = vmul.f32 %v538, %v545
      %v547 = vsub.f32 %v532, %v546
      %v548 = vmul.f32 %v547, %v547
      %v549 = vsel %vm535, %v548, 0.0
      %550 = vadd.xlane.f32.xlu0 %v549
      %v551 = vpop.xlane.xlu0 %550
      %v552 = vmul.f32 %v551, %v545
      %v553 = vadd.f32 %v552, 1e-12
      %v554 = vrsqrt.pop %v553
      %v555 = vmul.f32 %v554, %v553
      %v556 = vmul.f32 %v555, %v554
      %v557 = vmul.f32 0.5, %v556
      %v558 = vsub.f32 1.5, %v557
      %v559 = vmul.f32 %v554, %v558
      %vm560 = vweird.f32 %v553
      %vm561 = vweird.f32 %v554
      %vm562 = vmor %vm560, %vm561
      %v563 = vsel %vm562, %v554, %v559
      %v564 = vmul.f32 %v547, %v563
      %v566 = vperm.slane %v533, 0
      %v568 = vmul.f32 %v564, %v566
      %v570 = vperm.slane %v534, 0
      %v572 = vadd.f32 %v568, %v570
      %v573 = vld [vmem:[%s526] sm:$0x1]
      %v574 = vsub.f32 1.0, %v573
      %v575 = vmul.f32 %v574, -10000.0
      %v576 = vpack.c.bf16 %v572, %v572
      %v577 = vld [vmem:[%s4] sm:$0xf]
      %v578 = vld [vmem:[%s4 + $0x4] sm:$0xf]
      %v579 = vld [vmem:[%s4 + $0x8] sm:$0xf]
      %v580 = vld [vmem:[%s4 + $0xc] sm:$0xf]
      %v581 = vld [vmem:[%s4 + $0x10] sm:$0xf]
      %v582 = vld [vmem:[%s4 + $0x14] sm:$0xf]
      %v583 = vld [vmem:[%s4 + $0x18] sm:$0xf]
      %v584 = vld [vmem:[%s4 + $0x1c] sm:$0xf]
      %v585 = vld [vmem:[%s4 + $0x20] sm:$0xf]
      %v586 = vld [vmem:[%s4 + $0x24] sm:$0xf]
      %v587 = vld [vmem:[%s4 + $0x28] sm:$0xf]
      %v588 = vld [vmem:[%s4 + $0x2c] sm:$0xf]
      %v589 = vld [vmem:[%s4 + $0x30] sm:$0xf]
      %v590 = vld [vmem:[%s4 + $0x34] sm:$0xf]
      %v591 = vld [vmem:[%s4 + $0x38] sm:$0xf]
      %v592 = vld [vmem:[%s4 + $0x3c] sm:$0xf]
      %v593 = vld [vmem:[%s5] sm:$0x1]
      %v594 = vld [vmem:[%s5 + $0x1] sm:$0x1]
      %v595 = vld [vmem:[%s5 + $0x2] sm:$0x1]
      %v596 = vld [vmem:[%s5 + $0x3] sm:$0x1]
      %v601 = vperm.slane %v593, 0
      %v602 = vperm.slane %v594, 0
      %v603 = vperm.slane %v595, 0
      %v604 = vperm.slane %v596, 0
      %v613 = vunpack.c.l.b16 %v577
      %v614 = vunpack.c.l.b16 %v578
      %v615 = vunpack.c.l.b16 %v579
      %v616 = vunpack.c.l.b16 %v580
      %v617 = vpack.c.b16 %v614, %v613
      %v618 = vpack.c.b16 %v616, %v615
      %v622 = vsel %vm535, %v576, 0
      %624 = vmatpush.bf16.msra.mxu0 0
      %625 = vmatpush.bf16.msra.mxu0 0
      %626 = vmatpush.bf16.msra.mxu0 0
      %627 = vmatpush.bf16.msra.mxu0 0
      %628 = vmatpush.bf16.msra.mxu0 0
      %629 = vmatpush.bf16.msra.mxu0 0
      %630 = vmatpush.bf16.msra.mxu0 %v618
      %631 = vmatpush.bf16.msra.mxu0 %v617
      %632 = vmatmul.bf16.gmra.mxu0 %v622
      %v633 = vpop.f32.mrf.mxu0
      %v634 = vadd.f32 %v601, %v633
      %v635 = vpop.f32.mrf.mxu0
      %636 = vdwg.mxu0
      %v641 = vunpack.c.l.b16 %v581
      %v642 = vunpack.c.l.b16 %v582
      %v643 = vunpack.c.l.b16 %v583
      %v644 = vunpack.c.l.b16 %v584
      %v645 = vpack.c.b16 %v642, %v641
      %v646 = vpack.c.b16 %v644, %v643
      %649 = vmatpush.bf16.msra.mxu0 0
      %650 = vmatpush.bf16.msra.mxu0 0
      %651 = vmatpush.bf16.msra.mxu0 0
      %652 = vmatpush.bf16.msra.mxu0 0
      %653 = vmatpush.bf16.msra.mxu0 0
      %654 = vmatpush.bf16.msra.mxu0 0
      %655 = vmatpush.bf16.msra.mxu0 %v646
      %656 = vmatpush.bf16.msra.mxu0 %v645
      %657 = vmatmul.bf16.gmra.mxu0 %v622
      %v658 = vpop.f32.mrf.mxu0
      %v659 = vadd.f32 %v602, %v658
      %v660 = vpop.f32.mrf.mxu0
      %661 = vdwg.mxu0
      %v666 = vunpack.c.l.b16 %v585
      %v667 = vunpack.c.l.b16 %v586
      %v668 = vunpack.c.l.b16 %v587
      %v669 = vunpack.c.l.b16 %v588
      %v670 = vpack.c.b16 %v667, %v666
      %v671 = vpack.c.b16 %v669, %v668
      %674 = vmatpush.bf16.msra.mxu0 0
      %675 = vmatpush.bf16.msra.mxu0 0
      %676 = vmatpush.bf16.msra.mxu0 0
      %677 = vmatpush.bf16.msra.mxu0 0
      %678 = vmatpush.bf16.msra.mxu0 0
      %679 = vmatpush.bf16.msra.mxu0 0
      %680 = vmatpush.bf16.msra.mxu0 %v671
      %681 = vmatpush.bf16.msra.mxu0 %v670
      %682 = vmatmul.bf16.gmra.mxu0 %v622
      %v683 = vpop.f32.mrf.mxu0
      %v684 = vadd.f32 %v603, %v683
      %v685 = vpop.f32.mrf.mxu0
      %686 = vdwg.mxu0
      %v691 = vunpack.c.l.b16 %v589
      %v692 = vunpack.c.l.b16 %v590
      %v693 = vunpack.c.l.b16 %v591
      %v694 = vunpack.c.l.b16 %v592
      %v695 = vpack.c.b16 %v692, %v691
      %v696 = vpack.c.b16 %v694, %v693
      %699 = vmatpush.bf16.msra.mxu0 0
      %700 = vmatpush.bf16.msra.mxu0 0
      %701 = vmatpush.bf16.msra.mxu0 0
      %702 = vmatpush.bf16.msra.mxu0 0
      %703 = vmatpush.bf16.msra.mxu0 0
      %704 = vmatpush.bf16.msra.mxu0 0
      %705 = vmatpush.bf16.msra.mxu0 %v696
      %706 = vmatpush.bf16.msra.mxu0 %v695
      %707 = vmatmul.bf16.gmra.mxu0 %v622
      %v708 = vpop.f32.mrf.mxu0
      %v709 = vadd.f32 %v604, %v708
      %v710 = vpop.f32.mrf.mxu0
      %711 = vdwg.mxu0
      %v712 = vpack.c.bf16 %v634, %v634
      %v713 = vpack.c.bf16 %v659, %v659
      %v714 = vpack.c.bf16 %v684, %v684
      %v715 = vpack.c.bf16 %v709, %v709
      %v717 = vunpack.c.l.b16 %v712
      %v718 = vpack.c.b16 %v717, %v717
      %719 = vrot.lane.b32.xlu0 %v718, 120
      %v720 = vpop.permute.xlu0 %719
      %vm721 = vcmask 64512
      %v723 = vsel %vm721, %v712, 0
      %v726 = vsel %vm721, %v720, 0
      %728 = vmatpush.bf16.xpose.msra.mxu0 0
      %729 = vmatpush.bf16.xpose.msra.mxu0 0
      %730 = vmatpush.bf16.xpose.msra.mxu0 0
      %731 = vmatpush.bf16.xpose.msra.mxu0 0
      %732 = vmatpush.bf16.xpose.msra.mxu0 0
      %733 = vmatpush.bf16.xpose.msra.mxu0 0
      %734 = vmatpush.bf16.xpose.msra.mxu0 0
      %735 = vmatpush.bf16.xpose.msra.mxu0 %v726
      %736 = vmatmul.bf16.gmra.mxu0 %v723
      %v737 = vpop.f32.mrf.mxu0
      %v738 = vadd.f32 0.0, %v737
      %v739 = vpop.f32.mrf.mxu0
      %740 = vdwg.mxu0
      %v742 = vunpack.c.l.b16 %v713
      %v743 = vpack.c.b16 %v742, %v742
      %744 = vrot.lane.b32.xlu0 %v743, 120
      %v745 = vpop.permute.xlu0 %744
      %v747 = vsel %vm721, %v713, 0
      %v750 = vsel %vm721, %v745, 0
      %752 = vmatpush.bf16.xpose.msra.mxu0 0
      %753 = vmatpush.bf16.xpose.msra.mxu0 0
      %754 = vmatpush.bf16.xpose.msra.mxu0 0
      %755 = vmatpush.bf16.xpose.msra.mxu0 0
      %756 = vmatpush.bf16.xpose.msra.mxu0 0
      %757 = vmatpush.bf16.xpose.msra.mxu0 0
      %758 = vmatpush.bf16.xpose.msra.mxu0 0
      %759 = vmatpush.bf16.xpose.msra.mxu0 %v750
      %760 = vmatmul.bf16.gmra.mxu0 %v747
      %v761 = vpop.f32.mrf.mxu0
      %v762 = vadd.f32 0.0, %v761
      %v763 = vpop.f32.mrf.mxu0
      %764 = vdwg.mxu0
      %v766 = vunpack.c.l.b16 %v714
      %v767 = vpack.c.b16 %v766, %v766
      %768 = vrot.lane.b32.xlu0 %v767, 120
      %v769 = vpop.permute.xlu0 %768
      %v771 = vsel %vm721, %v714, 0
      %v774 = vsel %vm721, %v769, 0
      %776 = vmatpush.bf16.xpose.msra.mxu0 0
      %777 = vmatpush.bf16.xpose.msra.mxu0 0
      %778 = vmatpush.bf16.xpose.msra.mxu0 0
      %779 = vmatpush.bf16.xpose.msra.mxu0 0
      %780 = vmatpush.bf16.xpose.msra.mxu0 0
      %781 = vmatpush.bf16.xpose.msra.mxu0 0
      %782 = vmatpush.bf16.xpose.msra.mxu0 0
      %783 = vmatpush.bf16.xpose.msra.mxu0 %v774
      %784 = vmatmul.bf16.gmra.mxu0 %v771
      %v785 = vpop.f32.mrf.mxu0
      %v786 = vadd.f32 0.0, %v785
      %v787 = vpop.f32.mrf.mxu0
      %788 = vdwg.mxu0
      %v790 = vunpack.c.l.b16 %v715
      %v791 = vpack.c.b16 %v790, %v790
      %792 = vrot.lane.b32.xlu0 %v791, 120
      %v793 = vpop.permute.xlu0 %792
      %v795 = vsel %vm721, %v715, 0
      %v798 = vsel %vm721, %v793, 0
      %800 = vmatpush.bf16.xpose.msra.mxu0 0
      %801 = vmatpush.bf16.xpose.msra.mxu0 0
      %802 = vmatpush.bf16.xpose.msra.mxu0 0
      %803 = vmatpush.bf16.xpose.msra.mxu0 0
      %804 = vmatpush.bf16.xpose.msra.mxu0 0
      %805 = vmatpush.bf16.xpose.msra.mxu0 0
      %806 = vmatpush.bf16.xpose.msra.mxu0 0
      %807 = vmatpush.bf16.xpose.msra.mxu0 %v798
      %808 = vmatmul.bf16.gmra.mxu0 %v795
      %v809 = vpop.f32.mrf.mxu0
      %v810 = vadd.f32 0.0, %v809
      %v811 = vpop.f32.mrf.mxu0
      %812 = vdwg.mxu0
      %v813 = vmul.f32 %v738, 0.35355338
      %v814 = vmul.f32 %v762, 0.35355338
      %v815 = vmul.f32 %v786, 0.35355338
      %v816 = vmul.f32 %v810, 0.35355338
      %v818 = vperm.slane %v575, 0
      %v820 = vadd.f32 %v813, %v818
      %v821 = vadd.f32 %v814, %v818
      %v822 = vadd.f32 %v815, %v818
      %v823 = vadd.f32 %v816, %v818
      %v824 = vsel %vm721, %v820, -inf
      %825 = vmax.xlane.f32.xlu0 %v824
      %v826 = vpop.xlane.xlu0 %825
      %v827 = vsel %vm721, %v821, -inf
      %828 = vmax.xlane.f32.xlu0 %v827
      %v829 = vpop.xlane.xlu0 %828
      %v830 = vsel %vm721, %v822, -inf
      %831 = vmax.xlane.f32.xlu0 %v830
      %v832 = vpop.xlane.xlu0 %831
      %v833 = vsel %vm721, %v823, -inf
      %834 = vmax.xlane.f32.xlu0 %v833
      %v835 = vpop.xlane.xlu0 %834
      %v836 = vsub.f32 %v820, %v826
      %v837 = vsub.f32 %v821, %v829
      %v838 = vsub.f32 %v822, %v832
      %v839 = vsub.f32 %v823, %v835
      %v840 = vmul.f32 %v836, 1.442695
      %v841 = vpow.pop %v840
      %v842 = vmul.f32 %v837, 1.442695
      %v843 = vpow.pop %v842
      %v844 = vmul.f32 %v838, 1.442695
      %v845 = vpow.pop %v844
      %v846 = vmul.f32 %v839, 1.442695
      %v847 = vpow.pop %v846
      %v848 = vsel %vm721, %v841, 0.0
      %849 = vadd.xlane.f32.xlu0 %v848
      %v850 = vpop.xlane.xlu0 %849
      %v851 = vsel %vm721, %v843, 0.0
      %852 = vadd.xlane.f32.xlu0 %v851
      %v853 = vpop.xlane.xlu0 %852
      %v854 = vsel %vm721, %v845, 0.0
      %855 = vadd.xlane.f32.xlu0 %v854
      %v856 = vpop.xlane.xlu0 %855
      %v857 = vsel %vm721, %v847, 0.0
      %858 = vadd.xlane.f32.xlu0 %v857
      %v859 = vpop.xlane.xlu0 %858
      %v860 = vrcp.pop %v850
      %v861 = vrcp.pop %v853
      %v862 = vrcp.pop %v856
      %v863 = vrcp.pop %v859
      %v864 = vmul.f32 %v841, %v860
      %v865 = vmul.f32 %v843, %v861
      %v866 = vmul.f32 %v845, %v862
      %v867 = vmul.f32 %v847, %v863
      %v868 = vpack.c.bf16 %v864, %v864
      %v869 = vpack.c.bf16 %v865, %v865
      %v870 = vpack.c.bf16 %v866, %v866
      %v871 = vpack.c.bf16 %v867, %v867
      %872 = vrot.lane.b32.xlu0 %v718, 112
      %v873 = vpop.permute.xlu0 %872
      %v875 = vsel %vm721, %v868, 0
      %vm877 = vcmask 1043456
      %v879 = vsel %vm877, %v873, 0
      %881 = vmatpush.bf16.msra.mxu0 0
      %882 = vmatpush.bf16.msra.mxu0 0
      %883 = vmatpush.bf16.msra.mxu0 0
      %884 = vmatpush.bf16.msra.mxu0 0
      %885 = vmatpush.bf16.msra.mxu0 0
      %886 = vmatpush.bf16.msra.mxu0 0
      %887 = vmatpush.bf16.msra.mxu0 0
      %888 = vmatpush.bf16.msra.mxu0 %v879
      %889 = vmatmul.bf16.gmra.mxu0 %v875
      %v890 = vpop.f32.mrf.mxu0
      %v891 = vadd.f32 0.0, %v890
      %v892 = vpop.f32.mrf.mxu0
      %893 = vdwg.mxu0
      %894 = vrot.lane.b32.xlu0 %v743, 112
      %v895 = vpop.permute.xlu0 %894
      %v897 = vsel %vm721, %v869, 0
      %v900 = vsel %vm877, %v895, 0
      %902 = vmatpush.bf16.msra.mxu0 0
      %903 = vmatpush.bf16.msra.mxu0 0
      %904 = vmatpush.bf16.msra.mxu0 0
      %905 = vmatpush.bf16.msra.mxu0 0
      %906 = vmatpush.bf16.msra.mxu0 0
      %907 = vmatpush.bf16.msra.mxu0 0
      %908 = vmatpush.bf16.msra.mxu0 0
      %909 = vmatpush.bf16.msra.mxu0 %v900
      %910 = vmatmul.bf16.gmra.mxu0 %v897
      %v911 = vpop.f32.mrf.mxu0
      %v912 = vadd.f32 0.0, %v911
      %v913 = vpop.f32.mrf.mxu0
      %914 = vdwg.mxu0
      %915 = vrot.lane.b32.xlu0 %v767, 112
      %v916 = vpop.permute.xlu0 %915
      %v918 = vsel %vm721, %v870, 0
      %v921 = vsel %vm877, %v916, 0
      %923 = vmatpush.bf16.msra.mxu0 0
      %924 = vmatpush.bf16.msra.mxu0 0
      %925 = vmatpush.bf16.msra.mxu0 0
      %926 = vmatpush.bf16.msra.mxu0 0
      %927 = vmatpush.bf16.msra.mxu0 0
      %928 = vmatpush.bf16.msra.mxu0 0
      %929 = vmatpush.bf16.msra.mxu0 0
      %930 = vmatpush.bf16.msra.mxu0 %v921
      %931 = vmatmul.bf16.gmra.mxu0 %v918
      %v932 = vpop.f32.mrf.mxu0
      %v933 = vadd.f32 0.0, %v932
      %v934 = vpop.f32.mrf.mxu0
      %935 = vdwg.mxu0
      %936 = vrot.lane.b32.xlu0 %v791, 112
      %v937 = vpop.permute.xlu0 %936
      %v939 = vsel %vm721, %v871, 0
      %v942 = vsel %vm877, %v937, 0
      %944 = vmatpush.bf16.msra.mxu0 0
      %945 = vmatpush.bf16.msra.mxu0 0
      %946 = vmatpush.bf16.msra.mxu0 0
      %947 = vmatpush.bf16.msra.mxu0 0
      %948 = vmatpush.bf16.msra.mxu0 0
      %949 = vmatpush.bf16.msra.mxu0 0
      %950 = vmatpush.bf16.msra.mxu0 0
      %951 = vmatpush.bf16.msra.mxu0 %v942
      %952 = vmatmul.bf16.gmra.mxu0 %v939
      %v953 = vpop.f32.mrf.mxu0
      %v954 = vadd.f32 0.0, %v953
      %v955 = vpop.f32.mrf.mxu0
      %956 = vdwg.mxu0
      %v957 = vld [vmem:[%s6] sm:$0xf]
      %v958 = vld [vmem:[%s6 + $0x4] sm:$0xf]
      %v959 = vld [vmem:[%s6 + $0x8] sm:$0xf]
      %v960 = vld [vmem:[%s6 + $0xc] sm:$0xf]
      %v961 = vld [vmem:[%s7] sm:$0x1]
      %v962 = vpack.c.bf16 %v891, %v891
      %v963 = vpack.c.bf16 %v912, %v912
      %v964 = vpack.c.bf16 %v933, %v933
      %v965 = vpack.c.bf16 %v954, %v954
      %v967 = vsel %vm721, %v962, 0
      %v970 = vsel %vm877, %v957, 0
      %972 = vmatpush.bf16.msra.mxu0 0
      %973 = vmatpush.bf16.msra.mxu0 0
      %974 = vmatpush.bf16.msra.mxu0 0
      %975 = vmatpush.bf16.msra.mxu0 0
      %976 = vmatpush.bf16.msra.mxu0 0
      %977 = vmatpush.bf16.msra.mxu0 0
      %978 = vmatpush.bf16.msra.mxu0 0
      %979 = vmatpush.bf16.msra.mxu0 %v970
      %980 = vmatmul.bf16.gmra.mxu0 %v967
      %v981 = vpop.f32.mrf.mxu0
      %v982 = vadd.f32 0.0, %v981
      %v983 = vpop.f32.mrf.mxu0
      %984 = vdwg.mxu0
      %v986 = vsel %vm721, %v963, 0
      %v989 = vsel %vm877, %v958, 0
      %991 = vmatpush.bf16.msra.mxu0 0
      %992 = vmatpush.bf16.msra.mxu0 0
      %993 = vmatpush.bf16.msra.mxu0 0
      %994 = vmatpush.bf16.msra.mxu0 0
      %995 = vmatpush.bf16.msra.mxu0 0
      %996 = vmatpush.bf16.msra.mxu0 0
      %997 = vmatpush.bf16.msra.mxu0 0
      %998 = vmatpush.bf16.msra.mxu0 %v989
      %999 = vmatmul.bf16.gmra.mxu0 %v986
      %v1000 = vpop.f32.mrf.mxu0
      %v1001 = vadd.f32 0.0, %v1000
      %v1002 = vpop.f32.mrf.mxu0
      %1003 = vdwg.mxu0
      %v1005 = vsel %vm721, %v964, 0
      %v1008 = vsel %vm877, %v959, 0
      %1010 = vmatpush.bf16.msra.mxu0 0
      %1011 = vmatpush.bf16.msra.mxu0 0
      %1012 = vmatpush.bf16.msra.mxu0 0
      %1013 = vmatpush.bf16.msra.mxu0 0
      %1014 = vmatpush.bf16.msra.mxu0 0
      %1015 = vmatpush.bf16.msra.mxu0 0
      %1016 = vmatpush.bf16.msra.mxu0 0
      %1017 = vmatpush.bf16.msra.mxu0 %v1008
      %1018 = vmatmul.bf16.gmra.mxu0 %v1005
      %v1019 = vpop.f32.mrf.mxu0
      %v1020 = vadd.f32 0.0, %v1019
      %v1021 = vpop.f32.mrf.mxu0
      %1022 = vdwg.mxu0
      %v1024 = vsel %vm721, %v965, 0
      %v1027 = vsel %vm877, %v960, 0
      %1029 = vmatpush.bf16.msra.mxu0 0
      %1030 = vmatpush.bf16.msra.mxu0 0
      %1031 = vmatpush.bf16.msra.mxu0 0
      %1032 = vmatpush.bf16.msra.mxu0 0
      %1033 = vmatpush.bf16.msra.mxu0 0
      %1034 = vmatpush.bf16.msra.mxu0 0
      %1035 = vmatpush.bf16.msra.mxu0 0
      %1036 = vmatpush.bf16.msra.mxu0 %v1027
      %1037 = vmatmul.bf16.gmra.mxu0 %v1024
      %v1038 = vpop.f32.mrf.mxu0
      %v1039 = vadd.f32 0.0, %v1038
      %v1040 = vpop.f32.mrf.mxu0
      %1041 = vdwg.mxu0
      %v1042 = vsel %vm535, %v982, 0.0
      %v1043 = vsel %vm535, %v1001, 0.0
      %v1044 = vadd.f32 %v1042, %v1043
      %v1045 = vsel %vm535, %v1020, 0.0
      %v1046 = vadd.f32 %v1044, %v1045
      %v1047 = vsel %vm535, %v1039, 0.0
      %v1048 = vadd.f32 %v1046, %v1047
      %v1050 = vperm.slane %v961, 0
      %v1052 = vadd.f32 %v1048, %v1050
      %v1053 = vadd.f32 %v1052, %v572
      %v1054 = vld [vmem:[%s8] sm:$0x1]
      %v1055 = vld [vmem:[%s9] sm:$0x1]
      %v1056 = vsel %vm535, %v1053, 0.0
      %1057 = vadd.xlane.f32.xlu0 %v1056
      %v1058 = vpop.xlane.xlu0 %1057
      %v1059 = vmul.f32 %v1058, %v545
      %v1060 = vsub.f32 %v1053, %v1059
      %v1061 = vmul.f32 %v1060, %v1060
      %v1062 = vsel %vm535, %v1061, 0.0
      %1063 = vadd.xlane.f32.xlu0 %v1062
      %v1064 = vpop.xlane.xlu0 %1063
      %v1065 = vmul.f32 %v1064, %v545
      %v1066 = vadd.f32 %v1065, 1e-12
      %v1067 = vrsqrt.pop %v1066
      %v1068 = vmul.f32 %v1067, %v1066
      %v1069 = vmul.f32 %v1068, %v1067
      %v1070 = vmul.f32 0.5, %v1069
      %v1071 = vsub.f32 1.5, %v1070
      %v1072 = vmul.f32 %v1067, %v1071
      %vm1073 = vweird.f32 %v1066
      %vm1074 = vweird.f32 %v1067
      %vm1075 = vmor %vm1073, %vm1074
      %v1076 = vsel %vm1075, %v1067, %v1072
      %v1077 = vmul.f32 %v1060, %v1076
      %v1079 = vperm.slane %v1054, 0
      %v1081 = vmul.f32 %v1077, %v1079
      %v1083 = vperm.slane %v1055, 0
      %v1085 = vadd.f32 %v1081, %v1083
      %v1086 = vld [vmem:[%s10] sm:$0xf]
      %v1087 = vld [vmem:[%s10 + $0x4] sm:$0xf]
      %v1088 = vld [vmem:[%s10 + $0x8] sm:$0xf]
      %v1089 = vld [vmem:[%s10 + $0xc] sm:$0xf]
      %v1090 = vpack.c.bf16 %v1085, %v1085
      %v1091 = vld [vmem:[%s11] sm:$0x1]
      %v1093 = vperm.slane %v1091, 0
      %v1099 = vunpack.c.l.b16 %v1086
      %v1100 = vunpack.c.l.b16 %v1087
      %v1101 = vunpack.c.l.b16 %v1088
      %v1102 = vunpack.c.l.b16 %v1089
      %v1103 = vpack.c.b16 %v1100, %v1099
      %v1104 = vpack.c.b16 %v1102, %v1101
      %v1108 = vsel %vm535, %v1090, 0
      %1110 = vmatpush.bf16.msra.mxu0 0
      %1111 = vmatpush.bf16.msra.mxu0 0
      %1112 = vmatpush.bf16.msra.mxu0 0
      %1113 = vmatpush.bf16.msra.mxu0 0
      %1114 = vmatpush.bf16.msra.mxu0 0
      %1115 = vmatpush.bf16.msra.mxu0 0
      %1116 = vmatpush.bf16.msra.mxu0 %v1104
      %1117 = vmatpush.bf16.msra.mxu0 %v1103
      %1118 = vmatmul.bf16.gmra.mxu0 %v1108
      %v1119 = vpop.f32.mrf.mxu0
      %v1120 = vadd.f32 %v1093, %v1119
      %v1121 = vpop.f32.mrf.mxu0
      %1122 = vdwg.mxu0
      %v1123 = vmul.f32 %v1120, %v1120
      %v1124 = vmul.f32 %v1120, %v1123
      %v1125 = vmul.f32 %v1124, 0.044715
      %v1126 = vadd.f32 %v1120, %v1125
      %v1127 = vmul.f32 %v1126, 0.7978846
      %v1128 = vtanh.pop %v1127
      %v1129 = vadd.f32 %v1128, 1.0
      %v1130 = vmul.f32 %v1129, 0.5
      %v1131 = vmul.f32 %v1120, %v1130
      %v1132 = vld [vmem:[%s12] sm:$0xf]
      %v1133 = vld [vmem:[%s12 + $0x4] sm:$0xf]
      %v1134 = vld [vmem:[%s12 + $0x8] sm:$0xf]
      %v1135 = vld [vmem:[%s12 + $0xc] sm:$0xf]
      %v1136 = vld [vmem:[%s12 + $0x10] sm:$0xf]
      %v1137 = vld [vmem:[%s12 + $0x14] sm:$0xf]
      %v1138 = vld [vmem:[%s12 + $0x18] sm:$0xf]
      %v1139 = vld [vmem:[%s12 + $0x1c] sm:$0xf]
      %v1140 = vld [vmem:[%s12 + $0x20] sm:$0xf]
      %v1141 = vld [vmem:[%s12 + $0x24] sm:$0xf]
      %v1142 = vld [vmem:[%s12 + $0x28] sm:$0xf]
      %v1143 = vld [vmem:[%s12 + $0x2c] sm:$0xf]
      %v1144 = vld [vmem:[%s12 + $0x30] sm:$0xf]
      %v1145 = vld [vmem:[%s12 + $0x34] sm:$0xf]
      %v1146 = vld [vmem:[%s12 + $0x38] sm:$0xf]
      %v1147 = vld [vmem:[%s12 + $0x3c] sm:$0xf]
      %v1148 = vpack.c.bf16 %v1131, %v1131
      %v1149 = vld [vmem:[%s13] sm:$0x1]
      %v1151 = vperm.slane %v1149, 0
      %v1169 = vunpack.c.l.b16 %v1132
      %v1170 = vunpack.c.l.b16 %v1133
      %v1171 = vunpack.c.l.b16 %v1134
      %v1172 = vunpack.c.l.b16 %v1135
      %v1173 = vunpack.c.l.b16 %v1136
      %v1174 = vunpack.c.l.b16 %v1137
      %v1175 = vunpack.c.l.b16 %v1138
      %v1176 = vunpack.c.l.b16 %v1139
      %v1177 = vunpack.c.l.b16 %v1140
      %v1178 = vunpack.c.l.b16 %v1141
      %v1179 = vunpack.c.l.b16 %v1142
      %v1180 = vunpack.c.l.b16 %v1143
      %v1181 = vunpack.c.l.b16 %v1144
      %v1182 = vunpack.c.l.b16 %v1145
      %v1183 = vunpack.c.l.b16 %v1146
      %v1184 = vunpack.c.l.b16 %v1147
      %v1185 = vpack.c.b16 %v1170, %v1169
      %v1186 = vpack.c.b16 %v1172, %v1171
      %v1187 = vpack.c.b16 %v1174, %v1173
      %v1188 = vpack.c.b16 %v1176, %v1175
      %v1189 = vpack.c.b16 %v1178, %v1177
      %v1190 = vpack.c.b16 %v1180, %v1179
      %v1191 = vpack.c.b16 %v1182, %v1181
      %v1192 = vpack.c.b16 %v1184, %v1183
      %1201 = vmatpush.bf16.msra.mxu0 %v1192
      %1202 = vmatpush.bf16.msra.mxu0 %v1191
      %1203 = vmatpush.bf16.msra.mxu0 %v1190
      %1204 = vmatpush.bf16.msra.mxu0 %v1189
      %1205 = vmatpush.bf16.msra.mxu0 %v1188
      %1206 = vmatpush.bf16.msra.mxu0 %v1187
      %1207 = vmatpush.bf16.msra.mxu0 %v1186
      %1208 = vmatpush.bf16.msra.mxu0 %v1185
      %1209 = vmatmul.bf16.gmra.mxu0 %v1148
      %v1210 = vpop.f32.mrf.mxu0
      %v1211 = vadd.f32 %v1151, %v1210
      %v1212 = vpop.f32.mrf.mxu0
      %1213 = vdwg.mxu0
      %v1214 = vadd.f32 %v1211, %v1085
      %v1215 = vld [vmem:[%s14] sm:$0x1]
      %v1216 = vld [vmem:[%s15] sm:$0x1]
      %v1217 = vsel %vm535, %v1214, 0.0
      %1218 = vadd.xlane.f32.xlu0 %v1217
      %v1219 = vpop.xlane.xlu0 %1218
      %v1220 = vmul.f32 %v1219, %v545
      %v1221 = vsub.f32 %v1214, %v1220
      %v1222 = vmul.f32 %v1221, %v1221
      %v1223 = vsel %vm535, %v1222, 0.0
      %1224 = vadd.xlane.f32.xlu0 %v1223
      %v1225 = vpop.xlane.xlu0 %1224
      %v1226 = vmul.f32 %v1225, %v545
      %v1227 = vadd.f32 %v1226, 1e-12
      %v1228 = vrsqrt.pop %v1227
      %v1229 = vmul.f32 %v1228, %v1227
      %v1230 = vmul.f32 %v1229, %v1228
      %v1231 = vmul.f32 0.5, %v1230
      %v1232 = vsub.f32 1.5, %v1231
      %v1233 = vmul.f32 %v1228, %v1232
      %vm1234 = vweird.f32 %v1227
      %vm1235 = vweird.f32 %v1228
      %vm1236 = vmor %vm1234, %vm1235
      %v1237 = vsel %vm1236, %v1228, %v1233
      %v1238 = vmul.f32 %v1221, %v1237
      %v1240 = vperm.slane %v1215, 0
      %v1242 = vmul.f32 %v1238, %v1240
      %v1244 = vperm.slane %v1216, 0
      %v1246 = vadd.f32 %v1242, %v1244
      %v1247 = vpack.c.bf16 %v1246, %v1246
      %s1248 = scalar_lea.vmem %s4, 64
      %v1249 = vld [vmem:[%s1248] sm:$0xf]
      %v1250 = vld [vmem:[%s1248 + $0x4] sm:$0xf]
      %v1251 = vld [vmem:[%s1248 + $0x8] sm:$0xf]
      %v1252 = vld [vmem:[%s1248 + $0xc] sm:$0xf]
      %v1253 = vld [vmem:[%s1248 + $0x10] sm:$0xf]
      %v1254 = vld [vmem:[%s1248 + $0x14] sm:$0xf]
      %v1255 = vld [vmem:[%s1248 + $0x18] sm:$0xf]
      %v1256 = vld [vmem:[%s1248 + $0x1c] sm:$0xf]
      %v1257 = vld [vmem:[%s1248 + $0x20] sm:$0xf]
      %v1258 = vld [vmem:[%s1248 + $0x24] sm:$0xf]
      %v1259 = vld [vmem:[%s1248 + $0x28] sm:$0xf]
      %v1260 = vld [vmem:[%s1248 + $0x2c] sm:$0xf]
      %v1261 = vld [vmem:[%s1248 + $0x30] sm:$0xf]
      %v1262 = vld [vmem:[%s1248 + $0x34] sm:$0xf]
      %v1263 = vld [vmem:[%s1248 + $0x38] sm:$0xf]
      %v1264 = vld [vmem:[%s1248 + $0x3c] sm:$0xf]
      %s1265 = scalar_lea.vmem %s5, 4
      %v1266 = vld [vmem:[%s1265] sm:$0x1]
      %v1267 = vld [vmem:[%s1265 + $0x1] sm:$0x1]
      %v1268 = vld [vmem:[%s1265 + $0x2] sm:$0x1]
      %v1269 = vld [vmem:[%s1265 + $0x3] sm:$0x1]
      %v1274 = vperm.slane %v1266, 0
      %v1275 = vperm.slane %v1267, 0
      %v1276 = vperm.slane %v1268, 0
      %v1277 = vperm.slane %v1269, 0
      %v1286 = vunpack.c.l.b16 %v1249
      %v1287 = vunpack.c.l.b16 %v1250
      %v1288 = vunpack.c.l.b16 %v1251
      %v1289 = vunpack.c.l.b16 %v1252
      %v1290 = vpack.c.b16 %v1287, %v1286
      %v1291 = vpack.c.b16 %v1289, %v1288
      %v1295 = vsel %vm535, %v1247, 0
      %1297 = vmatpush.bf16.msra.mxu0 0
      %1298 = vmatpush.bf16.msra.mxu0 0
      %1299 = vmatpush.bf16.msra.mxu0 0
      %1300 = vmatpush.bf16.msra.mxu0 0
      %1301 = vmatpush.bf16.msra.mxu0 0
      %1302 = vmatpush.bf16.msra.mxu0 0
      %1303 = vmatpush.bf16.msra.mxu0 %v1291
      %1304 = vmatpush.bf16.msra.mxu0 %v1290
      %1305 = vmatmul.bf16.gmra.mxu0 %v1295
      %v1306 = vpop.f32.mrf.mxu0
      %v1307 = vadd.f32 %v1274, %v1306
      %v1308 = vpop.f32.mrf.mxu0
      %1309 = vdwg.mxu0
      %v1314 = vunpack.c.l.b16 %v1253
      %v1315 = vunpack.c.l.b16 %v1254
      %v1316 = vunpack.c.l.b16 %v1255
      %v1317 = vunpack.c.l.b16 %v1256
      %v1318 = vpack.c.b16 %v1315, %v1314
      %v1319 = vpack.c.b16 %v1317, %v1316
      %1322 = vmatpush.bf16.msra.mxu0 0
      %1323 = vmatpush.bf16.msra.mxu0 0
      %1324 = vmatpush.bf16.msra.mxu0 0
      %1325 = vmatpush.bf16.msra.mxu0 0
      %1326 = vmatpush.bf16.msra.mxu0 0
      %1327 = vmatpush.bf16.msra.mxu0 0
      %1328 = vmatpush.bf16.msra.mxu0 %v1319
      %1329 = vmatpush.bf16.msra.mxu0 %v1318
      %1330 = vmatmul.bf16.gmra.mxu0 %v1295
      %v1331 = vpop.f32.mrf.mxu0
      %v1332 = vadd.f32 %v1275, %v1331
      %v1333 = vpop.f32.mrf.mxu0
      %1334 = vdwg.mxu0
      %v1339 = vunpack.c.l.b16 %v1257
      %v1340 = vunpack.c.l.b16 %v1258
      %v1341 = vunpack.c.l.b16 %v1259
      %v1342 = vunpack.c.l.b16 %v1260
      %v1343 = vpack.c.b16 %v1340, %v1339
      %v1344 = vpack.c.b16 %v1342, %v1341
      %1347 = vmatpush.bf16.msra.mxu0 0
      %1348 = vmatpush.bf16.msra.mxu0 0
      %1349 = vmatpush.bf16.msra.mxu0 0
      %1350 = vmatpush.bf16.msra.mxu0 0
      %1351 = vmatpush.bf16.msra.mxu0 0
      %1352 = vmatpush.bf16.msra.mxu0 0
      %1353 = vmatpush.bf16.msra.mxu0 %v1344
      %1354 = vmatpush.bf16.msra.mxu0 %v1343
      %1355 = vmatmul.bf16.gmra.mxu0 %v1295
      %v1356 = vpop.f32.mrf.mxu0
      %v1357 = vadd.f32 %v1276, %v1356
      %v1358 = vpop.f32.mrf.mxu0
      %1359 = vdwg.mxu0
      %v1364 = vunpack.c.l.b16 %v1261
      %v1365 = vunpack.c.l.b16 %v1262
      %v1366 = vunpack.c.l.b16 %v1263
      %v1367 = vunpack.c.l.b16 %v1264
      %v1368 = vpack.c.b16 %v1365, %v1364
      %v1369 = vpack.c.b16 %v1367, %v1366
      %1372 = vmatpush.bf16.msra.mxu0 0
      %1373 = vmatpush.bf16.msra.mxu0 0
      %1374 = vmatpush.bf16.msra.mxu0 0
      %1375 = vmatpush.bf16.msra.mxu0 0
      %1376 = vmatpush.bf16.msra.mxu0 0
      %1377 = vmatpush.bf16.msra.mxu0 0
      %1378 = vmatpush.bf16.msra.mxu0 %v1369
      %1379 = vmatpush.bf16.msra.mxu0 %v1368
      %1380 = vmatmul.bf16.gmra.mxu0 %v1295
      %v1381 = vpop.f32.mrf.mxu0
      %v1382 = vadd.f32 %v1277, %v1381
      %v1383 = vpop.f32.mrf.mxu0
      %1384 = vdwg.mxu0
      %v1385 = vpack.c.bf16 %v1307, %v1307
      %v1386 = vpack.c.bf16 %v1332, %v1332
      %v1387 = vpack.c.bf16 %v1357, %v1357
      %v1388 = vpack.c.bf16 %v1382, %v1382
      %v1390 = vunpack.c.l.b16 %v1385
      %v1391 = vpack.c.b16 %v1390, %v1390
      %1392 = vrot.lane.b32.xlu0 %v1391, 120
      %v1393 = vpop.permute.xlu0 %1392
      %v1395 = vsel %vm721, %v1385, 0
      %v1398 = vsel %vm721, %v1393, 0
      %1400 = vmatpush.bf16.xpose.msra.mxu0 0
      %1401 = vmatpush.bf16.xpose.msra.mxu0 0
      %1402 = vmatpush.bf16.xpose.msra.mxu0 0
      %1403 = vmatpush.bf16.xpose.msra.mxu0 0
      %1404 = vmatpush.bf16.xpose.msra.mxu0 0
      %1405 = vmatpush.bf16.xpose.msra.mxu0 0
      %1406 = vmatpush.bf16.xpose.msra.mxu0 0
      %1407 = vmatpush.bf16.xpose.msra.mxu0 %v1398
      %1408 = vmatmul.bf16.gmra.mxu0 %v1395
      %v1409 = vpop.f32.mrf.mxu0
      %v1410 = vadd.f32 0.0, %v1409
      %v1411 = vpop.f32.mrf.mxu0
      %1412 = vdwg.mxu0
      %v1414 = vunpack.c.l.b16 %v1386
      %v1415 = vpack.c.b16 %v1414, %v1414
      %1416 = vrot.lane.b32.xlu0 %v1415, 120
      %v1417 = vpop.permute.xlu0 %1416
      %v1419 = vsel %vm721, %v1386, 0
      %v1422 = vsel %vm721, %v1417, 0
      %1424 = vmatpush.bf16.xpose.msra.mxu0 0
      %1425 = vmatpush.bf16.xpose.msra.mxu0 0
      %1426 = vmatpush.bf16.xpose.msra.mxu0 0
      %1427 = vmatpush.bf16.xpose.msra.mxu0 0
      %1428 = vmatpush.bf16.xpose.msra.mxu0 0
      %1429 = vmatpush.bf16.xpose.msra.mxu0 0
      %1430 = vmatpush.bf16.xpose.msra.mxu0 0
      %1431 = vmatpush.bf16.xpose.msra.mxu0 %v1422
      %1432 = vmatmul.bf16.gmra.mxu0 %v1419
      %v1433 = vpop.f32.mrf.mxu0
      %v1434 = vadd.f32 0.0, %v1433
      %v1435 = vpop.f32.mrf.mxu0
      %1436 = vdwg.mxu0
      %v1438 = vunpack.c.l.b16 %v1387
      %v1439 = vpack.c.b16 %v1438, %v1438
      %1440 = vrot.lane.b32.xlu0 %v1439, 120
      %v1441 = vpop.permute.xlu0 %1440
      %v1443 = vsel %vm721, %v1387, 0
      %v1446 = vsel %vm721, %v1441, 0
      %1448 = vmatpush.bf16.xpose.msra.mxu0 0
      %1449 = vmatpush.bf16.xpose.msra.mxu0 0
      %1450 = vmatpush.bf16.xpose.msra.mxu0 0
      %1451 = vmatpush.bf16.xpose.msra.mxu0 0
      %1452 = vmatpush.bf16.xpose.msra.mxu0 0
      %1453 = vmatpush.bf16.xpose.msra.mxu0 0
      %1454 = vmatpush.bf16.xpose.msra.mxu0 0
      %1455 = vmatpush.bf16.xpose.msra.mxu0 %v1446
      %1456 = vmatmul.bf16.gmra.mxu0 %v1443
      %v1457 = vpop.f32.mrf.mxu0
      %v1458 = vadd.f32 0.0, %v1457
      %v1459 = vpop.f32.mrf.mxu0
      %1460 = vdwg.mxu0
      %v1462 = vunpack.c.l.b16 %v1388
      %v1463 = vpack.c.b16 %v1462, %v1462
      %1464 = vrot.lane.b32.xlu0 %v1463, 120
      %v1465 = vpop.permute.xlu0 %1464
      %v1467 = vsel %vm721, %v1388, 0
      %v1470 = vsel %vm721, %v1465, 0
      %1472 = vmatpush.bf16.xpose.msra.mxu0 0
      %1473 = vmatpush.bf16.xpose.msra.mxu0 0
      %1474 = vmatpush.bf16.xpose.msra.mxu0 0
      %1475 = vmatpush.bf16.xpose.msra.mxu0 0
      %1476 = vmatpush.bf16.xpose.msra.mxu0 0
      %1477 = vmatpush.bf16.xpose.msra.mxu0 0
      %1478 = vmatpush.bf16.xpose.msra.mxu0 0
      %1479 = vmatpush.bf16.xpose.msra.mxu0 %v1470
      %1480 = vmatmul.bf16.gmra.mxu0 %v1467
      %v1481 = vpop.f32.mrf.mxu0
      %v1482 = vadd.f32 0.0, %v1481
      %v1483 = vpop.f32.mrf.mxu0
      %1484 = vdwg.mxu0
      %v1485 = vmul.f32 %v1410, 0.35355338
      %v1486 = vmul.f32 %v1434, 0.35355338
      %v1487 = vmul.f32 %v1458, 0.35355338
      %v1488 = vmul.f32 %v1482, 0.35355338
      %v1489 = vadd.f32 %v1485, %v818
      %v1490 = vadd.f32 %v1486, %v818
      %v1491 = vadd.f32 %v1487, %v818
      %v1492 = vadd.f32 %v1488, %v818
      %v1493 = vsel %vm721, %v1489, -inf
      %1494 = vmax.xlane.f32.xlu0 %v1493
      %v1495 = vpop.xlane.xlu0 %1494
      %v1496 = vsel %vm721, %v1490, -inf
      %1497 = vmax.xlane.f32.xlu0 %v1496
      %v1498 = vpop.xlane.xlu0 %1497
      %v1499 = vsel %vm721, %v1491, -inf
      %1500 = vmax.xlane.f32.xlu0 %v1499
      %v1501 = vpop.xlane.xlu0 %1500
      %v1502 = vsel %vm721, %v1492, -inf
      %1503 = vmax.xlane.f32.xlu0 %v1502
      %v1504 = vpop.xlane.xlu0 %1503
      %v1505 = vsub.f32 %v1489, %v1495
      %v1506 = vsub.f32 %v1490, %v1498
      %v1507 = vsub.f32 %v1491, %v1501
      %v1508 = vsub.f32 %v1492, %v1504
      %v1509 = vmul.f32 %v1505, 1.442695
      %v1510 = vpow.pop %v1509
      %v1511 = vmul.f32 %v1506, 1.442695
      %v1512 = vpow.pop %v1511
      %v1513 = vmul.f32 %v1507, 1.442695
      %v1514 = vpow.pop %v1513
      %v1515 = vmul.f32 %v1508, 1.442695
      %v1516 = vpow.pop %v1515
      %v1517 = vsel %vm721, %v1510, 0.0
      %1518 = vadd.xlane.f32.xlu0 %v1517
      %v1519 = vpop.xlane.xlu0 %1518
      %v1520 = vsel %vm721, %v1512, 0.0
      %1521 = vadd.xlane.f32.xlu0 %v1520
      %v1522 = vpop.xlane.xlu0 %1521
      %v1523 = vsel %vm721, %v1514, 0.0
      %1524 = vadd.xlane.f32.xlu0 %v1523
      %v1525 = vpop.xlane.xlu0 %1524
      %v1526 = vsel %vm721, %v1516, 0.0
      %1527 = vadd.xlane.f32.xlu0 %v1526
      %v1528 = vpop.xlane.xlu0 %1527
      %v1529 = vrcp.pop %v1519
      %v1530 = vrcp.pop %v1522
      %v1531 = vrcp.pop %v1525
      %v1532 = vrcp.pop %v1528
      %v1533 = vmul.f32 %v1510, %v1529
      %v1534 = vmul.f32 %v1512, %v1530
      %v1535 = vmul.f32 %v1514, %v1531
      %v1536 = vmul.f32 %v1516, %v1532
      %v1537 = vpack.c.bf16 %v1533, %v1533
      %v1538 = vpack.c.bf16 %v1534, %v1534
      %v1539 = vpack.c.bf16 %v1535, %v1535
      %v1540 = vpack.c.bf16 %v1536, %v1536
      %1541 = vrot.lane.b32.xlu0 %v1391, 112
      %v1542 = vpop.permute.xlu0 %1541
      %v1544 = vsel %vm721, %v1537, 0
      %v1547 = vsel %vm877, %v1542, 0
      %1549 = vmatpush.bf16.msra.mxu0 0
      %1550 = vmatpush.bf16.msra.mxu0 0
      %1551 = vmatpush.bf16.msra.mxu0 0
      %1552 = vmatpush.bf16.msra.mxu0 0
      %1553 = vmatpush.bf16.msra.mxu0 0
      %1554 = vmatpush.bf16.msra.mxu0 0
      %1555 = vmatpush.bf16.msra.mxu0 0
      %1556 = vmatpush.bf16.msra.mxu0 %v1547
      %1557 = vmatmul.bf16.gmra.mxu0 %v1544
      %v1558 = vpop.f32.mrf.mxu0
      %v1559 = vadd.f32 0.0, %v1558
      %v1560 = vpop.f32.mrf.mxu0
      %1561 = vdwg.mxu0
      %1562 = vrot.lane.b32.xlu0 %v1415, 112
      %v1563 = vpop.permute.xlu0 %1562
      %v1565 = vsel %vm721, %v1538, 0
      %v1568 = vsel %vm877, %v1563, 0
      %1570 = vmatpush.bf16.msra.mxu0 0
      %1571 = vmatpush.bf16.msra.mxu0 0
      %1572 = vmatpush.bf16.msra.mxu0 0
      %1573 = vmatpush.bf16.msra.mxu0 0
      %1574 = vmatpush.bf16.msra.mxu0 0
      %1575 = vmatpush.bf16.msra.mxu0 0
      %1576 = vmatpush.bf16.msra.mxu0 0
      %1577 = vmatpush.bf16.msra.mxu0 %v1568
      %1578 = vmatmul.bf16.gmra.mxu0 %v1565
      %v1579 = vpop.f32.mrf.mxu0
      %v1580 = vadd.f32 0.0, %v1579
      %v1581 = vpop.f32.mrf.mxu0
      %1582 = vdwg.mxu0
      %1583 = vrot.lane.b32.xlu0 %v1439, 112
      %v1584 = vpop.permute.xlu0 %1583
      %v1586 = vsel %vm721, %v1539, 0
      %v1589 = vsel %vm877, %v1584, 0
      %1591 = vmatpush.bf16.msra.mxu0 0
      %1592 = vmatpush.bf16.msra.mxu0 0
      %1593 = vmatpush.bf16.msra.mxu0 0
      %1594 = vmatpush.bf16.msra.mxu0 0
      %1595 = vmatpush.bf16.msra.mxu0 0
      %1596 = vmatpush.bf16.msra.mxu0 0
      %1597 = vmatpush.bf16.msra.mxu0 0
      %1598 = vmatpush.bf16.msra.mxu0 %v1589
      %1599 = vmatmul.bf16.gmra.mxu0 %v1586
      %v1600 = vpop.f32.mrf.mxu0
      %v1601 = vadd.f32 0.0, %v1600
      %v1602 = vpop.f32.mrf.mxu0
      %1603 = vdwg.mxu0
      %1604 = vrot.lane.b32.xlu0 %v1463, 112
      %v1605 = vpop.permute.xlu0 %1604
      %v1607 = vsel %vm721, %v1540, 0
      %v1610 = vsel %vm877, %v1605, 0
      %1612 = vmatpush.bf16.msra.mxu0 0
      %1613 = vmatpush.bf16.msra.mxu0 0
      %1614 = vmatpush.bf16.msra.mxu0 0
      %1615 = vmatpush.bf16.msra.mxu0 0
      %1616 = vmatpush.bf16.msra.mxu0 0
      %1617 = vmatpush.bf16.msra.mxu0 0
      %1618 = vmatpush.bf16.msra.mxu0 0
      %1619 = vmatpush.bf16.msra.mxu0 %v1610
      %1620 = vmatmul.bf16.gmra.mxu0 %v1607
      %v1621 = vpop.f32.mrf.mxu0
      %v1622 = vadd.f32 0.0, %v1621
      %v1623 = vpop.f32.mrf.mxu0
      %1624 = vdwg.mxu0
      %s1625 = scalar_lea.vmem %s6, 16
      %v1626 = vld [vmem:[%s1625] sm:$0xf]
      %v1627 = vld [vmem:[%s1625 + $0x4] sm:$0xf]
      %v1628 = vld [vmem:[%s1625 + $0x8] sm:$0xf]
      %v1629 = vld [vmem:[%s1625 + $0xc] sm:$0xf]
      %s1630 = scalar_lea.vmem %s7, 1
      %v1631 = vld [vmem:[%s1630] sm:$0x1]
      %v1632 = vpack.c.bf16 %v1559, %v1559
      %v1633 = vpack.c.bf16 %v1580, %v1580
      %v1634 = vpack.c.bf16 %v1601, %v1601
      %v1635 = vpack.c.bf16 %v1622, %v1622
      %v1637 = vsel %vm721, %v1632, 0
      %v1640 = vsel %vm877, %v1626, 0
      %1642 = vmatpush.bf16.msra.mxu0 0
      %1643 = vmatpush.bf16.msra.mxu0 0
      %1644 = vmatpush.bf16.msra.mxu0 0
      %1645 = vmatpush.bf16.msra.mxu0 0
      %1646 = vmatpush.bf16.msra.mxu0 0
      %1647 = vmatpush.bf16.msra.mxu0 0
      %1648 = vmatpush.bf16.msra.mxu0 0
      %1649 = vmatpush.bf16.msra.mxu0 %v1640
      %1650 = vmatmul.bf16.gmra.mxu0 %v1637
      %v1651 = vpop.f32.mrf.mxu0
      %v1652 = vadd.f32 0.0, %v1651
      %v1653 = vpop.f32.mrf.mxu0
      %1654 = vdwg.mxu0
      %v1656 = vsel %vm721, %v1633, 0
      %v1659 = vsel %vm877, %v1627, 0
      %1661 = vmatpush.bf16.msra.mxu0 0
      %1662 = vmatpush.bf16.msra.mxu0 0
      %1663 = vmatpush.bf16.msra.mxu0 0
      %1664 = vmatpush.bf16.msra.mxu0 0
      %1665 = vmatpush.bf16.msra.mxu0 0
      %1666 = vmatpush.bf16.msra.mxu0 0
      %1667 = vmatpush.bf16.msra.mxu0 0
      %1668 = vmatpush.bf16.msra.mxu0 %v1659
      %1669 = vmatmul.bf16.gmra.mxu0 %v1656
      %v1670 = vpop.f32.mrf.mxu0
      %v1671 = vadd.f32 0.0, %v1670
      %v1672 = vpop.f32.mrf.mxu0
      %1673 = vdwg.mxu0
      %v1675 = vsel %vm721, %v1634, 0
      %v1678 = vsel %vm877, %v1628, 0
      %1680 = vmatpush.bf16.msra.mxu0 0
      %1681 = vmatpush.bf16.msra.mxu0 0
      %1682 = vmatpush.bf16.msra.mxu0 0
      %1683 = vmatpush.bf16.msra.mxu0 0
      %1684 = vmatpush.bf16.msra.mxu0 0
      %1685 = vmatpush.bf16.msra.mxu0 0
      %1686 = vmatpush.bf16.msra.mxu0 0
      %1687 = vmatpush.bf16.msra.mxu0 %v1678
      %1688 = vmatmul.bf16.gmra.mxu0 %v1675
      %v1689 = vpop.f32.mrf.mxu0
      %v1690 = vadd.f32 0.0, %v1689
      %v1691 = vpop.f32.mrf.mxu0
      %1692 = vdwg.mxu0
      %v1694 = vsel %vm721, %v1635, 0
      %v1697 = vsel %vm877, %v1629, 0
      %1699 = vmatpush.bf16.msra.mxu0 0
      %1700 = vmatpush.bf16.msra.mxu0 0
      %1701 = vmatpush.bf16.msra.mxu0 0
      %1702 = vmatpush.bf16.msra.mxu0 0
      %1703 = vmatpush.bf16.msra.mxu0 0
      %1704 = vmatpush.bf16.msra.mxu0 0
      %1705 = vmatpush.bf16.msra.mxu0 0
      %1706 = vmatpush.bf16.msra.mxu0 %v1697
      %1707 = vmatmul.bf16.gmra.mxu0 %v1694
      %v1708 = vpop.f32.mrf.mxu0
      %v1709 = vadd.f32 0.0, %v1708
      %v1710 = vpop.f32.mrf.mxu0
      %1711 = vdwg.mxu0
      %v1712 = vsel %vm535, %v1652, 0.0
      %v1713 = vsel %vm535, %v1671, 0.0
      %v1714 = vadd.f32 %v1712, %v1713
      %v1715 = vsel %vm535, %v1690, 0.0
      %v1716 = vadd.f32 %v1714, %v1715
      %v1717 = vsel %vm535, %v1709, 0.0
      %v1718 = vadd.f32 %v1716, %v1717
      %v1720 = vperm.slane %v1631, 0
      %v1722 = vadd.f32 %v1718, %v1720
      %v1723 = vadd.f32 %v1722, %v1246
      %s1724 = scalar_lea.vmem %s8, 1
      %v1725 = vld [vmem:[%s1724] sm:$0x1]
      %s1726 = scalar_lea.vmem %s9, 1
      %v1727 = vld [vmem:[%s1726] sm:$0x1]
      %v1728 = vsel %vm535, %v1723, 0.0
      %1729 = vadd.xlane.f32.xlu0 %v1728
      %v1730 = vpop.xlane.xlu0 %1729
      %v1731 = vmul.f32 %v1730, %v545
      %v1732 = vsub.f32 %v1723, %v1731
      %v1733 = vmul.f32 %v1732, %v1732
      %v1734 = vsel %vm535, %v1733, 0.0
      %1735 = vadd.xlane.f32.xlu0 %v1734
      %v1736 = vpop.xlane.xlu0 %1735
      %v1737 = vmul.f32 %v1736, %v545
      %v1738 = vadd.f32 %v1737, 1e-12
      %v1739 = vrsqrt.pop %v1738
      %v1740 = vmul.f32 %v1739, %v1738
      %v1741 = vmul.f32 %v1740, %v1739
      %v1742 = vmul.f32 0.5, %v1741
      %v1743 = vsub.f32 1.5, %v1742
      %v1744 = vmul.f32 %v1739, %v1743
      %vm1745 = vweird.f32 %v1738
      %vm1746 = vweird.f32 %v1739
      %vm1747 = vmor %vm1745, %vm1746
      %v1748 = vsel %vm1747, %v1739, %v1744
      %v1749 = vmul.f32 %v1732, %v1748
      %v1751 = vperm.slane %v1725, 0
      %v1753 = vmul.f32 %v1749, %v1751
      %v1755 = vperm.slane %v1727, 0
      %v1757 = vadd.f32 %v1753, %v1755
      %s1758 = scalar_lea.vmem %s10, 16
      %v1759 = vld [vmem:[%s1758] sm:$0xf]
      %v1760 = vld [vmem:[%s1758 + $0x4] sm:$0xf]
      %v1761 = vld [vmem:[%s1758 + $0x8] sm:$0xf]
      %v1762 = vld [vmem:[%s1758 + $0xc] sm:$0xf]
      %v1763 = vpack.c.bf16 %v1757, %v1757
      %s1764 = scalar_lea.vmem %s11, 1
      %v1765 = vld [vmem:[%s1764] sm:$0x1]
      %v1767 = vperm.slane %v1765, 0
      %v1773 = vunpack.c.l.b16 %v1759
      %v1774 = vunpack.c.l.b16 %v1760
      %v1775 = vunpack.c.l.b16 %v1761
      %v1776 = vunpack.c.l.b16 %v1762
      %v1777 = vpack.c.b16 %v1774, %v1773
      %v1778 = vpack.c.b16 %v1776, %v1775
      %v1782 = vsel %vm535, %v1763, 0
      %1784 = vmatpush.bf16.msra.mxu0 0
      %1785 = vmatpush.bf16.msra.mxu0 0
      %1786 = vmatpush.bf16.msra.mxu0 0
      %1787 = vmatpush.bf16.msra.mxu0 0
      %1788 = vmatpush.bf16.msra.mxu0 0
      %1789 = vmatpush.bf16.msra.mxu0 0
      %1790 = vmatpush.bf16.msra.mxu0 %v1778
      %1791 = vmatpush.bf16.msra.mxu0 %v1777
      %1792 = vmatmul.bf16.gmra.mxu0 %v1782
      %v1793 = vpop.f32.mrf.mxu0
      %v1794 = vadd.f32 %v1767, %v1793
      %v1795 = vpop.f32.mrf.mxu0
      %1796 = vdwg.mxu0
      %v1797 = vmul.f32 %v1794, %v1794
      %v1798 = vmul.f32 %v1794, %v1797
      %v1799 = vmul.f32 %v1798, 0.044715
      %v1800 = vadd.f32 %v1794, %v1799
      %v1801 = vmul.f32 %v1800, 0.7978846
      %v1802 = vtanh.pop %v1801
      %v1803 = vadd.f32 %v1802, 1.0
      %v1804 = vmul.f32 %v1803, 0.5
      %v1805 = vmul.f32 %v1794, %v1804
      %s1806 = scalar_lea.vmem %s12, 64
      %v1807 = vld [vmem:[%s1806] sm:$0xf]
      %v1808 = vld [vmem:[%s1806 + $0x4] sm:$0xf]
      %v1809 = vld [vmem:[%s1806 + $0x8] sm:$0xf]
      %v1810 = vld [vmem:[%s1806 + $0xc] sm:$0xf]
      %v1811 = vld [vmem:[%s1806 + $0x10] sm:$0xf]
      %v1812 = vld [vmem:[%s1806 + $0x14] sm:$0xf]
      %v1813 = vld [vmem:[%s1806 + $0x18] sm:$0xf]
      %v1814 = vld [vmem:[%s1806 + $0x1c] sm:$0xf]
      %v1815 = vld [vmem:[%s1806 + $0x20] sm:$0xf]
      %v1816 = vld [vmem:[%s1806 + $0x24] sm:$0xf]
      %v1817 = vld [vmem:[%s1806 + $0x28] sm:$0xf]
      %v1818 = vld [vmem:[%s1806 + $0x2c] sm:$0xf]
      %v1819 = vld [vmem:[%s1806 + $0x30] sm:$0xf]
      %v1820 = vld [vmem:[%s1806 + $0x34] sm:$0xf]
      %v1821 = vld [vmem:[%s1806 + $0x38] sm:$0xf]
      %v1822 = vld [vmem:[%s1806 + $0x3c] sm:$0xf]
      %v1823 = vpack.c.bf16 %v1805, %v1805
      %s1824 = scalar_lea.vmem %s13, 1
      %v1825 = vld [vmem:[%s1824] sm:$0x1]
      %v1827 = vperm.slane %v1825, 0
      %v1845 = vunpack.c.l.b16 %v1807
      %v1846 = vunpack.c.l.b16 %v1808
      %v1847 = vunpack.c.l.b16 %v1809
      %v1848 = vunpack.c.l.b16 %v1810
      %v1849 = vunpack.c.l.b16 %v1811
      %v1850 = vunpack.c.l.b16 %v1812
      %v1851 = vunpack.c.l.b16 %v1813
      %v1852 = vunpack.c.l.b16 %v1814
      %v1853 = vunpack.c.l.b16 %v1815
      %v1854 = vunpack.c.l.b16 %v1816
      %v1855 = vunpack.c.l.b16 %v1817
      %v1856 = vunpack.c.l.b16 %v1818
      %v1857 = vunpack.c.l.b16 %v1819
      %v1858 = vunpack.c.l.b16 %v1820
      %v1859 = vunpack.c.l.b16 %v1821
      %v1860 = vunpack.c.l.b16 %v1822
      %v1861 = vpack.c.b16 %v1846, %v1845
      %v1862 = vpack.c.b16 %v1848, %v1847
      %v1863 = vpack.c.b16 %v1850, %v1849
      %v1864 = vpack.c.b16 %v1852, %v1851
      %v1865 = vpack.c.b16 %v1854, %v1853
      %v1866 = vpack.c.b16 %v1856, %v1855
      %v1867 = vpack.c.b16 %v1858, %v1857
      %v1868 = vpack.c.b16 %v1860, %v1859
      %1877 = vmatpush.bf16.msra.mxu0 %v1868
      %1878 = vmatpush.bf16.msra.mxu0 %v1867
      %1879 = vmatpush.bf16.msra.mxu0 %v1866
      %1880 = vmatpush.bf16.msra.mxu0 %v1865
      %1881 = vmatpush.bf16.msra.mxu0 %v1864
      %1882 = vmatpush.bf16.msra.mxu0 %v1863
      %1883 = vmatpush.bf16.msra.mxu0 %v1862
      %1884 = vmatpush.bf16.msra.mxu0 %v1861
      %1885 = vmatmul.bf16.gmra.mxu0 %v1823
      %v1886 = vpop.f32.mrf.mxu0
      %v1887 = vadd.f32 %v1827, %v1886
      %v1888 = vpop.f32.mrf.mxu0
      %1889 = vdwg.mxu0
      %v1890 = vadd.f32 %v1887, %v1757
      %s1891 = scalar_lea.vmem %s14, 1
      %v1892 = vld [vmem:[%s1891] sm:$0x1]
      %s1893 = scalar_lea.vmem %s15, 1
      %v1894 = vld [vmem:[%s1893] sm:$0x1]
      %v1895 = vsel %vm535, %v1890, 0.0
      %1896 = vadd.xlane.f32.xlu0 %v1895
      %v1897 = vpop.xlane.xlu0 %1896
      %v1898 = vmul.f32 %v1897, %v545
      %v1899 = vsub.f32 %v1890, %v1898
      %v1900 = vmul.f32 %v1899, %v1899
      %v1901 = vsel %vm535, %v1900, 0.0
      %1902 = vadd.xlane.f32.xlu0 %v1901
      %v1903 = vpop.xlane.xlu0 %1902
      %v1904 = vmul.f32 %v1903, %v545
      %v1905 = vadd.f32 %v1904, 1e-12
      %v1906 = vrsqrt.pop %v1905
      %v1907 = vmul.f32 %v1906, %v1905
      %v1908 = vmul.f32 %v1907, %v1906
      %v1909 = vmul.f32 0.5, %v1908
      %v1910 = vsub.f32 1.5, %v1909
      %v1911 = vmul.f32 %v1906, %v1910
      %vm1912 = vweird.f32 %v1905
      %vm1913 = vweird.f32 %v1906
      %vm1914 = vmor %vm1912, %vm1913
      %v1915 = vsel %vm1914, %v1906, %v1911
      %v1916 = vmul.f32 %v1899, %v1915
      %v1918 = vperm.slane %v1892, 0
      %v1920 = vmul.f32 %v1916, %v1918
      %v1922 = vperm.slane %v1894, 0
      %v1924 = vadd.f32 %v1920, %v1922
      %1925 = vst.msk [vmem:[%s530] sm:$0xff] %vm535, %v1924
      %p1926 = scmp.lt.s32.totalorder %s27, 1
      %s1927 = scalar_select %p1926, %s27, 1
      %s1928 = smul.addr %s1927, 8
      %s1929 = scalar_lea.vmem %s16, %s1928
      // Predicated region
      $region85: #{albef_forward_train.5} parent=83 // pred_check
        %p1930 = pneg %p391
      $region86: #{albef_forward_train.5} parent=83 // pred_check_branch
        %1932 = sbr.rel (%p1930) target = $region88
      $region87: #{albef_forward_train.5} parent=83 // pred_region
        _
      $region88: #{albef_forward_train.5} parent=83 // pred_fallthru
        _
    $region84: #{albef_forward_train.5} parent=5 // pred_fallthru
      _
    %p1933 = scmp.le.s32.totalorder 2, %s22
    // Predicated region
    $region89: #{albef_forward_train.5} parent=5 // pred_check
      %p1934 = pneg %p1933
    $region90: #{albef_forward_train.5} parent=5 // pred_check_branch
      %1936 = sbr.rel (%p1934) target = $region92
    $region91: #{albef_forward_train.5} parent=5 // pred_region
      %s1937 = ssub.s32 %s22, 2
      // Predicated region
      $region93: #{albef_forward_train.5} parent=91 // pred_check
        %p1938 = pneg %p397
      $region94: #{albef_forward_train.5} parent=91 // pred_check_branch
        %1940 = sbr.rel (%p1938) target = $region96
      $region95: #{albef_forward_train.5} parent=91 // pred_region
        %p1941 = scmp.lt.s32.totalorder %s28, 1
        %s1942 = scalar_select %p1941, %s28, 1
        %s1943 = smul.addr %s1942, 8
        %s1944 = scalar_lea.vmem %s16, %s1943
      $region96: #{albef_forward_train.5} parent=91 // pred_fallthru
        _
    $region92: #{albef_forward_train.5} parent=5 // pred_fallthru
      _
  $region6: #{albef_forward_train.5} parent=0 // loop_footer
    %s26 = sadd.s32 1, %s22
  $region7: #{albef_forward_train.5} parent=0 // loop_footer_branch
    %21 = sbr.rel target = $region3
  $region8: #{albef_forward_train.5} parent=0 // loop_exit
    _

// kernel: albef_forward_train.4
$region0: #{albef_forward_train.4}
  #allocation0 [shape = 'u32[]', space=smem, size = 0x4, offset = 0x4, fixed_abs, tag = 'smem constant byte address 0x4 - core index']
  #allocation1 [shape = 'u32[72,128]{1,0:T(1,128)}', space=vmem, size = 0x9000, scoped, tag = 'internal scratch']
  %s0 = inlined_call_operand.vmem [shape: f32[2,4,768], index: 0, kind: input, shape index: {}]
  %s1 = inlined_call_operand.vmem [shape: bf16[768,32], index: 1, kind: input, shape index: {}]
  %s2 = inlined_call_operand.vmem [shape: f32[1,32], index: 2, kind: input, shape index: {}]
  %s3 = inlined_call_operand.vmem [shape: f32[1,1,32], index: 3, kind: input, shape index: {}]
  %s4 = inlined_call_operand.vmem [shape: f32[1,5,32], index: 4, kind: input, shape index: {}]
  %s5 = inlined_call_operand.vmem [shape: f32[2,1,32], index: 5, kind: input, shape index: {}]
  %s6 = inlined_call_operand.vmem [shape: f32[2,1,32], index: 6, kind: input, shape index: {}]
  %s7 = inlined_call_operand.vmem [shape: bf16[2,4,32,24], index: 7, kind: input, shape index: {}]
  %s8 = inlined_call_operand.vmem [shape: f32[2,4,1,24], index: 8, kind: input, shape index: {}]
  %s9 = inlined_call_operand.vmem [shape: bf16[2,4,8,32], index: 9, kind: input, shape index: {}]
  %s10 = inlined_call_operand.vmem [shape: f32[2,1,32], index: 10, kind: input, shape index: {}]
  %s11 = inlined_call_operand.vmem [shape: f32[2,1,32], index: 11, kind: input, shape index: {}]
  %s12 = inlined_call_operand.vmem [shape: f32[2,1,32], index: 12, kind: input, shape index: {}]
  %s13 = inlined_call_operand.vmem [shape: bf16[2,32,128], index: 13, kind: input, shape index: {}]
  %s14 = inlined_call_operand.vmem [shape: f32[2,1,128], index: 14, kind: input, shape index: {}]
  %s15 = inlined_call_operand.vmem [shape: bf16[2,128,32], index: 15, kind: input, shape index: {}]
  %s16 = inlined_call_operand.vmem [shape: f32[2,1,32], index: 16, kind: input, shape index: {}]
  %s17 = inlined_call_operand.vmem [shape: f32[1,32], index: 17, kind: input, shape index: {}]
  %s18 = inlined_call_operand.vmem [shape: f32[1,32], index: 18, kind: input, shape index: {}]
  %s19 = inlined_call_operand.vmem [shape: f32[2,5,32], index: 19, kind: output, shape index: {}]
  %s20 = sld [smem:[#allocation0]]
  $region109: #{albef_forward_train.4} parent=0
    _
  %s22 = ssub.s32 1, %s20
  %s23 = scalar_select 0, %s22, %s20
  loop: start=0, step=1, limit=4
  $region2: #{albef_forward_train.4} parent=0 // loop_pre_header
    _
  $region3: #{albef_forward_train.4} parent=0 // loop_header
    %s25 = sphi 0, %s29
    %p26 = scmp.ge.s32.totalorder %s25, 4
    %s35 = sphi 0, %s37
    %s38 = sphi 0, %s35
    %s39 = sphi 0, %s38
    %s55 = sphi 0, %s39
    %s59 = sphi 0, %s59
    %s61 = sphi 0, %s59
    %s62 = sphi 0, %s61
    %s76 = sphi 0, %s62
    %s80 = sphi 0, %s80
    %s82 = sphi 0, %s80
    %s83 = sphi 0, %s82
    %s97 = sphi 0, %s83
    %s101 = sphi 0, %s101
    %s103 = sphi 0, %s101
    %s104 = sphi 0, %s103
    %s118 = sphi 0, %s104
    %s122 = sphi 0, %s122
    %s124 = sphi 0, %s122
    %s125 = sphi 0, %s124
    %s139 = sphi 0, %s125
    %s143 = sphi 0, %s143
    %s145 = sphi 0, %s143
    %s146 = sphi 0, %s145
    %s160 = sphi 0, %s146
    %s164 = sphi 0, %s164
    %s166 = sphi 0, %s164
    %s167 = sphi 0, %s166
    %s181 = sphi 0, %s167
    %s185 = sphi 0, %s185
    %s187 = sphi 0, %s185
    %s188 = sphi 0, %s187
    %s202 = sphi 0, %s188
    %s206 = sphi 0, %s206
    %s208 = sphi 0, %s206
    %s209 = sphi 0, %s208
    %s223 = sphi 0, %s209
    %s227 = sphi 0, %s227
    %s229 = sphi 0, %s227
    %s230 = sphi 0, %s229
    %s244 = sphi 0, %s230
    %s248 = sphi 0, %s248
    %s250 = sphi 0, %s248
    %s251 = sphi 0, %s250
    %s265 = sphi 0, %s251
    %s269 = sphi 0, %s269
    %s271 = sphi 0, %s269
    %s272 = sphi 0, %s271
    %s286 = sphi 0, %s272
    %s290 = sphi 0, %s290
    %s292 = sphi 0, %s290
    %s293 = sphi 0, %s292
    %s307 = sphi 0, %s293
    %s311 = sphi 0, %s311
    %s313 = sphi 0, %s311
    %s314 = sphi 0, %s313
    %s328 = sphi 0, %s314
    %s332 = sphi 0, %s332
    %s334 = sphi 0, %s332
    %s335 = sphi 0, %s334
    %s349 = sphi 0, %s335
    %s353 = sphi 0, %s353
    %s355 = sphi 0, %s353
    %s356 = sphi 0, %s355
    %s370 = sphi 0, %s356
    %s374 = sphi 0, %s374
    %s376 = sphi 0, %s374
    %s377 = sphi 0, %s376
    %s391 = sphi 0, %s377
    %s395 = sphi 0, %s395
    %s397 = sphi 0, %s395
    %s398 = sphi 0, %s397
    %s412 = sphi 0, %s398
    %s416 = sphi 0, %s416
    %s418 = sphi 0, %s416
    %s419 = sphi 0, %s418
    %s433 = sphi 0, %s419
    %s439 = sphi 0, %s441
    %s442 = sphi 0, %s439
    %s443 = sphi 0, %s442
    %s459 = sphi 0, %s443
  $region4: #{albef_forward_train.4} parent=0 // loop_header_branch
    %28 = sbr.rel (%p26) target = $region8
  $region5: #{albef_forward_train.4} parent=0 // loop_body
    %s30 = ssub.s32 %s25, 1
    %s31 = ssub.s32 %s25, 2
    %s32 = sadd.s32 %s25, 1
    %s33 = ssub.s32 %s25, %s32
    %p34 = scmp.eq.s32.totalorder %s33, 0
    %s36 = sadd.s32 %s35, 1
    %s37 = scalar_select %p34, %s35, %s36
    %p40 = pneg %p34
    %p41 = scmp.eq.s32.totalorder %s25, 1
    %p42 = por %p40, %p41
    %p43 = scmp.ne.s32.totalorder %s35, %s38
    %p44 = scmp.eq.s32.totalorder %s25, 0
    %p45 = por %p43, %p44
    %p46 = scmp.ne.s32.totalorder %s35, %s38
    %p47 = scmp.eq.s32.totalorder %s30, 1
    %p48 = por %p46, %p47
    %p49 = scmp.ne.s32.totalorder %s38, %s39
    %p50 = scmp.eq.s32.totalorder %s30, 0
    %p51 = por %p49, %p50
    %p52 = scmp.ne.s32.totalorder %s38, %s39
    %p53 = scmp.eq.s32.totalorder %s31, 1
    %p54 = por %p52, %p53
    %p56 = scmp.ne.s32.totalorder %s39, %s55
    %p57 = scmp.eq.s32.totalorder %s31, 0
    %p58 = por %p56, %p57
    %s60 = sadd.s32 %s59, 1
    %p63 = scmp.eq.s32.totalorder %s25, 1
    %p64 = scmp.ne.s32.totalorder %s59, %s61
    %p65 = scmp.eq.s32.totalorder %s25, 0
    %p66 = por %p64, %p65
    %p67 = scmp.ne.s32.totalorder %s59, %s61
    %p68 = scmp.eq.s32.totalorder %s30, 1
    %p69 = por %p67, %p68
    %p70 = scmp.ne.s32.totalorder %s61, %s62
    %p71 = scmp.eq.s32.totalorder %s30, 0
    %p72 = por %p70, %p71
    %p73 = scmp.ne.s32.totalorder %s61, %s62
    %p74 = scmp.eq.s32.totalorder %s31, 1
    %p75 = por %p73, %p74
    %p77 = scmp.ne.s32.totalorder %s62, %s76
    %p78 = scmp.eq.s32.totalorder %s31, 0
    %p79 = por %p77, %p78
    %s81 = sadd.s32 %s80, 1
    %p84 = scmp.eq.s32.totalorder %s25, 1
    %p85 = scmp.ne.s32.totalorder %s80, %s82
    %p86 = scmp.eq.s32.totalorder %s25, 0
    %p87 = por %p85, %p86
    %p88 = scmp.ne.s32.totalorder %s80, %s82
    %p89 = scmp.eq.s32.totalorder %s30, 1
    %p90 = por %p88, %p89
    %p91 = scmp.ne.s32.totalorder %s82, %s83
    %p92 = scmp.eq.s32.totalorder %s30, 0
    %p93 = por %p91, %p92
    %p94 = scmp.ne.s32.totalorder %s82, %s83
    %p95 = scmp.eq.s32.totalorder %s31, 1
    %p96 = por %p94, %p95
    %p98 = scmp.ne.s32.totalorder %s83, %s97
    %p99 = scmp.eq.s32.totalorder %s31, 0
    %p100 = por %p98, %p99
    %s102 = sadd.s32 %s101, 1
    %p105 = scmp.eq.s32.totalorder %s25, 1
    %p106 = scmp.ne.s32.totalorder %s101, %s103
    %p107 = scmp.eq.s32.totalorder %s25, 0
    %p108 = por %p106, %p107
    %p109 = scmp.ne.s32.totalorder %s101, %s103
    %p110 = scmp.eq.s32.totalorder %s30, 1
    %p111 = por %p109, %p110
    %p112 = scmp.ne.s32.totalorder %s103, %s104
    %p113 = scmp.eq.s32.totalorder %s30, 0
    %p114 = por %p112, %p113
    %p115 = scmp.ne.s32.totalorder %s103, %s104
    %p116 = scmp.eq.s32.totalorder %s31, 1
    %p117 = por %p115, %p116
    %p119 = scmp.ne.s32.totalorder %s104, %s118
    %p120 = scmp.eq.s32.totalorder %s31, 0
    %p121 = por %p119, %p120
    %s123 = sadd.s32 %s122, 1
    %p126 = scmp.eq.s32.totalorder %s25, 1
    %p127 = scmp.ne.s32.totalorder %s122, %s124
    %p128 = scmp.eq.s32.totalorder %s25, 0
    %p129 = por %p127, %p128
    %p130 = scmp.ne.s32.totalorder %s122, %s124
    %p131 = scmp.eq.s32.totalorder %s30, 1
    %p132 = por %p130, %p131
    %p133 = scmp.ne.s32.totalorder %s124, %s125
    %p134 = scmp.eq.s32.totalorder %s30, 0
    %p135 = por %p133, %p134
    %p136 = scmp.ne.s32.totalorder %s124, %s125
    %p137 = scmp.eq.s32.totalorder %s31, 1
    %p138 = por %p136, %p137
    %p140 = scmp.ne.s32.totalorder %s125, %s139
    %p141 = scmp.eq.s32.totalorder %s31, 0
    %p142 = por %p140, %p141
    %s144 = sadd.s32 %s143, 1
    %p147 = scmp.eq.s32.totalorder %s25, 1
    %p148 = scmp.ne.s32.totalorder %s143, %s145
    %p149 = scmp.eq.s32.totalorder %s25, 0
    %p150 = por %p148, %p149
    %p151 = scmp.ne.s32.totalorder %s143, %s145
    %p152 = scmp.eq.s32.totalorder %s30, 1
    %p153 = por %p151, %p152
    %p154 = scmp.ne.s32.totalorder %s145, %s146
    %p155 = scmp.eq.s32.totalorder %s30, 0
    %p156 = por %p154, %p155
    %p157 = scmp.ne.s32.totalorder %s145, %s146
    %p158 = scmp.eq.s32.totalorder %s31, 1
    %p159 = por %p157, %p158
    %p161 = scmp.ne.s32.totalorder %s146, %s160
    %p162 = scmp.eq.s32.totalorder %s31, 0
    %p163 = por %p161, %p162
    %s165 = sadd.s32 %s164, 1
    %p168 = scmp.eq.s32.totalorder %s25, 1
    %p169 = scmp.ne.s32.totalorder %s164, %s166
    %p170 = scmp.eq.s32.totalorder %s25, 0
    %p171 = por %p169, %p170
    %p172 = scmp.ne.s32.totalorder %s164, %s166
    %p173 = scmp.eq.s32.totalorder %s30, 1
    %p174 = por %p172, %p173
    %p175 = scmp.ne.s32.totalorder %s166, %s167
    %p176 = scmp.eq.s32.totalorder %s30, 0
    %p177 = por %p175, %p176
    %p178 = scmp.ne.s32.totalorder %s166, %s167
    %p179 = scmp.eq.s32.totalorder %s31, 1
    %p180 = por %p178, %p179
    %p182 = scmp.ne.s32.totalorder %s167, %s181
    %p183 = scmp.eq.s32.totalorder %s31, 0
    %p184 = por %p182, %p183
    %s186 = sadd.s32 %s185, 1
    %p189 = scmp.eq.s32.totalorder %s25, 1
    %p190 = scmp.ne.s32.totalorder %s185, %s187
    %p191 = scmp.eq.s32.totalorder %s25, 0
    %p192 = por %p190, %p191
    %p193 = scmp.ne.s32.totalorder %s185, %s187
    %p194 = scmp.eq.s32.totalorder %s30, 1
    %p195 = por %p193, %p194
    %p196 = scmp.ne.s32.totalorder %s187, %s188
    %p197 = scmp.eq.s32.totalorder %s30, 0
    %p198 = por %p196, %p197
    %p199 = scmp.ne.s32.totalorder %s187, %s188
    %p200 = scmp.eq.s32.totalorder %s31, 1
    %p201 = por %p199, %p200
    %p203 = scmp.ne.s32.totalorder %s188, %s202
    %p204 = scmp.eq.s32.totalorder %s31, 0
    %p205 = por %p203, %p204
    %s207 = sadd.s32 %s206, 1
    %p210 = scmp.eq.s32.totalorder %s25, 1
    %p211 = scmp.ne.s32.totalorder %s206, %s208
    %p212 = scmp.eq.s32.totalorder %s25, 0
    %p213 = por %p211, %p212
    %p214 = scmp.ne.s32.totalorder %s206, %s208
    %p215 = scmp.eq.s32.totalorder %s30, 1
    %p216 = por %p214, %p215
    %p217 = scmp.ne.s32.totalorder %s208, %s209
    %p218 = scmp.eq.s32.totalorder %s30, 0
    %p219 = por %p217, %p218
    %p220 = scmp.ne.s32.totalorder %s208, %s209
    %p221 = scmp.eq.s32.totalorder %s31, 1
    %p222 = por %p220, %p221
    %p224 = scmp.ne.s32.totalorder %s209, %s223
    %p225 = scmp.eq.s32.totalorder %s31, 0
    %p226 = por %p224, %p225
    %s228 = sadd.s32 %s227, 1
    %p231 = scmp.eq.s32.totalorder %s25, 1
    %p232 = scmp.ne.s32.totalorder %s227, %s229
    %p233 = scmp.eq.s32.totalorder %s25, 0
    %p234 = por %p232, %p233
    %p235 = scmp.ne.s32.totalorder %s227, %s229
    %p236 = scmp.eq.s32.totalorder %s30, 1
    %p237 = por %p235, %p236
    %p238 = scmp.ne.s32.totalorder %s229, %s230
    %p239 = scmp.eq.s32.totalorder %s30, 0
    %p240 = por %p238, %p239
    %p241 = scmp.ne.s32.totalorder %s229, %s230
    %p242 = scmp.eq.s32.totalorder %s31, 1
    %p243 = por %p241, %p242
    %p245 = scmp.ne.s32.totalorder %s230, %s244
    %p246 = scmp.eq.s32.totalorder %s31, 0
    %p247 = por %p245, %p246
    %s249 = sadd.s32 %s248, 1
    %p252 = scmp.eq.s32.totalorder %s25, 1
    %p253 = scmp.ne.s32.totalorder %s248, %s250
    %p254 = scmp.eq.s32.totalorder %s25, 0
    %p255 = por %p253, %p254
    %p256 = scmp.ne.s32.totalorder %s248, %s250
    %p257 = scmp.eq.s32.totalorder %s30, 1
    %p258 = por %p256, %p257
    %p259 = scmp.ne.s32.totalorder %s250, %s251
    %p260 = scmp.eq.s32.totalorder %s30, 0
    %p261 = por %p259, %p260
    %p262 = scmp.ne.s32.totalorder %s250, %s251
    %p263 = scmp.eq.s32.totalorder %s31, 1
    %p264 = por %p262, %p263
    %p266 = scmp.ne.s32.totalorder %s251, %s265
    %p267 = scmp.eq.s32.totalorder %s31, 0
    %p268 = por %p266, %p267
    %s270 = sadd.s32 %s269, 1
    %p273 = scmp.eq.s32.totalorder %s25, 1
    %p274 = scmp.ne.s32.totalorder %s269, %s271
    %p275 = scmp.eq.s32.totalorder %s25, 0
    %p276 = por %p274, %p275
    %p277 = scmp.ne.s32.totalorder %s269, %s271
    %p278 = scmp.eq.s32.totalorder %s30, 1
    %p279 = por %p277, %p278
    %p280 = scmp.ne.s32.totalorder %s271, %s272
    %p281 = scmp.eq.s32.totalorder %s30, 0
    %p282 = por %p280, %p281
    %p283 = scmp.ne.s32.totalorder %s271, %s272
    %p284 = scmp.eq.s32.totalorder %s31, 1
    %p285 = por %p283, %p284
    %p287 = scmp.ne.s32.totalorder %s272, %s286
    %p288 = scmp.eq.s32.totalorder %s31, 0
    %p289 = por %p287, %p288
    %s291 = sadd.s32 %s290, 1
    %p294 = scmp.eq.s32.totalorder %s25, 1
    %p295 = scmp.ne.s32.totalorder %s290, %s292
    %p296 = scmp.eq.s32.totalorder %s25, 0
    %p297 = por %p295, %p296
    %p298 = scmp.ne.s32.totalorder %s290, %s292
    %p299 = scmp.eq.s32.totalorder %s30, 1
    %p300 = por %p298, %p299
    %p301 = scmp.ne.s32.totalorder %s292, %s293
    %p302 = scmp.eq.s32.totalorder %s30, 0
    %p303 = por %p301, %p302
    %p304 = scmp.ne.s32.totalorder %s292, %s293
    %p305 = scmp.eq.s32.totalorder %s31, 1
    %p306 = por %p304, %p305
    %p308 = scmp.ne.s32.totalorder %s293, %s307
    %p309 = scmp.eq.s32.totalorder %s31, 0
    %p310 = por %p308, %p309
    %s312 = sadd.s32 %s311, 1
    %p315 = scmp.eq.s32.totalorder %s25, 1
    %p316 = scmp.ne.s32.totalorder %s311, %s313
    %p317 = scmp.eq.s32.totalorder %s25, 0
    %p318 = por %p316, %p317
    %p319 = scmp.ne.s32.totalorder %s311, %s313
    %p320 = scmp.eq.s32.totalorder %s30, 1
    %p321 = por %p319, %p320
    %p322 = scmp.ne.s32.totalorder %s313, %s314
    %p323 = scmp.eq.s32.totalorder %s30, 0
    %p324 = por %p322, %p323
    %p325 = scmp.ne.s32.totalorder %s313, %s314
    %p326 = scmp.eq.s32.totalorder %s31, 1
    %p327 = por %p325, %p326
    %p329 = scmp.ne.s32.totalorder %s314, %s328
    %p330 = scmp.eq.s32.totalorder %s31, 0
    %p331 = por %p329, %p330
    %s333 = sadd.s32 %s332, 1
    %p336 = scmp.eq.s32.totalorder %s25, 1
    %p337 = scmp.ne.s32.totalorder %s332, %s334
    %p338 = scmp.eq.s32.totalorder %s25, 0
    %p339 = por %p337, %p338
    %p340 = scmp.ne.s32.totalorder %s332, %s334
    %p341 = scmp.eq.s32.totalorder %s30, 1
    %p342 = por %p340, %p341
    %p343 = scmp.ne.s32.totalorder %s334, %s335
    %p344 = scmp.eq.s32.totalorder %s30, 0
    %p345 = por %p343, %p344
    %p346 = scmp.ne.s32.totalorder %s334, %s335
    %p347 = scmp.eq.s32.totalorder %s31, 1
    %p348 = por %p346, %p347
    %p350 = scmp.ne.s32.totalorder %s335, %s349
    %p351 = scmp.eq.s32.totalorder %s31, 0
    %p352 = por %p350, %p351
    %s354 = sadd.s32 %s353, 1
    %p357 = scmp.eq.s32.totalorder %s25, 1
    %p358 = scmp.ne.s32.totalorder %s353, %s355
    %p359 = scmp.eq.s32.totalorder %s25, 0
    %p360 = por %p358, %p359
    %p361 = scmp.ne.s32.totalorder %s353, %s355
    %p362 = scmp.eq.s32.totalorder %s30, 1
    %p363 = por %p361, %p362
    %p364 = scmp.ne.s32.totalorder %s355, %s356
    %p365 = scmp.eq.s32.totalorder %s30, 0
    %p366 = por %p364, %p365
    %p367 = scmp.ne.s32.totalorder %s355, %s356
    %p368 = scmp.eq.s32.totalorder %s31, 1
    %p369 = por %p367, %p368
    %p371 = scmp.ne.s32.totalorder %s356, %s370
    %p372 = scmp.eq.s32.totalorder %s31, 0
    %p373 = por %p371, %p372
    %s375 = sadd.s32 %s374, 1
    %p378 = scmp.eq.s32.totalorder %s25, 1
    %p379 = scmp.ne.s32.totalorder %s374, %s376
    %p380 = scmp.eq.s32.totalorder %s25, 0
    %p381 = por %p379, %p380
    %p382 = scmp.ne.s32.totalorder %s374, %s376
    %p383 = scmp.eq.s32.totalorder %s30, 1
    %p384 = por %p382, %p383
    %p385 = scmp.ne.s32.totalorder %s376, %s377
    %p386 = scmp.eq.s32.totalorder %s30, 0
    %p387 = por %p385, %p386
    %p388 = scmp.ne.s32.totalorder %s376, %s377
    %p389 = scmp.eq.s32.totalorder %s31, 1
    %p390 = por %p388, %p389
    %p392 = scmp.ne.s32.totalorder %s377, %s391
    %p393 = scmp.eq.s32.totalorder %s31, 0
    %p394 = por %p392, %p393
    %s396 = sadd.s32 %s395, 1
    %p399 = scmp.eq.s32.totalorder %s25, 1
    %p400 = scmp.ne.s32.totalorder %s395, %s397
    %p401 = scmp.eq.s32.totalorder %s25, 0
    %p402 = por %p400, %p401
    %p403 = scmp.ne.s32.totalorder %s395, %s397
    %p404 = scmp.eq.s32.totalorder %s30, 1
    %p405 = por %p403, %p404
    %p406 = scmp.ne.s32.totalorder %s397, %s398
    %p407 = scmp.eq.s32.totalorder %s30, 0
    %p408 = por %p406, %p407
    %p409 = scmp.ne.s32.totalorder %s397, %s398
    %p410 = scmp.eq.s32.totalorder %s31, 1
    %p411 = por %p409, %p410
    %p413 = scmp.ne.s32.totalorder %s398, %s412
    %p414 = scmp.eq.s32.totalorder %s31, 0
    %p415 = por %p413, %p414
    %s417 = sadd.s32 %s416, 1
    %p420 = scmp.eq.s32.totalorder %s25, 1
    %p421 = scmp.ne.s32.totalorder %s416, %s418
    %p422 = scmp.eq.s32.totalorder %s25, 0
    %p423 = por %p421, %p422
    %p424 = scmp.ne.s32.totalorder %s416, %s418
    %p425 = scmp.eq.s32.totalorder %s30, 1
    %p426 = por %p424, %p425
    %p427 = scmp.ne.s32.totalorder %s418, %s419
    %p428 = scmp.eq.s32.totalorder %s30, 0
    %p429 = por %p427, %p428
    %p430 = scmp.ne.s32.totalorder %s418, %s419
    %p431 = scmp.eq.s32.totalorder %s31, 1
    %p432 = por %p430, %p431
    %p434 = scmp.ne.s32.totalorder %s419, %s433
    %p435 = scmp.eq.s32.totalorder %s31, 0
    %p436 = por %p434, %p435
    %s437 = ssub.s32 %s25, %s32
    %p438 = scmp.eq.s32.totalorder %s437, 0
    %s440 = sadd.s32 %s439, 1
    %s441 = scalar_select %p438, %s439, %s440
    %p444 = pneg %p438
    %p445 = scmp.eq.s32.totalorder %s25, 1
    %p446 = por %p444, %p445
    %p447 = scmp.ne.s32.totalorder %s439, %s442
    %p448 = scmp.eq.s32.totalorder %s25, 0
    %p449 = por %p447, %p448
    %p450 = scmp.ne.s32.totalorder %s439, %s442
    %p451 = scmp.eq.s32.totalorder %s30, 1
    %p452 = por %p450, %p451
    %p453 = scmp.ne.s32.totalorder %s442, %s443
    %p454 = scmp.eq.s32.totalorder %s30, 0
    %p455 = por %p453, %p454
    %p456 = scmp.ne.s32.totalorder %s442, %s443
    %p457 = scmp.eq.s32.totalorder %s31, 1
    %p458 = por %p456, %p457
    %p460 = scmp.ne.s32.totalorder %s443, %s459
    %p461 = scmp.eq.s32.totalorder %s31, 0
    %p462 = por %p460, %p461
    %p463 = scmp.le.s32.totalorder 1, %s25
    %p464 = scmp.lt.s32.totalorder %s25, 3
    %p465 = pnand %p463, %p464
    %p466 = pneg %p465
    // Predicated region
    $region9: #{albef_forward_train.4} parent=5 // pred_check
      _
    $region10: #{albef_forward_train.4} parent=5 // pred_check_branch
      %468 = sbr.rel (%p465) target = $region12
    $region11: #{albef_forward_train.4} parent=5 // pred_region
      %s469 = ssub.s32 %s25, 1
      // Predicated region
      $region13: #{albef_forward_train.4} parent=11 // pred_check
        %p470 = pneg %p72
      $region14: #{albef_forward_train.4} parent=11 // pred_check_branch
        %472 = sbr.rel (%p470) target = $region16
      $region15: #{albef_forward_train.4} parent=11 // pred_region
        _
      $region16: #{albef_forward_train.4} parent=11 // pred_fallthru
        _
      // Predicated region
      $region17: #{albef_forward_train.4} parent=11 // pred_check
        %p473 = pneg %p93
      $region18: #{albef_forward_train.4} parent=11 // pred_check_branch
        %475 = sbr.rel (%p473) target = $region20
      $region19: #{albef_forward_train.4} parent=11 // pred_region
        _
      $region20: #{albef_forward_train.4} parent=11 // pred_fallthru
        _
      // Predicated region
      $region21: #{albef_forward_train.4} parent=11 // pred_check
        %p476 = pneg %p114
      $region22: #{albef_forward_train.4} parent=11 // pred_check_branch
        %478 = sbr.rel (%p476) target = $region24
      $region23: #{albef_forward_train.4} parent=11 // pred_region
        _
      $region24: #{albef_forward_train.4} parent=11 // pred_fallthru
        _
      // Predicated region
      $region25: #{albef_forward_train.4} parent=11 // pred_check
        %p479 = pneg %p135
      $region26: #{albef_forward_train.4} parent=11 // pred_check_branch
        %481 = sbr.rel (%p479) target = $region28
      $region27: #{albef_forward_train.4} parent=11 // pred_region
        _
      $region28: #{albef_forward_train.4} parent=11 // pred_fallthru
        _
      // Predicated region
      $region29: #{albef_forward_train.4} parent=11 // pred_check
        %p482 = pneg %p156
      $region30: #{albef_forward_train.4} parent=11 // pred_check_branch
        %484 = sbr.rel (%p482) target = $region32
      $region31: #{albef_forward_train.4} parent=11 // pred_region
        _
      $region32: #{albef_forward_train.4} parent=11 // pred_fallthru
        _
      // Predicated region
      $region33: #{albef_forward_train.4} parent=11 // pred_check
        %p485 = pneg %p177
      $region34: #{albef_forward_train.4} parent=11 // pred_check_branch
        %487 = sbr.rel (%p485) target = $region36
      $region35: #{albef_forward_train.4} parent=11 // pred_region
        _
      $region36: #{albef_forward_train.4} parent=11 // pred_fallthru
        _
      // Predicated region
      $region37: #{albef_forward_train.4} parent=11 // pred_check
        %p488 = pneg %p198
      $region38: #{albef_forward_train.4} parent=11 // pred_check_branch
        %490 = sbr.rel (%p488) target = $region40
      $region39: #{albef_forward_train.4} parent=11 // pred_region
        _
      $region40: #{albef_forward_train.4} parent=11 // pred_fallthru
        _
      // Predicated region
      $region41: #{albef_forward_train.4} parent=11 // pred_check
        %p491 = pneg %p219
      $region42: #{albef_forward_train.4} parent=11 // pred_check_branch
        %493 = sbr.rel (%p491) target = $region44
      $region43: #{albef_forward_train.4} parent=11 // pred_region
        _
      $region44: #{albef_forward_train.4} parent=11 // pred_fallthru
        _
      // Predicated region
      $region45: #{albef_forward_train.4} parent=11 // pred_check
        %p494 = pneg %p240
      $region46: #{albef_forward_train.4} parent=11 // pred_check_branch
        %496 = sbr.rel (%p494) target = $region48
      $region47: #{albef_forward_train.4} parent=11 // pred_region
        _
      $region48: #{albef_forward_train.4} parent=11 // pred_fallthru
        _
      // Predicated region
      $region49: #{albef_forward_train.4} parent=11 // pred_check
        %p497 = pneg %p261
      $region50: #{albef_forward_train.4} parent=11 // pred_check_branch
        %499 = sbr.rel (%p497) target = $region52
      $region51: #{albef_forward_train.4} parent=11 // pred_region
        _
      $region52: #{albef_forward_train.4} parent=11 // pred_fallthru
        _
      // Predicated region
      $region53: #{albef_forward_train.4} parent=11 // pred_check
        %p500 = pneg %p282
      $region54: #{albef_forward_train.4} parent=11 // pred_check_branch
        %502 = sbr.rel (%p500) target = $region56
      $region55: #{albef_forward_train.4} parent=11 // pred_region
        _
      $region56: #{albef_forward_train.4} parent=11 // pred_fallthru
        _
      // Predicated region
      $region57: #{albef_forward_train.4} parent=11 // pred_check
        %p503 = pneg %p303
      $region58: #{albef_forward_train.4} parent=11 // pred_check_branch
        %505 = sbr.rel (%p503) target = $region60
      $region59: #{albef_forward_train.4} parent=11 // pred_region
        _
      $region60: #{albef_forward_train.4} parent=11 // pred_fallthru
        _
      // Predicated region
      $region61: #{albef_forward_train.4} parent=11 // pred_check
        %p506 = pneg %p324
      $region62: #{albef_forward_train.4} parent=11 // pred_check_branch
        %508 = sbr.rel (%p506) target = $region64
      $region63: #{albef_forward_train.4} parent=11 // pred_region
        _
      $region64: #{albef_forward_train.4} parent=11 // pred_fallthru
        _
      // Predicated region
      $region65: #{albef_forward_train.4} parent=11 // pred_check
        %p509 = pneg %p345
      $region66: #{albef_forward_train.4} parent=11 // pred_check_branch
        %511 = sbr.rel (%p509) target = $region68
      $region67: #{albef_forward_train.4} parent=11 // pred_region
        _
      $region68: #{albef_forward_train.4} parent=11 // pred_fallthru
        _
      // Predicated region
      $region69: #{albef_forward_train.4} parent=11 // pred_check
        %p512 = pneg %p366
      $region70: #{albef_forward_train.4} parent=11 // pred_check_branch
        %514 = sbr.rel (%p512) target = $region72
      $region71: #{albef_forward_train.4} parent=11 // pred_region
        _
      $region72: #{albef_forward_train.4} parent=11 // pred_fallthru
        _
      // Predicated region
      $region73: #{albef_forward_train.4} parent=11 // pred_check
        %p515 = pneg %p387
      $region74: #{albef_forward_train.4} parent=11 // pred_check_branch
        %517 = sbr.rel (%p515) target = $region76
      $region75: #{albef_forward_train.4} parent=11 // pred_region
        _
      $region76: #{albef_forward_train.4} parent=11 // pred_fallthru
        _
      // Predicated region
      $region77: #{albef_forward_train.4} parent=11 // pred_check
        %p518 = pneg %p408
      $region78: #{albef_forward_train.4} parent=11 // pred_check_branch
        %520 = sbr.rel (%p518) target = $region80
      $region79: #{albef_forward_train.4} parent=11 // pred_region
        _
      $region80: #{albef_forward_train.4} parent=11 // pred_fallthru
        _
      // Predicated region
      $region81: #{albef_forward_train.4} parent=11 // pred_check
        %p521 = pneg %p429
      $region82: #{albef_forward_train.4} parent=11 // pred_check_branch
        %523 = sbr.rel (%p521) target = $region84
      $region83: #{albef_forward_train.4} parent=11 // pred_region
        _
      $region84: #{albef_forward_train.4} parent=11 // pred_fallthru
        _
    $region12: #{albef_forward_train.4} parent=5 // pred_fallthru
      _
    %p524 = scmp.lt.s32.totalorder %s25, 2
    // Predicated region
    $region85: #{albef_forward_train.4} parent=5 // pred_check
      %p525 = pneg %p524
    $region86: #{albef_forward_train.4} parent=5 // pred_check_branch
      %527 = sbr.rel (%p525) target = $region88
    $region87: #{albef_forward_train.4} parent=5 // pred_region
      // Predicated region
      $region89: #{albef_forward_train.4} parent=87 // pred_check
        %p528 = pneg %p45
      $region90: #{albef_forward_train.4} parent=87 // pred_check_branch
        %530 = sbr.rel (%p528) target = $region92
      $region91: #{albef_forward_train.4} parent=87 // pred_region
        %p531 = scmp.lt.s32.totalorder %s25, 1
        %s532 = scalar_select %p531, %s25, 1
        %s533 = smul.addr %s532, 6
        %s534 = smul.addr %s533, 4
        %s535 = scalar_lea.vmem %s0, %s534
      $region92: #{albef_forward_train.4} parent=87 // pred_fallthru
        _
    $region88: #{albef_forward_train.4} parent=5 // pred_fallthru
      _
    %p536 = scmp.le.s32.totalorder 1, %s25
    %p537 = scmp.lt.s32.totalorder %s25, 3
    %p538 = pnand %p536, %p537
    %p539 = pneg %p538
    // Predicated region
    $region93: #{albef_forward_train.4} parent=5 // pred_check
      _
    $region94: #{albef_forward_train.4} parent=5 // pred_check_branch
      %541 = sbr.rel (%p538) target = $region96
    $region95: #{albef_forward_train.4} parent=5 // pred_region
      %s542 = ssub.s32 %s25, 1
      %p543 = scmp.lt.s32.totalorder %s30, 1
      %s544 = scalar_select %p543, %s30, 1
      %s545 = smul.addr %s544, 6
      %s546 = smul.addr %s545, 4
      %s547 = scalar_lea.vmem %s0, %s546
      %p548 = pneg %p51
      %p549 = pneg %p48
      %p550 = pneg %p72
      %p551 = pneg %p69
      %p552 = pneg %p93
      %p553 = pneg %p90
      %p554 = pneg %p114
      %p555 = pneg %p111
      %p556 = pneg %p135
      %p557 = pneg %p132
      %p558 = pneg %p156
      %p559 = pneg %p153
      %p560 = pneg %p177
      %p561 = pneg %p174
      %p562 = pneg %p198
      %p563 = pneg %p195
      %p564 = pneg %p219
      %p565 = pneg %p216
      %p566 = pneg %p240
      %p567 = pneg %p237
      %p568 = pneg %p261
      %p569 = pneg %p258
      %p570 = pneg %p282
      %p571 = pneg %p279
      %p572 = pneg %p303
      %p573 = pneg %p300
      %p574 = pneg %p324
      %p575 = pneg %p321
      %p576 = pneg %p345
      %p577 = pneg %p342
      %p578 = pneg %p366
      %p579 = pneg %p363
      %p580 = pneg %p387
      %p581 = pneg %p384
      %p582 = pneg %p408
      %p583 = pneg %p405
      %p584 = pneg %p429
      %p585 = pneg %p426
      %p586 = pneg %p455
      %p587 = pneg %p452
      %p588 = scmp.lt.s32.totalorder %s30, 1
      %s589 = scalar_select %p588, %s30, 1
      %s590 = smul.addr %s589, 8
      %s591 = scalar_lea.vmem %s19, %s590
      %p592 = scmp.lt.s32.totalorder %s30, 1
      %s593 = scalar_select %p592, %s30, 1
      %s594 = smul.addr %s593, 6
      %s595 = smul.addr %s594, 4
      %s596 = scalar_lea.vmem %s0, %s595
      %p597 = scmp.lt.s32.totalorder %s30, 1
      %s598 = scalar_select %p597, %s30, 1
      %s599 = smul.addr %s598, 8
      %s600 = scalar_lea.vmem %s19, %s599
      %v602 = vld [vmem:[%s596] sm:$0xff]
      %v603 = vld [vmem:[%s596 + $0x8] sm:$0xff]
      %v604 = vld [vmem:[%s596 + $0x10] sm:$0xff]
      %v605 = vld [vmem:[%s1] sm:$0xf]
      %v606 = vld [vmem:[%s1 + $0x4] sm:$0xf]
      %v607 = vld [vmem:[%s1 + $0x8] sm:$0xf]
      %v608 = vld [vmem:[%s1 + $0xc] sm:$0xf]
      %v609 = vld [vmem:[%s1 + $0x10] sm:$0xf]
      %v610 = vld [vmem:[%s1 + $0x14] sm:$0xf]
      %v611 = vld [vmem:[%s1 + $0x18] sm:$0xf]
      %v612 = vld [vmem:[%s1 + $0x1c] sm:$0xf]
      %v613 = vld [vmem:[%s1 + $0x20] sm:$0xf]
      %v614 = vld [vmem:[%s1 + $0x24] sm:$0xf]
      %v615 = vld [vmem:[%s1 + $0x28] sm:$0xf]
      %v616 = vld [vmem:[%s1 + $0x2c] sm:$0xf]
      %v617 = vld [vmem:[%s1 + $0x30] sm:$0xf]
      %v618 = vld [vmem:[%s1 + $0x34] sm:$0xf]
      %v619 = vld [vmem:[%s1 + $0x38] sm:$0xf]
      %v620 = vld [vmem:[%s1 + $0x3c] sm:$0xf]
      %v621 = vld [vmem:[%s1 + $0x40] sm:$0xf]
      %v622 = vld [vmem:[%s1 + $0x44] sm:$0xf]
      %v623 = vld [vmem:[%s1 + $0x48] sm:$0xf]
      %v624 = vld [vmem:[%s1 + $0x4c] sm:$0xf]
      %v625 = vld [vmem:[%s1 + $0x50] sm:$0xf]
      %v626 = vld [vmem:[%s1 + $0x54] sm:$0xf]
      %v627 = vld [vmem:[%s1 + $0x58] sm:$0xf]
      %v628 = vld [vmem:[%s1 + $0x5c] sm:$0xf]
      %v629 = vld [vmem:[%s1 + $0x60] sm:$0xf]
      %v630 = vld [vmem:[%s1 + $0x64] sm:$0xf]
      %v631 = vld [vmem:[%s1 + $0x68] sm:$0xf]
      %v632 = vld [vmem:[%s1 + $0x6c] sm:$0xf]
      %v633 = vld [vmem:[%s1 + $0x70] sm:$0xf]
      %v634 = vld [vmem:[%s1 + $0x74] sm:$0xf]
      %v635 = vld [vmem:[%s1 + $0x78] sm:$0xf]
      %v636 = vld [vmem:[%s1 + $0x7c] sm:$0xf]
      %v637 = vld [vmem:[%s1 + $0x80] sm:$0xf]
      %v638 = vld [vmem:[%s1 + $0x84] sm:$0xf]
      %v639 = vld [vmem:[%s1 + $0x88] sm:$0xf]
      %v640 = vld [vmem:[%s1 + $0x8c] sm:$0xf]
      %v641 = vld [vmem:[%s1 + $0x90] sm:$0xf]
      %v642 = vld [vmem:[%s1 + $0x94] sm:$0xf]
      %v643 = vld [vmem:[%s1 + $0x98] sm:$0xf]
      %v644 = vld [vmem:[%s1 + $0x9c] sm:$0xf]
      %v645 = vld [vmem:[%s1 + $0xa0] sm:$0xf]
      %v646 = vld [vmem:[%s1 + $0xa4] sm:$0xf]
      %v647 = vld [vmem:[%s1 + $0xa8] sm:$0xf]
      %v648 = vld [vmem:[%s1 + $0xac] sm:$0xf]
      %v649 = vld [vmem:[%s1 + $0xb0] sm:$0xf]
      %v650 = vld [vmem:[%s1 + $0xb4] sm:$0xf]
      %v651 = vld [vmem:[%s1 + $0xb8] sm:$0xf]
      %v652 = vld [vmem:[%s1 + $0xbc] sm:$0xf]
      %v653 = vld [vmem:[%s1 + $0xc0] sm:$0xf]
      %v654 = vld [vmem:[%s1 + $0xc4] sm:$0xf]
      %v655 = vld [vmem:[%s1 + $0xc8] sm:$0xf]
      %v656 = vld [vmem:[%s1 + $0xcc] sm:$0xf]
      %v657 = vld [vmem:[%s1 + $0xd0] sm:$0xf]
      %v658 = vld [vmem:[%s1 + $0xd4] sm:$0xf]
      %v659 = vld [vmem:[%s1 + $0xd8] sm:$0xf]
      %v660 = vld [vmem:[%s1 + $0xdc] sm:$0xf]
      %v661 = vld [vmem:[%s1 + $0xe0] sm:$0xf]
      %v662 = vld [vmem:[%s1 + $0xe4] sm:$0xf]
      %v663 = vld [vmem:[%s1 + $0xe8] sm:$0xf]
      %v664 = vld [vmem:[%s1 + $0xec] sm:$0xf]
      %v665 = vld [vmem:[%s1 + $0xf0] sm:$0xf]
      %v666 = vld [vmem:[%s1 + $0xf4] sm:$0xf]
      %v667 = vld [vmem:[%s1 + $0xf8] sm:$0xf]
      %v668 = vld [vmem:[%s1 + $0xfc] sm:$0xf]
      %v669 = vld [vmem:[%s1 + $0x100] sm:$0xf]
      %v670 = vld [vmem:[%s1 + $0x104] sm:$0xf]
      %v671 = vld [vmem:[%s1 + $0x108] sm:$0xf]
      %v672 = vld [vmem:[%s1 + $0x10c] sm:$0xf]
      %v673 = vld [vmem:[%s1 + $0x110] sm:$0xf]
      %v674 = vld [vmem:[%s1 + $0x114] sm:$0xf]
      %v675 = vld [vmem:[%s1 + $0x118] sm:$0xf]
      %v676 = vld [vmem:[%s1 + $0x11c] sm:$0xf]
      %v677 = vld [vmem:[%s1 + $0x120] sm:$0xf]
      %v678 = vld [vmem:[%s1 + $0x124] sm:$0xf]
      %v679 = vld [vmem:[%s1 + $0x128] sm:$0xf]
      %v680 = vld [vmem:[%s1 + $0x12c] sm:$0xf]
      %v681 = vld [vmem:[%s1 + $0x130] sm:$0xf]
      %v682 = vld [vmem:[%s1 + $0x134] sm:$0xf]
      %v683 = vld [vmem:[%s1 + $0x138] sm:$0xf]
      %v684 = vld [vmem:[%s1 + $0x13c] sm:$0xf]
      %v685 = vld [vmem:[%s1 + $0x140] sm:$0xf]
      %v686 = vld [vmem:[%s1 + $0x144] sm:$0xf]
      %v687 = vld [vmem:[%s1 + $0x148] sm:$0xf]
      %v688 = vld [vmem:[%s1 + $0x14c] sm:$0xf]
      %v689 = vld [vmem:[%s1 + $0x150] sm:$0xf]
      %v690 = vld [vmem:[%s1 + $0x154] sm:$0xf]
      %v691 = vld [vmem:[%s1 + $0x158] sm:$0xf]
      %v692 = vld [vmem:[%s1 + $0x15c] sm:$0xf]
      %v693 = vld [vmem:[%s1 + $0x160] sm:$0xf]
      %v694 = vld [vmem:[%s1 + $0x164] sm:$0xf]
      %v695 = vld [vmem:[%s1 + $0x168] sm:$0xf]
      %v696 = vld [vmem:[%s1 + $0x16c] sm:$0xf]
      %v697 = vld [vmem:[%s1 + $0x170] sm:$0xf]
      %v698 = vld [vmem:[%s1 + $0x174] sm:$0xf]
      %v699 = vld [vmem:[%s1 + $0x178] sm:$0xf]
      %v700 = vld [vmem:[%s1 + $0x17c] sm:$0xf]
      %704 = vst [vmem:[#allocation1] ss:$2 sm:$0xff] %v602
      %s705 = scalar_lea.vmem [#allocation1], 16
      %706 = vst [vmem:[%s705] ss:$2 sm:$0xff] %v603
      %s707 = scalar_lea.vmem [#allocation1], 32
      %708 = vst [vmem:[%s707] ss:$2 sm:$0xff] %v604
      %v709 = vld.sshfl [vmem:[#allocation1] sm:$0xff pattern:$0x75316420]
      %v710 = vld.sshfl [vmem:[#allocation1 + $0x8] sm:$0xff pattern:$0x75316420]
      %v711 = vld.sshfl [vmem:[#allocation1 + $0x10] sm:$0xff pattern:$0x75316420]
      %v712 = vld.sshfl [vmem:[#allocation1 + $0x18] sm:$0xff pattern:$0x75316420]
      %v713 = vld.sshfl [vmem:[#allocation1 + $0x20] sm:$0xff pattern:$0x75316420]
      %v714 = vld.sshfl [vmem:[#allocation1 + $0x28] sm:$0xff pattern:$0x75316420]
      %v721 = vpack.c.bf16 %v709, %v709
      %v722 = vpack.c.bf16 %v710, %v710
      %v723 = vpack.c.bf16 %v711, %v711
      %v724 = vpack.c.bf16 %v712, %v712
      %v725 = vpack.c.bf16 %v713, %v713
      %v726 = vpack.c.bf16 %v714, %v714
      %v727 = vld [vmem:[%s2] sm:$0x1]
      %v729 = vperm.slane %v727, 0
      %v827 = vunpack.c.l.b16 %v605
      %v828 = vunpack.c.l.b16 %v606
      %v829 = vunpack.c.l.b16 %v607
      %v830 = vunpack.c.l.b16 %v608
      %v831 = vunpack.c.l.b16 %v609
      %v832 = vunpack.c.l.b16 %v610
      %v833 = vunpack.c.l.b16 %v611
      %v834 = vunpack.c.l.b16 %v612
      %v835 = vunpack.c.l.b16 %v613
      %v836 = vunpack.c.l.b16 %v614
      %v837 = vunpack.c.l.b16 %v615
      %v838 = vunpack.c.l.b16 %v616
      %v839 = vunpack.c.l.b16 %v617
      %v840 = vunpack.c.l.b16 %v618
      %v841 = vunpack.c.l.b16 %v619
      %v842 = vunpack.c.l.b16 %v620
      %v843 = vunpack.c.l.b16 %v621
      %v844 = vunpack.c.l.b16 %v622
      %v845 = vunpack.c.l.b16 %v623
      %v846 = vunpack.c.l.b16 %v624
      %v847 = vunpack.c.l.b16 %v625
      %v848 = vunpack.c.l.b16 %v626
      %v849 = vunpack.c.l.b16 %v627
      %v850 = vunpack.c.l.b16 %v628
      %v851 = vunpack.c.l.b16 %v629
      %v852 = vunpack.c.l.b16 %v630
      %v853 = vunpack.c.l.b16 %v631
      %v854 = vunpack.c.l.b16 %v632
      %v855 = vunpack.c.l.b16 %v633
      %v856 = vunpack.c.l.b16 %v634
      %v857 = vunpack.c.l.b16 %v635
      %v858 = vunpack.c.l.b16 %v636
      %v859 = vunpack.c.l.b16 %v637
      %v860 = vunpack.c.l.b16 %v638
      %v861 = vunpack.c.l.b16 %v639
      %v862 = vunpack.c.l.b16 %v640
      %v863 = vunpack.c.l.b16 %v641
      %v864 = vunpack.c.l.b16 %v642
      %v865 = vunpack.c.l.b16 %v643
      %v866 = vunpack.c.l.b16 %v644
      %v867 = vunpack.c.l.b16 %v645
      %v868 = vunpack.c.l.b16 %v646
      %v869 = vunpack.c.l.b16 %v647
      %v870 = vunpack.c.l.b16 %v648
      %v871 = vunpack.c.l.b16 %v649
      %v872 = vunpack.c.l.b16 %v650
      %v873 = vunpack.c.l.b16 %v651
      %v874 = vunpack.c.l.b16 %v652
      %v875 = vunpack.c.l.b16 %v653
      %v876 = vunpack.c.l.b16 %v654
      %v877 = vunpack.c.l.b16 %v655
      %v878 = vunpack.c.l.b16 %v656
      %v879 = vunpack.c.l.b16 %v657
      %v880 = vunpack.c.l.b16 %v658
      %v881 = vunpack.c.l.b16 %v659
      %v882 = vunpack.c.l.b16 %v660
      %v883 = vunpack.c.l.b16 %v661
      %v884 = vunpack.c.l.b16 %v662
      %v885 = vunpack.c.l.b16 %v663
      %v886 = vunpack.c.l.b16 %v664
      %v887 = vunpack.c.l.b16 %v665
      %v888 = vunpack.c.l.b16 %v666
      %v889 = vunpack.c.l.b16 %v667
      %v890 = vunpack.c.l.b16 %v668
      %v891 = vunpack.c.l.b16 %v669
      %v892 = vunpack.c.l.b16 %v670
      %v893 = vunpack.c.l.b16 %v671
      %v894 = vunpack.c.l.b16 %v672
      %v895 = vunpack.c.l.b16 %v673
      %v896 = vunpack.c.l.b16 %v674
      %v897 = vunpack.c.l.b16 %v675
      %v898 = vunpack.c.l.b16 %v676
      %v899 = vunpack.c.l.b16 %v677
      %v900 = vunpack.c.l.b16 %v678
      %v901 = vunpack.c.l.b16 %v679
      %v902 = vunpack.c.l.b16 %v680
      %v903 = vunpack.c.l.b16 %v681
      %v904 = vunpack.c.l.b16 %v682
      %v905 = vunpack.c.l.b16 %v683
      %v906 = vunpack.c.l.b16 %v684
      %v907 = vunpack.c.l.b16 %v685
      %v908 = vunpack.c.l.b16 %v686
      %v909 = vunpack.c.l.b16 %v687
      %v910 = vunpack.c.l.b16 %v688
      %v911 = vunpack.c.l.b16 %v689
      %v912 = vunpack.c.l.b16 %v690
      %v913 = vunpack.c.l.b16 %v691
      %v914 = vunpack.c.l.b16 %v692
      %v915 = vunpack.c.l.b16 %v693
      %v916 = vunpack.c.l.b16 %v694
      %v917 = vunpack.c.l.b16 %v695
      %v918 = vunpack.c.l.b16 %v696
      %v919 = vunpack.c.l.b16 %v697
      %v920 = vunpack.c.l.b16 %v698
      %v921 = vunpack.c.l.b16 %v699
      %v922 = vunpack.c.l.b16 %v700
      %v923 = vpack.c.b16 %v828, %v827
      %v924 = vpack.c.b16 %v830, %v829
      %v925 = vpack.c.b16 %v832, %v831
      %v926 = vpack.c.b16 %v834, %v833
      %v927 = vpack.c.b16 %v836, %v835
      %v928 = vpack.c.b16 %v838, %v837
      %v929 = vpack.c.b16 %v840, %v839
      %v930 = vpack.c.b16 %v842, %v841
      %v931 = vpack.c.b16 %v844, %v843
      %v932 = vpack.c.b16 %v846, %v845
      %v933 = vpack.c.b16 %v848, %v847
      %v934 = vpack.c.b16 %v850, %v849
      %v935 = vpack.c.b16 %v852, %v851
      %v936 = vpack.c.b16 %v854, %v853
      %v937 = vpack.c.b16 %v856, %v855
      %v938 = vpack.c.b16 %v858, %v857
      %v939 = vpack.c.b16 %v860, %v859
      %v940 = vpack.c.b16 %v862, %v861
      %v941 = vpack.c.b16 %v864, %v863
      %v942 = vpack.c.b16 %v866, %v865
      %v943 = vpack.c.b16 %v868, %v867
      %v944 = vpack.c.b16 %v870, %v869
      %v945 = vpack.c.b16 %v872, %v871
      %v946 = vpack.c.b16 %v874, %v873
      %v947 = vpack.c.b16 %v876, %v875
      %v948 = vpack.c.b16 %v878, %v877
      %v949 = vpack.c.b16 %v880, %v879
      %v950 = vpack.c.b16 %v882, %v881
      %v951 = vpack.c.b16 %v884, %v883
      %v952 = vpack.c.b16 %v886, %v885
      %v953 = vpack.c.b16 %v888, %v887
      %v954 = vpack.c.b16 %v890, %v889
      %v955 = vpack.c.b16 %v892, %v891
      %v956 = vpack.c.b16 %v894, %v893
      %v957 = vpack.c.b16 %v896, %v895
      %v958 = vpack.c.b16 %v898, %v897
      %v959 = vpack.c.b16 %v900, %v899
      %v960 = vpack.c.b16 %v902, %v901
      %v961 = vpack.c.b16 %v904, %v903
      %v962 = vpack.c.b16 %v906, %v905
      %v963 = vpack.c.b16 %v908, %v907
      %v964 = vpack.c.b16 %v910, %v909
      %v965 = vpack.c.b16 %v912, %v911
      %v966 = vpack.c.b16 %v914, %v913
      %v967 = vpack.c.b16 %v916, %v915
      %v968 = vpack.c.b16 %v918, %v917
      %v969 = vpack.c.b16 %v920, %v919
      %v970 = vpack.c.b16 %v922, %v921
      %1019 = vmatpush.bf16.msra.mxu0 %v930
      %1020 = vmatpush.bf16.msra.mxu0 %v929
      %1021 = vmatpush.bf16.msra.mxu0 %v928
      %1022 = vmatpush.bf16.msra.mxu0 %v927
      %1023 = vmatpush.bf16.msra.mxu0 %v926
      %1024 = vmatpush.bf16.msra.mxu0 %v925
      %1025 = vmatpush.bf16.msra.mxu0 %v924
      %1026 = vmatpush.bf16.msra.mxu0 %v923
      %1027 = vmatmul.bf16.gmra.mxu0 %v721
      %v1028 = vpop.f32.mrf.mxu0
      %v1029 = vadd.f32 %v729, %v1028
      %v1030 = vpop.f32.mrf.mxu0
      %1031 = vdwg.mxu0
      %1032 = vmatpush.bf16.msra.mxu0 %v938
      %1033 = vmatpush.bf16.msra.mxu0 %v937
      %1034 = vmatpush.bf16.msra.mxu0 %v936
      %1035 = vmatpush.bf16.msra.mxu0 %v935
      %1036 = vmatpush.bf16.msra.mxu0 %v934
      %1037 = vmatpush.bf16.msra.mxu0 %v933
      %1038 = vmatpush.bf16.msra.mxu0 %v932
      %1039 = vmatpush.bf16.msra.mxu0 %v931
      %1040 = vmatmul.bf16.gmra.mxu0 %v722
      %v1041 = vpop.f32.mrf.mxu0
      %v1042 = vadd.f32 %v1029, %v1041
      %v1043 = vpop.f32.mrf.mxu0
      %1044 = vdwg.mxu0
      %1045 = vmatpush.bf16.msra.mxu0 %v946
      %1046 = vmatpush.bf16.msra.mxu0 %v945
      %1047 = vmatpush.bf16.msra.mxu0 %v944
      %1048 = vmatpush.bf16.msra.mxu0 %v943
      %1049 = vmatpush.bf16.msra.mxu0 %v942
      %1050 = vmatpush.bf16.msra.mxu0 %v941
      %1051 = vmatpush.bf16.msra.mxu0 %v940
      %1052 = vmatpush.bf16.msra.mxu0 %v939
      %1053 = vmatmul.bf16.gmra.mxu0 %v723
      %v1054 = vpop.f32.mrf.mxu0
      %v1055 = vadd.f32 %v1042, %v1054
      %v1056 = vpop.f32.mrf.mxu0
      %1057 = vdwg.mxu0
      %1058 = vmatpush.bf16.msra.mxu0 %v954
      %1059 = vmatpush.bf16.msra.mxu0 %v953
      %1060 = vmatpush.bf16.msra.mxu0 %v952
      %1061 = vmatpush.bf16.msra.mxu0 %v951
      %1062 = vmatpush.bf16.msra.mxu0 %v950
      %1063 = vmatpush.bf16.msra.mxu0 %v949
      %1064 = vmatpush.bf16.msra.mxu0 %v948
      %1065 = vmatpush.bf16.msra.mxu0 %v947
      %1066 = vmatmul.bf16.gmra.mxu0 %v724
      %v1067 = vpop.f32.mrf.mxu0
      %v1068 = vadd.f32 %v1055, %v1067
      %v1069 = vpop.f32.mrf.mxu0
      %1070 = vdwg.mxu0
      %1071 = vmatpush.bf16.msra.mxu0 %v962
      %1072 = vmatpush.bf16.msra.mxu0 %v961
      %1073 = vmatpush.bf16.msra.mxu0 %v960
      %1074 = vmatpush.bf16.msra.mxu0 %v959
      %1075 = vmatpush.bf16.msra.mxu0 %v958
      %1076 = vmatpush.bf16.msra.mxu0 %v957
      %1077 = vmatpush.bf16.msra.mxu0 %v956
      %1078 = vmatpush.bf16.msra.mxu0 %v955
      %1079 = vmatmul.bf16.gmra.mxu0 %v725
      %v1080 = vpop.f32.mrf.mxu0
      %v1081 = vadd.f32 %v1068, %v1080
      %v1082 = vpop.f32.mrf.mxu0
      %1083 = vdwg.mxu0
      %1084 = vmatpush.bf16.msra.mxu0 %v970
      %1085 = vmatpush.bf16.msra.mxu0 %v969
      %1086 = vmatpush.bf16.msra.mxu0 %v968
      %1087 = vmatpush.bf16.msra.mxu0 %v967
      %1088 = vmatpush.bf16.msra.mxu0 %v966
      %1089 = vmatpush.bf16.msra.mxu0 %v965
      %1090 = vmatpush.bf16.msra.mxu0 %v964
      %1091 = vmatpush.bf16.msra.mxu0 %v963
      %1092 = vmatmul.bf16.gmra.mxu0 %v726
      %v1093 = vpop.f32.mrf.mxu0
      %v1094 = vadd.f32 %v1081, %v1093
      %v1095 = vpop.f32.mrf.mxu0
      %1096 = vdwg.mxu0
      %v1097 = vld [vmem:[%s3] sm:$0x1]
      %v1099 = vrot.slane %v1094, 7
      %vm1101 = vcmask 1040384
      %v1102 = vsel %vm1101, %v1097, %v1099
      %v1103 = vld [vmem:[%s4] sm:$0x1f]
      %v1104 = vadd.f32 %v1102, %v1103
      %v1105 = vld [vmem:[%s5] sm:$0x1]
      %v1106 = vld [vmem:[%s6] sm:$0x1]
      %vm1107 = vcmask 258048
      %v1108 = vsel %vm1107, %v1104, 0.0
      %1109 = vadd.xlane.f32.xlu0 %v1108
      %v1110 = vpop.xlane.xlu0 %1109
      %v1111 = vrcp.pop 32.0
      %v1112 = vmul.f32 32.0, %v1111
      %v1113 = vsub.f32 1.0, %v1112
      %v1114 = vmul.f32 %v1111, %v1113
      %v1115 = vadd.f32 %v1111, %v1114
      %vm1116 = vweird.f32 %v1111
      %v1117 = vsel %vm1116, %v1111, %v1115
      %v1118 = vmul.f32 %v1110, %v1117
      %v1119 = vsub.f32 %v1104, %v1118
      %v1120 = vmul.f32 %v1119, %v1119
      %v1121 = vsel %vm1107, %v1120, 0.0
      %1122 = vadd.xlane.f32.xlu0 %v1121
      %v1123 = vpop.xlane.xlu0 %1122
      %v1124 = vmul.f32 %v1123, %v1117
      %v1125 = vadd.f32 %v1124, 1e-06
      %v1126 = vrsqrt.pop %v1125
      %v1127 = vmul.f32 %v1126, %v1125
      %v1128 = vmul.f32 %v1127, %v1126
      %v1129 = vmul.f32 0.5, %v1128
      %v1130 = vsub.f32 1.5, %v1129
      %v1131 = vmul.f32 %v1126, %v1130
      %vm1132 = vweird.f32 %v1125
      %vm1133 = vweird.f32 %v1126
      %vm1134 = vmor %vm1132, %vm1133
      %v1135 = vsel %vm1134, %v1126, %v1131
      %v1136 = vmul.f32 %v1119, %v1135
      %v1138 = vperm.slane %v1105, 0
      %v1140 = vmul.f32 %v1136, %v1138
      %v1142 = vperm.slane %v1106, 0
      %v1144 = vadd.f32 %v1140, %v1142
      %v1145 = vpack.c.bf16 %v1144, %v1144
      %v1146 = vld [vmem:[%s7] sm:$0xf]
      %v1147 = vld [vmem:[%s7 + $0x4] sm:$0xf]
      %v1148 = vld [vmem:[%s7 + $0x8] sm:$0xf]
      %v1149 = vld [vmem:[%s7 + $0xc] sm:$0xf]
      %v1150 = vld [vmem:[%s7 + $0x10] sm:$0xf]
      %v1151 = vld [vmem:[%s7 + $0x14] sm:$0xf]
      %v1152 = vld [vmem:[%s7 + $0x18] sm:$0xf]
      %v1153 = vld [vmem:[%s7 + $0x1c] sm:$0xf]
      %v1154 = vld [vmem:[%s7 + $0x20] sm:$0xf]
      %v1155 = vld [vmem:[%s7 + $0x24] sm:$0xf]
      %v1156 = vld [vmem:[%s7 + $0x28] sm:$0xf]
      %v1157 = vld [vmem:[%s7 + $0x2c] sm:$0xf]
      %v1158 = vld [vmem:[%s7 + $0x30] sm:$0xf]
      %v1159 = vld [vmem:[%s7 + $0x34] sm:$0xf]
      %v1160 = vld [vmem:[%s7 + $0x38] sm:$0xf]
      %v1161 = vld [vmem:[%s7 + $0x3c] sm:$0xf]
      %v1162 = vld [vmem:[%s8] sm:$0x1]
      %v1163 = vld [vmem:[%s8 + $0x1] sm:$0x1]
      %v1164 = vld [vmem:[%s8 + $0x2] sm:$0x1]
      %v1165 = vld [vmem:[%s8 + $0x3] sm:$0x1]
      %v1170 = vperm.slane %v1162, 0
      %v1171 = vperm.slane %v1163, 0
      %v1172 = vperm.slane %v1164, 0
      %v1173 = vperm.slane %v1165, 0
      %v1182 = vunpack.c.l.b16 %v1146
      %v1183 = vunpack.c.l.b16 %v1147
      %v1184 = vunpack.c.l.b16 %v1148
      %v1185 = vunpack.c.l.b16 %v1149
      %v1186 = vpack.c.b16 %v1183, %v1182
      %v1187 = vpack.c.b16 %v1185, %v1184
      %vm1190 = vcmask 261120
      %v1192 = vsel %vm1190, %v1145, 0
      %1194 = vmatpush.bf16.msra.mxu0 0
      %1195 = vmatpush.bf16.msra.mxu0 0
      %1196 = vmatpush.bf16.msra.mxu0 0
      %1197 = vmatpush.bf16.msra.mxu0 0
      %1198 = vmatpush.bf16.msra.mxu0 0
      %1199 = vmatpush.bf16.msra.mxu0 0
      %1200 = vmatpush.bf16.msra.mxu0 %v1187
      %1201 = vmatpush.bf16.msra.mxu0 %v1186
      %1202 = vmatmul.bf16.gmra.mxu0 %v1192
      %v1203 = vpop.f32.mrf.mxu0
      %v1204 = vadd.f32 %v1170, %v1203
      %v1205 = vpop.f32.mrf.mxu0
      %1206 = vdwg.mxu0
      %v1211 = vunpack.c.l.b16 %v1150
      %v1212 = vunpack.c.l.b16 %v1151
      %v1213 = vunpack.c.l.b16 %v1152
      %v1214 = vunpack.c.l.b16 %v1153
      %v1215 = vpack.c.b16 %v1212, %v1211
      %v1216 = vpack.c.b16 %v1214, %v1213
      %1219 = vmatpush.bf16.msra.mxu0 0
      %1220 = vmatpush.bf16.msra.mxu0 0
      %1221 = vmatpush.bf16.msra.mxu0 0
      %1222 = vmatpush.bf16.msra.mxu0 0
      %1223 = vmatpush.bf16.msra.mxu0 0
      %1224 = vmatpush.bf16.msra.mxu0 0
      %1225 = vmatpush.bf16.msra.mxu0 %v1216
      %1226 = vmatpush.bf16.msra.mxu0 %v1215
      %1227 = vmatmul.bf16.gmra.mxu0 %v1192
      %v1228 = vpop.f32.mrf.mxu0
      %v1229 = vadd.f32 %v1171, %v1228
      %v1230 = vpop.f32.mrf.mxu0
      %1231 = vdwg.mxu0
      %v1236 = vunpack.c.l.b16 %v1154
      %v1237 = vunpack.c.l.b16 %v1155
      %v1238 = vunpack.c.l.b16 %v1156
      %v1239 = vunpack.c.l.b16 %v1157
      %v1240 = vpack.c.b16 %v1237, %v1236
      %v1241 = vpack.c.b16 %v1239, %v1238
      %1244 = vmatpush.bf16.msra.mxu0 0
      %1245 = vmatpush.bf16.msra.mxu0 0
      %1246 = vmatpush.bf16.msra.mxu0 0
      %1247 = vmatpush.bf16.msra.mxu0 0
      %1248 = vmatpush.bf16.msra.mxu0 0
      %1249 = vmatpush.bf16.msra.mxu0 0
      %1250 = vmatpush.bf16.msra.mxu0 %v1241
      %1251 = vmatpush.bf16.msra.mxu0 %v1240
      %1252 = vmatmul.bf16.gmra.mxu0 %v1192
      %v1253 = vpop.f32.mrf.mxu0
      %v1254 = vadd.f32 %v1172, %v1253
      %v1255 = vpop.f32.mrf.mxu0
      %1256 = vdwg.mxu0
      %v1261 = vunpack.c.l.b16 %v1158
      %v1262 = vunpack.c.l.b16 %v1159
      %v1263 = vunpack.c.l.b16 %v1160
      %v1264 = vunpack.c.l.b16 %v1161
      %v1265 = vpack.c.b16 %v1262, %v1261
      %v1266 = vpack.c.b16 %v1264, %v1263
      %1269 = vmatpush.bf16.msra.mxu0 0
      %1270 = vmatpush.bf16.msra.mxu0 0
      %1271 = vmatpush.bf16.msra.mxu0 0
      %1272 = vmatpush.bf16.msra.mxu0 0
      %1273 = vmatpush.bf16.msra.mxu0 0
      %1274 = vmatpush.bf16.msra.mxu0 0
      %1275 = vmatpush.bf16.msra.mxu0 %v1266
      %1276 = vmatpush.bf16.msra.mxu0 %v1265
      %1277 = vmatmul.bf16.gmra.mxu0 %v1192
      %v1278 = vpop.f32.mrf.mxu0
      %v1279 = vadd.f32 %v1173, %v1278
      %v1280 = vpop.f32.mrf.mxu0
      %1281 = vdwg.mxu0
      %v1282 = vpack.c.bf16 %v1204, %v1204
      %v1283 = vpack.c.bf16 %v1229, %v1229
      %v1284 = vpack.c.bf16 %v1254, %v1254
      %v1285 = vpack.c.bf16 %v1279, %v1279
      %v1287 = vunpack.c.l.b16 %v1282
      %v1288 = vpack.c.b16 %v1287, %v1287
      %1289 = vrot.lane.b32.xlu0 %v1288, 120
      %v1290 = vpop.permute.xlu0 %1289
      %vm1291 = vcmask 64512
      %v1293 = vsel %vm1291, %v1282, 0
      %v1296 = vsel %vm1291, %v1290, 0
      %1298 = vmatpush.bf16.xpose.msra.mxu0 0
      %1299 = vmatpush.bf16.xpose.msra.mxu0 0
      %1300 = vmatpush.bf16.xpose.msra.mxu0 0
      %1301 = vmatpush.bf16.xpose.msra.mxu0 0
      %1302 = vmatpush.bf16.xpose.msra.mxu0 0
      %1303 = vmatpush.bf16.xpose.msra.mxu0 0
      %1304 = vmatpush.bf16.xpose.msra.mxu0 0
      %1305 = vmatpush.bf16.xpose.msra.mxu0 %v1296
      %1306 = vmatmul.bf16.gmra.mxu0 %v1293
      %v1307 = vpop.f32.mrf.mxu0
      %v1308 = vadd.f32 0.0, %v1307
      %v1309 = vpop.f32.mrf.mxu0
      %1310 = vdwg.mxu0
      %v1312 = vunpack.c.l.b16 %v1283
      %v1313 = vpack.c.b16 %v1312, %v1312
      %1314 = vrot.lane.b32.xlu0 %v1313, 120
      %v1315 = vpop.permute.xlu0 %1314
      %v1317 = vsel %vm1291, %v1283, 0
      %v1320 = vsel %vm1291, %v1315, 0
      %1322 = vmatpush.bf16.xpose.msra.mxu0 0
      %1323 = vmatpush.bf16.xpose.msra.mxu0 0
      %1324 = vmatpush.bf16.xpose.msra.mxu0 0
      %1325 = vmatpush.bf16.xpose.msra.mxu0 0
      %1326 = vmatpush.bf16.xpose.msra.mxu0 0
      %1327 = vmatpush.bf16.xpose.msra.mxu0 0
      %1328 = vmatpush.bf16.xpose.msra.mxu0 0
      %1329 = vmatpush.bf16.xpose.msra.mxu0 %v1320
      %1330 = vmatmul.bf16.gmra.mxu0 %v1317
      %v1331 = vpop.f32.mrf.mxu0
      %v1332 = vadd.f32 0.0, %v1331
      %v1333 = vpop.f32.mrf.mxu0
      %1334 = vdwg.mxu0
      %v1336 = vunpack.c.l.b16 %v1284
      %v1337 = vpack.c.b16 %v1336, %v1336
      %1338 = vrot.lane.b32.xlu0 %v1337, 120
      %v1339 = vpop.permute.xlu0 %1338
      %v1341 = vsel %vm1291, %v1284, 0
      %v1344 = vsel %vm1291, %v1339, 0
      %1346 = vmatpush.bf16.xpose.msra.mxu0 0
      %1347 = vmatpush.bf16.xpose.msra.mxu0 0
      %1348 = vmatpush.bf16.xpose.msra.mxu0 0
      %1349 = vmatpush.bf16.xpose.msra.mxu0 0
      %1350 = vmatpush.bf16.xpose.msra.mxu0 0
      %1351 = vmatpush.bf16.xpose.msra.mxu0 0
      %1352 = vmatpush.bf16.xpose.msra.mxu0 0
      %1353 = vmatpush.bf16.xpose.msra.mxu0 %v1344
      %1354 = vmatmul.bf16.gmra.mxu0 %v1341
      %v1355 = vpop.f32.mrf.mxu0
      %v1356 = vadd.f32 0.0, %v1355
      %v1357 = vpop.f32.mrf.mxu0
      %1358 = vdwg.mxu0
      %v1360 = vunpack.c.l.b16 %v1285
      %v1361 = vpack.c.b16 %v1360, %v1360
      %1362 = vrot.lane.b32.xlu0 %v1361, 120
      %v1363 = vpop.permute.xlu0 %1362
      %v1365 = vsel %vm1291, %v1285, 0
      %v1368 = vsel %vm1291, %v1363, 0
      %1370 = vmatpush.bf16.xpose.msra.mxu0 0
      %1371 = vmatpush.bf16.xpose.msra.mxu0 0
      %1372 = vmatpush.bf16.xpose.msra.mxu0 0
      %1373 = vmatpush.bf16.xpose.msra.mxu0 0
      %1374 = vmatpush.bf16.xpose.msra.mxu0 0
      %1375 = vmatpush.bf16.xpose.msra.mxu0 0
      %1376 = vmatpush.bf16.xpose.msra.mxu0 0
      %1377 = vmatpush.bf16.xpose.msra.mxu0 %v1368
      %1378 = vmatmul.bf16.gmra.mxu0 %v1365
      %v1379 = vpop.f32.mrf.mxu0
      %v1380 = vadd.f32 0.0, %v1379
      %v1381 = vpop.f32.mrf.mxu0
      %1382 = vdwg.mxu0
      %v1383 = vmul.f32 %v1308, 0.35355338
      %v1384 = vmul.f32 %v1332, 0.35355338
      %v1385 = vmul.f32 %v1356, 0.35355338
      %v1386 = vmul.f32 %v1380, 0.35355338
      %vm1387 = vcmask 36864
      %v1388 = vsel %vm1387, %v1383, -inf
      %1389 = vmax.xlane.f32.xlu0 %v1388
      %v1390 = vpop.xlane.xlu0 %1389
      %v1391 = vsel %vm1387, %v1384, -inf
      %1392 = vmax.xlane.f32.xlu0 %v1391
      %v1393 = vpop.xlane.xlu0 %1392
      %v1394 = vsel %vm1387, %v1385, -inf
      %1395 = vmax.xlane.f32.xlu0 %v1394
      %v1396 = vpop.xlane.xlu0 %1395
      %v1397 = vsel %vm1387, %v1386, -inf
      %1398 = vmax.xlane.f32.xlu0 %v1397
      %v1399 = vpop.xlane.xlu0 %1398
      %v1400 = vsub.f32 %v1383, %v1390
      %v1401 = vsub.f32 %v1384, %v1393
      %v1402 = vsub.f32 %v1385, %v1396
      %v1403 = vsub.f32 %v1386, %v1399
      %v1404 = vmul.f32 %v1400, 1.442695
      %v1405 = vpow.pop %v1404
      %v1406 = vmul.f32 %v1401, 1.442695
      %v1407 = vpow.pop %v1406
      %v1408 = vmul.f32 %v1402, 1.442695
      %v1409 = vpow.pop %v1408
      %v1410 = vmul.f32 %v1403, 1.442695
      %v1411 = vpow.pop %v1410
      %v1412 = vsel %vm1387, %v1405, 0.0
      %1413 = vadd.xlane.f32.xlu0 %v1412
      %v1414 = vpop.xlane.xlu0 %1413
      %v1415 = vsel %vm1387, %v1407, 0.0
      %1416 = vadd.xlane.f32.xlu0 %v1415
      %v1417 = vpop.xlane.xlu0 %1416
      %v1418 = vsel %vm1387, %v1409, 0.0
      %1419 = vadd.xlane.f32.xlu0 %v1418
      %v1420 = vpop.xlane.xlu0 %1419
      %v1421 = vsel %vm1387, %v1411, 0.0
      %1422 = vadd.xlane.f32.xlu0 %v1421
      %v1423 = vpop.xlane.xlu0 %1422
      %v1424 = vrcp.pop %v1414
      %v1425 = vrcp.pop %v1417
      %v1426 = vrcp.pop %v1420
      %v1427 = vrcp.pop %v1423
      %v1428 = vmul.f32 %v1405, %v1424
      %v1429 = vmul.f32 %v1407, %v1425
      %v1430 = vmul.f32 %v1409, %v1426
      %v1431 = vmul.f32 %v1411, %v1427
      %v1432 = vpack.c.bf16 %v1428, %v1428
      %v1433 = vpack.c.bf16 %v1429, %v1429
      %v1434 = vpack.c.bf16 %v1430, %v1430
      %v1435 = vpack.c.bf16 %v1431, %v1431
      %1436 = vrot.lane.b32.xlu0 %v1288, 112
      %v1437 = vpop.permute.xlu0 %1436
      %vm1438 = vcmask 39936
      %v1440 = vsel %vm1438, %v1432, 0
      %vm1442 = vcmask 1041408
      %vm1443 = vcmask 1042432
      %v1444 = vsel %vm1442, 4294967295, 65535
      %v1445 = vsel %vm1443, %v1444, 0
      %v1447 = vand.u32 %v1437, %v1445
      %1449 = vmatpush.bf16.msra.mxu0 0
      %1450 = vmatpush.bf16.msra.mxu0 0
      %1451 = vmatpush.bf16.msra.mxu0 0
      %1452 = vmatpush.bf16.msra.mxu0 0
      %1453 = vmatpush.bf16.msra.mxu0 0
      %1454 = vmatpush.bf16.msra.mxu0 0
      %1455 = vmatpush.bf16.msra.mxu0 0
      %1456 = vmatpush.bf16.msra.mxu0 %v1447
      %1457 = vmatmul.bf16.gmra.mxu0 %v1440
      %v1458 = vpop.f32.mrf.mxu0
      %v1459 = vadd.f32 0.0, %v1458
      %v1460 = vpop.f32.mrf.mxu0
      %1461 = vdwg.mxu0
      %1462 = vrot.lane.b32.xlu0 %v1313, 112
      %v1463 = vpop.permute.xlu0 %1462
      %v1465 = vsel %vm1438, %v1433, 0
      %v1468 = vand.u32 %v1463, %v1445
      %1470 = vmatpush.bf16.msra.mxu0 0
      %1471 = vmatpush.bf16.msra.mxu0 0
      %1472 = vmatpush.bf16.msra.mxu0 0
      %1473 = vmatpush.bf16.msra.mxu0 0
      %1474 = vmatpush.bf16.msra.mxu0 0
      %1475 = vmatpush.bf16.msra.mxu0 0
      %1476 = vmatpush.bf16.msra.mxu0 0
      %1477 = vmatpush.bf16.msra.mxu0 %v1468
      %1478 = vmatmul.bf16.gmra.mxu0 %v1465
      %v1479 = vpop.f32.mrf.mxu0
      %v1480 = vadd.f32 0.0, %v1479
      %v1481 = vpop.f32.mrf.mxu0
      %1482 = vdwg.mxu0
      %1483 = vrot.lane.b32.xlu0 %v1337, 112
      %v1484 = vpop.permute.xlu0 %1483
      %v1486 = vsel %vm1438, %v1434, 0
      %v1489 = vand.u32 %v1484, %v1445
      %1491 = vmatpush.bf16.msra.mxu0 0
      %1492 = vmatpush.bf16.msra.mxu0 0
      %1493 = vmatpush.bf16.msra.mxu0 0
      %1494 = vmatpush.bf16.msra.mxu0 0
      %1495 = vmatpush.bf16.msra.mxu0 0
      %1496 = vmatpush.bf16.msra.mxu0 0
      %1497 = vmatpush.bf16.msra.mxu0 0
      %1498 = vmatpush.bf16.msra.mxu0 %v1489
      %1499 = vmatmul.bf16.gmra.mxu0 %v1486
      %v1500 = vpop.f32.mrf.mxu0
      %v1501 = vadd.f32 0.0, %v1500
      %v1502 = vpop.f32.mrf.mxu0
      %1503 = vdwg.mxu0
      %1504 = vrot.lane.b32.xlu0 %v1361, 112
      %v1505 = vpop.permute.xlu0 %1504
      %v1507 = vsel %vm1438, %v1435, 0
      %v1510 = vand.u32 %v1505, %v1445
      %1512 = vmatpush.bf16.msra.mxu0 0
      %1513 = vmatpush.bf16.msra.mxu0 0
      %1514 = vmatpush.bf16.msra.mxu0 0
      %1515 = vmatpush.bf16.msra.mxu0 0
      %1516 = vmatpush.bf16.msra.mxu0 0
      %1517 = vmatpush.bf16.msra.mxu0 0
      %1518 = vmatpush.bf16.msra.mxu0 0
      %1519 = vmatpush.bf16.msra.mxu0 %v1510
      %1520 = vmatmul.bf16.gmra.mxu0 %v1507
      %v1521 = vpop.f32.mrf.mxu0
      %v1522 = vadd.f32 0.0, %v1521
      %v1523 = vpop.f32.mrf.mxu0
      %1524 = vdwg.mxu0
      %v1525 = vld [vmem:[%s9] sm:$0xf]
      %v1526 = vld [vmem:[%s9 + $0x4] sm:$0xf]
      %v1527 = vld [vmem:[%s9 + $0x8] sm:$0xf]
      %v1528 = vld [vmem:[%s9 + $0xc] sm:$0xf]
      %v1529 = vld [vmem:[%s10] sm:$0x1]
      %v1530 = vpack.c.bf16 %v1459, %v1459
      %v1531 = vpack.c.bf16 %v1480, %v1480
      %v1532 = vpack.c.bf16 %v1501, %v1501
      %v1533 = vpack.c.bf16 %v1522, %v1522
      %v1535 = vsel %vm1291, %v1530, 0
      %vm1537 = vcmask 1043456
      %v1539 = vsel %vm1537, %v1525, 0
      %1541 = vmatpush.bf16.msra.mxu0 0
      %1542 = vmatpush.bf16.msra.mxu0 0
      %1543 = vmatpush.bf16.msra.mxu0 0
      %1544 = vmatpush.bf16.msra.mxu0 0
      %1545 = vmatpush.bf16.msra.mxu0 0
      %1546 = vmatpush.bf16.msra.mxu0 0
      %1547 = vmatpush.bf16.msra.mxu0 0
      %1548 = vmatpush.bf16.msra.mxu0 %v1539
      %1549 = vmatmul.bf16.gmra.mxu0 %v1535
      %v1550 = vpop.f32.mrf.mxu0
      %v1551 = vadd.f32 0.0, %v1550
      %v1552 = vpop.f32.mrf.mxu0
      %1553 = vdwg.mxu0
      %v1555 = vsel %vm1291, %v1531, 0
      %v1558 = vsel %vm1537, %v1526, 0
      %1560 = vmatpush.bf16.msra.mxu0 0
      %1561 = vmatpush.bf16.msra.mxu0 0
      %1562 = vmatpush.bf16.msra.mxu0 0
      %1563 = vmatpush.bf16.msra.mxu0 0
      %1564 = vmatpush.bf16.msra.mxu0 0
      %1565 = vmatpush.bf16.msra.mxu0 0
      %1566 = vmatpush.bf16.msra.mxu0 0
      %1567 = vmatpush.bf16.msra.mxu0 %v1558
      %1568 = vmatmul.bf16.gmra.mxu0 %v1555
      %v1569 = vpop.f32.mrf.mxu0
      %v1570 = vadd.f32 0.0, %v1569
      %v1571 = vpop.f32.mrf.mxu0
      %1572 = vdwg.mxu0
      %v1574 = vsel %vm1291, %v1532, 0
      %v1577 = vsel %vm1537, %v1527, 0
      %1579 = vmatpush.bf16.msra.mxu0 0
      %1580 = vmatpush.bf16.msra.mxu0 0
      %1581 = vmatpush.bf16.msra.mxu0 0
      %1582 = vmatpush.bf16.msra.mxu0 0
      %1583 = vmatpush.bf16.msra.mxu0 0
      %1584 = vmatpush.bf16.msra.mxu0 0
      %1585 = vmatpush.bf16.msra.mxu0 0
      %1586 = vmatpush.bf16.msra.mxu0 %v1577
      %1587 = vmatmul.bf16.gmra.mxu0 %v1574
      %v1588 = vpop.f32.mrf.mxu0
      %v1589 = vadd.f32 0.0, %v1588
      %v1590 = vpop.f32.mrf.mxu0
      %1591 = vdwg.mxu0
      %v1593 = vsel %vm1291, %v1533, 0
      %v1596 = vsel %vm1537, %v1528, 0
      %1598 = vmatpush.bf16.msra.mxu0 0
      %1599 = vmatpush.bf16.msra.mxu0 0
      %1600 = vmatpush.bf16.msra.mxu0 0
      %1601 = vmatpush.bf16.msra.mxu0 0
      %1602 = vmatpush.bf16.msra.mxu0 0
      %1603 = vmatpush.bf16.msra.mxu0 0
      %1604 = vmatpush.bf16.msra.mxu0 0
      %1605 = vmatpush.bf16.msra.mxu0 %v1596
      %1606 = vmatmul.bf16.gmra.mxu0 %v1593
      %v1607 = vpop.f32.mrf.mxu0
      %v1608 = vadd.f32 0.0, %v1607
      %v1609 = vpop.f32.mrf.mxu0
      %1610 = vdwg.mxu0
      %v1611 = vsel %vm1107, %v1551, 0.0
      %v1612 = vsel %vm1107, %v1570, 0.0
      %v1613 = vadd.f32 %v1611, %v1612
      %v1614 = vsel %vm1107, %v1589, 0.0
      %v1615 = vadd.f32 %v1613, %v1614
      %v1616 = vsel %vm1107, %v1608, 0.0
      %v1617 = vadd.f32 %v1615, %v1616
      %v1619 = vperm.slane %v1529, 0
      %v1621 = vadd.f32 %v1617, %v1619
      %v1622 = vadd.f32 %v1104, %v1621
      %v1623 = vld [vmem:[%s11] sm:$0x1]
      %v1624 = vld [vmem:[%s12] sm:$0x1]
      %v1625 = vsel %vm1107, %v1622, 0.0
      %1626 = vadd.xlane.f32.xlu0 %v1625
      %v1627 = vpop.xlane.xlu0 %1626
      %v1628 = vmul.f32 %v1627, %v1117
      %v1629 = vsub.f32 %v1622, %v1628
      %v1630 = vmul.f32 %v1629, %v1629
      %v1631 = vsel %vm1107, %v1630, 0.0
      %1632 = vadd.xlane.f32.xlu0 %v1631
      %v1633 = vpop.xlane.xlu0 %1632
      %v1634 = vmul.f32 %v1633, %v1117
      %v1635 = vadd.f32 %v1634, 1e-06
      %v1636 = vrsqrt.pop %v1635
      %v1637 = vmul.f32 %v1636, %v1635
      %v1638 = vmul.f32 %v1637, %v1636
      %v1639 = vmul.f32 0.5, %v1638
      %v1640 = vsub.f32 1.5, %v1639
      %v1641 = vmul.f32 %v1636, %v1640
      %vm1642 = vweird.f32 %v1635
      %vm1643 = vweird.f32 %v1636
      %vm1644 = vmor %vm1642, %vm1643
      %v1645 = vsel %vm1644, %v1636, %v1641
      %v1646 = vmul.f32 %v1629, %v1645
      %v1648 = vperm.slane %v1623, 0
      %v1650 = vmul.f32 %v1646, %v1648
      %v1652 = vperm.slane %v1624, 0
      %v1654 = vadd.f32 %v1650, %v1652
      %v1655 = vld [vmem:[%s13] sm:$0xf]
      %v1656 = vld [vmem:[%s13 + $0x4] sm:$0xf]
      %v1657 = vld [vmem:[%s13 + $0x8] sm:$0xf]
      %v1658 = vld [vmem:[%s13 + $0xc] sm:$0xf]
      %v1659 = vpack.c.bf16 %v1654, %v1654
      %v1660 = vld [vmem:[%s14] sm:$0x1]
      %v1662 = vperm.slane %v1660, 0
      %v1668 = vunpack.c.l.b16 %v1655
      %v1669 = vunpack.c.l.b16 %v1656
      %v1670 = vunpack.c.l.b16 %v1657
      %v1671 = vunpack.c.l.b16 %v1658
      %v1672 = vpack.c.b16 %v1669, %v1668
      %v1673 = vpack.c.b16 %v1671, %v1670
      %v1677 = vsel %vm1190, %v1659, 0
      %1679 = vmatpush.bf16.msra.mxu0 0
      %1680 = vmatpush.bf16.msra.mxu0 0
      %1681 = vmatpush.bf16.msra.mxu0 0
      %1682 = vmatpush.bf16.msra.mxu0 0
      %1683 = vmatpush.bf16.msra.mxu0 0
      %1684 = vmatpush.bf16.msra.mxu0 0
      %1685 = vmatpush.bf16.msra.mxu0 %v1673
      %1686 = vmatpush.bf16.msra.mxu0 %v1672
      %1687 = vmatmul.bf16.gmra.mxu0 %v1677
      %v1688 = vpop.f32.mrf.mxu0
      %v1689 = vadd.f32 %v1662, %v1688
      %v1690 = vpop.f32.mrf.mxu0
      %1691 = vdwg.mxu0
      %v1692 = vmul.f32 %v1689, %v1689
      %v1693 = vmul.f32 %v1689, %v1692
      %v1694 = vmul.f32 %v1693, 0.044715
      %v1695 = vadd.f32 %v1689, %v1694
      %v1696 = vmul.f32 %v1695, 0.7978846
      %v1697 = vtanh.pop %v1696
      %v1698 = vadd.f32 %v1697, 1.0
      %v1699 = vmul.f32 %v1698, 0.5
      %v1700 = vmul.f32 %v1689, %v1699
      %v1701 = vld [vmem:[%s15] sm:$0xf]
      %v1702 = vld [vmem:[%s15 + $0x4] sm:$0xf]
      %v1703 = vld [vmem:[%s15 + $0x8] sm:$0xf]
      %v1704 = vld [vmem:[%s15 + $0xc] sm:$0xf]
      %v1705 = vld [vmem:[%s15 + $0x10] sm:$0xf]
      %v1706 = vld [vmem:[%s15 + $0x14] sm:$0xf]
      %v1707 = vld [vmem:[%s15 + $0x18] sm:$0xf]
      %v1708 = vld [vmem:[%s15 + $0x1c] sm:$0xf]
      %v1709 = vld [vmem:[%s15 + $0x20] sm:$0xf]
      %v1710 = vld [vmem:[%s15 + $0x24] sm:$0xf]
      %v1711 = vld [vmem:[%s15 + $0x28] sm:$0xf]
      %v1712 = vld [vmem:[%s15 + $0x2c] sm:$0xf]
      %v1713 = vld [vmem:[%s15 + $0x30] sm:$0xf]
      %v1714 = vld [vmem:[%s15 + $0x34] sm:$0xf]
      %v1715 = vld [vmem:[%s15 + $0x38] sm:$0xf]
      %v1716 = vld [vmem:[%s15 + $0x3c] sm:$0xf]
      %v1717 = vpack.c.bf16 %v1700, %v1700
      %v1734 = vunpack.c.l.b16 %v1701
      %v1735 = vunpack.c.l.b16 %v1702
      %v1736 = vunpack.c.l.b16 %v1703
      %v1737 = vunpack.c.l.b16 %v1704
      %v1738 = vunpack.c.l.b16 %v1705
      %v1739 = vunpack.c.l.b16 %v1706
      %v1740 = vunpack.c.l.b16 %v1707
      %v1741 = vunpack.c.l.b16 %v1708
      %v1742 = vunpack.c.l.b16 %v1709
      %v1743 = vunpack.c.l.b16 %v1710
      %v1744 = vunpack.c.l.b16 %v1711
      %v1745 = vunpack.c.l.b16 %v1712
      %v1746 = vunpack.c.l.b16 %v1713
      %v1747 = vunpack.c.l.b16 %v1714
      %v1748 = vunpack.c.l.b16 %v1715
      %v1749 = vunpack.c.l.b16 %v1716
      %v1750 = vpack.c.b16 %v1735, %v1734
      %v1751 = vpack.c.b16 %v1737, %v1736
      %v1752 = vpack.c.b16 %v1739, %v1738
      %v1753 = vpack.c.b16 %v1741, %v1740
      %v1754 = vpack.c.b16 %v1743, %v1742
      %v1755 = vpack.c.b16 %v1745, %v1744
      %v1756 = vpack.c.b16 %v1747, %v1746
      %v1757 = vpack.c.b16 %v1749, %v1748
      %1766 = vmatpush.bf16.msra.mxu0 %v1757
      %1767 = vmatpush.bf16.msra.mxu0 %v1756
      %1768 = vmatpush.bf16.msra.mxu0 %v1755
      %1769 = vmatpush.bf16.msra.mxu0 %v1754
      %1770 = vmatpush.bf16.msra.mxu0 %v1753
      %1771 = vmatpush.bf16.msra.mxu0 %v1752
      %1772 = vmatpush.bf16.msra.mxu0 %v1751
      %1773 = vmatpush.bf16.msra.mxu0 %v1750
      %1774 = vmatmul.bf16.gmra.mxu0 %v1717
      %v1775 = vpop.f32.mrf.mxu0
      %v1776 = vadd.f32 0.0, %v1775
      %v1777 = vpop.f32.mrf.mxu0
      %1778 = vdwg.mxu0
      %v1779 = vadd.f32 %v1622, %v1776
      %v1780 = vld [vmem:[%s16] sm:$0x1]
      %v1782 = vperm.slane %v1780, 0
      %v1784 = vadd.f32 %v1779, %v1782
      %s1785 = scalar_lea.vmem %s5, 1
      %v1786 = vld [vmem:[%s1785] sm:$0x1]
      %s1787 = scalar_lea.vmem %s6, 1
      %v1788 = vld [vmem:[%s1787] sm:$0x1]
      %v1789 = vsel %vm1107, %v1784, 0.0
      %1790 = vadd.xlane.f32.xlu0 %v1789
      %v1791 = vpop.xlane.xlu0 %1790
      %v1792 = vmul.f32 %v1791, %v1117
      %v1793 = vsub.f32 %v1784, %v1792
      %v1794 = vmul.f32 %v1793, %v1793
      %v1795 = vsel %vm1107, %v1794, 0.0
      %1796 = vadd.xlane.f32.xlu0 %v1795
      %v1797 = vpop.xlane.xlu0 %1796
      %v1798 = vmul.f32 %v1797, %v1117
      %v1799 = vadd.f32 %v1798, 1e-06
      %v1800 = vrsqrt.pop %v1799
      %v1801 = vmul.f32 %v1800, %v1799
      %v1802 = vmul.f32 %v1801, %v1800
      %v1803 = vmul.f32 0.5, %v1802
      %v1804 = vsub.f32 1.5, %v1803
      %v1805 = vmul.f32 %v1800, %v1804
      %vm1806 = vweird.f32 %v1799
      %vm1807 = vweird.f32 %v1800
      %vm1808 = vmor %vm1806, %vm1807
      %v1809 = vsel %vm1808, %v1800, %v1805
      %v1810 = vmul.f32 %v1793, %v1809
      %v1812 = vperm.slane %v1786, 0
      %v1814 = vmul.f32 %v1810, %v1812
      %v1816 = vperm.slane %v1788, 0
      %v1818 = vadd.f32 %v1814, %v1816
      %v1819 = vpack.c.bf16 %v1818, %v1818
      %s1820 = scalar_lea.vmem %s7, 64
      %v1821 = vld [vmem:[%s1820] sm:$0xf]
      %v1822 = vld [vmem:[%s1820 + $0x4] sm:$0xf]
      %v1823 = vld [vmem:[%s1820 + $0x8] sm:$0xf]
      %v1824 = vld [vmem:[%s1820 + $0xc] sm:$0xf]
      %v1825 = vld [vmem:[%s1820 + $0x10] sm:$0xf]
      %v1826 = vld [vmem:[%s1820 + $0x14] sm:$0xf]
      %v1827 = vld [vmem:[%s1820 + $0x18] sm:$0xf]
      %v1828 = vld [vmem:[%s1820 + $0x1c] sm:$0xf]
      %v1829 = vld [vmem:[%s1820 + $0x20] sm:$0xf]
      %v1830 = vld [vmem:[%s1820 + $0x24] sm:$0xf]
      %v1831 = vld [vmem:[%s1820 + $0x28] sm:$0xf]
      %v1832 = vld [vmem:[%s1820 + $0x2c] sm:$0xf]
      %v1833 = vld [vmem:[%s1820 + $0x30] sm:$0xf]
      %v1834 = vld [vmem:[%s1820 + $0x34] sm:$0xf]
      %v1835 = vld [vmem:[%s1820 + $0x38] sm:$0xf]
      %v1836 = vld [vmem:[%s1820 + $0x3c] sm:$0xf]
      %s1837 = scalar_lea.vmem %s8, 4
      %v1838 = vld [vmem:[%s1837] sm:$0x1]
      %v1839 = vld [vmem:[%s1837 + $0x1] sm:$0x1]
      %v1840 = vld [vmem:[%s1837 + $0x2] sm:$0x1]
      %v1841 = vld [vmem:[%s1837 + $0x3] sm:$0x1]
      %v1846 = vperm.slane %v1838, 0
      %v1847 = vperm.slane %v1839, 0
      %v1848 = vperm.slane %v1840, 0
      %v1849 = vperm.slane %v1841, 0
      %v1858 = vunpack.c.l.b16 %v1821
      %v1859 = vunpack.c.l.b16 %v1822
      %v1860 = vunpack.c.l.b16 %v1823
      %v1861 = vunpack.c.l.b16 %v1824
      %v1862 = vpack.c.b16 %v1859, %v1858
      %v1863 = vpack.c.b16 %v1861, %v1860
      %v1867 = vsel %vm1190, %v1819, 0
      %1869 = vmatpush.bf16.msra.mxu0 0
      %1870 = vmatpush.bf16.msra.mxu0 0
      %1871 = vmatpush.bf16.msra.mxu0 0
      %1872 = vmatpush.bf16.msra.mxu0 0
      %1873 = vmatpush.bf16.msra.mxu0 0
      %1874 = vmatpush.bf16.msra.mxu0 0
      %1875 = vmatpush.bf16.msra.mxu0 %v1863
      %1876 = vmatpush.bf16.msra.mxu0 %v1862
      %1877 = vmatmul.bf16.gmra.mxu0 %v1867
      %v1878 = vpop.f32.mrf.mxu0
      %v1879 = vadd.f32 %v1846, %v1878
      %v1880 = vpop.f32.mrf.mxu0
      %1881 = vdwg.mxu0
      %v1886 = vunpack.c.l.b16 %v1825
      %v1887 = vunpack.c.l.b16 %v1826
      %v1888 = vunpack.c.l.b16 %v1827
      %v1889 = vunpack.c.l.b16 %v1828
      %v1890 = vpack.c.b16 %v1887, %v1886
      %v1891 = vpack.c.b16 %v1889, %v1888
      %1894 = vmatpush.bf16.msra.mxu0 0
      %1895 = vmatpush.bf16.msra.mxu0 0
      %1896 = vmatpush.bf16.msra.mxu0 0
      %1897 = vmatpush.bf16.msra.mxu0 0
      %1898 = vmatpush.bf16.msra.mxu0 0
      %1899 = vmatpush.bf16.msra.mxu0 0
      %1900 = vmatpush.bf16.msra.mxu0 %v1891
      %1901 = vmatpush.bf16.msra.mxu0 %v1890
      %1902 = vmatmul.bf16.gmra.mxu0 %v1867
      %v1903 = vpop.f32.mrf.mxu0
      %v1904 = vadd.f32 %v1847, %v1903
      %v1905 = vpop.f32.mrf.mxu0
      %1906 = vdwg.mxu0
      %v1911 = vunpack.c.l.b16 %v1829
      %v1912 = vunpack.c.l.b16 %v1830
      %v1913 = vunpack.c.l.b16 %v1831
      %v1914 = vunpack.c.l.b16 %v1832
      %v1915 = vpack.c.b16 %v1912, %v1911
      %v1916 = vpack.c.b16 %v1914, %v1913
      %1919 = vmatpush.bf16.msra.mxu0 0
      %1920 = vmatpush.bf16.msra.mxu0 0
      %1921 = vmatpush.bf16.msra.mxu0 0
      %1922 = vmatpush.bf16.msra.mxu0 0
      %1923 = vmatpush.bf16.msra.mxu0 0
      %1924 = vmatpush.bf16.msra.mxu0 0
      %1925 = vmatpush.bf16.msra.mxu0 %v1916
      %1926 = vmatpush.bf16.msra.mxu0 %v1915
      %1927 = vmatmul.bf16.gmra.mxu0 %v1867
      %v1928 = vpop.f32.mrf.mxu0
      %v1929 = vadd.f32 %v1848, %v1928
      %v1930 = vpop.f32.mrf.mxu0
      %1931 = vdwg.mxu0
      %v1936 = vunpack.c.l.b16 %v1833
      %v1937 = vunpack.c.l.b16 %v1834
      %v1938 = vunpack.c.l.b16 %v1835
      %v1939 = vunpack.c.l.b16 %v1836
      %v1940 = vpack.c.b16 %v1937, %v1936
      %v1941 = vpack.c.b16 %v1939, %v1938
      %1944 = vmatpush.bf16.msra.mxu0 0
      %1945 = vmatpush.bf16.msra.mxu0 0
      %1946 = vmatpush.bf16.msra.mxu0 0
      %1947 = vmatpush.bf16.msra.mxu0 0
      %1948 = vmatpush.bf16.msra.mxu0 0
      %1949 = vmatpush.bf16.msra.mxu0 0
      %1950 = vmatpush.bf16.msra.mxu0 %v1941
      %1951 = vmatpush.bf16.msra.mxu0 %v1940
      %1952 = vmatmul.bf16.gmra.mxu0 %v1867
      %v1953 = vpop.f32.mrf.mxu0
      %v1954 = vadd.f32 %v1849, %v1953
      %v1955 = vpop.f32.mrf.mxu0
      %1956 = vdwg.mxu0
      %v1957 = vpack.c.bf16 %v1879, %v1879
      %v1958 = vpack.c.bf16 %v1904, %v1904
      %v1959 = vpack.c.bf16 %v1929, %v1929
      %v1960 = vpack.c.bf16 %v1954, %v1954
      %v1962 = vunpack.c.l.b16 %v1957
      %v1963 = vpack.c.b16 %v1962, %v1962
      %1964 = vrot.lane.b32.xlu0 %v1963, 120
      %v1965 = vpop.permute.xlu0 %1964
      %v1967 = vsel %vm1291, %v1957, 0
      %v1970 = vsel %vm1291, %v1965, 0
      %1972 = vmatpush.bf16.xpose.msra.mxu0 0
      %1973 = vmatpush.bf16.xpose.msra.mxu0 0
      %1974 = vmatpush.bf16.xpose.msra.mxu0 0
      %1975 = vmatpush.bf16.xpose.msra.mxu0 0
      %1976 = vmatpush.bf16.xpose.msra.mxu0 0
      %1977 = vmatpush.bf16.xpose.msra.mxu0 0
      %1978 = vmatpush.bf16.xpose.msra.mxu0 0
      %1979 = vmatpush.bf16.xpose.msra.mxu0 %v1970
      %1980 = vmatmul.bf16.gmra.mxu0 %v1967
      %v1981 = vpop.f32.mrf.mxu0
      %v1982 = vadd.f32 0.0, %v1981
      %v1983 = vpop.f32.mrf.mxu0
      %1984 = vdwg.mxu0
      %v1986 = vunpack.c.l.b16 %v1958
      %v1987 = vpack.c.b16 %v1986, %v1986
      %1988 = vrot.lane.b32.xlu0 %v1987, 120
      %v1989 = vpop.permute.xlu0 %1988
      %v1991 = vsel %vm1291, %v1958, 0
      %v1994 = vsel %vm1291, %v1989, 0
      %1996 = vmatpush.bf16.xpose.msra.mxu0 0
      %1997 = vmatpush.bf16.xpose.msra.mxu0 0
      %1998 = vmatpush.bf16.xpose.msra.mxu0 0
      %1999 = vmatpush.bf16.xpose.msra.mxu0 0
      %2000 = vmatpush.bf16.xpose.msra.mxu0 0
      %2001 = vmatpush.bf16.xpose.msra.mxu0 0
      %2002 = vmatpush.bf16.xpose.msra.mxu0 0
      %2003 = vmatpush.bf16.xpose.msra.mxu0 %v1994
      %2004 = vmatmul.bf16.gmra.mxu0 %v1991
      %v2005 = vpop.f32.mrf.mxu0
      %v2006 = vadd.f32 0.0, %v2005
      %v2007 = vpop.f32.mrf.mxu0
      %2008 = vdwg.mxu0
      %v2010 = vunpack.c.l.b16 %v1959
      %v2011 = vpack.c.b16 %v2010, %v2010
      %2012 = vrot.lane.b32.xlu0 %v2011, 120
      %v2013 = vpop.permute.xlu0 %2012
      %v2015 = vsel %vm1291, %v1959, 0
      %v2018 = vsel %vm1291, %v2013, 0
      %2020 = vmatpush.bf16.xpose.msra.mxu0 0
      %2021 = vmatpush.bf16.xpose.msra.mxu0 0
      %2022 = vmatpush.bf16.xpose.msra.mxu0 0
      %2023 = vmatpush.bf16.xpose.msra.mxu0 0
      %2024 = vmatpush.bf16.xpose.msra.mxu0 0
      %2025 = vmatpush.bf16.xpose.msra.mxu0 0
      %2026 = vmatpush.bf16.xpose.msra.mxu0 0
      %2027 = vmatpush.bf16.xpose.msra.mxu0 %v2018
      %2028 = vmatmul.bf16.gmra.mxu0 %v2015
      %v2029 = vpop.f32.mrf.mxu0
      %v2030 = vadd.f32 0.0, %v2029
      %v2031 = vpop.f32.mrf.mxu0
      %2032 = vdwg.mxu0
      %v2034 = vunpack.c.l.b16 %v1960
      %v2035 = vpack.c.b16 %v2034, %v2034
      %2036 = vrot.lane.b32.xlu0 %v2035, 120
      %v2037 = vpop.permute.xlu0 %2036
      %v2039 = vsel %vm1291, %v1960, 0
      %v2042 = vsel %vm1291, %v2037, 0
      %2044 = vmatpush.bf16.xpose.msra.mxu0 0
      %2045 = vmatpush.bf16.xpose.msra.mxu0 0
      %2046 = vmatpush.bf16.xpose.msra.mxu0 0
      %2047 = vmatpush.bf16.xpose.msra.mxu0 0
      %2048 = vmatpush.bf16.xpose.msra.mxu0 0
      %2049 = vmatpush.bf16.xpose.msra.mxu0 0
      %2050 = vmatpush.bf16.xpose.msra.mxu0 0
      %2051 = vmatpush.bf16.xpose.msra.mxu0 %v2042
      %2052 = vmatmul.bf16.gmra.mxu0 %v2039
      %v2053 = vpop.f32.mrf.mxu0
      %v2054 = vadd.f32 0.0, %v2053
      %v2055 = vpop.f32.mrf.mxu0
      %2056 = vdwg.mxu0
      %v2057 = vmul.f32 %v1982, 0.35355338
      %v2058 = vmul.f32 %v2006, 0.35355338
      %v2059 = vmul.f32 %v2030, 0.35355338
      %v2060 = vmul.f32 %v2054, 0.35355338
      %v2061 = vsel %vm1387, %v2057, -inf
      %2062 = vmax.xlane.f32.xlu0 %v2061
      %v2063 = vpop.xlane.xlu0 %2062
      %v2064 = vsel %vm1387, %v2058, -inf
      %2065 = vmax.xlane.f32.xlu0 %v2064
      %v2066 = vpop.xlane.xlu0 %2065
      %v2067 = vsel %vm1387, %v2059, -inf
      %2068 = vmax.xlane.f32.xlu0 %v2067
      %v2069 = vpop.xlane.xlu0 %2068
      %v2070 = vsel %vm1387, %v2060, -inf
      %2071 = vmax.xlane.f32.xlu0 %v2070
      %v2072 = vpop.xlane.xlu0 %2071
      %v2073 = vsub.f32 %v2057, %v2063
      %v2074 = vsub.f32 %v2058, %v2066
      %v2075 = vsub.f32 %v2059, %v2069
      %v2076 = vsub.f32 %v2060, %v2072
      %v2077 = vmul.f32 %v2073, 1.442695
      %v2078 = vpow.pop %v2077
      %v2079 = vmul.f32 %v2074, 1.442695
      %v2080 = vpow.pop %v2079
      %v2081 = vmul.f32 %v2075, 1.442695
      %v2082 = vpow.pop %v2081
      %v2083 = vmul.f32 %v2076, 1.442695
      %v2084 = vpow.pop %v2083
      %v2085 = vsel %vm1387, %v2078, 0.0
      %2086 = vadd.xlane.f32.xlu0 %v2085
      %v2087 = vpop.xlane.xlu0 %2086
      %v2088 = vsel %vm1387, %v2080, 0.0
      %2089 = vadd.xlane.f32.xlu0 %v2088
      %v2090 = vpop.xlane.xlu0 %2089
      %v2091 = vsel %vm1387, %v2082, 0.0
      %2092 = vadd.xlane.f32.xlu0 %v2091
      %v2093 = vpop.xlane.xlu0 %2092
      %v2094 = vsel %vm1387, %v2084, 0.0
      %2095 = vadd.xlane.f32.xlu0 %v2094
      %v2096 = vpop.xlane.xlu0 %2095
      %v2097 = vrcp.pop %v2087
      %v2098 = vrcp.pop %v2090
      %v2099 = vrcp.pop %v2093
      %v2100 = vrcp.pop %v2096
      %v2101 = vmul.f32 %v2078, %v2097
      %v2102 = vmul.f32 %v2080, %v2098
      %v2103 = vmul.f32 %v2082, %v2099
      %v2104 = vmul.f32 %v2084, %v2100
      %v2105 = vpack.c.bf16 %v2101, %v2101
      %v2106 = vpack.c.bf16 %v2102, %v2102
      %v2107 = vpack.c.bf16 %v2103, %v2103
      %v2108 = vpack.c.bf16 %v2104, %v2104
      %2109 = vrot.lane.b32.xlu0 %v1963, 112
      %v2110 = vpop.permute.xlu0 %2109
      %v2112 = vsel %vm1438, %v2105, 0
      %v2115 = vand.u32 %v2110, %v1445
      %2117 = vmatpush.bf16.msra.mxu0 0
      %2118 = vmatpush.bf16.msra.mxu0 0
      %2119 = vmatpush.bf16.msra.mxu0 0
      %2120 = vmatpush.bf16.msra.mxu0 0
      %2121 = vmatpush.bf16.msra.mxu0 0
      %2122 = vmatpush.bf16.msra.mxu0 0
      %2123 = vmatpush.bf16.msra.mxu0 0
      %2124 = vmatpush.bf16.msra.mxu0 %v2115
      %2125 = vmatmul.bf16.gmra.mxu0 %v2112
      %v2126 = vpop.f32.mrf.mxu0
      %v2127 = vadd.f32 0.0, %v2126
      %v2128 = vpop.f32.mrf.mxu0
      %2129 = vdwg.mxu0
      %2130 = vrot.lane.b32.xlu0 %v1987, 112
      %v2131 = vpop.permute.xlu0 %2130
      %v2133 = vsel %vm1438, %v2106, 0
      %v2136 = vand.u32 %v2131, %v1445
      %2138 = vmatpush.bf16.msra.mxu0 0
      %2139 = vmatpush.bf16.msra.mxu0 0
      %2140 = vmatpush.bf16.msra.mxu0 0
      %2141 = vmatpush.bf16.msra.mxu0 0
      %2142 = vmatpush.bf16.msra.mxu0 0
      %2143 = vmatpush.bf16.msra.mxu0 0
      %2144 = vmatpush.bf16.msra.mxu0 0
      %2145 = vmatpush.bf16.msra.mxu0 %v2136
      %2146 = vmatmul.bf16.gmra.mxu0 %v2133
      %v2147 = vpop.f32.mrf.mxu0
      %v2148 = vadd.f32 0.0, %v2147
      %v2149 = vpop.f32.mrf.mxu0
      %2150 = vdwg.mxu0
      %2151 = vrot.lane.b32.xlu0 %v2011, 112
      %v2152 = vpop.permute.xlu0 %2151
      %v2154 = vsel %vm1438, %v2107, 0
      %v2157 = vand.u32 %v2152, %v1445
      %2159 = vmatpush.bf16.msra.mxu0 0
      %2160 = vmatpush.bf16.msra.mxu0 0
      %2161 = vmatpush.bf16.msra.mxu0 0
      %2162 = vmatpush.bf16.msra.mxu0 0
      %2163 = vmatpush.bf16.msra.mxu0 0
      %2164 = vmatpush.bf16.msra.mxu0 0
      %2165 = vmatpush.bf16.msra.mxu0 0
      %2166 = vmatpush.bf16.msra.mxu0 %v2157
      %2167 = vmatmul.bf16.gmra.mxu0 %v2154
      %v2168 = vpop.f32.mrf.mxu0
      %v2169 = vadd.f32 0.0, %v2168
      %v2170 = vpop.f32.mrf.mxu0
      %2171 = vdwg.mxu0
      %2172 = vrot.lane.b32.xlu0 %v2035, 112
      %v2173 = vpop.permute.xlu0 %2172
      %v2175 = vsel %vm1438, %v2108, 0
      %v2178 = vand.u32 %v2173, %v1445
      %2180 = vmatpush.bf16.msra.mxu0 0
      %2181 = vmatpush.bf16.msra.mxu0 0
      %2182 = vmatpush.bf16.msra.mxu0 0
      %2183 = vmatpush.bf16.msra.mxu0 0
      %2184 = vmatpush.bf16.msra.mxu0 0
      %2185 = vmatpush.bf16.msra.mxu0 0
      %2186 = vmatpush.bf16.msra.mxu0 0
      %2187 = vmatpush.bf16.msra.mxu0 %v2178
      %2188 = vmatmul.bf16.gmra.mxu0 %v2175
      %v2189 = vpop.f32.mrf.mxu0
      %v2190 = vadd.f32 0.0, %v2189
      %v2191 = vpop.f32.mrf.mxu0
      %2192 = vdwg.mxu0
      %s2193 = scalar_lea.vmem %s9, 16
      %v2194 = vld [vmem:[%s2193] sm:$0xf]
      %v2195 = vld [vmem:[%s2193 + $0x4] sm:$0xf]
      %v2196 = vld [vmem:[%s2193 + $0x8] sm:$0xf]
      %v2197 = vld [vmem:[%s2193 + $0xc] sm:$0xf]
      %s2198 = scalar_lea.vmem %s10, 1
      %v2199 = vld [vmem:[%s2198] sm:$0x1]
      %v2200 = vpack.c.bf16 %v2127, %v2127
      %v2201 = vpack.c.bf16 %v2148, %v2148
      %v2202 = vpack.c.bf16 %v2169, %v2169
      %v2203 = vpack.c.bf16 %v2190, %v2190
      %v2205 = vsel %vm1291, %v2200, 0
      %v2208 = vsel %vm1537, %v2194, 0
      %2210 = vmatpush.bf16.msra.mxu0 0
      %2211 = vmatpush.bf16.msra.mxu0 0
      %2212 = vmatpush.bf16.msra.mxu0 0
      %2213 = vmatpush.bf16.msra.mxu0 0
      %2214 = vmatpush.bf16.msra.mxu0 0
      %2215 = vmatpush.bf16.msra.mxu0 0
      %2216 = vmatpush.bf16.msra.mxu0 0
      %2217 = vmatpush.bf16.msra.mxu0 %v2208
      %2218 = vmatmul.bf16.gmra.mxu0 %v2205
      %v2219 = vpop.f32.mrf.mxu0
      %v2220 = vadd.f32 0.0, %v2219
      %v2221 = vpop.f32.mrf.mxu0
      %2222 = vdwg.mxu0
      %v2224 = vsel %vm1291, %v2201, 0
      %v2227 = vsel %vm1537, %v2195, 0
      %2229 = vmatpush.bf16.msra.mxu0 0
      %2230 = vmatpush.bf16.msra.mxu0 0
      %2231 = vmatpush.bf16.msra.mxu0 0
      %2232 = vmatpush.bf16.msra.mxu0 0
      %2233 = vmatpush.bf16.msra.mxu0 0
      %2234 = vmatpush.bf16.msra.mxu0 0
      %2235 = vmatpush.bf16.msra.mxu0 0
      %2236 = vmatpush.bf16.msra.mxu0 %v2227
      %2237 = vmatmul.bf16.gmra.mxu0 %v2224
      %v2238 = vpop.f32.mrf.mxu0
      %v2239 = vadd.f32 0.0, %v2238
      %v2240 = vpop.f32.mrf.mxu0
      %2241 = vdwg.mxu0
      %v2243 = vsel %vm1291, %v2202, 0
      %v2246 = vsel %vm1537, %v2196, 0
      %2248 = vmatpush.bf16.msra.mxu0 0
      %2249 = vmatpush.bf16.msra.mxu0 0
      %2250 = vmatpush.bf16.msra.mxu0 0
      %2251 = vmatpush.bf16.msra.mxu0 0
      %2252 = vmatpush.bf16.msra.mxu0 0
      %2253 = vmatpush.bf16.msra.mxu0 0
      %2254 = vmatpush.bf16.msra.mxu0 0
      %2255 = vmatpush.bf16.msra.mxu0 %v2246
      %2256 = vmatmul.bf16.gmra.mxu0 %v2243
      %v2257 = vpop.f32.mrf.mxu0
      %v2258 = vadd.f32 0.0, %v2257
      %v2259 = vpop.f32.mrf.mxu0
      %2260 = vdwg.mxu0
      %v2262 = vsel %vm1291, %v2203, 0
      %v2265 = vsel %vm1537, %v2197, 0
      %2267 = vmatpush.bf16.msra.mxu0 0
      %2268 = vmatpush.bf16.msra.mxu0 0
      %2269 = vmatpush.bf16.msra.mxu0 0
      %2270 = vmatpush.bf16.msra.mxu0 0
      %2271 = vmatpush.bf16.msra.mxu0 0
      %2272 = vmatpush.bf16.msra.mxu0 0
      %2273 = vmatpush.bf16.msra.mxu0 0
      %2274 = vmatpush.bf16.msra.mxu0 %v2265
      %2275 = vmatmul.bf16.gmra.mxu0 %v2262
      %v2276 = vpop.f32.mrf.mxu0
      %v2277 = vadd.f32 0.0, %v2276
      %v2278 = vpop.f32.mrf.mxu0
      %2279 = vdwg.mxu0
      %v2280 = vsel %vm1107, %v2220, 0.0
      %v2281 = vsel %vm1107, %v2239, 0.0
      %v2282 = vadd.f32 %v2280, %v2281
      %v2283 = vsel %vm1107, %v2258, 0.0
      %v2284 = vadd.f32 %v2282, %v2283
      %v2285 = vsel %vm1107, %v2277, 0.0
      %v2286 = vadd.f32 %v2284, %v2285
      %v2288 = vperm.slane %v2199, 0
      %v2290 = vadd.f32 %v2286, %v2288
      %v2291 = vadd.f32 %v1784, %v2290
      %s2292 = scalar_lea.vmem %s11, 1
      %v2293 = vld [vmem:[%s2292] sm:$0x1]
      %s2294 = scalar_lea.vmem %s12, 1
      %v2295 = vld [vmem:[%s2294] sm:$0x1]
      %v2296 = vsel %vm1107, %v2291, 0.0
      %2297 = vadd.xlane.f32.xlu0 %v2296
      %v2298 = vpop.xlane.xlu0 %2297
      %v2299 = vmul.f32 %v2298, %v1117
      %v2300 = vsub.f32 %v2291, %v2299
      %v2301 = vmul.f32 %v2300, %v2300
      %v2302 = vsel %vm1107, %v2301, 0.0
      %2303 = vadd.xlane.f32.xlu0 %v2302
      %v2304 = vpop.xlane.xlu0 %2303
      %v2305 = vmul.f32 %v2304, %v1117
      %v2306 = vadd.f32 %v2305, 1e-06
      %v2307 = vrsqrt.pop %v2306
      %v2308 = vmul.f32 %v2307, %v2306
      %v2309 = vmul.f32 %v2308, %v2307
      %v2310 = vmul.f32 0.5, %v2309
      %v2311 = vsub.f32 1.5, %v2310
      %v2312 = vmul.f32 %v2307, %v2311
      %vm2313 = vweird.f32 %v2306
      %vm2314 = vweird.f32 %v2307
      %vm2315 = vmor %vm2313, %vm2314
      %v2316 = vsel %vm2315, %v2307, %v2312
      %v2317 = vmul.f32 %v2300, %v2316
      %v2319 = vperm.slane %v2293, 0
      %v2321 = vmul.f32 %v2317, %v2319
      %v2323 = vperm.slane %v2295, 0
      %v2325 = vadd.f32 %v2321, %v2323
      %s2326 = scalar_lea.vmem %s13, 16
      %v2327 = vld [vmem:[%s2326] sm:$0xf]
      %v2328 = vld [vmem:[%s2326 + $0x4] sm:$0xf]
      %v2329 = vld [vmem:[%s2326 + $0x8] sm:$0xf]
      %v2330 = vld [vmem:[%s2326 + $0xc] sm:$0xf]
      %v2331 = vpack.c.bf16 %v2325, %v2325
      %s2332 = scalar_lea.vmem %s14, 1
      %v2333 = vld [vmem:[%s2332] sm:$0x1]
      %v2335 = vperm.slane %v2333, 0
      %v2341 = vunpack.c.l.b16 %v2327
      %v2342 = vunpack.c.l.b16 %v2328
      %v2343 = vunpack.c.l.b16 %v2329
      %v2344 = vunpack.c.l.b16 %v2330
      %v2345 = vpack.c.b16 %v2342, %v2341
      %v2346 = vpack.c.b16 %v2344, %v2343
      %v2350 = vsel %vm1190, %v2331, 0
      %2352 = vmatpush.bf16.msra.mxu0 0
      %2353 = vmatpush.bf16.msra.mxu0 0
      %2354 = vmatpush.bf16.msra.mxu0 0
      %2355 = vmatpush.bf16.msra.mxu0 0
      %2356 = vmatpush.bf16.msra.mxu0 0
      %2357 = vmatpush.bf16.msra.mxu0 0
      %2358 = vmatpush.bf16.msra.mxu0 %v2346
      %2359 = vmatpush.bf16.msra.mxu0 %v2345
      %2360 = vmatmul.bf16.gmra.mxu0 %v2350
      %v2361 = vpop.f32.mrf.mxu0
      %v2362 = vadd.f32 %v2335, %v2361
      %v2363 = vpop.f32.mrf.mxu0
      %2364 = vdwg.mxu0
      %v2365 = vmul.f32 %v2362, %v2362
      %v2366 = vmul.f32 %v2362, %v2365
      %v2367 = vmul.f32 %v2366, 0.044715
      %v2368 = vadd.f32 %v2362, %v2367
      %v2369 = vmul.f32 %v2368, 0.7978846
      %v2370 = vtanh.pop %v2369
      %v2371 = vadd.f32 %v2370, 1.0
      %v2372 = vmul.f32 %v2371, 0.5
      %v2373 = vmul.f32 %v2362, %v2372
      %s2374 = scalar_lea.vmem %s15, 64
      %v2375 = vld [vmem:[%s2374] sm:$0xf]
      %v2376 = vld [vmem:[%s2374 + $0x4] sm:$0xf]
      %v2377 = vld [vmem:[%s2374 + $0x8] sm:$0xf]
      %v2378 = vld [vmem:[%s2374 + $0xc] sm:$0xf]
      %v2379 = vld [vmem:[%s2374 + $0x10] sm:$0xf]
      %v2380 = vld [vmem:[%s2374 + $0x14] sm:$0xf]
      %v2381 = vld [vmem:[%s2374 + $0x18] sm:$0xf]
      %v2382 = vld [vmem:[%s2374 + $0x1c] sm:$0xf]
      %v2383 = vld [vmem:[%s2374 + $0x20] sm:$0xf]
      %v2384 = vld [vmem:[%s2374 + $0x24] sm:$0xf]
      %v2385 = vld [vmem:[%s2374 + $0x28] sm:$0xf]
      %v2386 = vld [vmem:[%s2374 + $0x2c] sm:$0xf]
      %v2387 = vld [vmem:[%s2374 + $0x30] sm:$0xf]
      %v2388 = vld [vmem:[%s2374 + $0x34] sm:$0xf]
      %v2389 = vld [vmem:[%s2374 + $0x38] sm:$0xf]
      %v2390 = vld [vmem:[%s2374 + $0x3c] sm:$0xf]
      %v2391 = vpack.c.bf16 %v2373, %v2373
      %v2408 = vunpack.c.l.b16 %v2375
      %v2409 = vunpack.c.l.b16 %v2376
      %v2410 = vunpack.c.l.b16 %v2377
      %v2411 = vunpack.c.l.b16 %v2378
      %v2412 = vunpack.c.l.b16 %v2379
      %v2413 = vunpack.c.l.b16 %v2380
      %v2414 = vunpack.c.l.b16 %v2381
      %v2415 = vunpack.c.l.b16 %v2382
      %v2416 = vunpack.c.l.b16 %v2383
      %v2417 = vunpack.c.l.b16 %v2384
      %v2418 = vunpack.c.l.b16 %v2385
      %v2419 = vunpack.c.l.b16 %v2386
      %v2420 = vunpack.c.l.b16 %v2387
      %v2421 = vunpack.c.l.b16 %v2388
      %v2422 = vunpack.c.l.b16 %v2389
      %v2423 = vunpack.c.l.b16 %v2390
      %v2424 = vpack.c.b16 %v2409, %v2408
      %v2425 = vpack.c.b16 %v2411, %v2410
      %v2426 = vpack.c.b16 %v2413, %v2412
      %v2427 = vpack.c.b16 %v2415, %v2414
      %v2428 = vpack.c.b16 %v2417, %v2416
      %v2429 = vpack.c.b16 %v2419, %v2418
      %v2430 = vpack.c.b16 %v2421, %v2420
      %v2431 = vpack.c.b16 %v2423, %v2422
      %2440 = vmatpush.bf16.msra.mxu0 %v2431
      %2441 = vmatpush.bf16.msra.mxu0 %v2430
      %2442 = vmatpush.bf16.msra.mxu0 %v2429
      %2443 = vmatpush.bf16.msra.mxu0 %v2428
      %2444 = vmatpush.bf16.msra.mxu0 %v2427
      %2445 = vmatpush.bf16.msra.mxu0 %v2426
      %2446 = vmatpush.bf16.msra.mxu0 %v2425
      %2447 = vmatpush.bf16.msra.mxu0 %v2424
      %2448 = vmatmul.bf16.gmra.mxu0 %v2391
      %v2449 = vpop.f32.mrf.mxu0
      %v2450 = vadd.f32 0.0, %v2449
      %v2451 = vpop.f32.mrf.mxu0
      %2452 = vdwg.mxu0
      %v2453 = vadd.f32 %v2291, %v2450
      %s2454 = scalar_lea.vmem %s16, 1
      %v2455 = vld [vmem:[%s2454] sm:$0x1]
      %v2457 = vperm.slane %v2455, 0
      %v2459 = vadd.f32 %v2453, %v2457
      %v2460 = vld [vmem:[%s17] sm:$0x1]
      %v2461 = vld [vmem:[%s18] sm:$0x1]
      %v2462 = vsel %vm1107, %v2459, 0.0
      %2463 = vadd.xlane.f32.xlu0 %v2462
      %v2464 = vpop.xlane.xlu0 %2463
      %v2465 = vmul.f32 %v2464, %v1117
      %v2466 = vsub.f32 %v2459, %v2465
      %v2467 = vmul.f32 %v2466, %v2466
      %v2468 = vsel %vm1107, %v2467, 0.0
      %2469 = vadd.xlane.f32.xlu0 %v2468
      %v2470 = vpop.xlane.xlu0 %2469
      %v2471 = vmul.f32 %v2470, %v1117
      %v2472 = vadd.f32 %v2471, 1e-06
      %v2473 = vrsqrt.pop %v2472
      %v2474 = vmul.f32 %v2473, %v2472
      %v2475 = vmul.f32 %v2474, %v2473
      %v2476 = vmul.f32 0.5, %v2475
      %v2477 = vsub.f32 1.5, %v2476
      %v2478 = vmul.f32 %v2473, %v2477
      %vm2479 = vweird.f32 %v2472
      %vm2480 = vweird.f32 %v2473
      %vm2481 = vmor %vm2479, %vm2480
      %v2482 = vsel %vm2481, %v2473, %v2478
      %v2483 = vmul.f32 %v2466, %v2482
      %v2485 = vperm.slane %v2460, 0
      %v2487 = vmul.f32 %v2483, %v2485
      %v2489 = vperm.slane %v2461, 0
      %v2491 = vadd.f32 %v2487, %v2489
      %2492 = vst.msk [vmem:[%s600] sm:$0x1f] %vm1107, %v2491
      %p2493 = scmp.lt.s32.totalorder %s30, 1
      %s2494 = scalar_select %p2493, %s30, 1
      %s2495 = smul.addr %s2494, 8
      %s2496 = scalar_lea.vmem %s19, %s2495
      // Predicated region
      $region97: #{albef_forward_train.4} parent=95 // pred_check
        %p2497 = pneg %p452
      $region98: #{albef_forward_train.4} parent=95 // pred_check_branch
        %2499 = sbr.rel (%p2497) target = $region100
      $region99: #{albef_forward_train.4} parent=95 // pred_region
        _
      $region100: #{albef_forward_train.4} parent=95 // pred_fallthru
        _
    $region96: #{albef_forward_train.4} parent=5 // pred_fallthru
      _
    %p2500 = scmp.le.s32.totalorder 2, %s25
    // Predicated region
    $region101: #{albef_forward_train.4} parent=5 // pred_check
      %p2501 = pneg %p2500
    $region102: #{albef_forward_train.4} parent=5 // pred_check_branch
      %2503 = sbr.rel (%p2501) target = $region104
    $region103: #{albef_forward_train.4} parent=5 // pred_region
      %s2504 = ssub.s32 %s25, 2
      // Predicated region
      $region105: #{albef_forward_train.4} parent=103 // pred_check
        %p2505 = pneg %p458
      $region106: #{albef_forward_train.4} parent=103 // pred_check_branch
        %2507 = sbr.rel (%p2505) target = $region108
      $region107: #{albef_forward_train.4} parent=103 // pred_region
        %p2508 = scmp.lt.s32.totalorder %s31, 1
        %s2509 = scalar_select %p2508, %s31, 1
        %s2510 = smul.addr %s2509, 8
        %s2511 = scalar_lea.vmem %s19, %s2510
      $region108: #{albef_forward_train.4} parent=103 // pred_fallthru
        _
    $region104: #{albef_forward_train.4} parent=5 // pred_fallthru
      _
  $region6: #{albef_forward_train.4} parent=0 // loop_footer
    %s29 = sadd.s32 1, %s25
  $region7: #{albef_forward_train.4} parent=0 // loop_footer_branch
    %24 = sbr.rel target = $region3
  $region8: #{albef_forward_train.4} parent=0 // loop_exit
    _

// kernel: albef_forward_train.7
$region0: #{albef_forward_train.7}
  #allocation0 [shape = 'u32[]', space=smem, size = 0x4, offset = 0x4, fixed_abs, tag = 'smem constant byte address 0x4 - core index']
  #allocation1 [shape = 'u32[72,128]{1,0:T(1,128)}', space=vmem, size = 0x9000, scoped, tag = 'internal scratch']
  %s0 = inlined_call_operand.vmem [shape: f32[6,8,32], index: 0, kind: input, shape index: {}]
  %s1 = inlined_call_operand.vmem [shape: f32[6,1,8], index: 1, kind: input, shape index: {}]
  %s2 = inlined_call_operand.vmem [shape: f32[6,5,32], index: 2, kind: input, shape index: {}]
  %s3 = inlined_call_operand.vmem [shape: bf16[2,4,32,24], index: 3, kind: input, shape index: {}]
  %s4 = inlined_call_operand.vmem [shape: f32[2,4,1,24], index: 4, kind: input, shape index: {}]
  %s5 = inlined_call_operand.vmem [shape: bf16[2,4,8,32], index: 5, kind: input, shape index: {}]
  %s6 = inlined_call_operand.vmem [shape: f32[2,1,32], index: 6, kind: input, shape index: {}]
  %s7 = inlined_call_operand.vmem [shape: f32[2,1,32], index: 7, kind: input, shape index: {}]
  %s8 = inlined_call_operand.vmem [shape: f32[2,1,32], index: 8, kind: input, shape index: {}]
  %s9 = inlined_call_operand.vmem [shape: bf16[2,4,32,8], index: 9, kind: input, shape index: {}]
  %s10 = inlined_call_operand.vmem [shape: f32[2,4,1,8], index: 10, kind: input, shape index: {}]
  %s11 = inlined_call_operand.vmem [shape: bf16[2,4,32,16], index: 11, kind: input, shape index: {}]
  %s12 = inlined_call_operand.vmem [shape: f32[2,4,1,16], index: 12, kind: input, shape index: {}]
  %s13 = inlined_call_operand.vmem [shape: bf16[2,4,8,32], index: 13, kind: input, shape index: {}]
  %s14 = inlined_call_operand.vmem [shape: f32[2,1,32], index: 14, kind: input, shape index: {}]
  %s15 = inlined_call_operand.vmem [shape: f32[2,1,32], index: 15, kind: input, shape index: {}]
  %s16 = inlined_call_operand.vmem [shape: f32[2,1,32], index: 16, kind: input, shape index: {}]
  %s17 = inlined_call_operand.vmem [shape: bf16[2,32,128], index: 17, kind: input, shape index: {}]
  %s18 = inlined_call_operand.vmem [shape: f32[2,1,128], index: 18, kind: input, shape index: {}]
  %s19 = inlined_call_operand.vmem [shape: bf16[2,128,32], index: 19, kind: input, shape index: {}]
  %s20 = inlined_call_operand.vmem [shape: f32[2,1,32], index: 20, kind: input, shape index: {}]
  %s21 = inlined_call_operand.vmem [shape: f32[2,1,32], index: 21, kind: input, shape index: {}]
  %s22 = inlined_call_operand.vmem [shape: f32[2,1,32], index: 22, kind: input, shape index: {}]
  %s23 = inlined_call_operand.vmem [shape: f32[32,2], index: 23, kind: input, shape index: {}]
  %s24 = inlined_call_operand.vmem [shape: f32[1,2], index: 24, kind: input, shape index: {}]
  %s25 = inlined_call_operand.vmem [shape: f32[6,1,2], index: 25, kind: output, shape index: {0}]
  %s26 = inlined_call_operand.vmem [shape: f32[6,1,1], index: 26, kind: output, shape index: {1}]
  %27 = xla_tuple %s25, %s26
  %s28 = sld [smem:[#allocation0]]
  $region141: #{albef_forward_train.7} parent=0
    _
  %s30 = ssub.s32 1, %s28
  %s31 = scalar_select 0, %s30, %s28
  loop: start=0, step=1, limit=8
  $region2: #{albef_forward_train.7} parent=0 // loop_pre_header
    _
  $region3: #{albef_forward_train.7} parent=0 // loop_header
    %s33 = sphi 0, %s37
    %p34 = scmp.ge.s32.totalorder %s33, 8
    %s43 = sphi 0, %s45
    %s46 = sphi 0, %s43
    %s47 = sphi 0, %s46
    %s63 = sphi 0, %s47
    %s69 = sphi 0, %s71
    %s72 = sphi 0, %s69
    %s73 = sphi 0, %s72
    %s89 = sphi 0, %s73
    %s95 = sphi 0, %s97
    %s98 = sphi 0, %s95
    %s99 = sphi 0, %s98
    %s115 = sphi 0, %s99
    %s119 = sphi 0, %s119
    %s121 = sphi 0, %s119
    %s122 = sphi 0, %s121
    %s136 = sphi 0, %s122
    %s140 = sphi 0, %s140
    %s142 = sphi 0, %s140
    %s143 = sphi 0, %s142
    %s157 = sphi 0, %s143
    %s161 = sphi 0, %s161
    %s163 = sphi 0, %s161
    %s164 = sphi 0, %s163
    %s178 = sphi 0, %s164
    %s182 = sphi 0, %s182
    %s184 = sphi 0, %s182
    %s185 = sphi 0, %s184
    %s199 = sphi 0, %s185
    %s203 = sphi 0, %s203
    %s205 = sphi 0, %s203
    %s206 = sphi 0, %s205
    %s220 = sphi 0, %s206
    %s224 = sphi 0, %s224
    %s226 = sphi 0, %s224
    %s227 = sphi 0, %s226
    %s241 = sphi 0, %s227
    %s245 = sphi 0, %s245
    %s247 = sphi 0, %s245
    %s248 = sphi 0, %s247
    %s262 = sphi 0, %s248
    %s266 = sphi 0, %s266
    %s268 = sphi 0, %s266
    %s269 = sphi 0, %s268
    %s283 = sphi 0, %s269
    %s287 = sphi 0, %s287
    %s289 = sphi 0, %s287
    %s290 = sphi 0, %s289
    %s304 = sphi 0, %s290
    %s308 = sphi 0, %s308
    %s310 = sphi 0, %s308
    %s311 = sphi 0, %s310
    %s325 = sphi 0, %s311
    %s329 = sphi 0, %s329
    %s331 = sphi 0, %s329
    %s332 = sphi 0, %s331
    %s346 = sphi 0, %s332
    %s350 = sphi 0, %s350
    %s352 = sphi 0, %s350
    %s353 = sphi 0, %s352
    %s367 = sphi 0, %s353
    %s371 = sphi 0, %s371
    %s373 = sphi 0, %s371
    %s374 = sphi 0, %s373
    %s388 = sphi 0, %s374
    %s392 = sphi 0, %s392
    %s394 = sphi 0, %s392
    %s395 = sphi 0, %s394
    %s409 = sphi 0, %s395
    %s413 = sphi 0, %s413
    %s415 = sphi 0, %s413
    %s416 = sphi 0, %s415
    %s430 = sphi 0, %s416
    %s434 = sphi 0, %s434
    %s436 = sphi 0, %s434
    %s437 = sphi 0, %s436
    %s451 = sphi 0, %s437
    %s455 = sphi 0, %s455
    %s457 = sphi 0, %s455
    %s458 = sphi 0, %s457
    %s472 = sphi 0, %s458
    %s476 = sphi 0, %s476
    %s478 = sphi 0, %s476
    %s479 = sphi 0, %s478
    %s493 = sphi 0, %s479
    %s497 = sphi 0, %s497
    %s499 = sphi 0, %s497
    %s500 = sphi 0, %s499
    %s514 = sphi 0, %s500
    %s518 = sphi 0, %s518
    %s520 = sphi 0, %s518
    %s521 = sphi 0, %s520
    %s535 = sphi 0, %s521
    %s539 = sphi 0, %s539
    %s541 = sphi 0, %s539
    %s542 = sphi 0, %s541
    %s556 = sphi 0, %s542
    %s560 = sphi 0, %s560
    %s562 = sphi 0, %s560
    %s563 = sphi 0, %s562
    %s577 = sphi 0, %s563
    %s583 = sphi 0, %s585
    %s586 = sphi 0, %s583
    %s587 = sphi 0, %s586
    %s603 = sphi 0, %s587
    %s609 = sphi 0, %s611
    %s612 = sphi 0, %s609
    %s613 = sphi 0, %s612
    %s629 = sphi 0, %s613
  $region4: #{albef_forward_train.7} parent=0 // loop_header_branch
    %36 = sbr.rel (%p34) target = $region8
  $region5: #{albef_forward_train.7} parent=0 // loop_body
    %s38 = ssub.s32 %s33, 1
    %s39 = ssub.s32 %s33, 2
    %s40 = sadd.s32 %s33, 1
    %s41 = ssub.s32 %s33, %s40
    %p42 = scmp.eq.s32.totalorder %s41, 0
    %s44 = sadd.s32 %s43, 1
    %s45 = scalar_select %p42, %s43, %s44
    %p48 = pneg %p42
    %p49 = scmp.eq.s32.totalorder %s33, 5
    %p50 = por %p48, %p49
    %p51 = scmp.ne.s32.totalorder %s43, %s46
    %p52 = scmp.eq.s32.totalorder %s33, 0
    %p53 = por %p51, %p52
    %p54 = scmp.ne.s32.totalorder %s43, %s46
    %p55 = scmp.eq.s32.totalorder %s38, 5
    %p56 = por %p54, %p55
    %p57 = scmp.ne.s32.totalorder %s46, %s47
    %p58 = scmp.eq.s32.totalorder %s38, 0
    %p59 = por %p57, %p58
    %p60 = scmp.ne.s32.totalorder %s46, %s47
    %p61 = scmp.eq.s32.totalorder %s39, 5
    %p62 = por %p60, %p61
    %p64 = scmp.ne.s32.totalorder %s47, %s63
    %p65 = scmp.eq.s32.totalorder %s39, 0
    %p66 = por %p64, %p65
    %s67 = ssub.s32 %s33, %s40
    %p68 = scmp.eq.s32.totalorder %s67, 0
    %s70 = sadd.s32 %s69, 1
    %s71 = scalar_select %p68, %s69, %s70
    %p74 = pneg %p68
    %p75 = scmp.eq.s32.totalorder %s33, 5
    %p76 = por %p74, %p75
    %p77 = scmp.ne.s32.totalorder %s69, %s72
    %p78 = scmp.eq.s32.totalorder %s33, 0
    %p79 = por %p77, %p78
    %p80 = scmp.ne.s32.totalorder %s69, %s72
    %p81 = scmp.eq.s32.totalorder %s38, 5
    %p82 = por %p80, %p81
    %p83 = scmp.ne.s32.totalorder %s72, %s73
    %p84 = scmp.eq.s32.totalorder %s38, 0
    %p85 = por %p83, %p84
    %p86 = scmp.ne.s32.totalorder %s72, %s73
    %p87 = scmp.eq.s32.totalorder %s39, 5
    %p88 = por %p86, %p87
    %p90 = scmp.ne.s32.totalorder %s73, %s89
    %p91 = scmp.eq.s32.totalorder %s39, 0
    %p92 = por %p90, %p91
    %s93 = ssub.s32 %s33, %s40
    %p94 = scmp.eq.s32.totalorder %s93, 0
    %s96 = sadd.s32 %s95, 1
    %s97 = scalar_select %p94, %s95, %s96
    %p100 = pneg %p94
    %p101 = scmp.eq.s32.totalorder %s33, 5
    %p102 = por %p100, %p101
    %p103 = scmp.ne.s32.totalorder %s95, %s98
    %p104 = scmp.eq.s32.totalorder %s33, 0
    %p105 = por %p103, %p104
    %p106 = scmp.ne.s32.totalorder %s95, %s98
    %p107 = scmp.eq.s32.totalorder %s38, 5
    %p108 = por %p106, %p107
    %p109 = scmp.ne.s32.totalorder %s98, %s99
    %p110 = scmp.eq.s32.totalorder %s38, 0
    %p111 = por %p109, %p110
    %p112 = scmp.ne.s32.totalorder %s98, %s99
    %p113 = scmp.eq.s32.totalorder %s39, 5
    %p114 = por %p112, %p113
    %p116 = scmp.ne.s32.totalorder %s99, %s115
    %p117 = scmp.eq.s32.totalorder %s39, 0
    %p118 = por %p116, %p117
    %s120 = sadd.s32 %s119, 1
    %p123 = scmp.eq.s32.totalorder %s33, 5
    %p124 = scmp.ne.s32.totalorder %s119, %s121
    %p125 = scmp.eq.s32.totalorder %s33, 0
    %p126 = por %p124, %p125
    %p127 = scmp.ne.s32.totalorder %s119, %s121
    %p128 = scmp.eq.s32.totalorder %s38, 5
    %p129 = por %p127, %p128
    %p130 = scmp.ne.s32.totalorder %s121, %s122
    %p131 = scmp.eq.s32.totalorder %s38, 0
    %p132 = por %p130, %p131
    %p133 = scmp.ne.s32.totalorder %s121, %s122
    %p134 = scmp.eq.s32.totalorder %s39, 5
    %p135 = por %p133, %p134
    %p137 = scmp.ne.s32.totalorder %s122, %s136
    %p138 = scmp.eq.s32.totalorder %s39, 0
    %p139 = por %p137, %p138
    %s141 = sadd.s32 %s140, 1
    %p144 = scmp.eq.s32.totalorder %s33, 5
    %p145 = scmp.ne.s32.totalorder %s140, %s142
    %p146 = scmp.eq.s32.totalorder %s33, 0
    %p147 = por %p145, %p146
    %p148 = scmp.ne.s32.totalorder %s140, %s142
    %p149 = scmp.eq.s32.totalorder %s38, 5
    %p150 = por %p148, %p149
    %p151 = scmp.ne.s32.totalorder %s142, %s143
    %p152 = scmp.eq.s32.totalorder %s38, 0
    %p153 = por %p151, %p152
    %p154 = scmp.ne.s32.totalorder %s142, %s143
    %p155 = scmp.eq.s32.totalorder %s39, 5
    %p156 = por %p154, %p155
    %p158 = scmp.ne.s32.totalorder %s143, %s157
    %p159 = scmp.eq.s32.totalorder %s39, 0
    %p160 = por %p158, %p159
    %s162 = sadd.s32 %s161, 1
    %p165 = scmp.eq.s32.totalorder %s33, 5
    %p166 = scmp.ne.s32.totalorder %s161, %s163
    %p167 = scmp.eq.s32.totalorder %s33, 0
    %p168 = por %p166, %p167
    %p169 = scmp.ne.s32.totalorder %s161, %s163
    %p170 = scmp.eq.s32.totalorder %s38, 5
    %p171 = por %p169, %p170
    %p172 = scmp.ne.s32.totalorder %s163, %s164
    %p173 = scmp.eq.s32.totalorder %s38, 0
    %p174 = por %p172, %p173
    %p175 = scmp.ne.s32.totalorder %s163, %s164
    %p176 = scmp.eq.s32.totalorder %s39, 5
    %p177 = por %p175, %p176
    %p179 = scmp.ne.s32.totalorder %s164, %s178
    %p180 = scmp.eq.s32.totalorder %s39, 0
    %p181 = por %p179, %p180
    %s183 = sadd.s32 %s182, 1
    %p186 = scmp.eq.s32.totalorder %s33, 5
    %p187 = scmp.ne.s32.totalorder %s182, %s184
    %p188 = scmp.eq.s32.totalorder %s33, 0
    %p189 = por %p187, %p188
    %p190 = scmp.ne.s32.totalorder %s182, %s184
    %p191 = scmp.eq.s32.totalorder %s38, 5
    %p192 = por %p190, %p191
    %p193 = scmp.ne.s32.totalorder %s184, %s185
    %p194 = scmp.eq.s32.totalorder %s38, 0
    %p195 = por %p193, %p194
    %p196 = scmp.ne.s32.totalorder %s184, %s185
    %p197 = scmp.eq.s32.totalorder %s39, 5
    %p198 = por %p196, %p197
    %p200 = scmp.ne.s32.totalorder %s185, %s199
    %p201 = scmp.eq.s32.totalorder %s39, 0
    %p202 = por %p200, %p201
    %s204 = sadd.s32 %s203, 1
    %p207 = scmp.eq.s32.totalorder %s33, 5
    %p208 = scmp.ne.s32.totalorder %s203, %s205
    %p209 = scmp.eq.s32.totalorder %s33, 0
    %p210 = por %p208, %p209
    %p211 = scmp.ne.s32.totalorder %s203, %s205
    %p212 = scmp.eq.s32.totalorder %s38, 5
    %p213 = por %p211, %p212
    %p214 = scmp.ne.s32.totalorder %s205, %s206
    %p215 = scmp.eq.s32.totalorder %s38, 0
    %p216 = por %p214, %p215
    %p217 = scmp.ne.s32.totalorder %s205, %s206
    %p218 = scmp.eq.s32.totalorder %s39, 5
    %p219 = por %p217, %p218
    %p221 = scmp.ne.s32.totalorder %s206, %s220
    %p222 = scmp.eq.s32.totalorder %s39, 0
    %p223 = por %p221, %p222
    %s225 = sadd.s32 %s224, 1
    %p228 = scmp.eq.s32.totalorder %s33, 5
    %p229 = scmp.ne.s32.totalorder %s224, %s226
    %p230 = scmp.eq.s32.totalorder %s33, 0
    %p231 = por %p229, %p230
    %p232 = scmp.ne.s32.totalorder %s224, %s226
    %p233 = scmp.eq.s32.totalorder %s38, 5
    %p234 = por %p232, %p233
    %p235 = scmp.ne.s32.totalorder %s226, %s227
    %p236 = scmp.eq.s32.totalorder %s38, 0
    %p237 = por %p235, %p236
    %p238 = scmp.ne.s32.totalorder %s226, %s227
    %p239 = scmp.eq.s32.totalorder %s39, 5
    %p240 = por %p238, %p239
    %p242 = scmp.ne.s32.totalorder %s227, %s241
    %p243 = scmp.eq.s32.totalorder %s39, 0
    %p244 = por %p242, %p243
    %s246 = sadd.s32 %s245, 1
    %p249 = scmp.eq.s32.totalorder %s33, 5
    %p250 = scmp.ne.s32.totalorder %s245, %s247
    %p251 = scmp.eq.s32.totalorder %s33, 0
    %p252 = por %p250, %p251
    %p253 = scmp.ne.s32.totalorder %s245, %s247
    %p254 = scmp.eq.s32.totalorder %s38, 5
    %p255 = por %p253, %p254
    %p256 = scmp.ne.s32.totalorder %s247, %s248
    %p257 = scmp.eq.s32.totalorder %s38, 0
    %p258 = por %p256, %p257
    %p259 = scmp.ne.s32.totalorder %s247, %s248
    %p260 = scmp.eq.s32.totalorder %s39, 5
    %p261 = por %p259, %p260
    %p263 = scmp.ne.s32.totalorder %s248, %s262
    %p264 = scmp.eq.s32.totalorder %s39, 0
    %p265 = por %p263, %p264
    %s267 = sadd.s32 %s266, 1
    %p270 = scmp.eq.s32.totalorder %s33, 5
    %p271 = scmp.ne.s32.totalorder %s266, %s268
    %p272 = scmp.eq.s32.totalorder %s33, 0
    %p273 = por %p271, %p272
    %p274 = scmp.ne.s32.totalorder %s266, %s268
    %p275 = scmp.eq.s32.totalorder %s38, 5
    %p276 = por %p274, %p275
    %p277 = scmp.ne.s32.totalorder %s268, %s269
    %p278 = scmp.eq.s32.totalorder %s38, 0
    %p279 = por %p277, %p278
    %p280 = scmp.ne.s32.totalorder %s268, %s269
    %p281 = scmp.eq.s32.totalorder %s39, 5
    %p282 = por %p280, %p281
    %p284 = scmp.ne.s32.totalorder %s269, %s283
    %p285 = scmp.eq.s32.totalorder %s39, 0
    %p286 = por %p284, %p285
    %s288 = sadd.s32 %s287, 1
    %p291 = scmp.eq.s32.totalorder %s33, 5
    %p292 = scmp.ne.s32.totalorder %s287, %s289
    %p293 = scmp.eq.s32.totalorder %s33, 0
    %p294 = por %p292, %p293
    %p295 = scmp.ne.s32.totalorder %s287, %s289
    %p296 = scmp.eq.s32.totalorder %s38, 5
    %p297 = por %p295, %p296
    %p298 = scmp.ne.s32.totalorder %s289, %s290
    %p299 = scmp.eq.s32.totalorder %s38, 0
    %p300 = por %p298, %p299
    %p301 = scmp.ne.s32.totalorder %s289, %s290
    %p302 = scmp.eq.s32.totalorder %s39, 5
    %p303 = por %p301, %p302
    %p305 = scmp.ne.s32.totalorder %s290, %s304
    %p306 = scmp.eq.s32.totalorder %s39, 0
    %p307 = por %p305, %p306
    %s309 = sadd.s32 %s308, 1
    %p312 = scmp.eq.s32.totalorder %s33, 5
    %p313 = scmp.ne.s32.totalorder %s308, %s310
    %p314 = scmp.eq.s32.totalorder %s33, 0
    %p315 = por %p313, %p314
    %p316 = scmp.ne.s32.totalorder %s308, %s310
    %p317 = scmp.eq.s32.totalorder %s38, 5
    %p318 = por %p316, %p317
    %p319 = scmp.ne.s32.totalorder %s310, %s311
    %p320 = scmp.eq.s32.totalorder %s38, 0
    %p321 = por %p319, %p320
    %p322 = scmp.ne.s32.totalorder %s310, %s311
    %p323 = scmp.eq.s32.totalorder %s39, 5
    %p324 = por %p322, %p323
    %p326 = scmp.ne.s32.totalorder %s311, %s325
    %p327 = scmp.eq.s32.totalorder %s39, 0
    %p328 = por %p326, %p327
    %s330 = sadd.s32 %s329, 1
    %p333 = scmp.eq.s32.totalorder %s33, 5
    %p334 = scmp.ne.s32.totalorder %s329, %s331
    %p335 = scmp.eq.s32.totalorder %s33, 0
    %p336 = por %p334, %p335
    %p337 = scmp.ne.s32.totalorder %s329, %s331
    %p338 = scmp.eq.s32.totalorder %s38, 5
    %p339 = por %p337, %p338
    %p340 = scmp.ne.s32.totalorder %s331, %s332
    %p341 = scmp.eq.s32.totalorder %s38, 0
    %p342 = por %p340, %p341
    %p343 = scmp.ne.s32.totalorder %s331, %s332
    %p344 = scmp.eq.s32.totalorder %s39, 5
    %p345 = por %p343, %p344
    %p347 = scmp.ne.s32.totalorder %s332, %s346
    %p348 = scmp.eq.s32.totalorder %s39, 0
    %p349 = por %p347, %p348
    %s351 = sadd.s32 %s350, 1
    %p354 = scmp.eq.s32.totalorder %s33, 5
    %p355 = scmp.ne.s32.totalorder %s350, %s352
    %p356 = scmp.eq.s32.totalorder %s33, 0
    %p357 = por %p355, %p356
    %p358 = scmp.ne.s32.totalorder %s350, %s352
    %p359 = scmp.eq.s32.totalorder %s38, 5
    %p360 = por %p358, %p359
    %p361 = scmp.ne.s32.totalorder %s352, %s353
    %p362 = scmp.eq.s32.totalorder %s38, 0
    %p363 = por %p361, %p362
    %p364 = scmp.ne.s32.totalorder %s352, %s353
    %p365 = scmp.eq.s32.totalorder %s39, 5
    %p366 = por %p364, %p365
    %p368 = scmp.ne.s32.totalorder %s353, %s367
    %p369 = scmp.eq.s32.totalorder %s39, 0
    %p370 = por %p368, %p369
    %s372 = sadd.s32 %s371, 1
    %p375 = scmp.eq.s32.totalorder %s33, 5
    %p376 = scmp.ne.s32.totalorder %s371, %s373
    %p377 = scmp.eq.s32.totalorder %s33, 0
    %p378 = por %p376, %p377
    %p379 = scmp.ne.s32.totalorder %s371, %s373
    %p380 = scmp.eq.s32.totalorder %s38, 5
    %p381 = por %p379, %p380
    %p382 = scmp.ne.s32.totalorder %s373, %s374
    %p383 = scmp.eq.s32.totalorder %s38, 0
    %p384 = por %p382, %p383
    %p385 = scmp.ne.s32.totalorder %s373, %s374
    %p386 = scmp.eq.s32.totalorder %s39, 5
    %p387 = por %p385, %p386
    %p389 = scmp.ne.s32.totalorder %s374, %s388
    %p390 = scmp.eq.s32.totalorder %s39, 0
    %p391 = por %p389, %p390
    %s393 = sadd.s32 %s392, 1
    %p396 = scmp.eq.s32.totalorder %s33, 5
    %p397 = scmp.ne.s32.totalorder %s392, %s394
    %p398 = scmp.eq.s32.totalorder %s33, 0
    %p399 = por %p397, %p398
    %p400 = scmp.ne.s32.totalorder %s392, %s394
    %p401 = scmp.eq.s32.totalorder %s38, 5
    %p402 = por %p400, %p401
    %p403 = scmp.ne.s32.totalorder %s394, %s395
    %p404 = scmp.eq.s32.totalorder %s38, 0
    %p405 = por %p403, %p404
    %p406 = scmp.ne.s32.totalorder %s394, %s395
    %p407 = scmp.eq.s32.totalorder %s39, 5
    %p408 = por %p406, %p407
    %p410 = scmp.ne.s32.totalorder %s395, %s409
    %p411 = scmp.eq.s32.totalorder %s39, 0
    %p412 = por %p410, %p411
    %s414 = sadd.s32 %s413, 1
    %p417 = scmp.eq.s32.totalorder %s33, 5
    %p418 = scmp.ne.s32.totalorder %s413, %s415
    %p419 = scmp.eq.s32.totalorder %s33, 0
    %p420 = por %p418, %p419
    %p421 = scmp.ne.s32.totalorder %s413, %s415
    %p422 = scmp.eq.s32.totalorder %s38, 5
    %p423 = por %p421, %p422
    %p424 = scmp.ne.s32.totalorder %s415, %s416
    %p425 = scmp.eq.s32.totalorder %s38, 0
    %p426 = por %p424, %p425
    %p427 = scmp.ne.s32.totalorder %s415, %s416
    %p428 = scmp.eq.s32.totalorder %s39, 5
    %p429 = por %p427, %p428
    %p431 = scmp.ne.s32.totalorder %s416, %s430
    %p432 = scmp.eq.s32.totalorder %s39, 0
    %p433 = por %p431, %p432
    %s435 = sadd.s32 %s434, 1
    %p438 = scmp.eq.s32.totalorder %s33, 5
    %p439 = scmp.ne.s32.totalorder %s434, %s436
    %p440 = scmp.eq.s32.totalorder %s33, 0
    %p441 = por %p439, %p440
    %p442 = scmp.ne.s32.totalorder %s434, %s436
    %p443 = scmp.eq.s32.totalorder %s38, 5
    %p444 = por %p442, %p443
    %p445 = scmp.ne.s32.totalorder %s436, %s437
    %p446 = scmp.eq.s32.totalorder %s38, 0
    %p447 = por %p445, %p446
    %p448 = scmp.ne.s32.totalorder %s436, %s437
    %p449 = scmp.eq.s32.totalorder %s39, 5
    %p450 = por %p448, %p449
    %p452 = scmp.ne.s32.totalorder %s437, %s451
    %p453 = scmp.eq.s32.totalorder %s39, 0
    %p454 = por %p452, %p453
    %s456 = sadd.s32 %s455, 1
    %p459 = scmp.eq.s32.totalorder %s33, 5
    %p460 = scmp.ne.s32.totalorder %s455, %s457
    %p461 = scmp.eq.s32.totalorder %s33, 0
    %p462 = por %p460, %p461
    %p463 = scmp.ne.s32.totalorder %s455, %s457
    %p464 = scmp.eq.s32.totalorder %s38, 5
    %p465 = por %p463, %p464
    %p466 = scmp.ne.s32.totalorder %s457, %s458
    %p467 = scmp.eq.s32.totalorder %s38, 0
    %p468 = por %p466, %p467
    %p469 = scmp.ne.s32.totalorder %s457, %s458
    %p470 = scmp.eq.s32.totalorder %s39, 5
    %p471 = por %p469, %p470
    %p473 = scmp.ne.s32.totalorder %s458, %s472
    %p474 = scmp.eq.s32.totalorder %s39, 0
    %p475 = por %p473, %p474
    %s477 = sadd.s32 %s476, 1
    %p480 = scmp.eq.s32.totalorder %s33, 5
    %p481 = scmp.ne.s32.totalorder %s476, %s478
    %p482 = scmp.eq.s32.totalorder %s33, 0
    %p483 = por %p481, %p482
    %p484 = scmp.ne.s32.totalorder %s476, %s478
    %p485 = scmp.eq.s32.totalorder %s38, 5
    %p486 = por %p484, %p485
    %p487 = scmp.ne.s32.totalorder %s478, %s479
    %p488 = scmp.eq.s32.totalorder %s38, 0
    %p489 = por %p487, %p488
    %p490 = scmp.ne.s32.totalorder %s478, %s479
    %p491 = scmp.eq.s32.totalorder %s39, 5
    %p492 = por %p490, %p491
    %p494 = scmp.ne.s32.totalorder %s479, %s493
    %p495 = scmp.eq.s32.totalorder %s39, 0
    %p496 = por %p494, %p495
    %s498 = sadd.s32 %s497, 1
    %p501 = scmp.eq.s32.totalorder %s33, 5
    %p502 = scmp.ne.s32.totalorder %s497, %s499
    %p503 = scmp.eq.s32.totalorder %s33, 0
    %p504 = por %p502, %p503
    %p505 = scmp.ne.s32.totalorder %s497, %s499
    %p506 = scmp.eq.s32.totalorder %s38, 5
    %p507 = por %p505, %p506
    %p508 = scmp.ne.s32.totalorder %s499, %s500
    %p509 = scmp.eq.s32.totalorder %s38, 0
    %p510 = por %p508, %p509
    %p511 = scmp.ne.s32.totalorder %s499, %s500
    %p512 = scmp.eq.s32.totalorder %s39, 5
    %p513 = por %p511, %p512
    %p515 = scmp.ne.s32.totalorder %s500, %s514
    %p516 = scmp.eq.s32.totalorder %s39, 0
    %p517 = por %p515, %p516
    %s519 = sadd.s32 %s518, 1
    %p522 = scmp.eq.s32.totalorder %s33, 5
    %p523 = scmp.ne.s32.totalorder %s518, %s520
    %p524 = scmp.eq.s32.totalorder %s33, 0
    %p525 = por %p523, %p524
    %p526 = scmp.ne.s32.totalorder %s518, %s520
    %p527 = scmp.eq.s32.totalorder %s38, 5
    %p528 = por %p526, %p527
    %p529 = scmp.ne.s32.totalorder %s520, %s521
    %p530 = scmp.eq.s32.totalorder %s38, 0
    %p531 = por %p529, %p530
    %p532 = scmp.ne.s32.totalorder %s520, %s521
    %p533 = scmp.eq.s32.totalorder %s39, 5
    %p534 = por %p532, %p533
    %p536 = scmp.ne.s32.totalorder %s521, %s535
    %p537 = scmp.eq.s32.totalorder %s39, 0
    %p538 = por %p536, %p537
    %s540 = sadd.s32 %s539, 1
    %p543 = scmp.eq.s32.totalorder %s33, 5
    %p544 = scmp.ne.s32.totalorder %s539, %s541
    %p545 = scmp.eq.s32.totalorder %s33, 0
    %p546 = por %p544, %p545
    %p547 = scmp.ne.s32.totalorder %s539, %s541
    %p548 = scmp.eq.s32.totalorder %s38, 5
    %p549 = por %p547, %p548
    %p550 = scmp.ne.s32.totalorder %s541, %s542
    %p551 = scmp.eq.s32.totalorder %s38, 0
    %p552 = por %p550, %p551
    %p553 = scmp.ne.s32.totalorder %s541, %s542
    %p554 = scmp.eq.s32.totalorder %s39, 5
    %p555 = por %p553, %p554
    %p557 = scmp.ne.s32.totalorder %s542, %s556
    %p558 = scmp.eq.s32.totalorder %s39, 0
    %p559 = por %p557, %p558
    %s561 = sadd.s32 %s560, 1
    %p564 = scmp.eq.s32.totalorder %s33, 5
    %p565 = scmp.ne.s32.totalorder %s560, %s562
    %p566 = scmp.eq.s32.totalorder %s33, 0
    %p567 = por %p565, %p566
    %p568 = scmp.ne.s32.totalorder %s560, %s562
    %p569 = scmp.eq.s32.totalorder %s38, 5
    %p570 = por %p568, %p569
    %p571 = scmp.ne.s32.totalorder %s562, %s563
    %p572 = scmp.eq.s32.totalorder %s38, 0
    %p573 = por %p571, %p572
    %p574 = scmp.ne.s32.totalorder %s562, %s563
    %p575 = scmp.eq.s32.totalorder %s39, 5
    %p576 = por %p574, %p575
    %p578 = scmp.ne.s32.totalorder %s563, %s577
    %p579 = scmp.eq.s32.totalorder %s39, 0
    %p580 = por %p578, %p579
    %s581 = ssub.s32 %s33, %s40
    %p582 = scmp.eq.s32.totalorder %s581, 0
    %s584 = sadd.s32 %s583, 1
    %s585 = scalar_select %p582, %s583, %s584
    %p588 = pneg %p582
    %p589 = scmp.eq.s32.totalorder %s33, 5
    %p590 = por %p588, %p589
    %p591 = scmp.ne.s32.totalorder %s583, %s586
    %p592 = scmp.eq.s32.totalorder %s33, 0
    %p593 = por %p591, %p592
    %p594 = scmp.ne.s32.totalorder %s583, %s586
    %p595 = scmp.eq.s32.totalorder %s38, 5
    %p596 = por %p594, %p595
    %p597 = scmp.ne.s32.totalorder %s586, %s587
    %p598 = scmp.eq.s32.totalorder %s38, 0
    %p599 = por %p597, %p598
    %p600 = scmp.ne.s32.totalorder %s586, %s587
    %p601 = scmp.eq.s32.totalorder %s39, 5
    %p602 = por %p600, %p601
    %p604 = scmp.ne.s32.totalorder %s587, %s603
    %p605 = scmp.eq.s32.totalorder %s39, 0
    %p606 = por %p604, %p605
    %s607 = ssub.s32 %s33, %s40
    %p608 = scmp.eq.s32.totalorder %s607, 0
    %s610 = sadd.s32 %s609, 1
    %s611 = scalar_select %p608, %s609, %s610
    %p614 = pneg %p608
    %p615 = scmp.eq.s32.totalorder %s33, 5
    %p616 = por %p614, %p615
    %p617 = scmp.ne.s32.totalorder %s609, %s612
    %p618 = scmp.eq.s32.totalorder %s33, 0
    %p619 = por %p617, %p618
    %p620 = scmp.ne.s32.totalorder %s609, %s612
    %p621 = scmp.eq.s32.totalorder %s38, 5
    %p622 = por %p620, %p621
    %p623 = scmp.ne.s32.totalorder %s612, %s613
    %p624 = scmp.eq.s32.totalorder %s38, 0
    %p625 = por %p623, %p624
    %p626 = scmp.ne.s32.totalorder %s612, %s613
    %p627 = scmp.eq.s32.totalorder %s39, 5
    %p628 = por %p626, %p627
    %p630 = scmp.ne.s32.totalorder %s613, %s629
    %p631 = scmp.eq.s32.totalorder %s39, 0
    %p632 = por %p630, %p631
    %p633 = scmp.le.s32.totalorder 1, %s33
    %p634 = scmp.lt.s32.totalorder %s33, 7
    %p635 = pnand %p633, %p634
    %p636 = pneg %p635
    // Predicated region
    $region9: #{albef_forward_train.7} parent=5 // pred_check
      _
    $region10: #{albef_forward_train.7} parent=5 // pred_check_branch
      %638 = sbr.rel (%p635) target = $region12
    $region11: #{albef_forward_train.7} parent=5 // pred_region
      %s639 = ssub.s32 %s33, 1
      // Predicated region
      $region13: #{albef_forward_train.7} parent=11 // pred_check
        %p640 = pneg %p132
      $region14: #{albef_forward_train.7} parent=11 // pred_check_branch
        %642 = sbr.rel (%p640) target = $region16
      $region15: #{albef_forward_train.7} parent=11 // pred_region
        _
      $region16: #{albef_forward_train.7} parent=11 // pred_fallthru
        _
      // Predicated region
      $region17: #{albef_forward_train.7} parent=11 // pred_check
        %p643 = pneg %p153
      $region18: #{albef_forward_train.7} parent=11 // pred_check_branch
        %645 = sbr.rel (%p643) target = $region20
      $region19: #{albef_forward_train.7} parent=11 // pred_region
        _
      $region20: #{albef_forward_train.7} parent=11 // pred_fallthru
        _
      // Predicated region
      $region21: #{albef_forward_train.7} parent=11 // pred_check
        %p646 = pneg %p174
      $region22: #{albef_forward_train.7} parent=11 // pred_check_branch
        %648 = sbr.rel (%p646) target = $region24
      $region23: #{albef_forward_train.7} parent=11 // pred_region
        _
      $region24: #{albef_forward_train.7} parent=11 // pred_fallthru
        _
      // Predicated region
      $region25: #{albef_forward_train.7} parent=11 // pred_check
        %p649 = pneg %p195
      $region26: #{albef_forward_train.7} parent=11 // pred_check_branch
        %651 = sbr.rel (%p649) target = $region28
      $region27: #{albef_forward_train.7} parent=11 // pred_region
        _
      $region28: #{albef_forward_train.7} parent=11 // pred_fallthru
        _
      // Predicated region
      $region29: #{albef_forward_train.7} parent=11 // pred_check
        %p652 = pneg %p216
      $region30: #{albef_forward_train.7} parent=11 // pred_check_branch
        %654 = sbr.rel (%p652) target = $region32
      $region31: #{albef_forward_train.7} parent=11 // pred_region
        _
      $region32: #{albef_forward_train.7} parent=11 // pred_fallthru
        _
      // Predicated region
      $region33: #{albef_forward_train.7} parent=11 // pred_check
        %p655 = pneg %p237
      $region34: #{albef_forward_train.7} parent=11 // pred_check_branch
        %657 = sbr.rel (%p655) target = $region36
      $region35: #{albef_forward_train.7} parent=11 // pred_region
        _
      $region36: #{albef_forward_train.7} parent=11 // pred_fallthru
        _
      // Predicated region
      $region37: #{albef_forward_train.7} parent=11 // pred_check
        %p658 = pneg %p258
      $region38: #{albef_forward_train.7} parent=11 // pred_check_branch
        %660 = sbr.rel (%p658) target = $region40
      $region39: #{albef_forward_train.7} parent=11 // pred_region
        _
      $region40: #{albef_forward_train.7} parent=11 // pred_fallthru
        _
      // Predicated region
      $region41: #{albef_forward_train.7} parent=11 // pred_check
        %p661 = pneg %p279
      $region42: #{albef_forward_train.7} parent=11 // pred_check_branch
        %663 = sbr.rel (%p661) target = $region44
      $region43: #{albef_forward_train.7} parent=11 // pred_region
        _
      $region44: #{albef_forward_train.7} parent=11 // pred_fallthru
        _
      // Predicated region
      $region45: #{albef_forward_train.7} parent=11 // pred_check
        %p664 = pneg %p300
      $region46: #{albef_forward_train.7} parent=11 // pred_check_branch
        %666 = sbr.rel (%p664) target = $region48
      $region47: #{albef_forward_train.7} parent=11 // pred_region
        _
      $region48: #{albef_forward_train.7} parent=11 // pred_fallthru
        _
      // Predicated region
      $region49: #{albef_forward_train.7} parent=11 // pred_check
        %p667 = pneg %p321
      $region50: #{albef_forward_train.7} parent=11 // pred_check_branch
        %669 = sbr.rel (%p667) target = $region52
      $region51: #{albef_forward_train.7} parent=11 // pred_region
        _
      $region52: #{albef_forward_train.7} parent=11 // pred_fallthru
        _
      // Predicated region
      $region53: #{albef_forward_train.7} parent=11 // pred_check
        %p670 = pneg %p342
      $region54: #{albef_forward_train.7} parent=11 // pred_check_branch
        %672 = sbr.rel (%p670) target = $region56
      $region55: #{albef_forward_train.7} parent=11 // pred_region
        _
      $region56: #{albef_forward_train.7} parent=11 // pred_fallthru
        _
      // Predicated region
      $region57: #{albef_forward_train.7} parent=11 // pred_check
        %p673 = pneg %p363
      $region58: #{albef_forward_train.7} parent=11 // pred_check_branch
        %675 = sbr.rel (%p673) target = $region60
      $region59: #{albef_forward_train.7} parent=11 // pred_region
        _
      $region60: #{albef_forward_train.7} parent=11 // pred_fallthru
        _
      // Predicated region
      $region61: #{albef_forward_train.7} parent=11 // pred_check
        %p676 = pneg %p384
      $region62: #{albef_forward_train.7} parent=11 // pred_check_branch
        %678 = sbr.rel (%p676) target = $region64
      $region63: #{albef_forward_train.7} parent=11 // pred_region
        _
      $region64: #{albef_forward_train.7} parent=11 // pred_fallthru
        _
      // Predicated region
      $region65: #{albef_forward_train.7} parent=11 // pred_check
        %p679 = pneg %p405
      $region66: #{albef_forward_train.7} parent=11 // pred_check_branch
        %681 = sbr.rel (%p679) target = $region68
      $region67: #{albef_forward_train.7} parent=11 // pred_region
        _
      $region68: #{albef_forward_train.7} parent=11 // pred_fallthru
        _
      // Predicated region
      $region69: #{albef_forward_train.7} parent=11 // pred_check
        %p682 = pneg %p426
      $region70: #{albef_forward_train.7} parent=11 // pred_check_branch
        %684 = sbr.rel (%p682) target = $region72
      $region71: #{albef_forward_train.7} parent=11 // pred_region
        _
      $region72: #{albef_forward_train.7} parent=11 // pred_fallthru
        _
      // Predicated region
      $region73: #{albef_forward_train.7} parent=11 // pred_check
        %p685 = pneg %p447
      $region74: #{albef_forward_train.7} parent=11 // pred_check_branch
        %687 = sbr.rel (%p685) target = $region76
      $region75: #{albef_forward_train.7} parent=11 // pred_region
        _
      $region76: #{albef_forward_train.7} parent=11 // pred_fallthru
        _
      // Predicated region
      $region77: #{albef_forward_train.7} parent=11 // pred_check
        %p688 = pneg %p468
      $region78: #{albef_forward_train.7} parent=11 // pred_check_branch
        %690 = sbr.rel (%p688) target = $region80
      $region79: #{albef_forward_train.7} parent=11 // pred_region
        _
      $region80: #{albef_forward_train.7} parent=11 // pred_fallthru
        _
      // Predicated region
      $region81: #{albef_forward_train.7} parent=11 // pred_check
        %p691 = pneg %p489
      $region82: #{albef_forward_train.7} parent=11 // pred_check_branch
        %693 = sbr.rel (%p691) target = $region84
      $region83: #{albef_forward_train.7} parent=11 // pred_region
        _
      $region84: #{albef_forward_train.7} parent=11 // pred_fallthru
        _
      // Predicated region
      $region85: #{albef_forward_train.7} parent=11 // pred_check
        %p694 = pneg %p510
      $region86: #{albef_forward_train.7} parent=11 // pred_check_branch
        %696 = sbr.rel (%p694) target = $region88
      $region87: #{albef_forward_train.7} parent=11 // pred_region
        _
      $region88: #{albef_forward_train.7} parent=11 // pred_fallthru
        _
      // Predicated region
      $region89: #{albef_forward_train.7} parent=11 // pred_check
        %p697 = pneg %p531
      $region90: #{albef_forward_train.7} parent=11 // pred_check_branch
        %699 = sbr.rel (%p697) target = $region92
      $region91: #{albef_forward_train.7} parent=11 // pred_region
        _
      $region92: #{albef_forward_train.7} parent=11 // pred_fallthru
        _
      // Predicated region
      $region93: #{albef_forward_train.7} parent=11 // pred_check
        %p700 = pneg %p552
      $region94: #{albef_forward_train.7} parent=11 // pred_check_branch
        %702 = sbr.rel (%p700) target = $region96
      $region95: #{albef_forward_train.7} parent=11 // pred_region
        _
      $region96: #{albef_forward_train.7} parent=11 // pred_fallthru
        _
      // Predicated region
      $region97: #{albef_forward_train.7} parent=11 // pred_check
        %p703 = pneg %p573
      $region98: #{albef_forward_train.7} parent=11 // pred_check_branch
        %705 = sbr.rel (%p703) target = $region100
      $region99: #{albef_forward_train.7} parent=11 // pred_region
        _
      $region100: #{albef_forward_train.7} parent=11 // pred_fallthru
        _
    $region12: #{albef_forward_train.7} parent=5 // pred_fallthru
      _
    %p706 = scmp.lt.s32.totalorder %s33, 6
    // Predicated region
    $region101: #{albef_forward_train.7} parent=5 // pred_check
      %p707 = pneg %p706
    $region102: #{albef_forward_train.7} parent=5 // pred_check_branch
      %709 = sbr.rel (%p707) target = $region104
    $region103: #{albef_forward_train.7} parent=5 // pred_region
      // Predicated region
      $region105: #{albef_forward_train.7} parent=103 // pred_check
        %p710 = pneg %p53
      $region106: #{albef_forward_train.7} parent=103 // pred_check_branch
        %712 = sbr.rel (%p710) target = $region108
      $region107: #{albef_forward_train.7} parent=103 // pred_region
        %p713 = scmp.lt.s32.totalorder %s33, 5
        %s714 = scalar_select %p713, %s33, 5
        %s715 = smul.addr %s714, 8
        %s716 = scalar_lea.vmem %s0, %s715
      $region108: #{albef_forward_train.7} parent=103 // pred_fallthru
        _
      // Predicated region
      $region109: #{albef_forward_train.7} parent=103 // pred_check
        %p717 = pneg %p79
      $region110: #{albef_forward_train.7} parent=103 // pred_check_branch
        %719 = sbr.rel (%p717) target = $region112
      $region111: #{albef_forward_train.7} parent=103 // pred_region
        %p720 = scmp.lt.s32.totalorder %s33, 5
        %s721 = scalar_select %p720, %s33, 5
        %s722 = scalar_lea.vmem %s1, %s721
      $region112: #{albef_forward_train.7} parent=103 // pred_fallthru
        _
      // Predicated region
      $region113: #{albef_forward_train.7} parent=103 // pred_check
        %p723 = pneg %p105
      $region114: #{albef_forward_train.7} parent=103 // pred_check_branch
        %725 = sbr.rel (%p723) target = $region116
      $region115: #{albef_forward_train.7} parent=103 // pred_region
        %p726 = scmp.lt.s32.totalorder %s33, 5
        %s727 = scalar_select %p726, %s33, 5
        %s728 = smul.addr %s727, 8
        %s729 = scalar_lea.vmem %s2, %s728
      $region116: #{albef_forward_train.7} parent=103 // pred_fallthru
        _
    $region104: #{albef_forward_train.7} parent=5 // pred_fallthru
      _
    %p730 = scmp.le.s32.totalorder 1, %s33
    %p731 = scmp.lt.s32.totalorder %s33, 7
    %p732 = pnand %p730, %p731
    %p733 = pneg %p732
    // Predicated region
    $region117: #{albef_forward_train.7} parent=5 // pred_check
      _
    $region118: #{albef_forward_train.7} parent=5 // pred_check_branch
      %735 = sbr.rel (%p732) target = $region120
    $region119: #{albef_forward_train.7} parent=5 // pred_region
      %s736 = ssub.s32 %s33, 1
      %p737 = scmp.lt.s32.totalorder %s38, 5
      %s738 = scalar_select %p737, %s38, 5
      %s739 = smul.addr %s738, 8
      %s740 = scalar_lea.vmem %s0, %s739
      %p741 = pneg %p59
      %p742 = pneg %p56
      %p743 = scmp.lt.s32.totalorder %s38, 5
      %s744 = scalar_select %p743, %s38, 5
      %s745 = scalar_lea.vmem %s1, %s744
      %p746 = pneg %p85
      %p747 = pneg %p82
      %p748 = scmp.lt.s32.totalorder %s38, 5
      %s749 = scalar_select %p748, %s38, 5
      %s750 = smul.addr %s749, 8
      %s751 = scalar_lea.vmem %s2, %s750
      %p752 = pneg %p111
      %p753 = pneg %p108
      %p754 = pneg %p132
      %p755 = pneg %p129
      %p756 = pneg %p153
      %p757 = pneg %p150
      %p758 = pneg %p174
      %p759 = pneg %p171
      %p760 = pneg %p195
      %p761 = pneg %p192
      %p762 = pneg %p216
      %p763 = pneg %p213
      %p764 = pneg %p237
      %p765 = pneg %p234
      %p766 = pneg %p258
      %p767 = pneg %p255
      %p768 = pneg %p279
      %p769 = pneg %p276
      %p770 = pneg %p300
      %p771 = pneg %p297
      %p772 = pneg %p321
      %p773 = pneg %p318
      %p774 = pneg %p342
      %p775 = pneg %p339
      %p776 = pneg %p363
      %p777 = pneg %p360
      %p778 = pneg %p384
      %p779 = pneg %p381
      %p780 = pneg %p405
      %p781 = pneg %p402
      %p782 = pneg %p426
      %p783 = pneg %p423
      %p784 = pneg %p447
      %p785 = pneg %p444
      %p786 = pneg %p468
      %p787 = pneg %p465
      %p788 = pneg %p489
      %p789 = pneg %p486
      %p790 = pneg %p510
      %p791 = pneg %p507
      %p792 = pneg %p531
      %p793 = pneg %p528
      %p794 = pneg %p552
      %p795 = pneg %p549
      %p796 = pneg %p573
      %p797 = pneg %p570
      %p798 = pneg %p599
      %p799 = pneg %p596
      %p800 = scmp.lt.s32.totalorder %s38, 5
      %s801 = scalar_select %p800, %s38, 5
      %s802 = scalar_lea.vmem %s25, %s801
      %p803 = pneg %p625
      %p804 = pneg %p622
      %p805 = scmp.lt.s32.totalorder %s38, 5
      %s806 = scalar_select %p805, %s38, 5
      %s807 = scalar_lea.vmem %s26, %s806
      %p808 = scmp.lt.s32.totalorder %s38, 5
      %s809 = scalar_select %p808, %s38, 5
      %s810 = smul.addr %s809, 8
      %s811 = scalar_lea.vmem %s0, %s810
      %p812 = scmp.lt.s32.totalorder %s38, 5
      %s813 = scalar_select %p812, %s38, 5
      %s814 = scalar_lea.vmem %s1, %s813
      %p815 = scmp.lt.s32.totalorder %s38, 5
      %s816 = scalar_select %p815, %s38, 5
      %s817 = smul.addr %s816, 8
      %s818 = scalar_lea.vmem %s2, %s817
      %p819 = scmp.lt.s32.totalorder %s38, 5
      %s820 = scalar_select %p819, %s38, 5
      %s821 = scalar_lea.vmem %s25, %s820
      %p822 = scmp.lt.s32.totalorder %s38, 5
      %s823 = scalar_select %p822, %s38, 5
      %s824 = scalar_lea.vmem %s26, %s823
      %v826 = vld [vmem:[%s811] sm:$0xff]
      %v827 = vld [vmem:[%s814] sm:$0x1]
      %v828 = vsub.f32 1.0, %v827
      %v829 = vmul.f32 %v828, -10000.0
      %v830 = vld [vmem:[%s818] sm:$0x1f]
      %v831 = vpack.c.bf16 %v830, %v830
      %v832 = vpack.c.bf16 %v826, %v826
      %v833 = vld [vmem:[%s3] sm:$0xf]
      %v834 = vld [vmem:[%s3 + $0x4] sm:$0xf]
      %v835 = vld [vmem:[%s3 + $0x8] sm:$0xf]
      %v836 = vld [vmem:[%s3 + $0xc] sm:$0xf]
      %v837 = vld [vmem:[%s3 + $0x10] sm:$0xf]
      %v838 = vld [vmem:[%s3 + $0x14] sm:$0xf]
      %v839 = vld [vmem:[%s3 + $0x18] sm:$0xf]
      %v840 = vld [vmem:[%s3 + $0x1c] sm:$0xf]
      %v841 = vld [vmem:[%s3 + $0x20] sm:$0xf]
      %v842 = vld [vmem:[%s3 + $0x24] sm:$0xf]
      %v843 = vld [vmem:[%s3 + $0x28] sm:$0xf]
      %v844 = vld [vmem:[%s3 + $0x2c] sm:$0xf]
      %v845 = vld [vmem:[%s3 + $0x30] sm:$0xf]
      %v846 = vld [vmem:[%s3 + $0x34] sm:$0xf]
      %v847 = vld [vmem:[%s3 + $0x38] sm:$0xf]
      %v848 = vld [vmem:[%s3 + $0x3c] sm:$0xf]
      %v849 = vld [vmem:[%s4] sm:$0x1]
      %v850 = vld [vmem:[%s4 + $0x1] sm:$0x1]
      %v851 = vld [vmem:[%s4 + $0x2] sm:$0x1]
      %v852 = vld [vmem:[%s4 + $0x3] sm:$0x1]
      %v857 = vperm.slane %v849, 0
      %v858 = vperm.slane %v850, 0
      %v859 = vperm.slane %v851, 0
      %v860 = vperm.slane %v852, 0
      %v869 = vunpack.c.l.b16 %v833
      %v870 = vunpack.c.l.b16 %v834
      %v871 = vunpack.c.l.b16 %v835
      %v872 = vunpack.c.l.b16 %v836
      %v873 = vpack.c.b16 %v870, %v869
      %v874 = vpack.c.b16 %v872, %v871
      %vm877 = vcmask 261120
      %v879 = vsel %vm877, %v832, 0
      %881 = vmatpush.bf16.msra.mxu0 0
      %882 = vmatpush.bf16.msra.mxu0 0
      %883 = vmatpush.bf16.msra.mxu0 0
      %884 = vmatpush.bf16.msra.mxu0 0
      %885 = vmatpush.bf16.msra.mxu0 0
      %886 = vmatpush.bf16.msra.mxu0 0
      %887 = vmatpush.bf16.msra.mxu0 %v874
      %888 = vmatpush.bf16.msra.mxu0 %v873
      %889 = vmatmul.bf16.gmra.mxu0 %v879
      %v890 = vpop.f32.mrf.mxu0
      %v891 = vadd.f32 %v857, %v890
      %v892 = vpop.f32.mrf.mxu0
      %893 = vdwg.mxu0
      %v898 = vunpack.c.l.b16 %v837
      %v899 = vunpack.c.l.b16 %v838
      %v900 = vunpack.c.l.b16 %v839
      %v901 = vunpack.c.l.b16 %v840
      %v902 = vpack.c.b16 %v899, %v898
      %v903 = vpack.c.b16 %v901, %v900
      %906 = vmatpush.bf16.msra.mxu0 0
      %907 = vmatpush.bf16.msra.mxu0 0
      %908 = vmatpush.bf16.msra.mxu0 0
      %909 = vmatpush.bf16.msra.mxu0 0
      %910 = vmatpush.bf16.msra.mxu0 0
      %911 = vmatpush.bf16.msra.mxu0 0
      %912 = vmatpush.bf16.msra.mxu0 %v903
      %913 = vmatpush.bf16.msra.mxu0 %v902
      %914 = vmatmul.bf16.gmra.mxu0 %v879
      %v915 = vpop.f32.mrf.mxu0
      %v916 = vadd.f32 %v858, %v915
      %v917 = vpop.f32.mrf.mxu0
      %918 = vdwg.mxu0
      %v923 = vunpack.c.l.b16 %v841
      %v924 = vunpack.c.l.b16 %v842
      %v925 = vunpack.c.l.b16 %v843
      %v926 = vunpack.c.l.b16 %v844
      %v927 = vpack.c.b16 %v924, %v923
      %v928 = vpack.c.b16 %v926, %v925
      %931 = vmatpush.bf16.msra.mxu0 0
      %932 = vmatpush.bf16.msra.mxu0 0
      %933 = vmatpush.bf16.msra.mxu0 0
      %934 = vmatpush.bf16.msra.mxu0 0
      %935 = vmatpush.bf16.msra.mxu0 0
      %936 = vmatpush.bf16.msra.mxu0 0
      %937 = vmatpush.bf16.msra.mxu0 %v928
      %938 = vmatpush.bf16.msra.mxu0 %v927
      %939 = vmatmul.bf16.gmra.mxu0 %v879
      %v940 = vpop.f32.mrf.mxu0
      %v941 = vadd.f32 %v859, %v940
      %v942 = vpop.f32.mrf.mxu0
      %943 = vdwg.mxu0
      %v948 = vunpack.c.l.b16 %v845
      %v949 = vunpack.c.l.b16 %v846
      %v950 = vunpack.c.l.b16 %v847
      %v951 = vunpack.c.l.b16 %v848
      %v952 = vpack.c.b16 %v949, %v948
      %v953 = vpack.c.b16 %v951, %v950
      %956 = vmatpush.bf16.msra.mxu0 0
      %957 = vmatpush.bf16.msra.mxu0 0
      %958 = vmatpush.bf16.msra.mxu0 0
      %959 = vmatpush.bf16.msra.mxu0 0
      %960 = vmatpush.bf16.msra.mxu0 0
      %961 = vmatpush.bf16.msra.mxu0 0
      %962 = vmatpush.bf16.msra.mxu0 %v953
      %963 = vmatpush.bf16.msra.mxu0 %v952
      %964 = vmatmul.bf16.gmra.mxu0 %v879
      %v965 = vpop.f32.mrf.mxu0
      %v966 = vadd.f32 %v860, %v965
      %v967 = vpop.f32.mrf.mxu0
      %968 = vdwg.mxu0
      %v969 = vpack.c.bf16 %v891, %v891
      %v970 = vpack.c.bf16 %v916, %v916
      %v971 = vpack.c.bf16 %v941, %v941
      %v972 = vpack.c.bf16 %v966, %v966
      %v974 = vunpack.c.l.b16 %v969
      %v975 = vpack.c.b16 %v974, %v974
      %976 = vrot.lane.b32.xlu0 %v975, 120
      %v977 = vpop.permute.xlu0 %976
      %vm978 = vcmask 64512
      %v980 = vsel %vm978, %v969, 0
      %v983 = vsel %vm978, %v977, 0
      %985 = vmatpush.bf16.xpose.msra.mxu0 0
      %986 = vmatpush.bf16.xpose.msra.mxu0 0
      %987 = vmatpush.bf16.xpose.msra.mxu0 0
      %988 = vmatpush.bf16.xpose.msra.mxu0 0
      %989 = vmatpush.bf16.xpose.msra.mxu0 0
      %990 = vmatpush.bf16.xpose.msra.mxu0 0
      %991 = vmatpush.bf16.xpose.msra.mxu0 0
      %992 = vmatpush.bf16.xpose.msra.mxu0 %v983
      %993 = vmatmul.bf16.gmra.mxu0 %v980
      %v994 = vpop.f32.mrf.mxu0
      %v995 = vadd.f32 0.0, %v994
      %v996 = vpop.f32.mrf.mxu0
      %997 = vdwg.mxu0
      %v999 = vunpack.c.l.b16 %v970
      %v1000 = vpack.c.b16 %v999, %v999
      %1001 = vrot.lane.b32.xlu0 %v1000, 120
      %v1002 = vpop.permute.xlu0 %1001
      %v1004 = vsel %vm978, %v970, 0
      %v1007 = vsel %vm978, %v1002, 0
      %1009 = vmatpush.bf16.xpose.msra.mxu0 0
      %1010 = vmatpush.bf16.xpose.msra.mxu0 0
      %1011 = vmatpush.bf16.xpose.msra.mxu0 0
      %1012 = vmatpush.bf16.xpose.msra.mxu0 0
      %1013 = vmatpush.bf16.xpose.msra.mxu0 0
      %1014 = vmatpush.bf16.xpose.msra.mxu0 0
      %1015 = vmatpush.bf16.xpose.msra.mxu0 0
      %1016 = vmatpush.bf16.xpose.msra.mxu0 %v1007
      %1017 = vmatmul.bf16.gmra.mxu0 %v1004
      %v1018 = vpop.f32.mrf.mxu0
      %v1019 = vadd.f32 0.0, %v1018
      %v1020 = vpop.f32.mrf.mxu0
      %1021 = vdwg.mxu0
      %v1023 = vunpack.c.l.b16 %v971
      %v1024 = vpack.c.b16 %v1023, %v1023
      %1025 = vrot.lane.b32.xlu0 %v1024, 120
      %v1026 = vpop.permute.xlu0 %1025
      %v1028 = vsel %vm978, %v971, 0
      %v1031 = vsel %vm978, %v1026, 0
      %1033 = vmatpush.bf16.xpose.msra.mxu0 0
      %1034 = vmatpush.bf16.xpose.msra.mxu0 0
      %1035 = vmatpush.bf16.xpose.msra.mxu0 0
      %1036 = vmatpush.bf16.xpose.msra.mxu0 0
      %1037 = vmatpush.bf16.xpose.msra.mxu0 0
      %1038 = vmatpush.bf16.xpose.msra.mxu0 0
      %1039 = vmatpush.bf16.xpose.msra.mxu0 0
      %1040 = vmatpush.bf16.xpose.msra.mxu0 %v1031
      %1041 = vmatmul.bf16.gmra.mxu0 %v1028
      %v1042 = vpop.f32.mrf.mxu0
      %v1043 = vadd.f32 0.0, %v1042
      %v1044 = vpop.f32.mrf.mxu0
      %1045 = vdwg.mxu0
      %v1047 = vunpack.c.l.b16 %v972
      %v1048 = vpack.c.b16 %v1047, %v1047
      %1049 = vrot.lane.b32.xlu0 %v1048, 120
      %v1050 = vpop.permute.xlu0 %1049
      %v1052 = vsel %vm978, %v972, 0
      %v1055 = vsel %vm978, %v1050, 0
      %1057 = vmatpush.bf16.xpose.msra.mxu0 0
      %1058 = vmatpush.bf16.xpose.msra.mxu0 0
      %1059 = vmatpush.bf16.xpose.msra.mxu0 0
      %1060 = vmatpush.bf16.xpose.msra.mxu0 0
      %1061 = vmatpush.bf16.xpose.msra.mxu0 0
      %1062 = vmatpush.bf16.xpose.msra.mxu0 0
      %1063 = vmatpush.bf16.xpose.msra.mxu0 0
      %1064 = vmatpush.bf16.xpose.msra.mxu0 %v1055
      %1065 = vmatmul.bf16.gmra.mxu0 %v1052
      %v1066 = vpop.f32.mrf.mxu0
      %v1067 = vadd.f32 0.0, %v1066
      %v1068 = vpop.f32.mrf.mxu0
      %1069 = vdwg.mxu0
      %v1070 = vmul.f32 %v995, 0.35355338
      %v1071 = vmul.f32 %v1019, 0.35355338
      %v1072 = vmul.f32 %v1043, 0.35355338
      %v1073 = vmul.f32 %v1067, 0.35355338
      %v1075 = vperm.slane %v829, 0
      %v1077 = vadd.f32 %v1070, %v1075
      %v1078 = vadd.f32 %v1071, %v1075
      %v1079 = vadd.f32 %v1072, %v1075
      %v1080 = vadd.f32 %v1073, %v1075
      %v1081 = vsel %vm978, %v1077, -inf
      %1082 = vmax.xlane.f32.xlu0 %v1081
      %v1083 = vpop.xlane.xlu0 %1082
      %v1084 = vsel %vm978, %v1078, -inf
      %1085 = vmax.xlane.f32.xlu0 %v1084
      %v1086 = vpop.xlane.xlu0 %1085
      %v1087 = vsel %vm978, %v1079, -inf
      %1088 = vmax.xlane.f32.xlu0 %v1087
      %v1089 = vpop.xlane.xlu0 %1088
      %v1090 = vsel %vm978, %v1080, -inf
      %1091 = vmax.xlane.f32.xlu0 %v1090
      %v1092 = vpop.xlane.xlu0 %1091
      %v1093 = vsub.f32 %v1077, %v1083
      %v1094 = vsub.f32 %v1078, %v1086
      %v1095 = vsub.f32 %v1079, %v1089
      %v1096 = vsub.f32 %v1080, %v1092
      %v1097 = vmul.f32 %v1093, 1.442695
      %v1098 = vpow.pop %v1097
      %v1099 = vmul.f32 %v1094, 1.442695
      %v1100 = vpow.pop %v1099
      %v1101 = vmul.f32 %v1095, 1.442695
      %v1102 = vpow.pop %v1101
      %v1103 = vmul.f32 %v1096, 1.442695
      %v1104 = vpow.pop %v1103
      %v1105 = vsel %vm978, %v1098, 0.0
      %1106 = vadd.xlane.f32.xlu0 %v1105
      %v1107 = vpop.xlane.xlu0 %1106
      %v1108 = vsel %vm978, %v1100, 0.0
      %1109 = vadd.xlane.f32.xlu0 %v1108
      %v1110 = vpop.xlane.xlu0 %1109
      %v1111 = vsel %vm978, %v1102, 0.0
      %1112 = vadd.xlane.f32.xlu0 %v1111
      %v1113 = vpop.xlane.xlu0 %1112
      %v1114 = vsel %vm978, %v1104, 0.0
      %1115 = vadd.xlane.f32.xlu0 %v1114
      %v1116 = vpop.xlane.xlu0 %1115
      %v1117 = vrcp.pop %v1107
      %v1118 = vrcp.pop %v1110
      %v1119 = vrcp.pop %v1113
      %v1120 = vrcp.pop %v1116
      %v1121 = vmul.f32 %v1098, %v1117
      %v1122 = vmul.f32 %v1100, %v1118
      %v1123 = vmul.f32 %v1102, %v1119
      %v1124 = vmul.f32 %v1104, %v1120
      %v1125 = vpack.c.bf16 %v1121, %v1121
      %v1126 = vpack.c.bf16 %v1122, %v1122
      %v1127 = vpack.c.bf16 %v1123, %v1123
      %v1128 = vpack.c.bf16 %v1124, %v1124
      %1129 = vrot.lane.b32.xlu0 %v975, 112
      %v1130 = vpop.permute.xlu0 %1129
      %v1132 = vsel %vm978, %v1125, 0
      %vm1134 = vcmask 1043456
      %v1136 = vsel %vm1134, %v1130, 0
      %1138 = vmatpush.bf16.msra.mxu0 0
      %1139 = vmatpush.bf16.msra.mxu0 0
      %1140 = vmatpush.bf16.msra.mxu0 0
      %1141 = vmatpush.bf16.msra.mxu0 0
      %1142 = vmatpush.bf16.msra.mxu0 0
      %1143 = vmatpush.bf16.msra.mxu0 0
      %1144 = vmatpush.bf16.msra.mxu0 0
      %1145 = vmatpush.bf16.msra.mxu0 %v1136
      %1146 = vmatmul.bf16.gmra.mxu0 %v1132
      %v1147 = vpop.f32.mrf.mxu0
      %v1148 = vadd.f32 0.0, %v1147
      %v1149 = vpop.f32.mrf.mxu0
      %1150 = vdwg.mxu0
      %1151 = vrot.lane.b32.xlu0 %v1000, 112
      %v1152 = vpop.permute.xlu0 %1151
      %v1154 = vsel %vm978, %v1126, 0
      %v1157 = vsel %vm1134, %v1152, 0
      %1159 = vmatpush.bf16.msra.mxu0 0
      %1160 = vmatpush.bf16.msra.mxu0 0
      %1161 = vmatpush.bf16.msra.mxu0 0
      %1162 = vmatpush.bf16.msra.mxu0 0
      %1163 = vmatpush.bf16.msra.mxu0 0
      %1164 = vmatpush.bf16.msra.mxu0 0
      %1165 = vmatpush.bf16.msra.mxu0 0
      %1166 = vmatpush.bf16.msra.mxu0 %v1157
      %1167 = vmatmul.bf16.gmra.mxu0 %v1154
      %v1168 = vpop.f32.mrf.mxu0
      %v1169 = vadd.f32 0.0, %v1168
      %v1170 = vpop.f32.mrf.mxu0
      %1171 = vdwg.mxu0
      %1172 = vrot.lane.b32.xlu0 %v1024, 112
      %v1173 = vpop.permute.xlu0 %1172
      %v1175 = vsel %vm978, %v1127, 0
      %v1178 = vsel %vm1134, %v1173, 0
      %1180 = vmatpush.bf16.msra.mxu0 0
      %1181 = vmatpush.bf16.msra.mxu0 0
      %1182 = vmatpush.bf16.msra.mxu0 0
      %1183 = vmatpush.bf16.msra.mxu0 0
      %1184 = vmatpush.bf16.msra.mxu0 0
      %1185 = vmatpush.bf16.msra.mxu0 0
      %1186 = vmatpush.bf16.msra.mxu0 0
      %1187 = vmatpush.bf16.msra.mxu0 %v1178
      %1188 = vmatmul.bf16.gmra.mxu0 %v1175
      %v1189 = vpop.f32.mrf.mxu0
      %v1190 = vadd.f32 0.0, %v1189
      %v1191 = vpop.f32.mrf.mxu0
      %1192 = vdwg.mxu0
      %1193 = vrot.lane.b32.xlu0 %v1048, 112
      %v1194 = vpop.permute.xlu0 %1193
      %v1196 = vsel %vm978, %v1128, 0
      %v1199 = vsel %vm1134, %v1194, 0
      %1201 = vmatpush.bf16.msra.mxu0 0
      %1202 = vmatpush.bf16.msra.mxu0 0
      %1203 = vmatpush.bf16.msra.mxu0 0
      %1204 = vmatpush.bf16.msra.mxu0 0
      %1205 = vmatpush.bf16.msra.mxu0 0
      %1206 = vmatpush.bf16.msra.mxu0 0
      %1207 = vmatpush.bf16.msra.mxu0 0
      %1208 = vmatpush.bf16.msra.mxu0 %v1199
      %1209 = vmatmul.bf16.gmra.mxu0 %v1196
      %v1210 = vpop.f32.mrf.mxu0
      %v1211 = vadd.f32 0.0, %v1210
      %v1212 = vpop.f32.mrf.mxu0
      %1213 = vdwg.mxu0
      %v1214 = vld [vmem:[%s5] sm:$0xf]
      %v1215 = vld [vmem:[%s5 + $0x4] sm:$0xf]
      %v1216 = vld [vmem:[%s5 + $0x8] sm:$0xf]
      %v1217 = vld [vmem:[%s5 + $0xc] sm:$0xf]
      %v1218 = vld [vmem:[%s6] sm:$0x1]
      %v1219 = vpack.c.bf16 %v1148, %v1148
      %v1220 = vpack.c.bf16 %v1169, %v1169
      %v1221 = vpack.c.bf16 %v1190, %v1190
      %v1222 = vpack.c.bf16 %v1211, %v1211
      %v1224 = vsel %vm978, %v1219, 0
      %v1227 = vsel %vm1134, %v1214, 0
      %1229 = vmatpush.bf16.msra.mxu0 0
      %1230 = vmatpush.bf16.msra.mxu0 0
      %1231 = vmatpush.bf16.msra.mxu0 0
      %1232 = vmatpush.bf16.msra.mxu0 0
      %1233 = vmatpush.bf16.msra.mxu0 0
      %1234 = vmatpush.bf16.msra.mxu0 0
      %1235 = vmatpush.bf16.msra.mxu0 0
      %1236 = vmatpush.bf16.msra.mxu0 %v1227
      %1237 = vmatmul.bf16.gmra.mxu0 %v1224
      %v1238 = vpop.f32.mrf.mxu0
      %v1239 = vadd.f32 0.0, %v1238
      %v1240 = vpop.f32.mrf.mxu0
      %1241 = vdwg.mxu0
      %v1243 = vsel %vm978, %v1220, 0
      %v1246 = vsel %vm1134, %v1215, 0
      %1248 = vmatpush.bf16.msra.mxu0 0
      %1249 = vmatpush.bf16.msra.mxu0 0
      %1250 = vmatpush.bf16.msra.mxu0 0
      %1251 = vmatpush.bf16.msra.mxu0 0
      %1252 = vmatpush.bf16.msra.mxu0 0
      %1253 = vmatpush.bf16.msra.mxu0 0
      %1254 = vmatpush.bf16.msra.mxu0 0
      %1255 = vmatpush.bf16.msra.mxu0 %v1246
      %1256 = vmatmul.bf16.gmra.mxu0 %v1243
      %v1257 = vpop.f32.mrf.mxu0
      %v1258 = vadd.f32 0.0, %v1257
      %v1259 = vpop.f32.mrf.mxu0
      %1260 = vdwg.mxu0
      %v1262 = vsel %vm978, %v1221, 0
      %v1265 = vsel %vm1134, %v1216, 0
      %1267 = vmatpush.bf16.msra.mxu0 0
      %1268 = vmatpush.bf16.msra.mxu0 0
      %1269 = vmatpush.bf16.msra.mxu0 0
      %1270 = vmatpush.bf16.msra.mxu0 0
      %1271 = vmatpush.bf16.msra.mxu0 0
      %1272 = vmatpush.bf16.msra.mxu0 0
      %1273 = vmatpush.bf16.msra.mxu0 0
      %1274 = vmatpush.bf16.msra.mxu0 %v1265
      %1275 = vmatmul.bf16.gmra.mxu0 %v1262
      %v1276 = vpop.f32.mrf.mxu0
      %v1277 = vadd.f32 0.0, %v1276
      %v1278 = vpop.f32.mrf.mxu0
      %1279 = vdwg.mxu0
      %v1281 = vsel %vm978, %v1222, 0
      %v1284 = vsel %vm1134, %v1217, 0
      %1286 = vmatpush.bf16.msra.mxu0 0
      %1287 = vmatpush.bf16.msra.mxu0 0
      %1288 = vmatpush.bf16.msra.mxu0 0
      %1289 = vmatpush.bf16.msra.mxu0 0
      %1290 = vmatpush.bf16.msra.mxu0 0
      %1291 = vmatpush.bf16.msra.mxu0 0
      %1292 = vmatpush.bf16.msra.mxu0 0
      %1293 = vmatpush.bf16.msra.mxu0 %v1284
      %1294 = vmatmul.bf16.gmra.mxu0 %v1281
      %v1295 = vpop.f32.mrf.mxu0
      %v1296 = vadd.f32 0.0, %v1295
      %v1297 = vpop.f32.mrf.mxu0
      %1298 = vdwg.mxu0
      %v1299 = vsel %vm877, %v1239, 0.0
      %v1300 = vsel %vm877, %v1258, 0.0
      %v1301 = vadd.f32 %v1299, %v1300
      %v1302 = vsel %vm877, %v1277, 0.0
      %v1303 = vadd.f32 %v1301, %v1302
      %v1304 = vsel %vm877, %v1296, 0.0
      %v1305 = vadd.f32 %v1303, %v1304
      %v1307 = vperm.slane %v1218, 0
      %v1309 = vadd.f32 %v1305, %v1307
      %v1310 = vadd.f32 %v1309, %v826
      %v1311 = vld [vmem:[%s7] sm:$0x1]
      %v1312 = vld [vmem:[%s8] sm:$0x1]
      %v1313 = vsel %vm877, %v1310, 0.0
      %1314 = vadd.xlane.f32.xlu0 %v1313
      %v1315 = vpop.xlane.xlu0 %1314
      %v1316 = vrcp.pop 32.0
      %v1317 = vmul.f32 32.0, %v1316
      %v1318 = vsub.f32 1.0, %v1317
      %v1319 = vmul.f32 %v1316, %v1318
      %v1320 = vadd.f32 %v1316, %v1319
      %vm1321 = vweird.f32 %v1316
      %v1322 = vsel %vm1321, %v1316, %v1320
      %v1323 = vmul.f32 %v1315, %v1322
      %v1324 = vsub.f32 %v1310, %v1323
      %v1325 = vmul.f32 %v1324, %v1324
      %v1326 = vsel %vm877, %v1325, 0.0
      %1327 = vadd.xlane.f32.xlu0 %v1326
      %v1328 = vpop.xlane.xlu0 %1327
      %v1329 = vmul.f32 %v1328, %v1322
      %v1330 = vadd.f32 %v1329, 1e-12
      %v1331 = vrsqrt.pop %v1330
      %v1332 = vmul.f32 %v1331, %v1330
      %v1333 = vmul.f32 %v1332, %v1331
      %v1334 = vmul.f32 0.5, %v1333
      %v1335 = vsub.f32 1.5, %v1334
      %v1336 = vmul.f32 %v1331, %v1335
      %vm1337 = vweird.f32 %v1330
      %vm1338 = vweird.f32 %v1331
      %vm1339 = vmor %vm1337, %vm1338
      %v1340 = vsel %vm1339, %v1331, %v1336
      %v1341 = vmul.f32 %v1324, %v1340
      %v1343 = vperm.slane %v1311, 0
      %v1345 = vmul.f32 %v1341, %v1343
      %v1347 = vperm.slane %v1312, 0
      %v1349 = vadd.f32 %v1345, %v1347
      %v1350 = vpack.c.bf16 %v1349, %v1349
      %v1351 = vld [vmem:[%s9] sm:$0xf]
      %v1352 = vld [vmem:[%s9 + $0x4] sm:$0xf]
      %v1353 = vld [vmem:[%s9 + $0x8] sm:$0xf]
      %v1354 = vld [vmem:[%s9 + $0xc] sm:$0xf]
      %v1355 = vld [vmem:[%s9 + $0x10] sm:$0xf]
      %v1356 = vld [vmem:[%s9 + $0x14] sm:$0xf]
      %v1357 = vld [vmem:[%s9 + $0x18] sm:$0xf]
      %v1358 = vld [vmem:[%s9 + $0x1c] sm:$0xf]
      %v1359 = vld [vmem:[%s9 + $0x20] sm:$0xf]
      %v1360 = vld [vmem:[%s9 + $0x24] sm:$0xf]
      %v1361 = vld [vmem:[%s9 + $0x28] sm:$0xf]
      %v1362 = vld [vmem:[%s9 + $0x2c] sm:$0xf]
      %v1363 = vld [vmem:[%s9 + $0x30] sm:$0xf]
      %v1364 = vld [vmem:[%s9 + $0x34] sm:$0xf]
      %v1365 = vld [vmem:[%s9 + $0x38] sm:$0xf]
      %v1366 = vld [vmem:[%s9 + $0x3c] sm:$0xf]
      %v1367 = vld [vmem:[%s10] sm:$0x1]
      %v1368 = vld [vmem:[%s10 + $0x1] sm:$0x1]
      %v1369 = vld [vmem:[%s10 + $0x2] sm:$0x1]
      %v1370 = vld [vmem:[%s10 + $0x3] sm:$0x1]
      %v1375 = vperm.slane %v1367, 0
      %v1376 = vperm.slane %v1368, 0
      %v1377 = vperm.slane %v1369, 0
      %v1378 = vperm.slane %v1370, 0
      %v1387 = vunpack.c.l.b16 %v1351
      %v1388 = vunpack.c.l.b16 %v1352
      %v1389 = vunpack.c.l.b16 %v1353
      %v1390 = vunpack.c.l.b16 %v1354
      %v1391 = vpack.c.b16 %v1388, %v1387
      %v1392 = vpack.c.b16 %v1390, %v1389
      %v1396 = vsel %vm877, %v1350, 0
      %1398 = vmatpush.bf16.msra.mxu0 0
      %1399 = vmatpush.bf16.msra.mxu0 0
      %1400 = vmatpush.bf16.msra.mxu0 0
      %1401 = vmatpush.bf16.msra.mxu0 0
      %1402 = vmatpush.bf16.msra.mxu0 0
      %1403 = vmatpush.bf16.msra.mxu0 0
      %1404 = vmatpush.bf16.msra.mxu0 %v1392
      %1405 = vmatpush.bf16.msra.mxu0 %v1391
      %1406 = vmatmul.bf16.gmra.mxu0 %v1396
      %v1407 = vpop.f32.mrf.mxu0
      %v1408 = vadd.f32 %v1375, %v1407
      %v1409 = vpop.f32.mrf.mxu0
      %1410 = vdwg.mxu0
      %v1415 = vunpack.c.l.b16 %v1355
      %v1416 = vunpack.c.l.b16 %v1356
      %v1417 = vunpack.c.l.b16 %v1357
      %v1418 = vunpack.c.l.b16 %v1358
      %v1419 = vpack.c.b16 %v1416, %v1415
      %v1420 = vpack.c.b16 %v1418, %v1417
      %1423 = vmatpush.bf16.msra.mxu0 0
      %1424 = vmatpush.bf16.msra.mxu0 0
      %1425 = vmatpush.bf16.msra.mxu0 0
      %1426 = vmatpush.bf16.msra.mxu0 0
      %1427 = vmatpush.bf16.msra.mxu0 0
      %1428 = vmatpush.bf16.msra.mxu0 0
      %1429 = vmatpush.bf16.msra.mxu0 %v1420
      %1430 = vmatpush.bf16.msra.mxu0 %v1419
      %1431 = vmatmul.bf16.gmra.mxu0 %v1396
      %v1432 = vpop.f32.mrf.mxu0
      %v1433 = vadd.f32 %v1376, %v1432
      %v1434 = vpop.f32.mrf.mxu0
      %1435 = vdwg.mxu0
      %v1440 = vunpack.c.l.b16 %v1359
      %v1441 = vunpack.c.l.b16 %v1360
      %v1442 = vunpack.c.l.b16 %v1361
      %v1443 = vunpack.c.l.b16 %v1362
      %v1444 = vpack.c.b16 %v1441, %v1440
      %v1445 = vpack.c.b16 %v1443, %v1442
      %1448 = vmatpush.bf16.msra.mxu0 0
      %1449 = vmatpush.bf16.msra.mxu0 0
      %1450 = vmatpush.bf16.msra.mxu0 0
      %1451 = vmatpush.bf16.msra.mxu0 0
      %1452 = vmatpush.bf16.msra.mxu0 0
      %1453 = vmatpush.bf16.msra.mxu0 0
      %1454 = vmatpush.bf16.msra.mxu0 %v1445
      %1455 = vmatpush.bf16.msra.mxu0 %v1444
      %1456 = vmatmul.bf16.gmra.mxu0 %v1396
      %v1457 = vpop.f32.mrf.mxu0
      %v1458 = vadd.f32 %v1377, %v1457
      %v1459 = vpop.f32.mrf.mxu0
      %1460 = vdwg.mxu0
      %v1465 = vunpack.c.l.b16 %v1363
      %v1466 = vunpack.c.l.b16 %v1364
      %v1467 = vunpack.c.l.b16 %v1365
      %v1468 = vunpack.c.l.b16 %v1366
      %v1469 = vpack.c.b16 %v1466, %v1465
      %v1470 = vpack.c.b16 %v1468, %v1467
      %1473 = vmatpush.bf16.msra.mxu0 0
      %1474 = vmatpush.bf16.msra.mxu0 0
      %1475 = vmatpush.bf16.msra.mxu0 0
      %1476 = vmatpush.bf16.msra.mxu0 0
      %1477 = vmatpush.bf16.msra.mxu0 0
      %1478 = vmatpush.bf16.msra.mxu0 0
      %1479 = vmatpush.bf16.msra.mxu0 %v1470
      %1480 = vmatpush.bf16.msra.mxu0 %v1469
      %1481 = vmatmul.bf16.gmra.mxu0 %v1396
      %v1482 = vpop.f32.mrf.mxu0
      %v1483 = vadd.f32 %v1378, %v1482
      %v1484 = vpop.f32.mrf.mxu0
      %1485 = vdwg.mxu0
      %v1486 = vld [vmem:[%s11] sm:$0xf]
      %v1487 = vld [vmem:[%s11 + $0x4] sm:$0xf]
      %v1488 = vld [vmem:[%s11 + $0x8] sm:$0xf]
      %v1489 = vld [vmem:[%s11 + $0xc] sm:$0xf]
      %v1490 = vld [vmem:[%s11 + $0x10] sm:$0xf]
      %v1491 = vld [vmem:[%s11 + $0x14] sm:$0xf]
      %v1492 = vld [vmem:[%s11 + $0x18] sm:$0xf]
      %v1493 = vld [vmem:[%s11 + $0x1c] sm:$0xf]
      %v1494 = vld [vmem:[%s11 + $0x20] sm:$0xf]
      %v1495 = vld [vmem:[%s11 + $0x24] sm:$0xf]
      %v1496 = vld [vmem:[%s11 + $0x28] sm:$0xf]
      %v1497 = vld [vmem:[%s11 + $0x2c] sm:$0xf]
      %v1498 = vld [vmem:[%s11 + $0x30] sm:$0xf]
      %v1499 = vld [vmem:[%s11 + $0x34] sm:$0xf]
      %v1500 = vld [vmem:[%s11 + $0x38] sm:$0xf]
      %v1501 = vld [vmem:[%s11 + $0x3c] sm:$0xf]
      %v1502 = vld [vmem:[%s12] sm:$0x1]
      %v1503 = vld [vmem:[%s12 + $0x1] sm:$0x1]
      %v1504 = vld [vmem:[%s12 + $0x2] sm:$0x1]
      %v1505 = vld [vmem:[%s12 + $0x3] sm:$0x1]
      %v1510 = vperm.slane %v1502, 0
      %v1511 = vperm.slane %v1503, 0
      %v1512 = vperm.slane %v1504, 0
      %v1513 = vperm.slane %v1505, 0
      %v1522 = vunpack.c.l.b16 %v1486
      %v1523 = vunpack.c.l.b16 %v1487
      %v1524 = vunpack.c.l.b16 %v1488
      %v1525 = vunpack.c.l.b16 %v1489
      %v1526 = vpack.c.b16 %v1523, %v1522
      %v1527 = vpack.c.b16 %v1525, %v1524
      %v1531 = vsel %vm877, %v831, 0
      %1533 = vmatpush.bf16.msra.mxu0 0
      %1534 = vmatpush.bf16.msra.mxu0 0
      %1535 = vmatpush.bf16.msra.mxu0 0
      %1536 = vmatpush.bf16.msra.mxu0 0
      %1537 = vmatpush.bf16.msra.mxu0 0
      %1538 = vmatpush.bf16.msra.mxu0 0
      %1539 = vmatpush.bf16.msra.mxu0 %v1527
      %1540 = vmatpush.bf16.msra.mxu0 %v1526
      %1541 = vmatmul.bf16.gmra.mxu0 %v1531
      %v1542 = vpop.f32.mrf.mxu0
      %v1543 = vadd.f32 %v1510, %v1542
      %v1544 = vpop.f32.mrf.mxu0
      %1545 = vdwg.mxu0
      %v1550 = vunpack.c.l.b16 %v1490
      %v1551 = vunpack.c.l.b16 %v1491
      %v1552 = vunpack.c.l.b16 %v1492
      %v1553 = vunpack.c.l.b16 %v1493
      %v1554 = vpack.c.b16 %v1551, %v1550
      %v1555 = vpack.c.b16 %v1553, %v1552
      %1558 = vmatpush.bf16.msra.mxu0 0
      %1559 = vmatpush.bf16.msra.mxu0 0
      %1560 = vmatpush.bf16.msra.mxu0 0
      %1561 = vmatpush.bf16.msra.mxu0 0
      %1562 = vmatpush.bf16.msra.mxu0 0
      %1563 = vmatpush.bf16.msra.mxu0 0
      %1564 = vmatpush.bf16.msra.mxu0 %v1555
      %1565 = vmatpush.bf16.msra.mxu0 %v1554
      %1566 = vmatmul.bf16.gmra.mxu0 %v1531
      %v1567 = vpop.f32.mrf.mxu0
      %v1568 = vadd.f32 %v1511, %v1567
      %v1569 = vpop.f32.mrf.mxu0
      %1570 = vdwg.mxu0
      %v1575 = vunpack.c.l.b16 %v1494
      %v1576 = vunpack.c.l.b16 %v1495
      %v1577 = vunpack.c.l.b16 %v1496
      %v1578 = vunpack.c.l.b16 %v1497
      %v1579 = vpack.c.b16 %v1576, %v1575
      %v1580 = vpack.c.b16 %v1578, %v1577
      %1583 = vmatpush.bf16.msra.mxu0 0
      %1584 = vmatpush.bf16.msra.mxu0 0
      %1585 = vmatpush.bf16.msra.mxu0 0
      %1586 = vmatpush.bf16.msra.mxu0 0
      %1587 = vmatpush.bf16.msra.mxu0 0
      %1588 = vmatpush.bf16.msra.mxu0 0
      %1589 = vmatpush.bf16.msra.mxu0 %v1580
      %1590 = vmatpush.bf16.msra.mxu0 %v1579
      %1591 = vmatmul.bf16.gmra.mxu0 %v1531
      %v1592 = vpop.f32.mrf.mxu0
      %v1593 = vadd.f32 %v1512, %v1592
      %v1594 = vpop.f32.mrf.mxu0
      %1595 = vdwg.mxu0
      %v1600 = vunpack.c.l.b16 %v1498
      %v1601 = vunpack.c.l.b16 %v1499
      %v1602 = vunpack.c.l.b16 %v1500
      %v1603 = vunpack.c.l.b16 %v1501
      %v1604 = vpack.c.b16 %v1601, %v1600
      %v1605 = vpack.c.b16 %v1603, %v1602
      %1608 = vmatpush.bf16.msra.mxu0 0
      %1609 = vmatpush.bf16.msra.mxu0 0
      %1610 = vmatpush.bf16.msra.mxu0 0
      %1611 = vmatpush.bf16.msra.mxu0 0
      %1612 = vmatpush.bf16.msra.mxu0 0
      %1613 = vmatpush.bf16.msra.mxu0 0
      %1614 = vmatpush.bf16.msra.mxu0 %v1605
      %1615 = vmatpush.bf16.msra.mxu0 %v1604
      %1616 = vmatmul.bf16.gmra.mxu0 %v1531
      %v1617 = vpop.f32.mrf.mxu0
      %v1618 = vadd.f32 %v1513, %v1617
      %v1619 = vpop.f32.mrf.mxu0
      %1620 = vdwg.mxu0
      %v1621 = vpack.c.bf16 %v1543, %v1543
      %v1622 = vpack.c.bf16 %v1568, %v1568
      %v1623 = vpack.c.bf16 %v1593, %v1593
      %v1624 = vpack.c.bf16 %v1618, %v1618
      %v1625 = vpack.c.bf16 %v1408, %v1408
      %v1626 = vpack.c.bf16 %v1433, %v1433
      %v1627 = vpack.c.bf16 %v1458, %v1458
      %v1628 = vpack.c.bf16 %v1483, %v1483
      %v1630 = vsel %vm978, %v1625, 0
      %v1633 = vsel %vm978, %v1621, 0
      %1635 = vmatpush.bf16.xpose.msra.mxu0 0
      %1636 = vmatpush.bf16.xpose.msra.mxu0 0
      %1637 = vmatpush.bf16.xpose.msra.mxu0 0
      %1638 = vmatpush.bf16.xpose.msra.mxu0 0
      %1639 = vmatpush.bf16.xpose.msra.mxu0 0
      %1640 = vmatpush.bf16.xpose.msra.mxu0 0
      %1641 = vmatpush.bf16.xpose.msra.mxu0 0
      %1642 = vmatpush.bf16.xpose.msra.mxu0 %v1633
      %1643 = vmatmul.bf16.gmra.mxu0 %v1630
      %v1644 = vpop.f32.mrf.mxu0
      %v1645 = vadd.f32 0.0, %v1644
      %v1646 = vpop.f32.mrf.mxu0
      %1647 = vdwg.mxu0
      %v1649 = vsel %vm978, %v1626, 0
      %v1652 = vsel %vm978, %v1622, 0
      %1654 = vmatpush.bf16.xpose.msra.mxu0 0
      %1655 = vmatpush.bf16.xpose.msra.mxu0 0
      %1656 = vmatpush.bf16.xpose.msra.mxu0 0
      %1657 = vmatpush.bf16.xpose.msra.mxu0 0
      %1658 = vmatpush.bf16.xpose.msra.mxu0 0
      %1659 = vmatpush.bf16.xpose.msra.mxu0 0
      %1660 = vmatpush.bf16.xpose.msra.mxu0 0
      %1661 = vmatpush.bf16.xpose.msra.mxu0 %v1652
      %1662 = vmatmul.bf16.gmra.mxu0 %v1649
      %v1663 = vpop.f32.mrf.mxu0
      %v1664 = vadd.f32 0.0, %v1663
      %v1665 = vpop.f32.mrf.mxu0
      %1666 = vdwg.mxu0
      %v1668 = vsel %vm978, %v1627, 0
      %v1671 = vsel %vm978, %v1623, 0
      %1673 = vmatpush.bf16.xpose.msra.mxu0 0
      %1674 = vmatpush.bf16.xpose.msra.mxu0 0
      %1675 = vmatpush.bf16.xpose.msra.mxu0 0
      %1676 = vmatpush.bf16.xpose.msra.mxu0 0
      %1677 = vmatpush.bf16.xpose.msra.mxu0 0
      %1678 = vmatpush.bf16.xpose.msra.mxu0 0
      %1679 = vmatpush.bf16.xpose.msra.mxu0 0
      %1680 = vmatpush.bf16.xpose.msra.mxu0 %v1671
      %1681 = vmatmul.bf16.gmra.mxu0 %v1668
      %v1682 = vpop.f32.mrf.mxu0
      %v1683 = vadd.f32 0.0, %v1682
      %v1684 = vpop.f32.mrf.mxu0
      %1685 = vdwg.mxu0
      %v1687 = vsel %vm978, %v1628, 0
      %v1690 = vsel %vm978, %v1624, 0
      %1692 = vmatpush.bf16.xpose.msra.mxu0 0
      %1693 = vmatpush.bf16.xpose.msra.mxu0 0
      %1694 = vmatpush.bf16.xpose.msra.mxu0 0
      %1695 = vmatpush.bf16.xpose.msra.mxu0 0
      %1696 = vmatpush.bf16.xpose.msra.mxu0 0
      %1697 = vmatpush.bf16.xpose.msra.mxu0 0
      %1698 = vmatpush.bf16.xpose.msra.mxu0 0
      %1699 = vmatpush.bf16.xpose.msra.mxu0 %v1690
      %1700 = vmatmul.bf16.gmra.mxu0 %v1687
      %v1701 = vpop.f32.mrf.mxu0
      %v1702 = vadd.f32 0.0, %v1701
      %v1703 = vpop.f32.mrf.mxu0
      %1704 = vdwg.mxu0
      %v1705 = vmul.f32 %v1645, 0.35355338
      %v1706 = vmul.f32 %v1664, 0.35355338
      %v1707 = vmul.f32 %v1683, 0.35355338
      %v1708 = vmul.f32 %v1702, 0.35355338
      %vm1709 = vcmask 39936
      %v1710 = vsel %vm1709, %v1705, -inf
      %1711 = vmax.xlane.f32.xlu0 %v1710
      %v1712 = vpop.xlane.xlu0 %1711
      %v1713 = vsel %vm1709, %v1706, -inf
      %1714 = vmax.xlane.f32.xlu0 %v1713
      %v1715 = vpop.xlane.xlu0 %1714
      %v1716 = vsel %vm1709, %v1707, -inf
      %1717 = vmax.xlane.f32.xlu0 %v1716
      %v1718 = vpop.xlane.xlu0 %1717
      %v1719 = vsel %vm1709, %v1708, -inf
      %1720 = vmax.xlane.f32.xlu0 %v1719
      %v1721 = vpop.xlane.xlu0 %1720
      %v1722 = vsub.f32 %v1705, %v1712
      %v1723 = vsub.f32 %v1706, %v1715
      %v1724 = vsub.f32 %v1707, %v1718
      %v1725 = vsub.f32 %v1708, %v1721
      %v1726 = vmul.f32 %v1722, 1.442695
      %v1727 = vpow.pop %v1726
      %v1728 = vmul.f32 %v1723, 1.442695
      %v1729 = vpow.pop %v1728
      %v1730 = vmul.f32 %v1724, 1.442695
      %v1731 = vpow.pop %v1730
      %v1732 = vmul.f32 %v1725, 1.442695
      %v1733 = vpow.pop %v1732
      %v1734 = vsel %vm1709, %v1727, 0.0
      %1735 = vadd.xlane.f32.xlu0 %v1734
      %v1736 = vpop.xlane.xlu0 %1735
      %v1737 = vsel %vm1709, %v1729, 0.0
      %1738 = vadd.xlane.f32.xlu0 %v1737
      %v1739 = vpop.xlane.xlu0 %1738
      %v1740 = vsel %vm1709, %v1731, 0.0
      %1741 = vadd.xlane.f32.xlu0 %v1740
      %v1742 = vpop.xlane.xlu0 %1741
      %v1743 = vsel %vm1709, %v1733, 0.0
      %1744 = vadd.xlane.f32.xlu0 %v1743
      %v1745 = vpop.xlane.xlu0 %1744
      %v1746 = vrcp.pop %v1736
      %v1747 = vrcp.pop %v1739
      %v1748 = vrcp.pop %v1742
      %v1749 = vrcp.pop %v1745
      %v1750 = vmul.f32 %v1727, %v1746
      %v1751 = vmul.f32 %v1729, %v1747
      %v1752 = vmul.f32 %v1731, %v1748
      %v1753 = vmul.f32 %v1733, %v1749
      %v1754 = vpack.c.bf16 %v1750, %v1750
      %v1755 = vpack.c.bf16 %v1751, %v1751
      %v1756 = vpack.c.bf16 %v1752, %v1752
      %v1757 = vpack.c.bf16 %v1753, %v1753
      %v1759 = vunpack.c.l.b16 %v1621
      %v1760 = vpack.c.b16 %v1759, %v1759
      %1761 = vrot.lane.b32.xlu0 %v1760, 120
      %v1762 = vpop.permute.xlu0 %1761
      %v1764 = vsel %vm1709, %v1754, 0
      %vm1766 = vcmask 1041408
      %vm1767 = vcmask 1042432
      %v1768 = vsel %vm1766, 4294967295, 65535
      %v1769 = vsel %vm1767, %v1768, 0
      %v1771 = vand.u32 %v1762, %v1769
      %1773 = vmatpush.bf16.msra.mxu0 0
      %1774 = vmatpush.bf16.msra.mxu0 0
      %1775 = vmatpush.bf16.msra.mxu0 0
      %1776 = vmatpush.bf16.msra.mxu0 0
      %1777 = vmatpush.bf16.msra.mxu0 0
      %1778 = vmatpush.bf16.msra.mxu0 0
      %1779 = vmatpush.bf16.msra.mxu0 0
      %1780 = vmatpush.bf16.msra.mxu0 %v1771
      %1781 = vmatmul.bf16.gmra.mxu0 %v1764
      %v1782 = vpop.f32.mrf.mxu0
      %v1783 = vadd.f32 0.0, %v1782
      %v1784 = vpop.f32.mrf.mxu0
      %1785 = vdwg.mxu0
      %v1787 = vunpack.c.l.b16 %v1622
      %v1788 = vpack.c.b16 %v1787, %v1787
      %1789 = vrot.lane.b32.xlu0 %v1788, 120
      %v1790 = vpop.permute.xlu0 %1789
      %v1792 = vsel %vm1709, %v1755, 0
      %v1795 = vand.u32 %v1790, %v1769
      %1797 = vmatpush.bf16.msra.mxu0 0
      %1798 = vmatpush.bf16.msra.mxu0 0
      %1799 = vmatpush.bf16.msra.mxu0 0
      %1800 = vmatpush.bf16.msra.mxu0 0
      %1801 = vmatpush.bf16.msra.mxu0 0
      %1802 = vmatpush.bf16.msra.mxu0 0
      %1803 = vmatpush.bf16.msra.mxu0 0
      %1804 = vmatpush.bf16.msra.mxu0 %v1795
      %1805 = vmatmul.bf16.gmra.mxu0 %v1792
      %v1806 = vpop.f32.mrf.mxu0
      %v1807 = vadd.f32 0.0, %v1806
      %v1808 = vpop.f32.mrf.mxu0
      %1809 = vdwg.mxu0
      %v1811 = vunpack.c.l.b16 %v1623
      %v1812 = vpack.c.b16 %v1811, %v1811
      %1813 = vrot.lane.b32.xlu0 %v1812, 120
      %v1814 = vpop.permute.xlu0 %1813
      %v1816 = vsel %vm1709, %v1756, 0
      %v1819 = vand.u32 %v1814, %v1769
      %1821 = vmatpush.bf16.msra.mxu0 0
      %1822 = vmatpush.bf16.msra.mxu0 0
      %1823 = vmatpush.bf16.msra.mxu0 0
      %1824 = vmatpush.bf16.msra.mxu0 0
      %1825 = vmatpush.bf16.msra.mxu0 0
      %1826 = vmatpush.bf16.msra.mxu0 0
      %1827 = vmatpush.bf16.msra.mxu0 0
      %1828 = vmatpush.bf16.msra.mxu0 %v1819
      %1829 = vmatmul.bf16.gmra.mxu0 %v1816
      %v1830 = vpop.f32.mrf.mxu0
      %v1831 = vadd.f32 0.0, %v1830
      %v1832 = vpop.f32.mrf.mxu0
      %1833 = vdwg.mxu0
      %v1835 = vunpack.c.l.b16 %v1624
      %v1836 = vpack.c.b16 %v1835, %v1835
      %1837 = vrot.lane.b32.xlu0 %v1836, 120
      %v1838 = vpop.permute.xlu0 %1837
      %v1840 = vsel %vm1709, %v1757, 0
      %v1843 = vand.u32 %v1838, %v1769
      %1845 = vmatpush.bf16.msra.mxu0 0
      %1846 = vmatpush.bf16.msra.mxu0 0
      %1847 = vmatpush.bf16.msra.mxu0 0
      %1848 = vmatpush.bf16.msra.mxu0 0
      %1849 = vmatpush.bf16.msra.mxu0 0
      %1850 = vmatpush.bf16.msra.mxu0 0
      %1851 = vmatpush.bf16.msra.mxu0 0
      %1852 = vmatpush.bf16.msra.mxu0 %v1843
      %1853 = vmatmul.bf16.gmra.mxu0 %v1840
      %v1854 = vpop.f32.mrf.mxu0
      %v1855 = vadd.f32 0.0, %v1854
      %v1856 = vpop.f32.mrf.mxu0
      %1857 = vdwg.mxu0
      %v1858 = vld [vmem:[%s13] sm:$0xf]
      %v1859 = vld [vmem:[%s13 + $0x4] sm:$0xf]
      %v1860 = vld [vmem:[%s13 + $0x8] sm:$0xf]
      %v1861 = vld [vmem:[%s13 + $0xc] sm:$0xf]
      %v1862 = vld [vmem:[%s14] sm:$0x1]
      %v1863 = vpack.c.bf16 %v1783, %v1783
      %v1864 = vpack.c.bf16 %v1807, %v1807
      %v1865 = vpack.c.bf16 %v1831, %v1831
      %v1866 = vpack.c.bf16 %v1855, %v1855
      %v1868 = vsel %vm978, %v1863, 0
      %v1871 = vsel %vm1134, %v1858, 0
      %1873 = vmatpush.bf16.msra.mxu0 0
      %1874 = vmatpush.bf16.msra.mxu0 0
      %1875 = vmatpush.bf16.msra.mxu0 0
      %1876 = vmatpush.bf16.msra.mxu0 0
      %1877 = vmatpush.bf16.msra.mxu0 0
      %1878 = vmatpush.bf16.msra.mxu0 0
      %1879 = vmatpush.bf16.msra.mxu0 0
      %1880 = vmatpush.bf16.msra.mxu0 %v1871
      %1881 = vmatmul.bf16.gmra.mxu0 %v1868
      %v1882 = vpop.f32.mrf.mxu0
      %v1883 = vadd.f32 0.0, %v1882
      %v1884 = vpop.f32.mrf.mxu0
      %1885 = vdwg.mxu0
      %v1887 = vsel %vm978, %v1864, 0
      %v1890 = vsel %vm1134, %v1859, 0
      %1892 = vmatpush.bf16.msra.mxu0 0
      %1893 = vmatpush.bf16.msra.mxu0 0
      %1894 = vmatpush.bf16.msra.mxu0 0
      %1895 = vmatpush.bf16.msra.mxu0 0
      %1896 = vmatpush.bf16.msra.mxu0 0
      %1897 = vmatpush.bf16.msra.mxu0 0
      %1898 = vmatpush.bf16.msra.mxu0 0
      %1899 = vmatpush.bf16.msra.mxu0 %v1890
      %1900 = vmatmul.bf16.gmra.mxu0 %v1887
      %v1901 = vpop.f32.mrf.mxu0
      %v1902 = vadd.f32 0.0, %v1901
      %v1903 = vpop.f32.mrf.mxu0
      %1904 = vdwg.mxu0
      %v1906 = vsel %vm978, %v1865, 0
      %v1909 = vsel %vm1134, %v1860, 0
      %1911 = vmatpush.bf16.msra.mxu0 0
      %1912 = vmatpush.bf16.msra.mxu0 0
      %1913 = vmatpush.bf16.msra.mxu0 0
      %1914 = vmatpush.bf16.msra.mxu0 0
      %1915 = vmatpush.bf16.msra.mxu0 0
      %1916 = vmatpush.bf16.msra.mxu0 0
      %1917 = vmatpush.bf16.msra.mxu0 0
      %1918 = vmatpush.bf16.msra.mxu0 %v1909
      %1919 = vmatmul.bf16.gmra.mxu0 %v1906
      %v1920 = vpop.f32.mrf.mxu0
      %v1921 = vadd.f32 0.0, %v1920
      %v1922 = vpop.f32.mrf.mxu0
      %1923 = vdwg.mxu0
      %v1925 = vsel %vm978, %v1866, 0
      %v1928 = vsel %vm1134, %v1861, 0
      %1930 = vmatpush.bf16.msra.mxu0 0
      %1931 = vmatpush.bf16.msra.mxu0 0
      %1932 = vmatpush.bf16.msra.mxu0 0
      %1933 = vmatpush.bf16.msra.mxu0 0
      %1934 = vmatpush.bf16.msra.mxu0 0
      %1935 = vmatpush.bf16.msra.mxu0 0
      %1936 = vmatpush.bf16.msra.mxu0 0
      %1937 = vmatpush.bf16.msra.mxu0 %v1928
      %1938 = vmatmul.bf16.gmra.mxu0 %v1925
      %v1939 = vpop.f32.mrf.mxu0
      %v1940 = vadd.f32 0.0, %v1939
      %v1941 = vpop.f32.mrf.mxu0
      %1942 = vdwg.mxu0
      %v1943 = vsel %vm877, %v1883, 0.0
      %v1944 = vsel %vm877, %v1902, 0.0
      %v1945 = vadd.f32 %v1943, %v1944
      %v1946 = vsel %vm877, %v1921, 0.0
      %v1947 = vadd.f32 %v1945, %v1946
      %v1948 = vsel %vm877, %v1940, 0.0
      %v1949 = vadd.f32 %v1947, %v1948
      %v1951 = vperm.slane %v1862, 0
      %v1953 = vadd.f32 %v1949, %v1951
      %v1954 = vadd.f32 %v1953, %v1349
      %v1955 = vld [vmem:[%s15] sm:$0x1]
      %v1956 = vld [vmem:[%s16] sm:$0x1]
      %v1957 = vsel %vm877, %v1954, 0.0
      %1958 = vadd.xlane.f32.xlu0 %v1957
      %v1959 = vpop.xlane.xlu0 %1958
      %v1960 = vmul.f32 %v1959, %v1322
      %v1961 = vsub.f32 %v1954, %v1960
      %v1962 = vmul.f32 %v1961, %v1961
      %v1963 = vsel %vm877, %v1962, 0.0
      %1964 = vadd.xlane.f32.xlu0 %v1963
      %v1965 = vpop.xlane.xlu0 %1964
      %v1966 = vmul.f32 %v1965, %v1322
      %v1967 = vadd.f32 %v1966, 1e-12
      %v1968 = vrsqrt.pop %v1967
      %v1969 = vmul.f32 %v1968, %v1967
      %v1970 = vmul.f32 %v1969, %v1968
      %v1971 = vmul.f32 0.5, %v1970
      %v1972 = vsub.f32 1.5, %v1971
      %v1973 = vmul.f32 %v1968, %v1972
      %vm1974 = vweird.f32 %v1967
      %vm1975 = vweird.f32 %v1968
      %vm1976 = vmor %vm1974, %vm1975
      %v1977 = vsel %vm1976, %v1968, %v1973
      %v1978 = vmul.f32 %v1961, %v1977
      %v1980 = vperm.slane %v1955, 0
      %v1982 = vmul.f32 %v1978, %v1980
      %v1984 = vperm.slane %v1956, 0
      %v1986 = vadd.f32 %v1982, %v1984
      %v1987 = vld [vmem:[%s17] sm:$0xf]
      %v1988 = vld [vmem:[%s17 + $0x4] sm:$0xf]
      %v1989 = vld [vmem:[%s17 + $0x8] sm:$0xf]
      %v1990 = vld [vmem:[%s17 + $0xc] sm:$0xf]
      %v1991 = vpack.c.bf16 %v1986, %v1986
      %v1992 = vld [vmem:[%s18] sm:$0x1]
      %v1994 = vperm.slane %v1992, 0
      %v2000 = vunpack.c.l.b16 %v1987
      %v2001 = vunpack.c.l.b16 %v1988
      %v2002 = vunpack.c.l.b16 %v1989
      %v2003 = vunpack.c.l.b16 %v1990
      %v2004 = vpack.c.b16 %v2001, %v2000
      %v2005 = vpack.c.b16 %v2003, %v2002
      %v2009 = vsel %vm877, %v1991, 0
      %2011 = vmatpush.bf16.msra.mxu0 0
      %2012 = vmatpush.bf16.msra.mxu0 0
      %2013 = vmatpush.bf16.msra.mxu0 0
      %2014 = vmatpush.bf16.msra.mxu0 0
      %2015 = vmatpush.bf16.msra.mxu0 0
      %2016 = vmatpush.bf16.msra.mxu0 0
      %2017 = vmatpush.bf16.msra.mxu0 %v2005
      %2018 = vmatpush.bf16.msra.mxu0 %v2004
      %2019 = vmatmul.bf16.gmra.mxu0 %v2009
      %v2020 = vpop.f32.mrf.mxu0
      %v2021 = vadd.f32 %v1994, %v2020
      %v2022 = vpop.f32.mrf.mxu0
      %2023 = vdwg.mxu0
      %v2024 = vmul.f32 %v2021, %v2021
      %v2025 = vmul.f32 %v2021, %v2024
      %v2026 = vmul.f32 %v2025, 0.044715
      %v2027 = vadd.f32 %v2021, %v2026
      %v2028 = vmul.f32 %v2027, 0.7978846
      %v2029 = vtanh.pop %v2028
      %v2030 = vadd.f32 %v2029, 1.0
      %v2031 = vmul.f32 %v2030, 0.5
      %v2032 = vmul.f32 %v2021, %v2031
      %v2033 = vld [vmem:[%s19] sm:$0xf]
      %v2034 = vld [vmem:[%s19 + $0x4] sm:$0xf]
      %v2035 = vld [vmem:[%s19 + $0x8] sm:$0xf]
      %v2036 = vld [vmem:[%s19 + $0xc] sm:$0xf]
      %v2037 = vld [vmem:[%s19 + $0x10] sm:$0xf]
      %v2038 = vld [vmem:[%s19 + $0x14] sm:$0xf]
      %v2039 = vld [vmem:[%s19 + $0x18] sm:$0xf]
      %v2040 = vld [vmem:[%s19 + $0x1c] sm:$0xf]
      %v2041 = vld [vmem:[%s19 + $0x20] sm:$0xf]
      %v2042 = vld [vmem:[%s19 + $0x24] sm:$0xf]
      %v2043 = vld [vmem:[%s19 + $0x28] sm:$0xf]
      %v2044 = vld [vmem:[%s19 + $0x2c] sm:$0xf]
      %v2045 = vld [vmem:[%s19 + $0x30] sm:$0xf]
      %v2046 = vld [vmem:[%s19 + $0x34] sm:$0xf]
      %v2047 = vld [vmem:[%s19 + $0x38] sm:$0xf]
      %v2048 = vld [vmem:[%s19 + $0x3c] sm:$0xf]
      %v2049 = vpack.c.bf16 %v2032, %v2032
      %v2050 = vld [vmem:[%s20] sm:$0x1]
      %v2052 = vperm.slane %v2050, 0
      %v2070 = vunpack.c.l.b16 %v2033
      %v2071 = vunpack.c.l.b16 %v2034
      %v2072 = vunpack.c.l.b16 %v2035
      %v2073 = vunpack.c.l.b16 %v2036
      %v2074 = vunpack.c.l.b16 %v2037
      %v2075 = vunpack.c.l.b16 %v2038
      %v2076 = vunpack.c.l.b16 %v2039
      %v2077 = vunpack.c.l.b16 %v2040
      %v2078 = vunpack.c.l.b16 %v2041
      %v2079 = vunpack.c.l.b16 %v2042
      %v2080 = vunpack.c.l.b16 %v2043
      %v2081 = vunpack.c.l.b16 %v2044
      %v2082 = vunpack.c.l.b16 %v2045
      %v2083 = vunpack.c.l.b16 %v2046
      %v2084 = vunpack.c.l.b16 %v2047
      %v2085 = vunpack.c.l.b16 %v2048
      %v2086 = vpack.c.b16 %v2071, %v2070
      %v2087 = vpack.c.b16 %v2073, %v2072
      %v2088 = vpack.c.b16 %v2075, %v2074
      %v2089 = vpack.c.b16 %v2077, %v2076
      %v2090 = vpack.c.b16 %v2079, %v2078
      %v2091 = vpack.c.b16 %v2081, %v2080
      %v2092 = vpack.c.b16 %v2083, %v2082
      %v2093 = vpack.c.b16 %v2085, %v2084
      %2102 = vmatpush.bf16.msra.mxu0 %v2093
      %2103 = vmatpush.bf16.msra.mxu0 %v2092
      %2104 = vmatpush.bf16.msra.mxu0 %v2091
      %2105 = vmatpush.bf16.msra.mxu0 %v2090
      %2106 = vmatpush.bf16.msra.mxu0 %v2089
      %2107 = vmatpush.bf16.msra.mxu0 %v2088
      %2108 = vmatpush.bf16.msra.mxu0 %v2087
      %2109 = vmatpush.bf16.msra.mxu0 %v2086
      %2110 = vmatmul.bf16.gmra.mxu0 %v2049
      %v2111 = vpop.f32.mrf.mxu0
      %v2112 = vadd.f32 %v2052, %v2111
      %v2113 = vpop.f32.mrf.mxu0
      %2114 = vdwg.mxu0
      %v2115 = vadd.f32 %v2112, %v1986
      %v2116 = vld [vmem:[%s21] sm:$0x1]
      %v2117 = vld [vmem:[%s22] sm:$0x1]
      %v2118 = vsel %vm877, %v2115, 0.0
      %2119 = vadd.xlane.f32.xlu0 %v2118
      %v2120 = vpop.xlane.xlu0 %2119
      %v2121 = vmul.f32 %v2120, %v1322
      %v2122 = vsub.f32 %v2115, %v2121
      %v2123 = vmul.f32 %v2122, %v2122
      %v2124 = vsel %vm877, %v2123, 0.0
      %2125 = vadd.xlane.f32.xlu0 %v2124
      %v2126 = vpop.xlane.xlu0 %2125
      %v2127 = vmul.f32 %v2126, %v1322
      %v2128 = vadd.f32 %v2127, 1e-12
      %v2129 = vrsqrt.pop %v2128
      %v2130 = vmul.f32 %v2129, %v2128
      %v2131 = vmul.f32 %v2130, %v2129
      %v2132 = vmul.f32 0.5, %v2131
      %v2133 = vsub.f32 1.5, %v2132
      %v2134 = vmul.f32 %v2129, %v2133
      %vm2135 = vweird.f32 %v2128
      %vm2136 = vweird.f32 %v2129
      %vm2137 = vmor %vm2135, %vm2136
      %v2138 = vsel %vm2137, %v2129, %v2134
      %v2139 = vmul.f32 %v2122, %v2138
      %v2141 = vperm.slane %v2116, 0
      %v2143 = vmul.f32 %v2139, %v2141
      %v2145 = vperm.slane %v2117, 0
      %v2147 = vadd.f32 %v2143, %v2145
      %v2148 = vpack.c.bf16 %v2147, %v2147
      %s2149 = scalar_lea.vmem %s3, 64
      %v2150 = vld [vmem:[%s2149] sm:$0xf]
      %v2151 = vld [vmem:[%s2149 + $0x4] sm:$0xf]
      %v2152 = vld [vmem:[%s2149 + $0x8] sm:$0xf]
      %v2153 = vld [vmem:[%s2149 + $0xc] sm:$0xf]
      %v2154 = vld [vmem:[%s2149 + $0x10] sm:$0xf]
      %v2155 = vld [vmem:[%s2149 + $0x14] sm:$0xf]
      %v2156 = vld [vmem:[%s2149 + $0x18] sm:$0xf]
      %v2157 = vld [vmem:[%s2149 + $0x1c] sm:$0xf]
      %v2158 = vld [vmem:[%s2149 + $0x20] sm:$0xf]
      %v2159 = vld [vmem:[%s2149 + $0x24] sm:$0xf]
      %v2160 = vld [vmem:[%s2149 + $0x28] sm:$0xf]
      %v2161 = vld [vmem:[%s2149 + $0x2c] sm:$0xf]
      %v2162 = vld [vmem:[%s2149 + $0x30] sm:$0xf]
      %v2163 = vld [vmem:[%s2149 + $0x34] sm:$0xf]
      %v2164 = vld [vmem:[%s2149 + $0x38] sm:$0xf]
      %v2165 = vld [vmem:[%s2149 + $0x3c] sm:$0xf]
      %s2166 = scalar_lea.vmem %s4, 4
      %v2167 = vld [vmem:[%s2166] sm:$0x1]
      %v2168 = vld [vmem:[%s2166 + $0x1] sm:$0x1]
      %v2169 = vld [vmem:[%s2166 + $0x2] sm:$0x1]
      %v2170 = vld [vmem:[%s2166 + $0x3] sm:$0x1]
      %v2175 = vperm.slane %v2167, 0
      %v2176 = vperm.slane %v2168, 0
      %v2177 = vperm.slane %v2169, 0
      %v2178 = vperm.slane %v2170, 0
      %v2187 = vunpack.c.l.b16 %v2150
      %v2188 = vunpack.c.l.b16 %v2151
      %v2189 = vunpack.c.l.b16 %v2152
      %v2190 = vunpack.c.l.b16 %v2153
      %v2191 = vpack.c.b16 %v2188, %v2187
      %v2192 = vpack.c.b16 %v2190, %v2189
      %v2196 = vsel %vm877, %v2148, 0
      %2198 = vmatpush.bf16.msra.mxu0 0
      %2199 = vmatpush.bf16.msra.mxu0 0
      %2200 = vmatpush.bf16.msra.mxu0 0
      %2201 = vmatpush.bf16.msra.mxu0 0
      %2202 = vmatpush.bf16.msra.mxu0 0
      %2203 = vmatpush.bf16.msra.mxu0 0
      %2204 = vmatpush.bf16.msra.mxu0 %v2192
      %2205 = vmatpush.bf16.msra.mxu0 %v2191
      %2206 = vmatmul.bf16.gmra.mxu0 %v2196
      %v2207 = vpop.f32.mrf.mxu0
      %v2208 = vadd.f32 %v2175, %v2207
      %v2209 = vpop.f32.mrf.mxu0
      %2210 = vdwg.mxu0
      %v2215 = vunpack.c.l.b16 %v2154
      %v2216 = vunpack.c.l.b16 %v2155
      %v2217 = vunpack.c.l.b16 %v2156
      %v2218 = vunpack.c.l.b16 %v2157
      %v2219 = vpack.c.b16 %v2216, %v2215
      %v2220 = vpack.c.b16 %v2218, %v2217
      %2223 = vmatpush.bf16.msra.mxu0 0
      %2224 = vmatpush.bf16.msra.mxu0 0
      %2225 = vmatpush.bf16.msra.mxu0 0
      %2226 = vmatpush.bf16.msra.mxu0 0
      %2227 = vmatpush.bf16.msra.mxu0 0
      %2228 = vmatpush.bf16.msra.mxu0 0
      %2229 = vmatpush.bf16.msra.mxu0 %v2220
      %2230 = vmatpush.bf16.msra.mxu0 %v2219
      %2231 = vmatmul.bf16.gmra.mxu0 %v2196
      %v2232 = vpop.f32.mrf.mxu0
      %v2233 = vadd.f32 %v2176, %v2232
      %v2234 = vpop.f32.mrf.mxu0
      %2235 = vdwg.mxu0
      %v2240 = vunpack.c.l.b16 %v2158
      %v2241 = vunpack.c.l.b16 %v2159
      %v2242 = vunpack.c.l.b16 %v2160
      %v2243 = vunpack.c.l.b16 %v2161
      %v2244 = vpack.c.b16 %v2241, %v2240
      %v2245 = vpack.c.b16 %v2243, %v2242
      %2248 = vmatpush.bf16.msra.mxu0 0
      %2249 = vmatpush.bf16.msra.mxu0 0
      %2250 = vmatpush.bf16.msra.mxu0 0
      %2251 = vmatpush.bf16.msra.mxu0 0
      %2252 = vmatpush.bf16.msra.mxu0 0
      %2253 = vmatpush.bf16.msra.mxu0 0
      %2254 = vmatpush.bf16.msra.mxu0 %v2245
      %2255 = vmatpush.bf16.msra.mxu0 %v2244
      %2256 = vmatmul.bf16.gmra.mxu0 %v2196
      %v2257 = vpop.f32.mrf.mxu0
      %v2258 = vadd.f32 %v2177, %v2257
      %v2259 = vpop.f32.mrf.mxu0
      %2260 = vdwg.mxu0
      %v2265 = vunpack.c.l.b16 %v2162
      %v2266 = vunpack.c.l.b16 %v2163
      %v2267 = vunpack.c.l.b16 %v2164
      %v2268 = vunpack.c.l.b16 %v2165
      %v2269 = vpack.c.b16 %v2266, %v2265
      %v2270 = vpack.c.b16 %v2268, %v2267
      %2273 = vmatpush.bf16.msra.mxu0 0
      %2274 = vmatpush.bf16.msra.mxu0 0
      %2275 = vmatpush.bf16.msra.mxu0 0
      %2276 = vmatpush.bf16.msra.mxu0 0
      %2277 = vmatpush.bf16.msra.mxu0 0
      %2278 = vmatpush.bf16.msra.mxu0 0
      %2279 = vmatpush.bf16.msra.mxu0 %v2270
      %2280 = vmatpush.bf16.msra.mxu0 %v2269
      %2281 = vmatmul.bf16.gmra.mxu0 %v2196
      %v2282 = vpop.f32.mrf.mxu0
      %v2283 = vadd.f32 %v2178, %v2282
      %v2284 = vpop.f32.mrf.mxu0
      %2285 = vdwg.mxu0
      %v2286 = vpack.c.bf16 %v2208, %v2208
      %v2287 = vpack.c.bf16 %v2233, %v2233
      %v2288 = vpack.c.bf16 %v2258, %v2258
      %v2289 = vpack.c.bf16 %v2283, %v2283
      %v2291 = vunpack.c.l.b16 %v2286
      %v2292 = vpack.c.b16 %v2291, %v2291
      %2293 = vrot.lane.b32.xlu0 %v2292, 120
      %v2294 = vpop.permute.xlu0 %2293
      %v2296 = vsel %vm978, %v2286, 0
      %v2299 = vsel %vm978, %v2294, 0
      %2301 = vmatpush.bf16.xpose.msra.mxu0 0
      %2302 = vmatpush.bf16.xpose.msra.mxu0 0
      %2303 = vmatpush.bf16.xpose.msra.mxu0 0
      %2304 = vmatpush.bf16.xpose.msra.mxu0 0
      %2305 = vmatpush.bf16.xpose.msra.mxu0 0
      %2306 = vmatpush.bf16.xpose.msra.mxu0 0
      %2307 = vmatpush.bf16.xpose.msra.mxu0 0
      %2308 = vmatpush.bf16.xpose.msra.mxu0 %v2299
      %2309 = vmatmul.bf16.gmra.mxu0 %v2296
      %v2310 = vpop.f32.mrf.mxu0
      %v2311 = vadd.f32 0.0, %v2310
      %v2312 = vpop.f32.mrf.mxu0
      %2313 = vdwg.mxu0
      %v2315 = vunpack.c.l.b16 %v2287
      %v2316 = vpack.c.b16 %v2315, %v2315
      %2317 = vrot.lane.b32.xlu0 %v2316, 120
      %v2318 = vpop.permute.xlu0 %2317
      %v2320 = vsel %vm978, %v2287, 0
      %v2323 = vsel %vm978, %v2318, 0
      %2325 = vmatpush.bf16.xpose.msra.mxu0 0
      %2326 = vmatpush.bf16.xpose.msra.mxu0 0
      %2327 = vmatpush.bf16.xpose.msra.mxu0 0
      %2328 = vmatpush.bf16.xpose.msra.mxu0 0
      %2329 = vmatpush.bf16.xpose.msra.mxu0 0
      %2330 = vmatpush.bf16.xpose.msra.mxu0 0
      %2331 = vmatpush.bf16.xpose.msra.mxu0 0
      %2332 = vmatpush.bf16.xpose.msra.mxu0 %v2323
      %2333 = vmatmul.bf16.gmra.mxu0 %v2320
      %v2334 = vpop.f32.mrf.mxu0
      %v2335 = vadd.f32 0.0, %v2334
      %v2336 = vpop.f32.mrf.mxu0
      %2337 = vdwg.mxu0
      %v2339 = vunpack.c.l.b16 %v2288
      %v2340 = vpack.c.b16 %v2339, %v2339
      %2341 = vrot.lane.b32.xlu0 %v2340, 120
      %v2342 = vpop.permute.xlu0 %2341
      %v2344 = vsel %vm978, %v2288, 0
      %v2347 = vsel %vm978, %v2342, 0
      %2349 = vmatpush.bf16.xpose.msra.mxu0 0
      %2350 = vmatpush.bf16.xpose.msra.mxu0 0
      %2351 = vmatpush.bf16.xpose.msra.mxu0 0
      %2352 = vmatpush.bf16.xpose.msra.mxu0 0
      %2353 = vmatpush.bf16.xpose.msra.mxu0 0
      %2354 = vmatpush.bf16.xpose.msra.mxu0 0
      %2355 = vmatpush.bf16.xpose.msra.mxu0 0
      %2356 = vmatpush.bf16.xpose.msra.mxu0 %v2347
      %2357 = vmatmul.bf16.gmra.mxu0 %v2344
      %v2358 = vpop.f32.mrf.mxu0
      %v2359 = vadd.f32 0.0, %v2358
      %v2360 = vpop.f32.mrf.mxu0
      %2361 = vdwg.mxu0
      %v2363 = vunpack.c.l.b16 %v2289
      %v2364 = vpack.c.b16 %v2363, %v2363
      %2365 = vrot.lane.b32.xlu0 %v2364, 120
      %v2366 = vpop.permute.xlu0 %2365
      %v2368 = vsel %vm978, %v2289, 0
      %v2371 = vsel %vm978, %v2366, 0
      %2373 = vmatpush.bf16.xpose.msra.mxu0 0
      %2374 = vmatpush.bf16.xpose.msra.mxu0 0
      %2375 = vmatpush.bf16.xpose.msra.mxu0 0
      %2376 = vmatpush.bf16.xpose.msra.mxu0 0
      %2377 = vmatpush.bf16.xpose.msra.mxu0 0
      %2378 = vmatpush.bf16.xpose.msra.mxu0 0
      %2379 = vmatpush.bf16.xpose.msra.mxu0 0
      %2380 = vmatpush.bf16.xpose.msra.mxu0 %v2371
      %2381 = vmatmul.bf16.gmra.mxu0 %v2368
      %v2382 = vpop.f32.mrf.mxu0
      %v2383 = vadd.f32 0.0, %v2382
      %v2384 = vpop.f32.mrf.mxu0
      %2385 = vdwg.mxu0
      %v2386 = vmul.f32 %v2311, 0.35355338
      %v2387 = vmul.f32 %v2335, 0.35355338
      %v2388 = vmul.f32 %v2359, 0.35355338
      %v2389 = vmul.f32 %v2383, 0.35355338
      %v2390 = vadd.f32 %v2386, %v1075
      %v2391 = vadd.f32 %v2387, %v1075
      %v2392 = vadd.f32 %v2388, %v1075
      %v2393 = vadd.f32 %v2389, %v1075
      %v2394 = vsel %vm978, %v2390, -inf
      %2395 = vmax.xlane.f32.xlu0 %v2394
      %v2396 = vpop.xlane.xlu0 %2395
      %v2397 = vsel %vm978, %v2391, -inf
      %2398 = vmax.xlane.f32.xlu0 %v2397
      %v2399 = vpop.xlane.xlu0 %2398
      %v2400 = vsel %vm978, %v2392, -inf
      %2401 = vmax.xlane.f32.xlu0 %v2400
      %v2402 = vpop.xlane.xlu0 %2401
      %v2403 = vsel %vm978, %v2393, -inf
      %2404 = vmax.xlane.f32.xlu0 %v2403
      %v2405 = vpop.xlane.xlu0 %2404
      %v2406 = vsub.f32 %v2390, %v2396
      %v2407 = vsub.f32 %v2391, %v2399
      %v2408 = vsub.f32 %v2392, %v2402
      %v2409 = vsub.f32 %v2393, %v2405
      %v2410 = vmul.f32 %v2406, 1.442695
      %v2411 = vpow.pop %v2410
      %v2412 = vmul.f32 %v2407, 1.442695
      %v2413 = vpow.pop %v2412
      %v2414 = vmul.f32 %v2408, 1.442695
      %v2415 = vpow.pop %v2414
      %v2416 = vmul.f32 %v2409, 1.442695
      %v2417 = vpow.pop %v2416
      %v2418 = vsel %vm978, %v2411, 0.0
      %2419 = vadd.xlane.f32.xlu0 %v2418
      %v2420 = vpop.xlane.xlu0 %2419
      %v2421 = vsel %vm978, %v2413, 0.0
      %2422 = vadd.xlane.f32.xlu0 %v2421
      %v2423 = vpop.xlane.xlu0 %2422
      %v2424 = vsel %vm978, %v2415, 0.0
      %2425 = vadd.xlane.f32.xlu0 %v2424
      %v2426 = vpop.xlane.xlu0 %2425
      %v2427 = vsel %vm978, %v2417, 0.0
      %2428 = vadd.xlane.f32.xlu0 %v2427
      %v2429 = vpop.xlane.xlu0 %2428
      %v2430 = vrcp.pop %v2420
      %v2431 = vrcp.pop %v2423
      %v2432 = vrcp.pop %v2426
      %v2433 = vrcp.pop %v2429
      %v2434 = vmul.f32 %v2411, %v2430
      %v2435 = vmul.f32 %v2413, %v2431
      %v2436 = vmul.f32 %v2415, %v2432
      %v2437 = vmul.f32 %v2417, %v2433
      %v2438 = vpack.c.bf16 %v2434, %v2434
      %v2439 = vpack.c.bf16 %v2435, %v2435
      %v2440 = vpack.c.bf16 %v2436, %v2436
      %v2441 = vpack.c.bf16 %v2437, %v2437
      %2442 = vrot.lane.b32.xlu0 %v2292, 112
      %v2443 = vpop.permute.xlu0 %2442
      %v2445 = vsel %vm978, %v2438, 0
      %v2448 = vsel %vm1134, %v2443, 0
      %2450 = vmatpush.bf16.msra.mxu0 0
      %2451 = vmatpush.bf16.msra.mxu0 0
      %2452 = vmatpush.bf16.msra.mxu0 0
      %2453 = vmatpush.bf16.msra.mxu0 0
      %2454 = vmatpush.bf16.msra.mxu0 0
      %2455 = vmatpush.bf16.msra.mxu0 0
      %2456 = vmatpush.bf16.msra.mxu0 0
      %2457 = vmatpush.bf16.msra.mxu0 %v2448
      %2458 = vmatmul.bf16.gmra.mxu0 %v2445
      %v2459 = vpop.f32.mrf.mxu0
      %v2460 = vadd.f32 0.0, %v2459
      %v2461 = vpop.f32.mrf.mxu0
      %2462 = vdwg.mxu0
      %2463 = vrot.lane.b32.xlu0 %v2316, 112
      %v2464 = vpop.permute.xlu0 %2463
      %v2466 = vsel %vm978, %v2439, 0
      %v2469 = vsel %vm1134, %v2464, 0
      %2471 = vmatpush.bf16.msra.mxu0 0
      %2472 = vmatpush.bf16.msra.mxu0 0
      %2473 = vmatpush.bf16.msra.mxu0 0
      %2474 = vmatpush.bf16.msra.mxu0 0
      %2475 = vmatpush.bf16.msra.mxu0 0
      %2476 = vmatpush.bf16.msra.mxu0 0
      %2477 = vmatpush.bf16.msra.mxu0 0
      %2478 = vmatpush.bf16.msra.mxu0 %v2469
      %2479 = vmatmul.bf16.gmra.mxu0 %v2466
      %v2480 = vpop.f32.mrf.mxu0
      %v2481 = vadd.f32 0.0, %v2480
      %v2482 = vpop.f32.mrf.mxu0
      %2483 = vdwg.mxu0
      %2484 = vrot.lane.b32.xlu0 %v2340, 112
      %v2485 = vpop.permute.xlu0 %2484
      %v2487 = vsel %vm978, %v2440, 0
      %v2490 = vsel %vm1134, %v2485, 0
      %2492 = vmatpush.bf16.msra.mxu0 0
      %2493 = vmatpush.bf16.msra.mxu0 0
      %2494 = vmatpush.bf16.msra.mxu0 0
      %2495 = vmatpush.bf16.msra.mxu0 0
      %2496 = vmatpush.bf16.msra.mxu0 0
      %2497 = vmatpush.bf16.msra.mxu0 0
      %2498 = vmatpush.bf16.msra.mxu0 0
      %2499 = vmatpush.bf16.msra.mxu0 %v2490
      %2500 = vmatmul.bf16.gmra.mxu0 %v2487
      %v2501 = vpop.f32.mrf.mxu0
      %v2502 = vadd.f32 0.0, %v2501
      %v2503 = vpop.f32.mrf.mxu0
      %2504 = vdwg.mxu0
      %2505 = vrot.lane.b32.xlu0 %v2364, 112
      %v2506 = vpop.permute.xlu0 %2505
      %v2508 = vsel %vm978, %v2441, 0
      %v2511 = vsel %vm1134, %v2506, 0
      %2513 = vmatpush.bf16.msra.mxu0 0
      %2514 = vmatpush.bf16.msra.mxu0 0
      %2515 = vmatpush.bf16.msra.mxu0 0
      %2516 = vmatpush.bf16.msra.mxu0 0
      %2517 = vmatpush.bf16.msra.mxu0 0
      %2518 = vmatpush.bf16.msra.mxu0 0
      %2519 = vmatpush.bf16.msra.mxu0 0
      %2520 = vmatpush.bf16.msra.mxu0 %v2511
      %2521 = vmatmul.bf16.gmra.mxu0 %v2508
      %v2522 = vpop.f32.mrf.mxu0
      %v2523 = vadd.f32 0.0, %v2522
      %v2524 = vpop.f32.mrf.mxu0
      %2525 = vdwg.mxu0
      %s2526 = scalar_lea.vmem %s5, 16
      %v2527 = vld [vmem:[%s2526] sm:$0xf]
      %v2528 = vld [vmem:[%s2526 + $0x4] sm:$0xf]
      %v2529 = vld [vmem:[%s2526 + $0x8] sm:$0xf]
      %v2530 = vld [vmem:[%s2526 + $0xc] sm:$0xf]
      %s2531 = scalar_lea.vmem %s6, 1
      %v2532 = vld [vmem:[%s2531] sm:$0x1]
      %v2533 = vpack.c.bf16 %v2460, %v2460
      %v2534 = vpack.c.bf16 %v2481, %v2481
      %v2535 = vpack.c.bf16 %v2502, %v2502
      %v2536 = vpack.c.bf16 %v2523, %v2523
      %v2538 = vsel %vm978, %v2533, 0
      %v2541 = vsel %vm1134, %v2527, 0
      %2543 = vmatpush.bf16.msra.mxu0 0
      %2544 = vmatpush.bf16.msra.mxu0 0
      %2545 = vmatpush.bf16.msra.mxu0 0
      %2546 = vmatpush.bf16.msra.mxu0 0
      %2547 = vmatpush.bf16.msra.mxu0 0
      %2548 = vmatpush.bf16.msra.mxu0 0
      %2549 = vmatpush.bf16.msra.mxu0 0
      %2550 = vmatpush.bf16.msra.mxu0 %v2541
      %2551 = vmatmul.bf16.gmra.mxu0 %v2538
      %v2552 = vpop.f32.mrf.mxu0
      %v2553 = vadd.f32 0.0, %v2552
      %v2554 = vpop.f32.mrf.mxu0
      %2555 = vdwg.mxu0
      %v2557 = vsel %vm978, %v2534, 0
      %v2560 = vsel %vm1134, %v2528, 0
      %2562 = vmatpush.bf16.msra.mxu0 0
      %2563 = vmatpush.bf16.msra.mxu0 0
      %2564 = vmatpush.bf16.msra.mxu0 0
      %2565 = vmatpush.bf16.msra.mxu0 0
      %2566 = vmatpush.bf16.msra.mxu0 0
      %2567 = vmatpush.bf16.msra.mxu0 0
      %2568 = vmatpush.bf16.msra.mxu0 0
      %2569 = vmatpush.bf16.msra.mxu0 %v2560
      %2570 = vmatmul.bf16.gmra.mxu0 %v2557
      %v2571 = vpop.f32.mrf.mxu0
      %v2572 = vadd.f32 0.0, %v2571
      %v2573 = vpop.f32.mrf.mxu0
      %2574 = vdwg.mxu0
      %v2576 = vsel %vm978, %v2535, 0
      %v2579 = vsel %vm1134, %v2529, 0
      %2581 = vmatpush.bf16.msra.mxu0 0
      %2582 = vmatpush.bf16.msra.mxu0 0
      %2583 = vmatpush.bf16.msra.mxu0 0
      %2584 = vmatpush.bf16.msra.mxu0 0
      %2585 = vmatpush.bf16.msra.mxu0 0
      %2586 = vmatpush.bf16.msra.mxu0 0
      %2587 = vmatpush.bf16.msra.mxu0 0
      %2588 = vmatpush.bf16.msra.mxu0 %v2579
      %2589 = vmatmul.bf16.gmra.mxu0 %v2576
      %v2590 = vpop.f32.mrf.mxu0
      %v2591 = vadd.f32 0.0, %v2590
      %v2592 = vpop.f32.mrf.mxu0
      %2593 = vdwg.mxu0
      %v2595 = vsel %vm978, %v2536, 0
      %v2598 = vsel %vm1134, %v2530, 0
      %2600 = vmatpush.bf16.msra.mxu0 0
      %2601 = vmatpush.bf16.msra.mxu0 0
      %2602 = vmatpush.bf16.msra.mxu0 0
      %2603 = vmatpush.bf16.msra.mxu0 0
      %2604 = vmatpush.bf16.msra.mxu0 0
      %2605 = vmatpush.bf16.msra.mxu0 0
      %2606 = vmatpush.bf16.msra.mxu0 0
      %2607 = vmatpush.bf16.msra.mxu0 %v2598
      %2608 = vmatmul.bf16.gmra.mxu0 %v2595
      %v2609 = vpop.f32.mrf.mxu0
      %v2610 = vadd.f32 0.0, %v2609
      %v2611 = vpop.f32.mrf.mxu0
      %2612 = vdwg.mxu0
      %v2613 = vsel %vm877, %v2553, 0.0
      %v2614 = vsel %vm877, %v2572, 0.0
      %v2615 = vadd.f32 %v2613, %v2614
      %v2616 = vsel %vm877, %v2591, 0.0
      %v2617 = vadd.f32 %v2615, %v2616
      %v2618 = vsel %vm877, %v2610, 0.0
      %v2619 = vadd.f32 %v2617, %v2618
      %v2621 = vperm.slane %v2532, 0
      %v2623 = vadd.f32 %v2619, %v2621
      %v2624 = vadd.f32 %v2623, %v2147
      %s2625 = scalar_lea.vmem %s7, 1
      %v2626 = vld [vmem:[%s2625] sm:$0x1]
      %s2627 = scalar_lea.vmem %s8, 1
      %v2628 = vld [vmem:[%s2627] sm:$0x1]
      %v2629 = vsel %vm877, %v2624, 0.0
      %2630 = vadd.xlane.f32.xlu0 %v2629
      %v2631 = vpop.xlane.xlu0 %2630
      %v2632 = vmul.f32 %v2631, %v1322
      %v2633 = vsub.f32 %v2624, %v2632
      %v2634 = vmul.f32 %v2633, %v2633
      %v2635 = vsel %vm877, %v2634, 0.0
      %2636 = vadd.xlane.f32.xlu0 %v2635
      %v2637 = vpop.xlane.xlu0 %2636
      %v2638 = vmul.f32 %v2637, %v1322
      %v2639 = vadd.f32 %v2638, 1e-12
      %v2640 = vrsqrt.pop %v2639
      %v2641 = vmul.f32 %v2640, %v2639
      %v2642 = vmul.f32 %v2641, %v2640
      %v2643 = vmul.f32 0.5, %v2642
      %v2644 = vsub.f32 1.5, %v2643
      %v2645 = vmul.f32 %v2640, %v2644
      %vm2646 = vweird.f32 %v2639
      %vm2647 = vweird.f32 %v2640
      %vm2648 = vmor %vm2646, %vm2647
      %v2649 = vsel %vm2648, %v2640, %v2645
      %v2650 = vmul.f32 %v2633, %v2649
      %v2652 = vperm.slane %v2626, 0
      %v2654 = vmul.f32 %v2650, %v2652
      %v2656 = vperm.slane %v2628, 0
      %v2658 = vadd.f32 %v2654, %v2656
      %v2659 = vpack.c.bf16 %v2658, %v2658
      %s2660 = scalar_lea.vmem %s9, 64
      %v2661 = vld [vmem:[%s2660] sm:$0xf]
      %v2662 = vld [vmem:[%s2660 + $0x4] sm:$0xf]
      %v2663 = vld [vmem:[%s2660 + $0x8] sm:$0xf]
      %v2664 = vld [vmem:[%s2660 + $0xc] sm:$0xf]
      %v2665 = vld [vmem:[%s2660 + $0x10] sm:$0xf]
      %v2666 = vld [vmem:[%s2660 + $0x14] sm:$0xf]
      %v2667 = vld [vmem:[%s2660 + $0x18] sm:$0xf]
      %v2668 = vld [vmem:[%s2660 + $0x1c] sm:$0xf]
      %v2669 = vld [vmem:[%s2660 + $0x20] sm:$0xf]
      %v2670 = vld [vmem:[%s2660 + $0x24] sm:$0xf]
      %v2671 = vld [vmem:[%s2660 + $0x28] sm:$0xf]
      %v2672 = vld [vmem:[%s2660 + $0x2c] sm:$0xf]
      %v2673 = vld [vmem:[%s2660 + $0x30] sm:$0xf]
      %v2674 = vld [vmem:[%s2660 + $0x34] sm:$0xf]
      %v2675 = vld [vmem:[%s2660 + $0x38] sm:$0xf]
      %v2676 = vld [vmem:[%s2660 + $0x3c] sm:$0xf]
      %s2677 = scalar_lea.vmem %s10, 4
      %v2678 = vld [vmem:[%s2677] sm:$0x1]
      %v2679 = vld [vmem:[%s2677 + $0x1] sm:$0x1]
      %v2680 = vld [vmem:[%s2677 + $0x2] sm:$0x1]
      %v2681 = vld [vmem:[%s2677 + $0x3] sm:$0x1]
      %v2686 = vperm.slane %v2678, 0
      %v2687 = vperm.slane %v2679, 0
      %v2688 = vperm.slane %v2680, 0
      %v2689 = vperm.slane %v2681, 0
      %v2698 = vunpack.c.l.b16 %v2661
      %v2699 = vunpack.c.l.b16 %v2662
      %v2700 = vunpack.c.l.b16 %v2663
      %v2701 = vunpack.c.l.b16 %v2664
      %v2702 = vpack.c.b16 %v2699, %v2698
      %v2703 = vpack.c.b16 %v2701, %v2700
      %v2707 = vsel %vm877, %v2659, 0
      %2709 = vmatpush.bf16.msra.mxu0 0
      %2710 = vmatpush.bf16.msra.mxu0 0
      %2711 = vmatpush.bf16.msra.mxu0 0
      %2712 = vmatpush.bf16.msra.mxu0 0
      %2713 = vmatpush.bf16.msra.mxu0 0
      %2714 = vmatpush.bf16.msra.mxu0 0
      %2715 = vmatpush.bf16.msra.mxu0 %v2703
      %2716 = vmatpush.bf16.msra.mxu0 %v2702
      %2717 = vmatmul.bf16.gmra.mxu0 %v2707
      %v2718 = vpop.f32.mrf.mxu0
      %v2719 = vadd.f32 %v2686, %v2718
      %v2720 = vpop.f32.mrf.mxu0
      %2721 = vdwg.mxu0
      %v2726 = vunpack.c.l.b16 %v2665
      %v2727 = vunpack.c.l.b16 %v2666
      %v2728 = vunpack.c.l.b16 %v2667
      %v2729 = vunpack.c.l.b16 %v2668
      %v2730 = vpack.c.b16 %v2727, %v2726
      %v2731 = vpack.c.b16 %v2729, %v2728
      %2734 = vmatpush.bf16.msra.mxu0 0
      %2735 = vmatpush.bf16.msra.mxu0 0
      %2736 = vmatpush.bf16.msra.mxu0 0
      %2737 = vmatpush.bf16.msra.mxu0 0
      %2738 = vmatpush.bf16.msra.mxu0 0
      %2739 = vmatpush.bf16.msra.mxu0 0
      %2740 = vmatpush.bf16.msra.mxu0 %v2731
      %2741 = vmatpush.bf16.msra.mxu0 %v2730
      %2742 = vmatmul.bf16.gmra.mxu0 %v2707
      %v2743 = vpop.f32.mrf.mxu0
      %v2744 = vadd.f32 %v2687, %v2743
      %v2745 = vpop.f32.mrf.mxu0
      %2746 = vdwg.mxu0
      %v2751 = vunpack.c.l.b16 %v2669
      %v2752 = vunpack.c.l.b16 %v2670
      %v2753 = vunpack.c.l.b16 %v2671
      %v2754 = vunpack.c.l.b16 %v2672
      %v2755 = vpack.c.b16 %v2752, %v2751
      %v2756 = vpack.c.b16 %v2754, %v2753
      %2759 = vmatpush.bf16.msra.mxu0 0
      %2760 = vmatpush.bf16.msra.mxu0 0
      %2761 = vmatpush.bf16.msra.mxu0 0
      %2762 = vmatpush.bf16.msra.mxu0 0
      %2763 = vmatpush.bf16.msra.mxu0 0
      %2764 = vmatpush.bf16.msra.mxu0 0
      %2765 = vmatpush.bf16.msra.mxu0 %v2756
      %2766 = vmatpush.bf16.msra.mxu0 %v2755
      %2767 = vmatmul.bf16.gmra.mxu0 %v2707
      %v2768 = vpop.f32.mrf.mxu0
      %v2769 = vadd.f32 %v2688, %v2768
      %v2770 = vpop.f32.mrf.mxu0
      %2771 = vdwg.mxu0
      %v2776 = vunpack.c.l.b16 %v2673
      %v2777 = vunpack.c.l.b16 %v2674
      %v2778 = vunpack.c.l.b16 %v2675
      %v2779 = vunpack.c.l.b16 %v2676
      %v2780 = vpack.c.b16 %v2777, %v2776
      %v2781 = vpack.c.b16 %v2779, %v2778
      %2784 = vmatpush.bf16.msra.mxu0 0
      %2785 = vmatpush.bf16.msra.mxu0 0
      %2786 = vmatpush.bf16.msra.mxu0 0
      %2787 = vmatpush.bf16.msra.mxu0 0
      %2788 = vmatpush.bf16.msra.mxu0 0
      %2789 = vmatpush.bf16.msra.mxu0 0
      %2790 = vmatpush.bf16.msra.mxu0 %v2781
      %2791 = vmatpush.bf16.msra.mxu0 %v2780
      %2792 = vmatmul.bf16.gmra.mxu0 %v2707
      %v2793 = vpop.f32.mrf.mxu0
      %v2794 = vadd.f32 %v2689, %v2793
      %v2795 = vpop.f32.mrf.mxu0
      %2796 = vdwg.mxu0
      %s2797 = scalar_lea.vmem %s11, 64
      %v2798 = vld [vmem:[%s2797] sm:$0xf]
      %v2799 = vld [vmem:[%s2797 + $0x4] sm:$0xf]
      %v2800 = vld [vmem:[%s2797 + $0x8] sm:$0xf]
      %v2801 = vld [vmem:[%s2797 + $0xc] sm:$0xf]
      %v2802 = vld [vmem:[%s2797 + $0x10] sm:$0xf]
      %v2803 = vld [vmem:[%s2797 + $0x14] sm:$0xf]
      %v2804 = vld [vmem:[%s2797 + $0x18] sm:$0xf]
      %v2805 = vld [vmem:[%s2797 + $0x1c] sm:$0xf]
      %v2806 = vld [vmem:[%s2797 + $0x20] sm:$0xf]
      %v2807 = vld [vmem:[%s2797 + $0x24] sm:$0xf]
      %v2808 = vld [vmem:[%s2797 + $0x28] sm:$0xf]
      %v2809 = vld [vmem:[%s2797 + $0x2c] sm:$0xf]
      %v2810 = vld [vmem:[%s2797 + $0x30] sm:$0xf]
      %v2811 = vld [vmem:[%s2797 + $0x34] sm:$0xf]
      %v2812 = vld [vmem:[%s2797 + $0x38] sm:$0xf]
      %v2813 = vld [vmem:[%s2797 + $0x3c] sm:$0xf]
      %s2814 = scalar_lea.vmem %s12, 4
      %v2815 = vld [vmem:[%s2814] sm:$0x1]
      %v2816 = vld [vmem:[%s2814 + $0x1] sm:$0x1]
      %v2817 = vld [vmem:[%s2814 + $0x2] sm:$0x1]
      %v2818 = vld [vmem:[%s2814 + $0x3] sm:$0x1]
      %v2823 = vperm.slane %v2815, 0
      %v2824 = vperm.slane %v2816, 0
      %v2825 = vperm.slane %v2817, 0
      %v2826 = vperm.slane %v2818, 0
      %v2835 = vunpack.c.l.b16 %v2798
      %v2836 = vunpack.c.l.b16 %v2799
      %v2837 = vunpack.c.l.b16 %v2800
      %v2838 = vunpack.c.l.b16 %v2801
      %v2839 = vpack.c.b16 %v2836, %v2835
      %v2840 = vpack.c.b16 %v2838, %v2837
      %2843 = vmatpush.bf16.msra.mxu0 0
      %2844 = vmatpush.bf16.msra.mxu0 0
      %2845 = vmatpush.bf16.msra.mxu0 0
      %2846 = vmatpush.bf16.msra.mxu0 0
      %2847 = vmatpush.bf16.msra.mxu0 0
      %2848 = vmatpush.bf16.msra.mxu0 0
      %2849 = vmatpush.bf16.msra.mxu0 %v2840
      %2850 = vmatpush.bf16.msra.mxu0 %v2839
      %2851 = vmatmul.bf16.gmra.mxu0 %v1531
      %v2852 = vpop.f32.mrf.mxu0
      %v2853 = vadd.f32 %v2823, %v2852
      %v2854 = vpop.f32.mrf.mxu0
      %2855 = vdwg.mxu0
      %v2860 = vunpack.c.l.b16 %v2802
      %v2861 = vunpack.c.l.b16 %v2803
      %v2862 = vunpack.c.l.b16 %v2804
      %v2863 = vunpack.c.l.b16 %v2805
      %v2864 = vpack.c.b16 %v2861, %v2860
      %v2865 = vpack.c.b16 %v2863, %v2862
      %2868 = vmatpush.bf16.msra.mxu0 0
      %2869 = vmatpush.bf16.msra.mxu0 0
      %2870 = vmatpush.bf16.msra.mxu0 0
      %2871 = vmatpush.bf16.msra.mxu0 0
      %2872 = vmatpush.bf16.msra.mxu0 0
      %2873 = vmatpush.bf16.msra.mxu0 0
      %2874 = vmatpush.bf16.msra.mxu0 %v2865
      %2875 = vmatpush.bf16.msra.mxu0 %v2864
      %2876 = vmatmul.bf16.gmra.mxu0 %v1531
      %v2877 = vpop.f32.mrf.mxu0
      %v2878 = vadd.f32 %v2824, %v2877
      %v2879 = vpop.f32.mrf.mxu0
      %2880 = vdwg.mxu0
      %v2885 = vunpack.c.l.b16 %v2806
      %v2886 = vunpack.c.l.b16 %v2807
      %v2887 = vunpack.c.l.b16 %v2808
      %v2888 = vunpack.c.l.b16 %v2809
      %v2889 = vpack.c.b16 %v2886, %v2885
      %v2890 = vpack.c.b16 %v2888, %v2887
      %2893 = vmatpush.bf16.msra.mxu0 0
      %2894 = vmatpush.bf16.msra.mxu0 0
      %2895 = vmatpush.bf16.msra.mxu0 0
      %2896 = vmatpush.bf16.msra.mxu0 0
      %2897 = vmatpush.bf16.msra.mxu0 0
      %2898 = vmatpush.bf16.msra.mxu0 0
      %2899 = vmatpush.bf16.msra.mxu0 %v2890
      %2900 = vmatpush.bf16.msra.mxu0 %v2889
      %2901 = vmatmul.bf16.gmra.mxu0 %v1531
      %v2902 = vpop.f32.mrf.mxu0
      %v2903 = vadd.f32 %v2825, %v2902
      %v2904 = vpop.f32.mrf.mxu0
      %2905 = vdwg.mxu0
      %v2910 = vunpack.c.l.b16 %v2810
      %v2911 = vunpack.c.l.b16 %v2811
      %v2912 = vunpack.c.l.b16 %v2812
      %v2913 = vunpack.c.l.b16 %v2813
      %v2914 = vpack.c.b16 %v2911, %v2910
      %v2915 = vpack.c.b16 %v2913, %v2912
      %2918 = vmatpush.bf16.msra.mxu0 0
      %2919 = vmatpush.bf16.msra.mxu0 0
      %2920 = vmatpush.bf16.msra.mxu0 0
      %2921 = vmatpush.bf16.msra.mxu0 0
      %2922 = vmatpush.bf16.msra.mxu0 0
      %2923 = vmatpush.bf16.msra.mxu0 0
      %2924 = vmatpush.bf16.msra.mxu0 %v2915
      %2925 = vmatpush.bf16.msra.mxu0 %v2914
      %2926 = vmatmul.bf16.gmra.mxu0 %v1531
      %v2927 = vpop.f32.mrf.mxu0
      %v2928 = vadd.f32 %v2826, %v2927
      %v2929 = vpop.f32.mrf.mxu0
      %2930 = vdwg.mxu0
      %v2931 = vpack.c.bf16 %v2853, %v2853
      %v2932 = vpack.c.bf16 %v2878, %v2878
      %v2933 = vpack.c.bf16 %v2903, %v2903
      %v2934 = vpack.c.bf16 %v2928, %v2928
      %v2935 = vpack.c.bf16 %v2719, %v2719
      %v2936 = vpack.c.bf16 %v2744, %v2744
      %v2937 = vpack.c.bf16 %v2769, %v2769
      %v2938 = vpack.c.bf16 %v2794, %v2794
      %v2940 = vsel %vm978, %v2935, 0
      %v2943 = vsel %vm978, %v2931, 0
      %2945 = vmatpush.bf16.xpose.msra.mxu0 0
      %2946 = vmatpush.bf16.xpose.msra.mxu0 0
      %2947 = vmatpush.bf16.xpose.msra.mxu0 0
      %2948 = vmatpush.bf16.xpose.msra.mxu0 0
      %2949 = vmatpush.bf16.xpose.msra.mxu0 0
      %2950 = vmatpush.bf16.xpose.msra.mxu0 0
      %2951 = vmatpush.bf16.xpose.msra.mxu0 0
      %2952 = vmatpush.bf16.xpose.msra.mxu0 %v2943
      %2953 = vmatmul.bf16.gmra.mxu0 %v2940
      %v2954 = vpop.f32.mrf.mxu0
      %v2955 = vadd.f32 0.0, %v2954
      %v2956 = vpop.f32.mrf.mxu0
      %2957 = vdwg.mxu0
      %v2959 = vsel %vm978, %v2936, 0
      %v2962 = vsel %vm978, %v2932, 0
      %2964 = vmatpush.bf16.xpose.msra.mxu0 0
      %2965 = vmatpush.bf16.xpose.msra.mxu0 0
      %2966 = vmatpush.bf16.xpose.msra.mxu0 0
      %2967 = vmatpush.bf16.xpose.msra.mxu0 0
      %2968 = vmatpush.bf16.xpose.msra.mxu0 0
      %2969 = vmatpush.bf16.xpose.msra.mxu0 0
      %2970 = vmatpush.bf16.xpose.msra.mxu0 0
      %2971 = vmatpush.bf16.xpose.msra.mxu0 %v2962
      %2972 = vmatmul.bf16.gmra.mxu0 %v2959
      %v2973 = vpop.f32.mrf.mxu0
      %v2974 = vadd.f32 0.0, %v2973
      %v2975 = vpop.f32.mrf.mxu0
      %2976 = vdwg.mxu0
      %v2978 = vsel %vm978, %v2937, 0
      %v2981 = vsel %vm978, %v2933, 0
      %2983 = vmatpush.bf16.xpose.msra.mxu0 0
      %2984 = vmatpush.bf16.xpose.msra.mxu0 0
      %2985 = vmatpush.bf16.xpose.msra.mxu0 0
      %2986 = vmatpush.bf16.xpose.msra.mxu0 0
      %2987 = vmatpush.bf16.xpose.msra.mxu0 0
      %2988 = vmatpush.bf16.xpose.msra.mxu0 0
      %2989 = vmatpush.bf16.xpose.msra.mxu0 0
      %2990 = vmatpush.bf16.xpose.msra.mxu0 %v2981
      %2991 = vmatmul.bf16.gmra.mxu0 %v2978
      %v2992 = vpop.f32.mrf.mxu0
      %v2993 = vadd.f32 0.0, %v2992
      %v2994 = vpop.f32.mrf.mxu0
      %2995 = vdwg.mxu0
      %v2997 = vsel %vm978, %v2938, 0
      %v3000 = vsel %vm978, %v2934, 0
      %3002 = vmatpush.bf16.xpose.msra.mxu0 0
      %3003 = vmatpush.bf16.xpose.msra.mxu0 0
      %3004 = vmatpush.bf16.xpose.msra.mxu0 0
      %3005 = vmatpush.bf16.xpose.msra.mxu0 0
      %3006 = vmatpush.bf16.xpose.msra.mxu0 0
      %3007 = vmatpush.bf16.xpose.msra.mxu0 0
      %3008 = vmatpush.bf16.xpose.msra.mxu0 0
      %3009 = vmatpush.bf16.xpose.msra.mxu0 %v3000
      %3010 = vmatmul.bf16.gmra.mxu0 %v2997
      %v3011 = vpop.f32.mrf.mxu0
      %v3012 = vadd.f32 0.0, %v3011
      %v3013 = vpop.f32.mrf.mxu0
      %3014 = vdwg.mxu0
      %v3015 = vmul.f32 %v2955, 0.35355338
      %v3016 = vmul.f32 %v2974, 0.35355338
      %v3017 = vmul.f32 %v2993, 0.35355338
      %v3018 = vmul.f32 %v3012, 0.35355338
      %v3019 = vsel %vm1709, %v3015, -inf
      %3020 = vmax.xlane.f32.xlu0 %v3019
      %v3021 = vpop.xlane.xlu0 %3020
      %v3022 = vsel %vm1709, %v3016, -inf
      %3023 = vmax.xlane.f32.xlu0 %v3022
      %v3024 = vpop.xlane.xlu0 %3023
      %v3025 = vsel %vm1709, %v3017, -inf
      %3026 = vmax.xlane.f32.xlu0 %v3025
      %v3027 = vpop.xlane.xlu0 %3026
      %v3028 = vsel %vm1709, %v3018, -inf
      %3029 = vmax.xlane.f32.xlu0 %v3028
      %v3030 = vpop.xlane.xlu0 %3029
      %v3031 = vsub.f32 %v3015, %v3021
      %v3032 = vsub.f32 %v3016, %v3024
      %v3033 = vsub.f32 %v3017, %v3027
      %v3034 = vsub.f32 %v3018, %v3030
      %v3035 = vmul.f32 %v3031, 1.442695
      %v3036 = vpow.pop %v3035
      %v3037 = vmul.f32 %v3032, 1.442695
      %v3038 = vpow.pop %v3037
      %v3039 = vmul.f32 %v3033, 1.442695
      %v3040 = vpow.pop %v3039
      %v3041 = vmul.f32 %v3034, 1.442695
      %v3042 = vpow.pop %v3041
      %v3043 = vsel %vm1709, %v3036, 0.0
      %3044 = vadd.xlane.f32.xlu0 %v3043
      %v3045 = vpop.xlane.xlu0 %3044
      %v3046 = vsel %vm1709, %v3038, 0.0
      %3047 = vadd.xlane.f32.xlu0 %v3046
      %v3048 = vpop.xlane.xlu0 %3047
      %v3049 = vsel %vm1709, %v3040, 0.0
      %3050 = vadd.xlane.f32.xlu0 %v3049
      %v3051 = vpop.xlane.xlu0 %3050
      %v3052 = vsel %vm1709, %v3042, 0.0
      %3053 = vadd.xlane.f32.xlu0 %v3052
      %v3054 = vpop.xlane.xlu0 %3053
      %v3055 = vrcp.pop %v3045
      %v3056 = vrcp.pop %v3048
      %v3057 = vrcp.pop %v3051
      %v3058 = vrcp.pop %v3054
      %v3059 = vmul.f32 %v3036, %v3055
      %v3060 = vmul.f32 %v3038, %v3056
      %v3061 = vmul.f32 %v3040, %v3057
      %v3062 = vmul.f32 %v3042, %v3058
      %v3063 = vpack.c.bf16 %v3059, %v3059
      %v3064 = vpack.c.bf16 %v3060, %v3060
      %v3065 = vpack.c.bf16 %v3061, %v3061
      %v3066 = vpack.c.bf16 %v3062, %v3062
      %v3068 = vunpack.c.l.b16 %v2931
      %v3069 = vpack.c.b16 %v3068, %v3068
      %3070 = vrot.lane.b32.xlu0 %v3069, 120
      %v3071 = vpop.permute.xlu0 %3070
      %v3073 = vsel %vm1709, %v3063, 0
      %v3076 = vand.u32 %v3071, %v1769
      %3078 = vmatpush.bf16.msra.mxu0 0
      %3079 = vmatpush.bf16.msra.mxu0 0
      %3080 = vmatpush.bf16.msra.mxu0 0
      %3081 = vmatpush.bf16.msra.mxu0 0
      %3082 = vmatpush.bf16.msra.mxu0 0
      %3083 = vmatpush.bf16.msra.mxu0 0
      %3084 = vmatpush.bf16.msra.mxu0 0
      %3085 = vmatpush.bf16.msra.mxu0 %v3076
      %3086 = vmatmul.bf16.gmra.mxu0 %v3073
      %v3087 = vpop.f32.mrf.mxu0
      %v3088 = vadd.f32 0.0, %v3087
      %v3089 = vpop.f32.mrf.mxu0
      %3090 = vdwg.mxu0
      %v3092 = vunpack.c.l.b16 %v2932
      %v3093 = vpack.c.b16 %v3092, %v3092
      %3094 = vrot.lane.b32.xlu0 %v3093, 120
      %v3095 = vpop.permute.xlu0 %3094
      %v3097 = vsel %vm1709, %v3064, 0
      %v3100 = vand.u32 %v3095, %v1769
      %3102 = vmatpush.bf16.msra.mxu0 0
      %3103 = vmatpush.bf16.msra.mxu0 0
      %3104 = vmatpush.bf16.msra.mxu0 0
      %3105 = vmatpush.bf16.msra.mxu0 0
      %3106 = vmatpush.bf16.msra.mxu0 0
      %3107 = vmatpush.bf16.msra.mxu0 0
      %3108 = vmatpush.bf16.msra.mxu0 0
      %3109 = vmatpush.bf16.msra.mxu0 %v3100
      %3110 = vmatmul.bf16.gmra.mxu0 %v3097
      %v3111 = vpop.f32.mrf.mxu0
      %v3112 = vadd.f32 0.0, %v3111
      %v3113 = vpop.f32.mrf.mxu0
      %3114 = vdwg.mxu0
      %v3116 = vunpack.c.l.b16 %v2933
      %v3117 = vpack.c.b16 %v3116, %v3116
      %3118 = vrot.lane.b32.xlu0 %v3117, 120
      %v3119 = vpop.permute.xlu0 %3118
      %v3121 = vsel %vm1709, %v3065, 0
      %v3124 = vand.u32 %v3119, %v1769
      %3126 = vmatpush.bf16.msra.mxu0 0
      %3127 = vmatpush.bf16.msra.mxu0 0
      %3128 = vmatpush.bf16.msra.mxu0 0
      %3129 = vmatpush.bf16.msra.mxu0 0
      %3130 = vmatpush.bf16.msra.mxu0 0
      %3131 = vmatpush.bf16.msra.mxu0 0
      %3132 = vmatpush.bf16.msra.mxu0 0
      %3133 = vmatpush.bf16.msra.mxu0 %v3124
      %3134 = vmatmul.bf16.gmra.mxu0 %v3121
      %v3135 = vpop.f32.mrf.mxu0
      %v3136 = vadd.f32 0.0, %v3135
      %v3137 = vpop.f32.mrf.mxu0
      %3138 = vdwg.mxu0
      %v3140 = vunpack.c.l.b16 %v2934
      %v3141 = vpack.c.b16 %v3140, %v3140
      %3142 = vrot.lane.b32.xlu0 %v3141, 120
      %v3143 = vpop.permute.xlu0 %3142
      %v3145 = vsel %vm1709, %v3066, 0
      %v3148 = vand.u32 %v3143, %v1769
      %3150 = vmatpush.bf16.msra.mxu0 0
      %3151 = vmatpush.bf16.msra.mxu0 0
      %3152 = vmatpush.bf16.msra.mxu0 0
      %3153 = vmatpush.bf16.msra.mxu0 0
      %3154 = vmatpush.bf16.msra.mxu0 0
      %3155 = vmatpush.bf16.msra.mxu0 0
      %3156 = vmatpush.bf16.msra.mxu0 0
      %3157 = vmatpush.bf16.msra.mxu0 %v3148
      %3158 = vmatmul.bf16.gmra.mxu0 %v3145
      %v3159 = vpop.f32.mrf.mxu0
      %v3160 = vadd.f32 0.0, %v3159
      %v3161 = vpop.f32.mrf.mxu0
      %3162 = vdwg.mxu0
      %s3163 = scalar_lea.vmem %s13, 16
      %v3164 = vld [vmem:[%s3163] sm:$0xf]
      %v3165 = vld [vmem:[%s3163 + $0x4] sm:$0xf]
      %v3166 = vld [vmem:[%s3163 + $0x8] sm:$0xf]
      %v3167 = vld [vmem:[%s3163 + $0xc] sm:$0xf]
      %s3168 = scalar_lea.vmem %s14, 1
      %v3169 = vld [vmem:[%s3168] sm:$0x1]
      %v3170 = vpack.c.bf16 %v3088, %v3088
      %v3171 = vpack.c.bf16 %v3112, %v3112
      %v3172 = vpack.c.bf16 %v3136, %v3136
      %v3173 = vpack.c.bf16 %v3160, %v3160
      %v3175 = vsel %vm978, %v3170, 0
      %v3178 = vsel %vm1134, %v3164, 0
      %3180 = vmatpush.bf16.msra.mxu0 0
      %3181 = vmatpush.bf16.msra.mxu0 0
      %3182 = vmatpush.bf16.msra.mxu0 0
      %3183 = vmatpush.bf16.msra.mxu0 0
      %3184 = vmatpush.bf16.msra.mxu0 0
      %3185 = vmatpush.bf16.msra.mxu0 0
      %3186 = vmatpush.bf16.msra.mxu0 0
      %3187 = vmatpush.bf16.msra.mxu0 %v3178
      %3188 = vmatmul.bf16.gmra.mxu0 %v3175
      %v3189 = vpop.f32.mrf.mxu0
      %v3190 = vadd.f32 0.0, %v3189
      %v3191 = vpop.f32.mrf.mxu0
      %3192 = vdwg.mxu0
      %v3194 = vsel %vm978, %v3171, 0
      %v3197 = vsel %vm1134, %v3165, 0
      %3199 = vmatpush.bf16.msra.mxu0 0
      %3200 = vmatpush.bf16.msra.mxu0 0
      %3201 = vmatpush.bf16.msra.mxu0 0
      %3202 = vmatpush.bf16.msra.mxu0 0
      %3203 = vmatpush.bf16.msra.mxu0 0
      %3204 = vmatpush.bf16.msra.mxu0 0
      %3205 = vmatpush.bf16.msra.mxu0 0
      %3206 = vmatpush.bf16.msra.mxu0 %v3197
      %3207 = vmatmul.bf16.gmra.mxu0 %v3194
      %v3208 = vpop.f32.mrf.mxu0
      %v3209 = vadd.f32 0.0, %v3208
      %v3210 = vpop.f32.mrf.mxu0
      %3211 = vdwg.mxu0
      %v3213 = vsel %vm978, %v3172, 0
      %v3216 = vsel %vm1134, %v3166, 0
      %3218 = vmatpush.bf16.msra.mxu0 0
      %3219 = vmatpush.bf16.msra.mxu0 0
      %3220 = vmatpush.bf16.msra.mxu0 0
      %3221 = vmatpush.bf16.msra.mxu0 0
      %3222 = vmatpush.bf16.msra.mxu0 0
      %3223 = vmatpush.bf16.msra.mxu0 0
      %3224 = vmatpush.bf16.msra.mxu0 0
      %3225 = vmatpush.bf16.msra.mxu0 %v3216
      %3226 = vmatmul.bf16.gmra.mxu0 %v3213
      %v3227 = vpop.f32.mrf.mxu0
      %v3228 = vadd.f32 0.0, %v3227
      %v3229 = vpop.f32.mrf.mxu0
      %3230 = vdwg.mxu0
      %v3232 = vsel %vm978, %v3173, 0
      %v3235 = vsel %vm1134, %v3167, 0
      %3237 = vmatpush.bf16.msra.mxu0 0
      %3238 = vmatpush.bf16.msra.mxu0 0
      %3239 = vmatpush.bf16.msra.mxu0 0
      %3240 = vmatpush.bf16.msra.mxu0 0
      %3241 = vmatpush.bf16.msra.mxu0 0
      %3242 = vmatpush.bf16.msra.mxu0 0
      %3243 = vmatpush.bf16.msra.mxu0 0
      %3244 = vmatpush.bf16.msra.mxu0 %v3235
      %3245 = vmatmul.bf16.gmra.mxu0 %v3232
      %v3246 = vpop.f32.mrf.mxu0
      %v3247 = vadd.f32 0.0, %v3246
      %v3248 = vpop.f32.mrf.mxu0
      %3249 = vdwg.mxu0
      %v3250 = vsel %vm877, %v3190, 0.0
      %v3251 = vsel %vm877, %v3209, 0.0
      %v3252 = vadd.f32 %v3250, %v3251
      %v3253 = vsel %vm877, %v3228, 0.0
      %v3254 = vadd.f32 %v3252, %v3253
      %v3255 = vsel %vm877, %v3247, 0.0
      %v3256 = vadd.f32 %v3254, %v3255
      %v3258 = vperm.slane %v3169, 0
      %v3260 = vadd.f32 %v3256, %v3258
      %v3261 = vadd.f32 %v3260, %v2658
      %s3262 = scalar_lea.vmem %s15, 1
      %v3263 = vld [vmem:[%s3262] sm:$0x1]
      %s3264 = scalar_lea.vmem %s16, 1
      %v3265 = vld [vmem:[%s3264] sm:$0x1]
      %v3266 = vsel %vm877, %v3261, 0.0
      %3267 = vadd.xlane.f32.xlu0 %v3266
      %v3268 = vpop.xlane.xlu0 %3267
      %v3269 = vmul.f32 %v3268, %v1322
      %v3270 = vsub.f32 %v3261, %v3269
      %v3271 = vmul.f32 %v3270, %v3270
      %v3272 = vsel %vm877, %v3271, 0.0
      %3273 = vadd.xlane.f32.xlu0 %v3272
      %v3274 = vpop.xlane.xlu0 %3273
      %v3275 = vmul.f32 %v3274, %v1322
      %v3276 = vadd.f32 %v3275, 1e-12
      %v3277 = vrsqrt.pop %v3276
      %v3278 = vmul.f32 %v3277, %v3276
      %v3279 = vmul.f32 %v3278, %v3277
      %v3280 = vmul.f32 0.5, %v3279
      %v3281 = vsub.f32 1.5, %v3280
      %v3282 = vmul.f32 %v3277, %v3281
      %vm3283 = vweird.f32 %v3276
      %vm3284 = vweird.f32 %v3277
      %vm3285 = vmor %vm3283, %vm3284
      %v3286 = vsel %vm3285, %v3277, %v3282
      %v3287 = vmul.f32 %v3270, %v3286
      %v3289 = vperm.slane %v3263, 0
      %v3291 = vmul.f32 %v3287, %v3289
      %v3293 = vperm.slane %v3265, 0
      %v3295 = vadd.f32 %v3291, %v3293
      %s3296 = scalar_lea.vmem %s17, 16
      %v3297 = vld [vmem:[%s3296] sm:$0xf]
      %v3298 = vld [vmem:[%s3296 + $0x4] sm:$0xf]
      %v3299 = vld [vmem:[%s3296 + $0x8] sm:$0xf]
      %v3300 = vld [vmem:[%s3296 + $0xc] sm:$0xf]
      %v3301 = vpack.c.bf16 %v3295, %v3295
      %s3302 = scalar_lea.vmem %s18, 1
      %v3303 = vld [vmem:[%s3302] sm:$0x1]
      %v3305 = vperm.slane %v3303, 0
      %v3311 = vunpack.c.l.b16 %v3297
      %v3312 = vunpack.c.l.b16 %v3298
      %v3313 = vunpack.c.l.b16 %v3299
      %v3314 = vunpack.c.l.b16 %v3300
      %v3315 = vpack.c.b16 %v3312, %v3311
      %v3316 = vpack.c.b16 %v3314, %v3313
      %v3320 = vsel %vm877, %v3301, 0
      %3322 = vmatpush.bf16.msra.mxu0 0
      %3323 = vmatpush.bf16.msra.mxu0 0
      %3324 = vmatpush.bf16.msra.mxu0 0
      %3325 = vmatpush.bf16.msra.mxu0 0
      %3326 = vmatpush.bf16.msra.mxu0 0
      %3327 = vmatpush.bf16.msra.mxu0 0
      %3328 = vmatpush.bf16.msra.mxu0 %v3316
      %3329 = vmatpush.bf16.msra.mxu0 %v3315
      %3330 = vmatmul.bf16.gmra.mxu0 %v3320
      %v3331 = vpop.f32.mrf.mxu0
      %v3332 = vadd.f32 %v3305, %v3331
      %v3333 = vpop.f32.mrf.mxu0
      %3334 = vdwg.mxu0
      %v3335 = vmul.f32 %v3332, %v3332
      %v3336 = vmul.f32 %v3332, %v3335
      %v3337 = vmul.f32 %v3336, 0.044715
      %v3338 = vadd.f32 %v3332, %v3337
      %v3339 = vmul.f32 %v3338, 0.7978846
      %v3340 = vtanh.pop %v3339
      %v3341 = vadd.f32 %v3340, 1.0
      %v3342 = vmul.f32 %v3341, 0.5
      %v3343 = vmul.f32 %v3332, %v3342
      %s3344 = scalar_lea.vmem %s19, 64
      %v3345 = vld [vmem:[%s3344] sm:$0xf]
      %v3346 = vld [vmem:[%s3344 + $0x4] sm:$0xf]
      %v3347 = vld [vmem:[%s3344 + $0x8] sm:$0xf]
      %v3348 = vld [vmem:[%s3344 + $0xc] sm:$0xf]
      %v3349 = vld [vmem:[%s3344 + $0x10] sm:$0xf]
      %v3350 = vld [vmem:[%s3344 + $0x14] sm:$0xf]
      %v3351 = vld [vmem:[%s3344 + $0x18] sm:$0xf]
      %v3352 = vld [vmem:[%s3344 + $0x1c] sm:$0xf]
      %v3353 = vld [vmem:[%s3344 + $0x20] sm:$0xf]
      %v3354 = vld [vmem:[%s3344 + $0x24] sm:$0xf]
      %v3355 = vld [vmem:[%s3344 + $0x28] sm:$0xf]
      %v3356 = vld [vmem:[%s3344 + $0x2c] sm:$0xf]
      %v3357 = vld [vmem:[%s3344 + $0x30] sm:$0xf]
      %v3358 = vld [vmem:[%s3344 + $0x34] sm:$0xf]
      %v3359 = vld [vmem:[%s3344 + $0x38] sm:$0xf]
      %v3360 = vld [vmem:[%s3344 + $0x3c] sm:$0xf]
      %v3361 = vpack.c.bf16 %v3343, %v3343
      %s3362 = scalar_lea.vmem %s20, 1
      %v3363 = vld [vmem:[%s3362] sm:$0x1]
      %v3365 = vperm.slane %v3363, 0
      %v3383 = vunpack.c.l.b16 %v3345
      %v3384 = vunpack.c.l.b16 %v3346
      %v3385 = vunpack.c.l.b16 %v3347
      %v3386 = vunpack.c.l.b16 %v3348
      %v3387 = vunpack.c.l.b16 %v3349
      %v3388 = vunpack.c.l.b16 %v3350
      %v3389 = vunpack.c.l.b16 %v3351
      %v3390 = vunpack.c.l.b16 %v3352
      %v3391 = vunpack.c.l.b16 %v3353
      %v3392 = vunpack.c.l.b16 %v3354
      %v3393 = vunpack.c.l.b16 %v3355
      %v3394 = vunpack.c.l.b16 %v3356
      %v3395 = vunpack.c.l.b16 %v3357
      %v3396 = vunpack.c.l.b16 %v3358
      %v3397 = vunpack.c.l.b16 %v3359
      %v3398 = vunpack.c.l.b16 %v3360
      %v3399 = vpack.c.b16 %v3384, %v3383
      %v3400 = vpack.c.b16 %v3386, %v3385
      %v3401 = vpack.c.b16 %v3388, %v3387
      %v3402 = vpack.c.b16 %v3390, %v3389
      %v3403 = vpack.c.b16 %v3392, %v3391
      %v3404 = vpack.c.b16 %v3394, %v3393
      %v3405 = vpack.c.b16 %v3396, %v3395
      %v3406 = vpack.c.b16 %v3398, %v3397
      %3415 = vmatpush.bf16.msra.mxu0 %v3406
      %3416 = vmatpush.bf16.msra.mxu0 %v3405
      %3417 = vmatpush.bf16.msra.mxu0 %v3404
      %3418 = vmatpush.bf16.msra.mxu0 %v3403
      %3419 = vmatpush.bf16.msra.mxu0 %v3402
      %3420 = vmatpush.bf16.msra.mxu0 %v3401
      %3421 = vmatpush.bf16.msra.mxu0 %v3400
      %3422 = vmatpush.bf16.msra.mxu0 %v3399
      %3423 = vmatmul.bf16.gmra.mxu0 %v3361
      %v3424 = vpop.f32.mrf.mxu0
      %v3425 = vadd.f32 %v3365, %v3424
      %v3426 = vpop.f32.mrf.mxu0
      %3427 = vdwg.mxu0
      %v3428 = vadd.f32 %v3425, %v3295
      %s3429 = scalar_lea.vmem %s21, 1
      %v3430 = vld [vmem:[%s3429] sm:$0x1]
      %s3431 = scalar_lea.vmem %s22, 1
      %v3432 = vld [vmem:[%s3431] sm:$0x1]
      %v3433 = vsel %vm877, %v3428, 0.0
      %3434 = vadd.xlane.f32.xlu0 %v3433
      %v3435 = vpop.xlane.xlu0 %3434
      %v3436 = vmul.f32 %v3435, %v1322
      %v3437 = vsub.f32 %v3428, %v3436
      %v3438 = vmul.f32 %v3437, %v3437
      %v3439 = vsel %vm877, %v3438, 0.0
      %3440 = vadd.xlane.f32.xlu0 %v3439
      %v3441 = vpop.xlane.xlu0 %3440
      %v3442 = vmul.f32 %v3441, %v1322
      %v3443 = vadd.f32 %v3442, 1e-12
      %v3444 = vrsqrt.pop %v3443
      %v3445 = vmul.f32 %v3444, %v3443
      %v3446 = vmul.f32 %v3445, %v3444
      %v3447 = vmul.f32 0.5, %v3446
      %v3448 = vsub.f32 1.5, %v3447
      %v3449 = vmul.f32 %v3444, %v3448
      %vm3450 = vweird.f32 %v3443
      %vm3451 = vweird.f32 %v3444
      %vm3452 = vmor %vm3450, %vm3451
      %v3453 = vsel %vm3452, %v3444, %v3449
      %v3454 = vmul.f32 %v3437, %v3453
      %v3456 = vperm.slane %v3430, 0
      %v3458 = vmul.f32 %v3454, %v3456
      %v3460 = vperm.slane %v3432, 0
      %v3462 = vadd.f32 %v3458, %v3460
      %v3463 = vld [vmem:[%s23] sm:$0xff]
      %v3464 = vld [vmem:[%s23 + $0x8] sm:$0xff]
      %v3465 = vld [vmem:[%s23 + $0x10] sm:$0xff]
      %v3466 = vld [vmem:[%s23 + $0x18] sm:$0xff]
      %v3467 = vld [vmem:[%s24] sm:$0x1]
      %v3469 = vsel %vm877, %v3462, 0
      %3471 = vmatpush.msra.mxu0 0.0
      %3472 = vmatpush.msra.mxu0 0.0
      %3473 = vmatpush.msra.mxu0 0.0
      %3474 = vmatpush.msra.mxu0 0.0
      %3475 = vmatpush.msra.mxu0 0.0
      %3476 = vmatpush.msra.mxu0 0.0
      %3477 = vmatpush.msra.mxu0 0.0
      %3478 = vmatpush.msra.mxu0 0.0
      %3479 = vmatpush.msra.mxu0 0.0
      %3480 = vmatpush.msra.mxu0 0.0
      %3481 = vmatpush.msra.mxu0 0.0
      %3482 = vmatpush.msra.mxu0 0.0
      %3483 = vmatpush.msra.mxu0 %v3466
      %3484 = vmatpush.msra.mxu0 %v3465
      %3485 = vmatpush.msra.mxu0 %v3464
      %3486 = vmatpush.msra.mxu0 %v3463
      %3487 = vmatmul.f32.gmra.mxu0 %v3469
      %v3488 = vpop.f32.mrf.mxu0
      %v3489 = vadd.f32 %v3467, %v3488
      %3490 = vdwg.mxu0
      %vm3491 = vcmask 8192
      %v3492 = vsel %vm3491, %v3489, -inf
      %3493 = vmax.xlane.f32.xlu0 %v3492
      %v3494 = vpop.xlane.xlu0 %3493
      %v3495 = vsub.f32 %v3489, %v3494
      %v3496 = vmul.f32 %v3495, 1.442695
      %v3497 = vpow.pop %v3496
      %v3498 = vsel %vm3491, %v3497, 0.0
      %3499 = vadd.xlane.f32.xlu0 %v3498
      %v3500 = vpop.xlane.xlu0 %3499
      %v3501 = vlog2.pop %v3500
      %v3502 = vmul.f32 %v3501, 0.6931472
      %v3503 = vadd.f32 %v3502, %v3494
      %v3504 = vsub.f32 %v3489, %v3503
      %p3505 = scmp.lt.s32.totalorder %s38, 2
      %s3506 = scalar_select %p3505, 1, 0
      %v3507 = vlaneseq
      %v3508 = vand.u32 %v3507, 127
      %v3509 = vstv %s3506
      %vm3510 = vcmp.eq.s32.totalorder %v3508, %v3509
      %v3511 = vsel %vm3510, 1, 0
      %v3512 = vcvt.s32.f32 %v3511
      %v3513 = vmul.f32 %v3504, %v3512
      %v3514 = vsel %vm3491, %v3513, 0.0
      %3515 = vadd.xlane.f32.xlu0 %v3514
      %v3516 = vpop.xlane.xlu0 %3515
      %v3517 = vsub.f32 0.0, %v3516
      %3518 = vst.msk [vmem:[%s821] sm:$0x1] %vm3491, %v3489
      %vm3519 = vcmask 0
      %3520 = vst.msk [vmem:[%s824] sm:$0x1] %vm3519, %v3517
      %p3521 = scmp.lt.s32.totalorder %s38, 5
      %s3522 = scalar_select %p3521, %s38, 5
      %s3523 = scalar_lea.vmem %s25, %s3522
      %p3524 = scmp.lt.s32.totalorder %s38, 5
      %s3525 = scalar_select %p3524, %s38, 5
      %s3526 = scalar_lea.vmem %s26, %s3525
      // Predicated region
      $region121: #{albef_forward_train.7} parent=119 // pred_check
        %p3527 = pneg %p596
      $region122: #{albef_forward_train.7} parent=119 // pred_check_branch
        %3529 = sbr.rel (%p3527) target = $region124
      $region123: #{albef_forward_train.7} parent=119 // pred_region
        _
      $region124: #{albef_forward_train.7} parent=119 // pred_fallthru
        _
      // Predicated region
      $region125: #{albef_forward_train.7} parent=119 // pred_check
        %p3530 = pneg %p622
      $region126: #{albef_forward_train.7} parent=119 // pred_check_branch
        %3532 = sbr.rel (%p3530) target = $region128
      $region127: #{albef_forward_train.7} parent=119 // pred_region
        _
      $region128: #{albef_forward_train.7} parent=119 // pred_fallthru
        _
    $region120: #{albef_forward_train.7} parent=5 // pred_fallthru
      _
    %p3533 = scmp.le.s32.totalorder 2, %s33
    // Predicated region
    $region129: #{albef_forward_train.7} parent=5 // pred_check
      %p3534 = pneg %p3533
    $region130: #{albef_forward_train.7} parent=5 // pred_check_branch
      %3536 = sbr.rel (%p3534) target = $region132
    $region131: #{albef_forward_train.7} parent=5 // pred_region
      %s3537 = ssub.s32 %s33, 2
      // Predicated region
      $region133: #{albef_forward_train.7} parent=131 // pred_check
        %p3538 = pneg %p602
      $region134: #{albef_forward_train.7} parent=131 // pred_check_branch
        %3540 = sbr.rel (%p3538) target = $region136
      $region135: #{albef_forward_train.7} parent=131 // pred_region
        %p3541 = scmp.lt.s32.totalorder %s39, 5
        %s3542 = scalar_select %p3541, %s39, 5
        %s3543 = scalar_lea.vmem %s25, %s3542
      $region136: #{albef_forward_train.7} parent=131 // pred_fallthru
        _
      // Predicated region
      $region137: #{albef_forward_train.7} parent=131 // pred_check
        %p3544 = pneg %p628
      $region138: #{albef_forward_train.7} parent=131 // pred_check_branch
        %3546 = sbr.rel (%p3544) target = $region140
      $region139: #{albef_forward_train.7} parent=131 // pred_region
        %p3547 = scmp.lt.s32.totalorder %s39, 5
        %s3548 = scalar_select %p3547, %s39, 5
        %s3549 = scalar_lea.vmem %s26, %s3548
      $region140: #{albef_forward_train.7} parent=131 // pred_fallthru
        _
    $region132: #{albef_forward_train.7} parent=5 // pred_fallthru
      _
  $region6: #{albef_forward_train.7} parent=0 // loop_footer
    %s37 = sadd.s32 1, %s33
  $region7: #{albef_forward_train.7} parent=0 // loop_footer_branch
    %32 = sbr.rel target = $region3
  $region8: #{albef_forward_train.7} parent=0 // loop_exit
    _

</llo_original>
